<compile_context>
chip_gen: v7x
topology: tpu7x:2x2x1
jax: 0.10.0
libtpu: 0.0.40
codegen_flags: <defaults>
</compile_context>

<pallas_src>
import jax
import jax.numpy as jnp
from jax.experimental import pallas as pl
from jax.experimental.pallas import tpu as pltpu

# encoder + decoder layer widths (PyTorch module definition)
DIMS = [784, 128, 64, 32, 16, 3, 16, 32, 64, 128, 784]
N_LAYERS = len(DIMS) - 1        # 10 Linear layers
BOTTLENECK_LAYER = 4            # Linear(16, 3): encoder output, NO activation
BIAS_ROWS = 16                  # bias pack rows (>= N_LAYERS, sublane-aligned)
MAX_BM = 512                    # target batch tile (review: 512-1024)


def autoencoder_kernel(x_ref, *rest):
    """rest = (w0_ref, ..., w9_ref, bias_ref, out_ref).

    Weights are bf16 (in, out); biases are packed into one f32
    [BIAS_ROWS, 784] array (row l = bias of layer l, zero-padded on the right).
    """
    w_refs = rest[:N_LAYERS]
    bias_ref = rest[N_LAYERS]
    out_ref = rest[N_LAYERS + 1]

    h = x_ref[...].astype(jnp.bfloat16)                  # (BM, 784) bf16

    for layer in range(N_LAYERS):
        d_out = DIMS[layer + 1]
        acc = jnp.dot(h, w_refs[layer][...],             # bf16 x bf16 -> f32 (MXU)
                      preferred_element_type=jnp.float32)
        # Static per-layer bias slice from VMEM (keeps vreg pressure low).
        acc = acc + bias_ref[layer:layer + 1, :d_out]    # f32 (1, d_out) broadcast
        if layer == N_LAYERS - 1:
            out_ref[...] = jax.nn.sigmoid(acc).astype(out_ref.dtype)  # final Sigmoid
        elif layer == BOTTLENECK_LAYER:
            h = acc.astype(jnp.bfloat16)                 # encoder output: no activation
        else:
            h = jnp.tanh(acc).astype(jnp.bfloat16)       # f32 tanh, then cast


def _prep_params(params):
    """Cast weights to bf16 (kept at their natural (in, out) shapes) and pack
    all 10 biases into one f32 [BIAS_ROWS, 784] array (padded entries zero)."""
    ws = []
    bias_pack = jnp.zeros((BIAS_ROWS, DIMS[-1]), jnp.float32)
    for layer in range(N_LAYERS):
        w = params[2 * layer]
        b = params[2 * layer + 1].reshape(-1)
        ws.append(w.astype(jnp.bfloat16))
        bias_pack = bias_pack.at[layer, :b.shape[0]].set(b)
    return ws, bias_pack


def _choose_bm(batch, max_bm=MAX_BM):
    """Large batch tiles for DMA efficiency, but keep >= 2 grid tiles when
    possible so v7x's two TensorCores both get work."""
    if batch <= 8:
        return 8
    half = (batch + 1) // 2
    half = ((half + 7) // 8) * 8        # sublane-aligned
    return max(8, min(max_bm, half))


def _invariant_spec(shape):
    """Grid-invariant parameter BlockSpec; single-buffered when supported."""
    idx = lambda i: (0, 0)
    if hasattr(pl, "Buffered"):
        try:
            return pl.BlockSpec(shape, idx, pipeline_mode=pl.Buffered(1))
        except TypeError:
            pass
    return pl.BlockSpec(shape, idx)


def autoencoder_forward(x, params, out_dtype=None):
    """x: [B, 784] float32.  params: flat list [w0, b0, ..., w9, b9] (f32,
    weights transposed to (in, out)).  out_dtype defaults to x.dtype (f32);
    pass jnp.bfloat16 to halve output HBM traffic if downstream tolerates it."""
    B, D = x.shape
    assert D == DIMS[0]
    out_dtype = x.dtype if out_dtype is None else out_dtype

    ws, bias_pack = _prep_params(params)

    bm = _choose_bm(B)
    n_tiles = pl.cdiv(B, bm)
    Bp = n_tiles * bm
    xp = x if Bp == B else jnp.pad(x, ((0, Bp - B), (0, 0)))   # batch pad only

    x_spec = pl.BlockSpec((bm, D), lambda i: (i, 0))           # full 784 last dim
    out_spec = pl.BlockSpec((bm, D), lambda i: (i, 0))
    w_specs = [_invariant_spec(w.shape) for w in ws]           # grid-invariant
    b_spec = _invariant_spec(bias_pack.shape)

    flops = 2 * Bp * sum(DIMS[l] * DIMS[l + 1] for l in range(N_LAYERS))
    transcendentals = Bp * sum(
        DIMS[l + 1] for l in range(N_LAYERS) if l != BOTTLENECK_LAYER)
    bytes_accessed = (Bp * D * x.dtype.itemsize                      # input
                      + Bp * D * jnp.dtype(out_dtype).itemsize       # output
                      + sum(int(w.size) * 2 for w in ws)             # bf16 weights
                      + int(bias_pack.size) * 4)                     # bias pack

    out = pl.pallas_call(
        autoencoder_kernel,
        out_shape=jax.ShapeDtypeStruct((Bp, D), out_dtype),
        grid_spec=pltpu.PrefetchScalarGridSpec(
            num_scalar_prefetch=0,
            grid=(n_tiles,),
            in_specs=[x_spec] + w_specs + [b_spec],
            out_specs=out_spec,
        ),
        compiler_params=pltpu.CompilerParams(
            dimension_semantics=("parallel",),
            vmem_limit_bytes=32 * 1024 * 1024,   # ~10 MiB actual at BM=512; safe on v5e/v6e/v7x
        ),
        cost_estimate=pl.CostEstimate(
            flops=flops,
            transcendentals=transcendentals,
            bytes_accessed=bytes_accessed,
        ),
    )(xp, *ws, bias_pack)

    return out if Bp == B else out[:B]


def init_params(key):
    """Deterministic synthetic parameters matching the PyTorch layer shapes."""
    params = []
    keys = jax.random.split(key, 2 * N_LAYERS)
    for layer in range(N_LAYERS):
        d_in, d_out = DIMS[layer], DIMS[layer + 1]
        scale = 1.0 / jnp.sqrt(jnp.float32(d_in))
        w = jax.random.uniform(keys[2 * layer], (d_in, d_out),
                               dtype=jnp.float32, minval=-scale, maxval=scale)
        b = jax.random.uniform(keys[2 * layer + 1], (1, d_out),
                               dtype=jnp.float32, minval=-scale, maxval=scale)
        params.append(w)
        params.append(b)
    return params


def reference_forward(x, params):
    """Pure-JAX f32 reference matching the PyTorch module exactly."""
    h = x
    for layer in range(N_LAYERS):
        w, b = params[2 * layer], params[2 * layer + 1]
        h = h @ w + b
        if layer == N_LAYERS - 1:
            h = jax.nn.sigmoid(h)
        elif layer != BOTTLENECK_LAYER:
            h = jnp.tanh(h)
    return h


if __name__ == "__main__":
    key = jax.random.PRNGKey(0)
    k_x, k_p = jax.random.split(key)

    B = 1024                                   # -> 2 grid tiles of BM=512 (both v7x TCs busy)
    x = jax.random.uniform(k_x, (B, 28 * 28), dtype=jnp.float32)
    params = init_params(k_p)

    fwd = jax.jit(autoencoder_forward)
    out = jax.block_until_ready(fwd(x, params))

    ref = reference_forward(x, params)
    assert out.shape == (B, 28 * 28)
    assert out.dtype == x.dtype
    max_err = float(jnp.max(jnp.abs(out - ref)))
    # bf16 matmuls with f32 accumulation through 10 layers -> loosened tolerance.
    assert max_err < 5e-2, f"mismatch vs reference: max abs err {max_err}"

    print("KERNEL_OK")
</pallas_src>

<mosaic_0001>
module attributes {stable_mosaic.version = 11 : i64} {
  func.func @autoencoder_kernel(%arg0: i32, %arg1: memref<512x784xf32, #tpu.memory_space<vmem>>, %arg2: memref<784x128xbf16, #tpu.memory_space<vmem>>, %arg3: memref<128x64xbf16, #tpu.memory_space<vmem>>, %arg4: memref<64x32xbf16, #tpu.memory_space<vmem>>, %arg5: memref<32x16xbf16, #tpu.memory_space<vmem>>, %arg6: memref<16x3xbf16, #tpu.memory_space<vmem>>, %arg7: memref<3x16xbf16, #tpu.memory_space<vmem>>, %arg8: memref<16x32xbf16, #tpu.memory_space<vmem>>, %arg9: memref<32x64xbf16, #tpu.memory_space<vmem>>, %arg10: memref<64x128xbf16, #tpu.memory_space<vmem>>, %arg11: memref<128x784xbf16, #tpu.memory_space<vmem>>, %arg12: memref<16x784xf32, #tpu.memory_space<vmem>>, %arg13: memref<512x784xf32, #tpu.memory_space<vmem>>) attributes {dimension_semantics = [#tpu.dimension_semantics<parallel>], iteration_bounds = array<i64: 2>, scalar_prefetch = 0 : i64, scratch_operands = 0 : i64, tpu.core_type = #tpu.core_type<tc>, window_params = [{transform_indices = @transform_0, window_bounds = array<i64: 512, 784>}, {pipeline_mode = #tpu.pipeline_mode<synchronous>, transform_indices = @transform_1, window_bounds = array<i64: 784, 128>}, {pipeline_mode = #tpu.pipeline_mode<synchronous>, transform_indices = @transform_2, window_bounds = array<i64: 128, 64>}, {pipeline_mode = #tpu.pipeline_mode<synchronous>, transform_indices = @transform_3, window_bounds = array<i64: 64, 32>}, {pipeline_mode = #tpu.pipeline_mode<synchronous>, transform_indices = @transform_4, window_bounds = array<i64: 32, 16>}, {pipeline_mode = #tpu.pipeline_mode<synchronous>, transform_indices = @transform_5, window_bounds = array<i64: 16, 3>}, {pipeline_mode = #tpu.pipeline_mode<synchronous>, transform_indices = @transform_6, window_bounds = array<i64: 3, 16>}, {pipeline_mode = #tpu.pipeline_mode<synchronous>, transform_indices = @transform_7, window_bounds = array<i64: 16, 32>}, {pipeline_mode = #tpu.pipeline_mode<synchronous>, transform_indices = @transform_8, window_bounds = array<i64: 32, 64>}, {pipeline_mode = #tpu.pipeline_mode<synchronous>, transform_indices = @transform_9, window_bounds = array<i64: 64, 128>}, {pipeline_mode = #tpu.pipeline_mode<synchronous>, transform_indices = @transform_10, window_bounds = array<i64: 128, 784>}, {pipeline_mode = #tpu.pipeline_mode<synchronous>, transform_indices = @transform_11, window_bounds = array<i64: 16, 784>}, {transform_indices = @transform_12, window_bounds = array<i64: 512, 784>}]} {
    %c0 = arith.constant 0 : index
    %c0_0 = arith.constant 0 : index
    %0 = vector.load %arg1[%c0, %c0_0] : memref<512x784xf32, #tpu.memory_space<vmem>>, vector<512x784xf32>
    %1 = arith.truncf %0 : vector<512x784xf32> to vector<512x784xbf16>
    %c0_1 = arith.constant 0 : index
    %c0_2 = arith.constant 0 : index
    %2 = vector.load %arg2[%c0_1, %c0_2] : memref<784x128xbf16, #tpu.memory_space<vmem>>, vector<784x128xbf16>
    %cst = arith.constant dense<0.000000e+00> : vector<512x128xf32>
    %3 = tpu.matmul %1, %2, %cst {dimension_numbers = #tpu.dot_dimension_numbers<[1], [0], [0], [1], [0, 0, 1, 1], [], []>} : vector<512x784xbf16>, vector<784x128xbf16>, vector<512x128xf32> -> vector<512x128xf32>
    %c0_3 = arith.constant 0 : index
    %c0_4 = arith.constant 0 : index
    %4 = vector.load %arg12[%c0_3, %c0_4] : memref<16x784xf32, #tpu.memory_space<vmem>>, vector<1x128xf32>
    %5 = vector.broadcast %4 : vector<1x128xf32> to vector<512x128xf32>
    %6 = arith.addf %3, %5 : vector<512x128xf32>
    %7 = math.tanh %6 : vector<512x128xf32>
    %8 = arith.truncf %7 : vector<512x128xf32> to vector<512x128xbf16>
    %c0_5 = arith.constant 0 : index
    %c0_6 = arith.constant 0 : index
    %9 = vector.load %arg3[%c0_5, %c0_6] : memref<128x64xbf16, #tpu.memory_space<vmem>>, vector<128x64xbf16>
    %cst_7 = arith.constant dense<0.000000e+00> : vector<512x64xf32>
    %10 = tpu.matmul %8, %9, %cst_7 {dimension_numbers = #tpu.dot_dimension_numbers<[1], [0], [0], [1], [0, 0, 1, 1], [], []>} : vector<512x128xbf16>, vector<128x64xbf16>, vector<512x64xf32> -> vector<512x64xf32>
    %c1 = arith.constant 1 : index
    %c0_8 = arith.constant 0 : index
    %11 = vector.load %arg12[%c1, %c0_8] : memref<16x784xf32, #tpu.memory_space<vmem>>, vector<1x64xf32>
    %12 = vector.broadcast %11 : vector<1x64xf32> to vector<512x64xf32>
    %13 = arith.addf %10, %12 : vector<512x64xf32>
    %14 = math.tanh %13 : vector<512x64xf32>
    %15 = arith.truncf %14 : vector<512x64xf32> to vector<512x64xbf16>
    %c0_9 = arith.constant 0 : index
    %c0_10 = arith.constant 0 : index
    %16 = vector.load %arg4[%c0_9, %c0_10] : memref<64x32xbf16, #tpu.memory_space<vmem>>, vector<64x32xbf16>
    %cst_11 = arith.constant dense<0.000000e+00> : vector<512x32xf32>
    %17 = tpu.matmul %15, %16, %cst_11 {dimension_numbers = #tpu.dot_dimension_numbers<[1], [0], [0], [1], [0, 0, 1, 1], [], []>} : vector<512x64xbf16>, vector<64x32xbf16>, vector<512x32xf32> -> vector<512x32xf32>
    %c2 = arith.constant 2 : index
    %c0_12 = arith.constant 0 : index
    %18 = vector.load %arg12[%c2, %c0_12] : memref<16x784xf32, #tpu.memory_space<vmem>>, vector<1x32xf32>
    %19 = vector.broadcast %18 : vector<1x32xf32> to vector<512x32xf32>
    %20 = arith.addf %17, %19 : vector<512x32xf32>
    %21 = math.tanh %20 : vector<512x32xf32>
    %22 = arith.truncf %21 : vector<512x32xf32> to vector<512x32xbf16>
    %c0_13 = arith.constant 0 : index
    %c0_14 = arith.constant 0 : index
    %23 = vector.load %arg5[%c0_13, %c0_14] : memref<32x16xbf16, #tpu.memory_space<vmem>>, vector<32x16xbf16>
    %cst_15 = arith.constant dense<0.000000e+00> : vector<512x16xf32>
    %24 = tpu.matmul %22, %23, %cst_15 {dimension_numbers = #tpu.dot_dimension_numbers<[1], [0], [0], [1], [0, 0, 1, 1], [], []>} : vector<512x32xbf16>, vector<32x16xbf16>, vector<512x16xf32> -> vector<512x16xf32>
    %c3 = arith.constant 3 : index
    %c0_16 = arith.constant 0 : index
    %25 = vector.load %arg12[%c3, %c0_16] : memref<16x784xf32, #tpu.memory_space<vmem>>, vector<1x16xf32>
    %26 = vector.broadcast %25 : vector<1x16xf32> to vector<512x16xf32>
    %27 = arith.addf %24, %26 : vector<512x16xf32>
    %28 = math.tanh %27 : vector<512x16xf32>
    %29 = arith.truncf %28 : vector<512x16xf32> to vector<512x16xbf16>
    %c0_17 = arith.constant 0 : index
    %c0_18 = arith.constant 0 : index
    %30 = vector.load %arg6[%c0_17, %c0_18] : memref<16x3xbf16, #tpu.memory_space<vmem>>, vector<16x3xbf16>
    %cst_19 = arith.constant dense<0.000000e+00> : vector<512x3xf32>
    %31 = tpu.matmul %29, %30, %cst_19 {dimension_numbers = #tpu.dot_dimension_numbers<[1], [0], [0], [1], [0, 0, 1, 1], [], []>} : vector<512x16xbf16>, vector<16x3xbf16>, vector<512x3xf32> -> vector<512x3xf32>
    %c4 = arith.constant 4 : index
    %c0_20 = arith.constant 0 : index
    %32 = vector.load %arg12[%c4, %c0_20] : memref<16x784xf32, #tpu.memory_space<vmem>>, vector<1x3xf32>
    %33 = vector.broadcast %32 : vector<1x3xf32> to vector<512x3xf32>
    %34 = arith.addf %31, %33 : vector<512x3xf32>
    %35 = arith.truncf %34 : vector<512x3xf32> to vector<512x3xbf16>
    %c0_21 = arith.constant 0 : index
    %c0_22 = arith.constant 0 : index
    %36 = vector.load %arg7[%c0_21, %c0_22] : memref<3x16xbf16, #tpu.memory_space<vmem>>, vector<3x16xbf16>
    %cst_23 = arith.constant dense<0.000000e+00> : vector<512x16xf32>
    %37 = tpu.matmul %35, %36, %cst_23 {dimension_numbers = #tpu.dot_dimension_numbers<[1], [0], [0], [1], [0, 0, 1, 1], [], []>} : vector<512x3xbf16>, vector<3x16xbf16>, vector<512x16xf32> -> vector<512x16xf32>
    %c5 = arith.constant 5 : index
    %c0_24 = arith.constant 0 : index
    %38 = vector.load %arg12[%c5, %c0_24] : memref<16x784xf32, #tpu.memory_space<vmem>>, vector<1x16xf32>
    %39 = vector.broadcast %38 : vector<1x16xf32> to vector<512x16xf32>
    %40 = arith.addf %37, %39 : vector<512x16xf32>
    %41 = math.tanh %40 : vector<512x16xf32>
    %42 = arith.truncf %41 : vector<512x16xf32> to vector<512x16xbf16>
    %c0_25 = arith.constant 0 : index
    %c0_26 = arith.constant 0 : index
    %43 = vector.load %arg8[%c0_25, %c0_26] : memref<16x32xbf16, #tpu.memory_space<vmem>>, vector<16x32xbf16>
    %cst_27 = arith.constant dense<0.000000e+00> : vector<512x32xf32>
    %44 = tpu.matmul %42, %43, %cst_27 {dimension_numbers = #tpu.dot_dimension_numbers<[1], [0], [0], [1], [0, 0, 1, 1], [], []>} : vector<512x16xbf16>, vector<16x32xbf16>, vector<512x32xf32> -> vector<512x32xf32>
    %c6 = arith.constant 6 : index
    %c0_28 = arith.constant 0 : index
    %45 = vector.load %arg12[%c6, %c0_28] : memref<16x784xf32, #tpu.memory_space<vmem>>, vector<1x32xf32>
    %46 = vector.broadcast %45 : vector<1x32xf32> to vector<512x32xf32>
    %47 = arith.addf %44, %46 : vector<512x32xf32>
    %48 = math.tanh %47 : vector<512x32xf32>
    %49 = arith.truncf %48 : vector<512x32xf32> to vector<512x32xbf16>
    %c0_29 = arith.constant 0 : index
    %c0_30 = arith.constant 0 : index
    %50 = vector.load %arg9[%c0_29, %c0_30] : memref<32x64xbf16, #tpu.memory_space<vmem>>, vector<32x64xbf16>
    %cst_31 = arith.constant dense<0.000000e+00> : vector<512x64xf32>
    %51 = tpu.matmul %49, %50, %cst_31 {dimension_numbers = #tpu.dot_dimension_numbers<[1], [0], [0], [1], [0, 0, 1, 1], [], []>} : vector<512x32xbf16>, vector<32x64xbf16>, vector<512x64xf32> -> vector<512x64xf32>
    %c7 = arith.constant 7 : index
    %c0_32 = arith.constant 0 : index
    %52 = vector.load %arg12[%c7, %c0_32] : memref<16x784xf32, #tpu.memory_space<vmem>>, vector<1x64xf32>
    %53 = vector.broadcast %52 : vector<1x64xf32> to vector<512x64xf32>
    %54 = arith.addf %51, %53 : vector<512x64xf32>
    %55 = math.tanh %54 : vector<512x64xf32>
    %56 = arith.truncf %55 : vector<512x64xf32> to vector<512x64xbf16>
    %c0_33 = arith.constant 0 : index
    %c0_34 = arith.constant 0 : index
    %57 = vector.load %arg10[%c0_33, %c0_34] : memref<64x128xbf16, #tpu.memory_space<vmem>>, vector<64x128xbf16>
    %cst_35 = arith.constant dense<0.000000e+00> : vector<512x128xf32>
    %58 = tpu.matmul %56, %57, %cst_35 {dimension_numbers = #tpu.dot_dimension_numbers<[1], [0], [0], [1], [0, 0, 1, 1], [], []>} : vector<512x64xbf16>, vector<64x128xbf16>, vector<512x128xf32> -> vector<512x128xf32>
    %c8 = arith.constant 8 : index
    %c0_36 = arith.constant 0 : index
    %59 = vector.load %arg12[%c8, %c0_36] : memref<16x784xf32, #tpu.memory_space<vmem>>, vector<1x128xf32>
    %60 = vector.broadcast %59 : vector<1x128xf32> to vector<512x128xf32>
    %61 = arith.addf %58, %60 : vector<512x128xf32>
    %62 = math.tanh %61 : vector<512x128xf32>
    %63 = arith.truncf %62 : vector<512x128xf32> to vector<512x128xbf16>
    %c0_37 = arith.constant 0 : index
    %c0_38 = arith.constant 0 : index
    %64 = vector.load %arg11[%c0_37, %c0_38] : memref<128x784xbf16, #tpu.memory_space<vmem>>, vector<128x784xbf16>
    %cst_39 = arith.constant dense<0.000000e+00> : vector<512x784xf32>
    %65 = tpu.matmul %63, %64, %cst_39 {dimension_numbers = #tpu.dot_dimension_numbers<[1], [0], [0], [1], [0, 0, 1, 1], [], []>} : vector<512x128xbf16>, vector<128x784xbf16>, vector<512x784xf32> -> vector<512x784xf32>
    %c9 = arith.constant 9 : index
    %c0_40 = arith.constant 0 : index
    %66 = vector.load %arg12[%c9, %c0_40] : memref<16x784xf32, #tpu.memory_space<vmem>>, vector<1x784xf32>
    %67 = vector.broadcast %66 : vector<1x784xf32> to vector<512x784xf32>
    %68 = arith.addf %65, %67 : vector<512x784xf32>
    %69 = arith.negf %68 : vector<512x784xf32>
    %70 = math.exp %69 : vector<512x784xf32>
    %cst_41 = arith.constant 1.000000e+00 : f32
    %71 = vector.broadcast %cst_41 : f32 to vector<512x784xf32>
    %72 = arith.addf %71, %70 : vector<512x784xf32>
    %73 = arith.divf %71, %72 : vector<512x784xf32>
    %c0_42 = arith.constant 0 : index
    %c0_43 = arith.constant 0 : index
    %74 = vector.load %arg13[%c0_42, %c0_43] : memref<512x784xf32, #tpu.memory_space<vmem>>, vector<512x784xf32>
    tpu.vector_store %arg13[%c0_42, %c0_43], %73 {strides = array<i32>} : memref<512x784xf32, #tpu.memory_space<vmem>>, vector<512x784xf32>,
    return
  }
  func.func @transform_0(%arg0: i32) -> (i32, i32) {
    %c0_i32 = arith.constant 0 : i32
    %c0_i32_0 = arith.constant 0 : i32
    return %arg0, %c0_i32 : i32, i32
  }
  func.func @transform_1(%arg0: i32) -> (i32, i32) {
    %c0_i32 = arith.constant 0 : i32
    %c0_i32_0 = arith.constant 0 : i32
    %c0_i32_1 = arith.constant 0 : i32
    return %c0_i32, %c0_i32_0 : i32, i32
  }
  func.func @transform_2(%arg0: i32) -> (i32, i32) {
    %c0_i32 = arith.constant 0 : i32
    %c0_i32_0 = arith.constant 0 : i32
    %c0_i32_1 = arith.constant 0 : i32
    return %c0_i32, %c0_i32_0 : i32, i32
  }
  func.func @transform_3(%arg0: i32) -> (i32, i32) {
    %c0_i32 = arith.constant 0 : i32
    %c0_i32_0 = arith.constant 0 : i32
    %c0_i32_1 = arith.constant 0 : i32
    return %c0_i32, %c0_i32_0 : i32, i32
  }
  func.func @transform_4(%arg0: i32) -> (i32, i32) {
    %c0_i32 = arith.constant 0 : i32
    %c0_i32_0 = arith.constant 0 : i32
    %c0_i32_1 = arith.constant 0 : i32
    return %c0_i32, %c0_i32_0 : i32, i32
  }
  func.func @transform_5(%arg0: i32) -> (i32, i32) {
    %c0_i32 = arith.constant 0 : i32
    %c0_i32_0 = arith.constant 0 : i32
    %c0_i32_1 = arith.constant 0 : i32
    return %c0_i32, %c0_i32_0 : i32, i32
  }
  func.func @transform_6(%arg0: i32) -> (i32, i32) {
    %c0_i32 = arith.constant 0 : i32
    %c0_i32_0 = arith.constant 0 : i32
    %c0_i32_1 = arith.constant 0 : i32
    return %c0_i32, %c0_i32_0 : i32, i32
  }
  func.func @transform_7(%arg0: i32) -> (i32, i32) {
    %c0_i32 = arith.constant 0 : i32
    %c0_i32_0 = arith.constant 0 : i32
    %c0_i32_1 = arith.constant 0 : i32
    return %c0_i32, %c0_i32_0 : i32, i32
  }
  func.func @transform_8(%arg0: i32) -> (i32, i32) {
    %c0_i32 = arith.constant 0 : i32
    %c0_i32_0 = arith.constant 0 : i32
    %c0_i32_1 = arith.constant 0 : i32
    return %c0_i32, %c0_i32_0 : i32, i32
  }
  func.func @transform_9(%arg0: i32) -> (i32, i32) {
    %c0_i32 = arith.constant 0 : i32
    %c0_i32_0 = arith.constant 0 : i32
    %c0_i32_1 = arith.constant 0 : i32
    return %c0_i32, %c0_i32_0 : i32, i32
  }
  func.func @transform_10(%arg0: i32) -> (i32, i32) {
    %c0_i32 = arith.constant 0 : i32
    %c0_i32_0 = arith.constant 0 : i32
    %c0_i32_1 = arith.constant 0 : i32
    return %c0_i32, %c0_i32_0 : i32, i32
  }
  func.func @transform_11(%arg0: i32) -> (i32, i32) {
    %c0_i32 = arith.constant 0 : i32
    %c0_i32_0 = arith.constant 0 : i32
    %c0_i32_1 = arith.constant 0 : i32
    return %c0_i32, %c0_i32_0 : i32, i32
  }
  func.func @transform_12(%arg0: i32) -> (i32, i32) {
    %c0_i32 = arith.constant 0 : i32
    %c0_i32_0 = arith.constant 0 : i32
    return %arg0, %c0_i32 : i32, i32
  }
}

</mosaic_0001>

<llo_original>
// kernel: autoencoder_forward.1
$region0: #{autoencoder_forward.1}
  #allocation0 [shape = 'u32[]', space=smem, size = 0x4, offset = 0x4, fixed_abs, tag = 'smem constant byte address 0x4 - core index']
  #allocation1 [shape = 'u32[144,128]{1,0:T(1,128)}', space=vmem, size = 0x12000, scoped, tag = 'internal scratch']
  %s0 = inlined_call_operand.vmem [shape: f32[1024,784], index: 0, kind: input, shape index: {}]
  %s1 = inlined_call_operand.vmem [shape: bf16[784,128], index: 1, kind: input, shape index: {}]
  %s2 = inlined_call_operand.vmem [shape: bf16[128,64], index: 2, kind: input, shape index: {}]
  %s3 = inlined_call_operand.vmem [shape: bf16[64,32], index: 3, kind: input, shape index: {}]
  %s4 = inlined_call_operand.vmem [shape: bf16[32,16], index: 4, kind: input, shape index: {}]
  %s5 = inlined_call_operand.vmem [shape: bf16[16,3], index: 5, kind: input, shape index: {}]
  %s6 = inlined_call_operand.vmem [shape: bf16[3,16], index: 6, kind: input, shape index: {}]
  %s7 = inlined_call_operand.vmem [shape: bf16[16,32], index: 7, kind: input, shape index: {}]
  %s8 = inlined_call_operand.vmem [shape: bf16[32,64], index: 8, kind: input, shape index: {}]
  %s9 = inlined_call_operand.vmem [shape: bf16[64,128], index: 9, kind: input, shape index: {}]
  %s10 = inlined_call_operand.vmem [shape: bf16[128,784], index: 10, kind: input, shape index: {}]
  %s11 = inlined_call_operand.vmem [shape: f32[16,784], index: 11, kind: input, shape index: {}]
  %s12 = inlined_call_operand.vmem [shape: f32[1024,784], index: 12, kind: output, shape index: {}]
  %s13 = sld [smem:[#allocation0]]
  $region81: #{autoencoder_forward.1} parent=0
    _
  %s15 = ssub.s32 1, %s13
  %s16 = scalar_select 0, %s15, %s13
  loop: start=0, step=1, limit=4
  $region2: #{autoencoder_forward.1} parent=0 // loop_pre_header
    _
  $region3: #{autoencoder_forward.1} parent=0 // loop_header
    %s18 = sphi 0, %s22
    %p19 = scmp.ge.s32.totalorder %s18, 4
    %s28 = sphi 0, %s30
    %s31 = sphi 0, %s28
    %s32 = sphi 0, %s31
    %s48 = sphi 0, %s32
    %s52 = sphi 0, %s52
    %s54 = sphi 0, %s52
    %s55 = sphi 0, %s54
    %s69 = sphi 0, %s55
    %s73 = sphi 0, %s73
    %s75 = sphi 0, %s73
    %s76 = sphi 0, %s75
    %s90 = sphi 0, %s76
    %s94 = sphi 0, %s94
    %s96 = sphi 0, %s94
    %s97 = sphi 0, %s96
    %s111 = sphi 0, %s97
    %s115 = sphi 0, %s115
    %s117 = sphi 0, %s115
    %s118 = sphi 0, %s117
    %s132 = sphi 0, %s118
    %s136 = sphi 0, %s136
    %s138 = sphi 0, %s136
    %s139 = sphi 0, %s138
    %s153 = sphi 0, %s139
    %s157 = sphi 0, %s157
    %s159 = sphi 0, %s157
    %s160 = sphi 0, %s159
    %s174 = sphi 0, %s160
    %s178 = sphi 0, %s178
    %s180 = sphi 0, %s178
    %s181 = sphi 0, %s180
    %s195 = sphi 0, %s181
    %s199 = sphi 0, %s199
    %s201 = sphi 0, %s199
    %s202 = sphi 0, %s201
    %s216 = sphi 0, %s202
    %s220 = sphi 0, %s220
    %s222 = sphi 0, %s220
    %s223 = sphi 0, %s222
    %s237 = sphi 0, %s223
    %s241 = sphi 0, %s241
    %s243 = sphi 0, %s241
    %s244 = sphi 0, %s243
    %s258 = sphi 0, %s244
    %s262 = sphi 0, %s262
    %s264 = sphi 0, %s262
    %s265 = sphi 0, %s264
    %s279 = sphi 0, %s265
    %s285 = sphi 0, %s287
    %s288 = sphi 0, %s285
    %s289 = sphi 0, %s288
    %s305 = sphi 0, %s289
  $region4: #{autoencoder_forward.1} parent=0 // loop_header_branch
    %21 = sbr.rel (%p19) target = $region8
  $region5: #{autoencoder_forward.1} parent=0 // loop_body
    %s23 = ssub.s32 %s18, 1
    %s24 = ssub.s32 %s18, 2
    %s25 = sadd.s32 %s18, 1
    %s26 = ssub.s32 %s18, %s25
    %p27 = scmp.eq.s32.totalorder %s26, 0
    %s29 = sadd.s32 %s28, 1
    %s30 = scalar_select %p27, %s28, %s29
    %p33 = pneg %p27
    %p34 = scmp.eq.s32.totalorder %s18, 1
    %p35 = por %p33, %p34
    %p36 = scmp.ne.s32.totalorder %s28, %s31
    %p37 = scmp.eq.s32.totalorder %s18, 0
    %p38 = por %p36, %p37
    %p39 = scmp.ne.s32.totalorder %s28, %s31
    %p40 = scmp.eq.s32.totalorder %s23, 1
    %p41 = por %p39, %p40
    %p42 = scmp.ne.s32.totalorder %s31, %s32
    %p43 = scmp.eq.s32.totalorder %s23, 0
    %p44 = por %p42, %p43
    %p45 = scmp.ne.s32.totalorder %s31, %s32
    %p46 = scmp.eq.s32.totalorder %s24, 1
    %p47 = por %p45, %p46
    %p49 = scmp.ne.s32.totalorder %s32, %s48
    %p50 = scmp.eq.s32.totalorder %s24, 0
    %p51 = por %p49, %p50
    %s53 = sadd.s32 %s52, 1
    %p56 = scmp.eq.s32.totalorder %s18, 1
    %p57 = scmp.ne.s32.totalorder %s52, %s54
    %p58 = scmp.eq.s32.totalorder %s18, 0
    %p59 = por %p57, %p58
    %p60 = scmp.ne.s32.totalorder %s52, %s54
    %p61 = scmp.eq.s32.totalorder %s23, 1
    %p62 = por %p60, %p61
    %p63 = scmp.ne.s32.totalorder %s54, %s55
    %p64 = scmp.eq.s32.totalorder %s23, 0
    %p65 = por %p63, %p64
    %p66 = scmp.ne.s32.totalorder %s54, %s55
    %p67 = scmp.eq.s32.totalorder %s24, 1
    %p68 = por %p66, %p67
    %p70 = scmp.ne.s32.totalorder %s55, %s69
    %p71 = scmp.eq.s32.totalorder %s24, 0
    %p72 = por %p70, %p71
    %s74 = sadd.s32 %s73, 1
    %p77 = scmp.eq.s32.totalorder %s18, 1
    %p78 = scmp.ne.s32.totalorder %s73, %s75
    %p79 = scmp.eq.s32.totalorder %s18, 0
    %p80 = por %p78, %p79
    %p81 = scmp.ne.s32.totalorder %s73, %s75
    %p82 = scmp.eq.s32.totalorder %s23, 1
    %p83 = por %p81, %p82
    %p84 = scmp.ne.s32.totalorder %s75, %s76
    %p85 = scmp.eq.s32.totalorder %s23, 0
    %p86 = por %p84, %p85
    %p87 = scmp.ne.s32.totalorder %s75, %s76
    %p88 = scmp.eq.s32.totalorder %s24, 1
    %p89 = por %p87, %p88
    %p91 = scmp.ne.s32.totalorder %s76, %s90
    %p92 = scmp.eq.s32.totalorder %s24, 0
    %p93 = por %p91, %p92
    %s95 = sadd.s32 %s94, 1
    %p98 = scmp.eq.s32.totalorder %s18, 1
    %p99 = scmp.ne.s32.totalorder %s94, %s96
    %p100 = scmp.eq.s32.totalorder %s18, 0
    %p101 = por %p99, %p100
    %p102 = scmp.ne.s32.totalorder %s94, %s96
    %p103 = scmp.eq.s32.totalorder %s23, 1
    %p104 = por %p102, %p103
    %p105 = scmp.ne.s32.totalorder %s96, %s97
    %p106 = scmp.eq.s32.totalorder %s23, 0
    %p107 = por %p105, %p106
    %p108 = scmp.ne.s32.totalorder %s96, %s97
    %p109 = scmp.eq.s32.totalorder %s24, 1
    %p110 = por %p108, %p109
    %p112 = scmp.ne.s32.totalorder %s97, %s111
    %p113 = scmp.eq.s32.totalorder %s24, 0
    %p114 = por %p112, %p113
    %s116 = sadd.s32 %s115, 1
    %p119 = scmp.eq.s32.totalorder %s18, 1
    %p120 = scmp.ne.s32.totalorder %s115, %s117
    %p121 = scmp.eq.s32.totalorder %s18, 0
    %p122 = por %p120, %p121
    %p123 = scmp.ne.s32.totalorder %s115, %s117
    %p124 = scmp.eq.s32.totalorder %s23, 1
    %p125 = por %p123, %p124
    %p126 = scmp.ne.s32.totalorder %s117, %s118
    %p127 = scmp.eq.s32.totalorder %s23, 0
    %p128 = por %p126, %p127
    %p129 = scmp.ne.s32.totalorder %s117, %s118
    %p130 = scmp.eq.s32.totalorder %s24, 1
    %p131 = por %p129, %p130
    %p133 = scmp.ne.s32.totalorder %s118, %s132
    %p134 = scmp.eq.s32.totalorder %s24, 0
    %p135 = por %p133, %p134
    %s137 = sadd.s32 %s136, 1
    %p140 = scmp.eq.s32.totalorder %s18, 1
    %p141 = scmp.ne.s32.totalorder %s136, %s138
    %p142 = scmp.eq.s32.totalorder %s18, 0
    %p143 = por %p141, %p142
    %p144 = scmp.ne.s32.totalorder %s136, %s138
    %p145 = scmp.eq.s32.totalorder %s23, 1
    %p146 = por %p144, %p145
    %p147 = scmp.ne.s32.totalorder %s138, %s139
    %p148 = scmp.eq.s32.totalorder %s23, 0
    %p149 = por %p147, %p148
    %p150 = scmp.ne.s32.totalorder %s138, %s139
    %p151 = scmp.eq.s32.totalorder %s24, 1
    %p152 = por %p150, %p151
    %p154 = scmp.ne.s32.totalorder %s139, %s153
    %p155 = scmp.eq.s32.totalorder %s24, 0
    %p156 = por %p154, %p155
    %s158 = sadd.s32 %s157, 1
    %p161 = scmp.eq.s32.totalorder %s18, 1
    %p162 = scmp.ne.s32.totalorder %s157, %s159
    %p163 = scmp.eq.s32.totalorder %s18, 0
    %p164 = por %p162, %p163
    %p165 = scmp.ne.s32.totalorder %s157, %s159
    %p166 = scmp.eq.s32.totalorder %s23, 1
    %p167 = por %p165, %p166
    %p168 = scmp.ne.s32.totalorder %s159, %s160
    %p169 = scmp.eq.s32.totalorder %s23, 0
    %p170 = por %p168, %p169
    %p171 = scmp.ne.s32.totalorder %s159, %s160
    %p172 = scmp.eq.s32.totalorder %s24, 1
    %p173 = por %p171, %p172
    %p175 = scmp.ne.s32.totalorder %s160, %s174
    %p176 = scmp.eq.s32.totalorder %s24, 0
    %p177 = por %p175, %p176
    %s179 = sadd.s32 %s178, 1
    %p182 = scmp.eq.s32.totalorder %s18, 1
    %p183 = scmp.ne.s32.totalorder %s178, %s180
    %p184 = scmp.eq.s32.totalorder %s18, 0
    %p185 = por %p183, %p184
    %p186 = scmp.ne.s32.totalorder %s178, %s180
    %p187 = scmp.eq.s32.totalorder %s23, 1
    %p188 = por %p186, %p187
    %p189 = scmp.ne.s32.totalorder %s180, %s181
    %p190 = scmp.eq.s32.totalorder %s23, 0
    %p191 = por %p189, %p190
    %p192 = scmp.ne.s32.totalorder %s180, %s181
    %p193 = scmp.eq.s32.totalorder %s24, 1
    %p194 = por %p192, %p193
    %p196 = scmp.ne.s32.totalorder %s181, %s195
    %p197 = scmp.eq.s32.totalorder %s24, 0
    %p198 = por %p196, %p197
    %s200 = sadd.s32 %s199, 1
    %p203 = scmp.eq.s32.totalorder %s18, 1
    %p204 = scmp.ne.s32.totalorder %s199, %s201
    %p205 = scmp.eq.s32.totalorder %s18, 0
    %p206 = por %p204, %p205
    %p207 = scmp.ne.s32.totalorder %s199, %s201
    %p208 = scmp.eq.s32.totalorder %s23, 1
    %p209 = por %p207, %p208
    %p210 = scmp.ne.s32.totalorder %s201, %s202
    %p211 = scmp.eq.s32.totalorder %s23, 0
    %p212 = por %p210, %p211
    %p213 = scmp.ne.s32.totalorder %s201, %s202
    %p214 = scmp.eq.s32.totalorder %s24, 1
    %p215 = por %p213, %p214
    %p217 = scmp.ne.s32.totalorder %s202, %s216
    %p218 = scmp.eq.s32.totalorder %s24, 0
    %p219 = por %p217, %p218
    %s221 = sadd.s32 %s220, 1
    %p224 = scmp.eq.s32.totalorder %s18, 1
    %p225 = scmp.ne.s32.totalorder %s220, %s222
    %p226 = scmp.eq.s32.totalorder %s18, 0
    %p227 = por %p225, %p226
    %p228 = scmp.ne.s32.totalorder %s220, %s222
    %p229 = scmp.eq.s32.totalorder %s23, 1
    %p230 = por %p228, %p229
    %p231 = scmp.ne.s32.totalorder %s222, %s223
    %p232 = scmp.eq.s32.totalorder %s23, 0
    %p233 = por %p231, %p232
    %p234 = scmp.ne.s32.totalorder %s222, %s223
    %p235 = scmp.eq.s32.totalorder %s24, 1
    %p236 = por %p234, %p235
    %p238 = scmp.ne.s32.totalorder %s223, %s237
    %p239 = scmp.eq.s32.totalorder %s24, 0
    %p240 = por %p238, %p239
    %s242 = sadd.s32 %s241, 1
    %p245 = scmp.eq.s32.totalorder %s18, 1
    %p246 = scmp.ne.s32.totalorder %s241, %s243
    %p247 = scmp.eq.s32.totalorder %s18, 0
    %p248 = por %p246, %p247
    %p249 = scmp.ne.s32.totalorder %s241, %s243
    %p250 = scmp.eq.s32.totalorder %s23, 1
    %p251 = por %p249, %p250
    %p252 = scmp.ne.s32.totalorder %s243, %s244
    %p253 = scmp.eq.s32.totalorder %s23, 0
    %p254 = por %p252, %p253
    %p255 = scmp.ne.s32.totalorder %s243, %s244
    %p256 = scmp.eq.s32.totalorder %s24, 1
    %p257 = por %p255, %p256
    %p259 = scmp.ne.s32.totalorder %s244, %s258
    %p260 = scmp.eq.s32.totalorder %s24, 0
    %p261 = por %p259, %p260
    %s263 = sadd.s32 %s262, 1
    %p266 = scmp.eq.s32.totalorder %s18, 1
    %p267 = scmp.ne.s32.totalorder %s262, %s264
    %p268 = scmp.eq.s32.totalorder %s18, 0
    %p269 = por %p267, %p268
    %p270 = scmp.ne.s32.totalorder %s262, %s264
    %p271 = scmp.eq.s32.totalorder %s23, 1
    %p272 = por %p270, %p271
    %p273 = scmp.ne.s32.totalorder %s264, %s265
    %p274 = scmp.eq.s32.totalorder %s23, 0
    %p275 = por %p273, %p274
    %p276 = scmp.ne.s32.totalorder %s264, %s265
    %p277 = scmp.eq.s32.totalorder %s24, 1
    %p278 = por %p276, %p277
    %p280 = scmp.ne.s32.totalorder %s265, %s279
    %p281 = scmp.eq.s32.totalorder %s24, 0
    %p282 = por %p280, %p281
    %s283 = ssub.s32 %s18, %s25
    %p284 = scmp.eq.s32.totalorder %s283, 0
    %s286 = sadd.s32 %s285, 1
    %s287 = scalar_select %p284, %s285, %s286
    %p290 = pneg %p284
    %p291 = scmp.eq.s32.totalorder %s18, 1
    %p292 = por %p290, %p291
    %p293 = scmp.ne.s32.totalorder %s285, %s288
    %p294 = scmp.eq.s32.totalorder %s18, 0
    %p295 = por %p293, %p294
    %p296 = scmp.ne.s32.totalorder %s285, %s288
    %p297 = scmp.eq.s32.totalorder %s23, 1
    %p298 = por %p296, %p297
    %p299 = scmp.ne.s32.totalorder %s288, %s289
    %p300 = scmp.eq.s32.totalorder %s23, 0
    %p301 = por %p299, %p300
    %p302 = scmp.ne.s32.totalorder %s288, %s289
    %p303 = scmp.eq.s32.totalorder %s24, 1
    %p304 = por %p302, %p303
    %p306 = scmp.ne.s32.totalorder %s289, %s305
    %p307 = scmp.eq.s32.totalorder %s24, 0
    %p308 = por %p306, %p307
    %p309 = scmp.le.s32.totalorder 1, %s18
    %p310 = scmp.lt.s32.totalorder %s18, 3
    %p311 = pnand %p309, %p310
    %p312 = pneg %p311
    // Predicated region
    $region9: #{autoencoder_forward.1} parent=5 // pred_check
      _
    $region10: #{autoencoder_forward.1} parent=5 // pred_check_branch
      %314 = sbr.rel (%p311) target = $region12
    $region11: #{autoencoder_forward.1} parent=5 // pred_region
      %s315 = ssub.s32 %s18, 1
      // Predicated region
      $region13: #{autoencoder_forward.1} parent=11 // pred_check
        %p316 = pneg %p65
      $region14: #{autoencoder_forward.1} parent=11 // pred_check_branch
        %318 = sbr.rel (%p316) target = $region16
      $region15: #{autoencoder_forward.1} parent=11 // pred_region
        _
      $region16: #{autoencoder_forward.1} parent=11 // pred_fallthru
        _
      // Predicated region
      $region17: #{autoencoder_forward.1} parent=11 // pred_check
        %p319 = pneg %p86
      $region18: #{autoencoder_forward.1} parent=11 // pred_check_branch
        %321 = sbr.rel (%p319) target = $region20
      $region19: #{autoencoder_forward.1} parent=11 // pred_region
        _
      $region20: #{autoencoder_forward.1} parent=11 // pred_fallthru
        _
      // Predicated region
      $region21: #{autoencoder_forward.1} parent=11 // pred_check
        %p322 = pneg %p107
      $region22: #{autoencoder_forward.1} parent=11 // pred_check_branch
        %324 = sbr.rel (%p322) target = $region24
      $region23: #{autoencoder_forward.1} parent=11 // pred_region
        _
      $region24: #{autoencoder_forward.1} parent=11 // pred_fallthru
        _
      // Predicated region
      $region25: #{autoencoder_forward.1} parent=11 // pred_check
        %p325 = pneg %p128
      $region26: #{autoencoder_forward.1} parent=11 // pred_check_branch
        %327 = sbr.rel (%p325) target = $region28
      $region27: #{autoencoder_forward.1} parent=11 // pred_region
        _
      $region28: #{autoencoder_forward.1} parent=11 // pred_fallthru
        _
      // Predicated region
      $region29: #{autoencoder_forward.1} parent=11 // pred_check
        %p328 = pneg %p149
      $region30: #{autoencoder_forward.1} parent=11 // pred_check_branch
        %330 = sbr.rel (%p328) target = $region32
      $region31: #{autoencoder_forward.1} parent=11 // pred_region
        _
      $region32: #{autoencoder_forward.1} parent=11 // pred_fallthru
        _
      // Predicated region
      $region33: #{autoencoder_forward.1} parent=11 // pred_check
        %p331 = pneg %p170
      $region34: #{autoencoder_forward.1} parent=11 // pred_check_branch
        %333 = sbr.rel (%p331) target = $region36
      $region35: #{autoencoder_forward.1} parent=11 // pred_region
        _
      $region36: #{autoencoder_forward.1} parent=11 // pred_fallthru
        _
      // Predicated region
      $region37: #{autoencoder_forward.1} parent=11 // pred_check
        %p334 = pneg %p191
      $region38: #{autoencoder_forward.1} parent=11 // pred_check_branch
        %336 = sbr.rel (%p334) target = $region40
      $region39: #{autoencoder_forward.1} parent=11 // pred_region
        _
      $region40: #{autoencoder_forward.1} parent=11 // pred_fallthru
        _
      // Predicated region
      $region41: #{autoencoder_forward.1} parent=11 // pred_check
        %p337 = pneg %p212
      $region42: #{autoencoder_forward.1} parent=11 // pred_check_branch
        %339 = sbr.rel (%p337) target = $region44
      $region43: #{autoencoder_forward.1} parent=11 // pred_region
        _
      $region44: #{autoencoder_forward.1} parent=11 // pred_fallthru
        _
      // Predicated region
      $region45: #{autoencoder_forward.1} parent=11 // pred_check
        %p340 = pneg %p233
      $region46: #{autoencoder_forward.1} parent=11 // pred_check_branch
        %342 = sbr.rel (%p340) target = $region48
      $region47: #{autoencoder_forward.1} parent=11 // pred_region
        _
      $region48: #{autoencoder_forward.1} parent=11 // pred_fallthru
        _
      // Predicated region
      $region49: #{autoencoder_forward.1} parent=11 // pred_check
        %p343 = pneg %p254
      $region50: #{autoencoder_forward.1} parent=11 // pred_check_branch
        %345 = sbr.rel (%p343) target = $region52
      $region51: #{autoencoder_forward.1} parent=11 // pred_region
        _
      $region52: #{autoencoder_forward.1} parent=11 // pred_fallthru
        _
      // Predicated region
      $region53: #{autoencoder_forward.1} parent=11 // pred_check
        %p346 = pneg %p275
      $region54: #{autoencoder_forward.1} parent=11 // pred_check_branch
        %348 = sbr.rel (%p346) target = $region56
      $region55: #{autoencoder_forward.1} parent=11 // pred_region
        _
      $region56: #{autoencoder_forward.1} parent=11 // pred_fallthru
        _
    $region12: #{autoencoder_forward.1} parent=5 // pred_fallthru
      _
    %p349 = scmp.lt.s32.totalorder %s18, 2
    // Predicated region
    $region57: #{autoencoder_forward.1} parent=5 // pred_check
      %p350 = pneg %p349
    $region58: #{autoencoder_forward.1} parent=5 // pred_check_branch
      %352 = sbr.rel (%p350) target = $region60
    $region59: #{autoencoder_forward.1} parent=5 // pred_region
      // Predicated region
      $region61: #{autoencoder_forward.1} parent=59 // pred_check
        %p353 = pneg %p38
      $region62: #{autoencoder_forward.1} parent=59 // pred_check_branch
        %355 = sbr.rel (%p353) target = $region64
      $region63: #{autoencoder_forward.1} parent=59 // pred_region
        %s356 = smul.u32 64, %s18
        %p357 = scmp.lt.s32.totalorder %s356, 127
        %s358 = scalar_select %p357, %s356, 127
        %s359 = smul.addr %s358, 7
        %s360 = smul.addr %s359, 8
        %s361 = scalar_lea.vmem %s0, %s360
        %s362 = smul.u32 64, %s18
      $region64: #{autoencoder_forward.1} parent=59 // pred_fallthru
        _
    $region60: #{autoencoder_forward.1} parent=5 // pred_fallthru
      _
    %p363 = scmp.le.s32.totalorder 1, %s18
    %p364 = scmp.lt.s32.totalorder %s18, 3
    %p365 = pnand %p363, %p364
    %p366 = pneg %p365
    // Predicated region
    $region65: #{autoencoder_forward.1} parent=5 // pred_check
      _
    $region66: #{autoencoder_forward.1} parent=5 // pred_check_branch
      %368 = sbr.rel (%p365) target = $region68
    $region67: #{autoencoder_forward.1} parent=5 // pred_region
      %s369 = ssub.s32 %s18, 1
      %s370 = smul.u32 64, %s23
      %p371 = scmp.lt.s32.totalorder %s370, 127
      %s372 = scalar_select %p371, %s370, 127
      %s373 = smul.addr %s372, 7
      %s374 = smul.addr %s373, 8
      %s375 = scalar_lea.vmem %s0, %s374
      %p376 = pneg %p44
      %p377 = pneg %p41
      %p378 = pneg %p65
      %p379 = pneg %p62
      %p380 = pneg %p86
      %p381 = pneg %p83
      %p382 = pneg %p107
      %p383 = pneg %p104
      %p384 = pneg %p128
      %p385 = pneg %p125
      %p386 = pneg %p149
      %p387 = pneg %p146
      %p388 = pneg %p170
      %p389 = pneg %p167
      %p390 = pneg %p191
      %p391 = pneg %p188
      %p392 = pneg %p212
      %p393 = pneg %p209
      %p394 = pneg %p233
      %p395 = pneg %p230
      %p396 = pneg %p254
      %p397 = pneg %p251
      %p398 = pneg %p275
      %p399 = pneg %p272
      %p400 = pneg %p301
      %p401 = pneg %p298
      %s402 = smul.u32 64, %s23
      %p403 = scmp.lt.s32.totalorder %s402, 127
      %s404 = scalar_select %p403, %s402, 127
      %s405 = smul.addr %s404, 7
      %s406 = smul.addr %s405, 8
      %s407 = scalar_lea.vmem %s12, %s406
      %s408 = smul.u32 64, %s23
      %p409 = scmp.lt.s32.totalorder %s408, 127
      %s410 = scalar_select %p409, %s408, 127
      %s411 = smul.addr %s410, 7
      %s412 = smul.addr %s411, 8
      %s413 = scalar_lea.vmem %s0, %s412
      %s414 = smul.u32 64, %s23
      %s415 = smul.u32 64, %s23
      %p416 = scmp.lt.s32.totalorder %s415, 127
      %s417 = scalar_select %p416, %s415, 127
      %s418 = smul.addr %s417, 7
      %s419 = smul.addr %s418, 8
      %s420 = scalar_lea.vmem %s12, %s419
      %s421 = smul.u32 64, %s23
      %v423 = vld [vmem:[%s413] sm:$0xff]
      %v424 = vld [vmem:[%s413 + $0x8] sm:$0xff]
      %v425 = vld [vmem:[%s413 + $0x10] sm:$0xff]
      %v426 = vld [vmem:[%s413 + $0x18] sm:$0xff]
      %v427 = vld [vmem:[%s413 + $0x20] sm:$0xff]
      %v428 = vld [vmem:[%s413 + $0x28] sm:$0xff]
      %v429 = vld [vmem:[%s413 + $0x30] sm:$0xff]
      %v430 = vld [vmem:[%s413 + $0x38] sm:$0xff]
      %v431 = vld [vmem:[%s413 + $0x40] sm:$0xff]
      %v432 = vld [vmem:[%s413 + $0x48] sm:$0xff]
      %v433 = vld [vmem:[%s413 + $0x50] sm:$0xff]
      %v434 = vld [vmem:[%s413 + $0x58] sm:$0xff]
      %v435 = vld [vmem:[%s413 + $0x60] sm:$0xff]
      %v436 = vld [vmem:[%s413 + $0x68] sm:$0xff]
      %v437 = vld [vmem:[%s413 + $0x70] sm:$0xff]
      %v438 = vld [vmem:[%s413 + $0x78] sm:$0xff]
      %v439 = vld [vmem:[%s413 + $0x80] sm:$0xff]
      %v440 = vld [vmem:[%s413 + $0x88] sm:$0xff]
      %v441 = vld [vmem:[%s413 + $0x90] sm:$0xff]
      %v442 = vld [vmem:[%s413 + $0x98] sm:$0xff]
      %v443 = vld [vmem:[%s413 + $0xa0] sm:$0xff]
      %v444 = vld [vmem:[%s413 + $0xa8] sm:$0xff]
      %v445 = vld [vmem:[%s413 + $0xb0] sm:$0xff]
      %v446 = vld [vmem:[%s413 + $0xb8] sm:$0xff]
      %v447 = vld [vmem:[%s413 + $0xc0] sm:$0xff]
      %v448 = vld [vmem:[%s413 + $0xc8] sm:$0xff]
      %v449 = vld [vmem:[%s413 + $0xd0] sm:$0xff]
      %v450 = vld [vmem:[%s413 + $0xd8] sm:$0xff]
      %v451 = vld [vmem:[%s413 + $0xe0] sm:$0xff]
      %v452 = vld [vmem:[%s413 + $0xe8] sm:$0xff]
      %v453 = vld [vmem:[%s413 + $0xf0] sm:$0xff]
      %v454 = vld [vmem:[%s413 + $0xf8] sm:$0xff]
      %v455 = vld [vmem:[%s413 + $0x100] sm:$0xff]
      %v456 = vld [vmem:[%s413 + $0x108] sm:$0xff]
      %v457 = vld [vmem:[%s413 + $0x110] sm:$0xff]
      %v458 = vld [vmem:[%s413 + $0x118] sm:$0xff]
      %v459 = vld [vmem:[%s413 + $0x120] sm:$0xff]
      %v460 = vld [vmem:[%s413 + $0x128] sm:$0xff]
      %v461 = vld [vmem:[%s413 + $0x130] sm:$0xff]
      %v462 = vld [vmem:[%s413 + $0x138] sm:$0xff]
      %v463 = vld [vmem:[%s413 + $0x140] sm:$0xff]
      %v464 = vld [vmem:[%s413 + $0x148] sm:$0xff]
      %v465 = vld [vmem:[%s413 + $0x150] sm:$0xff]
      %v466 = vld [vmem:[%s413 + $0x158] sm:$0xff]
      %v467 = vld [vmem:[%s413 + $0x160] sm:$0xff]
      %v468 = vld [vmem:[%s413 + $0x168] sm:$0xff]
      %v469 = vld [vmem:[%s413 + $0x170] sm:$0xff]
      %v470 = vld [vmem:[%s413 + $0x178] sm:$0xff]
      %v471 = vld [vmem:[%s413 + $0x180] sm:$0xff]
      %v472 = vld [vmem:[%s413 + $0x188] sm:$0xff]
      %v473 = vld [vmem:[%s413 + $0x190] sm:$0xff]
      %v474 = vld [vmem:[%s413 + $0x198] sm:$0xff]
      %v475 = vld [vmem:[%s413 + $0x1a0] sm:$0xff]
      %v476 = vld [vmem:[%s413 + $0x1a8] sm:$0xff]
      %v477 = vld [vmem:[%s413 + $0x1b0] sm:$0xff]
      %v478 = vld [vmem:[%s413 + $0x1b8] sm:$0xff]
      %v479 = vld [vmem:[%s413 + $0x1c0] sm:$0xff]
      %v480 = vld [vmem:[%s413 + $0x1c8] sm:$0xff]
      %v481 = vld [vmem:[%s413 + $0x1d0] sm:$0xff]
      %v482 = vld [vmem:[%s413 + $0x1d8] sm:$0xff]
      %v483 = vld [vmem:[%s413 + $0x1e0] sm:$0xff]
      %v484 = vld [vmem:[%s413 + $0x1e8] sm:$0xff]
      %v485 = vld [vmem:[%s413 + $0x1f0] sm:$0xff]
      %v486 = vld [vmem:[%s413 + $0x1f8] sm:$0xff]
      %v487 = vld [vmem:[%s413 + $0x200] sm:$0xff]
      %v488 = vld [vmem:[%s413 + $0x208] sm:$0xff]
      %v489 = vld [vmem:[%s413 + $0x210] sm:$0xff]
      %v490 = vld [vmem:[%s413 + $0x218] sm:$0xff]
      %v491 = vld [vmem:[%s413 + $0x220] sm:$0xff]
      %v492 = vld [vmem:[%s413 + $0x228] sm:$0xff]
      %v493 = vld [vmem:[%s413 + $0x230] sm:$0xff]
      %v494 = vld [vmem:[%s413 + $0x238] sm:$0xff]
      %v495 = vld [vmem:[%s413 + $0x240] sm:$0xff]
      %v496 = vld [vmem:[%s413 + $0x248] sm:$0xff]
      %v497 = vld [vmem:[%s413 + $0x250] sm:$0xff]
      %v498 = vld [vmem:[%s413 + $0x258] sm:$0xff]
      %v499 = vld [vmem:[%s413 + $0x260] sm:$0xff]
      %v500 = vld [vmem:[%s413 + $0x268] sm:$0xff]
      %v501 = vld [vmem:[%s413 + $0x270] sm:$0xff]
      %v502 = vld [vmem:[%s413 + $0x278] sm:$0xff]
      %v503 = vld [vmem:[%s413 + $0x280] sm:$0xff]
      %v504 = vld [vmem:[%s413 + $0x288] sm:$0xff]
      %v505 = vld [vmem:[%s413 + $0x290] sm:$0xff]
      %v506 = vld [vmem:[%s413 + $0x298] sm:$0xff]
      %v507 = vld [vmem:[%s413 + $0x2a0] sm:$0xff]
      %v508 = vld [vmem:[%s413 + $0x2a8] sm:$0xff]
      %v509 = vld [vmem:[%s413 + $0x2b0] sm:$0xff]
      %v510 = vld [vmem:[%s413 + $0x2b8] sm:$0xff]
      %v511 = vld [vmem:[%s413 + $0x2c0] sm:$0xff]
      %v512 = vld [vmem:[%s413 + $0x2c8] sm:$0xff]
      %v513 = vld [vmem:[%s413 + $0x2d0] sm:$0xff]
      %v514 = vld [vmem:[%s413 + $0x2d8] sm:$0xff]
      %v515 = vld [vmem:[%s413 + $0x2e0] sm:$0xff]
      %v516 = vld [vmem:[%s413 + $0x2e8] sm:$0xff]
      %v517 = vld [vmem:[%s413 + $0x2f0] sm:$0xff]
      %v518 = vld [vmem:[%s413 + $0x2f8] sm:$0xff]
      %v519 = vld [vmem:[%s413 + $0x300] sm:$0xff]
      %v520 = vld [vmem:[%s413 + $0x308] sm:$0xff]
      %v521 = vld [vmem:[%s413 + $0x310] sm:$0xff]
      %v522 = vld [vmem:[%s413 + $0x318] sm:$0xff]
      %v523 = vld [vmem:[%s413 + $0x320] sm:$0xff]
      %v524 = vld [vmem:[%s413 + $0x328] sm:$0xff]
      %v525 = vld [vmem:[%s413 + $0x330] sm:$0xff]
      %v526 = vld [vmem:[%s413 + $0x338] sm:$0xff]
      %v527 = vld [vmem:[%s413 + $0x340] sm:$0xff]
      %v528 = vld [vmem:[%s413 + $0x348] sm:$0xff]
      %v529 = vld [vmem:[%s413 + $0x350] sm:$0xff]
      %v530 = vld [vmem:[%s413 + $0x358] sm:$0xff]
      %v531 = vld [vmem:[%s413 + $0x360] sm:$0xff]
      %v532 = vld [vmem:[%s413 + $0x368] sm:$0xff]
      %v533 = vld [vmem:[%s413 + $0x370] sm:$0xff]
      %v534 = vld [vmem:[%s413 + $0x378] sm:$0xff]
      %v535 = vld [vmem:[%s413 + $0x380] sm:$0xff]
      %v536 = vld [vmem:[%s413 + $0x388] sm:$0xff]
      %v537 = vld [vmem:[%s413 + $0x390] sm:$0xff]
      %v538 = vld [vmem:[%s413 + $0x398] sm:$0xff]
      %v539 = vld [vmem:[%s413 + $0x3a0] sm:$0xff]
      %v540 = vld [vmem:[%s413 + $0x3a8] sm:$0xff]
      %v541 = vld [vmem:[%s413 + $0x3b0] sm:$0xff]
      %v542 = vld [vmem:[%s413 + $0x3b8] sm:$0xff]
      %v543 = vld [vmem:[%s413 + $0x3c0] sm:$0xff]
      %v544 = vld [vmem:[%s413 + $0x3c8] sm:$0xff]
      %v545 = vld [vmem:[%s413 + $0x3d0] sm:$0xff]
      %v546 = vld [vmem:[%s413 + $0x3d8] sm:$0xff]
      %v547 = vld [vmem:[%s413 + $0x3e0] sm:$0xff]
      %v548 = vld [vmem:[%s413 + $0x3e8] sm:$0xff]
      %v549 = vld [vmem:[%s413 + $0x3f0] sm:$0xff]
      %v550 = vld [vmem:[%s413 + $0x3f8] sm:$0xff]
      %v551 = vld [vmem:[%s413 + $0x400] sm:$0xff]
      %v552 = vld [vmem:[%s413 + $0x408] sm:$0xff]
      %v553 = vld [vmem:[%s413 + $0x410] sm:$0xff]
      %v554 = vld [vmem:[%s413 + $0x418] sm:$0xff]
      %v555 = vld [vmem:[%s413 + $0x420] sm:$0xff]
      %v556 = vld [vmem:[%s413 + $0x428] sm:$0xff]
      %v557 = vld [vmem:[%s413 + $0x430] sm:$0xff]
      %v558 = vld [vmem:[%s413 + $0x438] sm:$0xff]
      %v559 = vld [vmem:[%s413 + $0x440] sm:$0xff]
      %v560 = vld [vmem:[%s413 + $0x448] sm:$0xff]
      %v561 = vld [vmem:[%s413 + $0x450] sm:$0xff]
      %v562 = vld [vmem:[%s413 + $0x458] sm:$0xff]
      %v563 = vld [vmem:[%s413 + $0x460] sm:$0xff]
      %v564 = vld [vmem:[%s413 + $0x468] sm:$0xff]
      %v565 = vld [vmem:[%s413 + $0x470] sm:$0xff]
      %v566 = vld [vmem:[%s413 + $0x478] sm:$0xff]
      %v567 = vld [vmem:[%s413 + $0x480] sm:$0xff]
      %v568 = vld [vmem:[%s413 + $0x488] sm:$0xff]
      %v569 = vld [vmem:[%s413 + $0x490] sm:$0xff]
      %v570 = vld [vmem:[%s413 + $0x498] sm:$0xff]
      %v571 = vld [vmem:[%s413 + $0x4a0] sm:$0xff]
      %v572 = vld [vmem:[%s413 + $0x4a8] sm:$0xff]
      %v573 = vld [vmem:[%s413 + $0x4b0] sm:$0xff]
      %v574 = vld [vmem:[%s413 + $0x4b8] sm:$0xff]
      %v575 = vld [vmem:[%s413 + $0x4c0] sm:$0xff]
      %v576 = vld [vmem:[%s413 + $0x4c8] sm:$0xff]
      %v577 = vld [vmem:[%s413 + $0x4d0] sm:$0xff]
      %v578 = vld [vmem:[%s413 + $0x4d8] sm:$0xff]
      %v579 = vld [vmem:[%s413 + $0x4e0] sm:$0xff]
      %v580 = vld [vmem:[%s413 + $0x4e8] sm:$0xff]
      %v581 = vld [vmem:[%s413 + $0x4f0] sm:$0xff]
      %v582 = vld [vmem:[%s413 + $0x4f8] sm:$0xff]
      %v583 = vld [vmem:[%s413 + $0x500] sm:$0xff]
      %v584 = vld [vmem:[%s413 + $0x508] sm:$0xff]
      %v585 = vld [vmem:[%s413 + $0x510] sm:$0xff]
      %v586 = vld [vmem:[%s413 + $0x518] sm:$0xff]
      %v587 = vld [vmem:[%s413 + $0x520] sm:$0xff]
      %v588 = vld [vmem:[%s413 + $0x528] sm:$0xff]
      %v589 = vld [vmem:[%s413 + $0x530] sm:$0xff]
      %v590 = vld [vmem:[%s413 + $0x538] sm:$0xff]
      %v591 = vld [vmem:[%s413 + $0x540] sm:$0xff]
      %v592 = vld [vmem:[%s413 + $0x548] sm:$0xff]
      %v593 = vld [vmem:[%s413 + $0x550] sm:$0xff]
      %v594 = vld [vmem:[%s413 + $0x558] sm:$0xff]
      %v595 = vld [vmem:[%s413 + $0x560] sm:$0xff]
      %v596 = vld [vmem:[%s413 + $0x568] sm:$0xff]
      %v597 = vld [vmem:[%s413 + $0x570] sm:$0xff]
      %v598 = vld [vmem:[%s413 + $0x578] sm:$0xff]
      %v599 = vld [vmem:[%s413 + $0x580] sm:$0xff]
      %v600 = vld [vmem:[%s413 + $0x588] sm:$0xff]
      %v601 = vld [vmem:[%s413 + $0x590] sm:$0xff]
      %v602 = vld [vmem:[%s413 + $0x598] sm:$0xff]
      %v603 = vld [vmem:[%s413 + $0x5a0] sm:$0xff]
      %v604 = vld [vmem:[%s413 + $0x5a8] sm:$0xff]
      %v605 = vld [vmem:[%s413 + $0x5b0] sm:$0xff]
      %v606 = vld [vmem:[%s413 + $0x5b8] sm:$0xff]
      %v607 = vld [vmem:[%s413 + $0x5c0] sm:$0xff]
      %v608 = vld [vmem:[%s413 + $0x5c8] sm:$0xff]
      %v609 = vld [vmem:[%s413 + $0x5d0] sm:$0xff]
      %v610 = vld [vmem:[%s413 + $0x5d8] sm:$0xff]
      %v611 = vld [vmem:[%s413 + $0x5e0] sm:$0xff]
      %v612 = vld [vmem:[%s413 + $0x5e8] sm:$0xff]
      %v613 = vld [vmem:[%s413 + $0x5f0] sm:$0xff]
      %v614 = vld [vmem:[%s413 + $0x5f8] sm:$0xff]
      %v615 = vld [vmem:[%s413 + $0x600] sm:$0xff]
      %v616 = vld [vmem:[%s413 + $0x608] sm:$0xff]
      %v617 = vld [vmem:[%s413 + $0x610] sm:$0xff]
      %v618 = vld [vmem:[%s413 + $0x618] sm:$0xff]
      %v619 = vld [vmem:[%s413 + $0x620] sm:$0xff]
      %v620 = vld [vmem:[%s413 + $0x628] sm:$0xff]
      %v621 = vld [vmem:[%s413 + $0x630] sm:$0xff]
      %v622 = vld [vmem:[%s413 + $0x638] sm:$0xff]
      %v623 = vld [vmem:[%s413 + $0x640] sm:$0xff]
      %v624 = vld [vmem:[%s413 + $0x648] sm:$0xff]
      %v625 = vld [vmem:[%s413 + $0x650] sm:$0xff]
      %v626 = vld [vmem:[%s413 + $0x658] sm:$0xff]
      %v627 = vld [vmem:[%s413 + $0x660] sm:$0xff]
      %v628 = vld [vmem:[%s413 + $0x668] sm:$0xff]
      %v629 = vld [vmem:[%s413 + $0x670] sm:$0xff]
      %v630 = vld [vmem:[%s413 + $0x678] sm:$0xff]
      %v631 = vld [vmem:[%s413 + $0x680] sm:$0xff]
      %v632 = vld [vmem:[%s413 + $0x688] sm:$0xff]
      %v633 = vld [vmem:[%s413 + $0x690] sm:$0xff]
      %v634 = vld [vmem:[%s413 + $0x698] sm:$0xff]
      %v635 = vld [vmem:[%s413 + $0x6a0] sm:$0xff]
      %v636 = vld [vmem:[%s413 + $0x6a8] sm:$0xff]
      %v637 = vld [vmem:[%s413 + $0x6b0] sm:$0xff]
      %v638 = vld [vmem:[%s413 + $0x6b8] sm:$0xff]
      %v639 = vld [vmem:[%s413 + $0x6c0] sm:$0xff]
      %v640 = vld [vmem:[%s413 + $0x6c8] sm:$0xff]
      %v641 = vld [vmem:[%s413 + $0x6d0] sm:$0xff]
      %v642 = vld [vmem:[%s413 + $0x6d8] sm:$0xff]
      %v643 = vld [vmem:[%s413 + $0x6e0] sm:$0xff]
      %v644 = vld [vmem:[%s413 + $0x6e8] sm:$0xff]
      %v645 = vld [vmem:[%s413 + $0x6f0] sm:$0xff]
      %v646 = vld [vmem:[%s413 + $0x6f8] sm:$0xff]
      %v647 = vld [vmem:[%s413 + $0x700] sm:$0xff]
      %v648 = vld [vmem:[%s413 + $0x708] sm:$0xff]
      %v649 = vld [vmem:[%s413 + $0x710] sm:$0xff]
      %v650 = vld [vmem:[%s413 + $0x718] sm:$0xff]
      %v651 = vld [vmem:[%s413 + $0x720] sm:$0xff]
      %v652 = vld [vmem:[%s413 + $0x728] sm:$0xff]
      %v653 = vld [vmem:[%s413 + $0x730] sm:$0xff]
      %v654 = vld [vmem:[%s413 + $0x738] sm:$0xff]
      %v655 = vld [vmem:[%s413 + $0x740] sm:$0xff]
      %v656 = vld [vmem:[%s413 + $0x748] sm:$0xff]
      %v657 = vld [vmem:[%s413 + $0x750] sm:$0xff]
      %v658 = vld [vmem:[%s413 + $0x758] sm:$0xff]
      %v659 = vld [vmem:[%s413 + $0x760] sm:$0xff]
      %v660 = vld [vmem:[%s413 + $0x768] sm:$0xff]
      %v661 = vld [vmem:[%s413 + $0x770] sm:$0xff]
      %v662 = vld [vmem:[%s413 + $0x778] sm:$0xff]
      %v663 = vld [vmem:[%s413 + $0x780] sm:$0xff]
      %v664 = vld [vmem:[%s413 + $0x788] sm:$0xff]
      %v665 = vld [vmem:[%s413 + $0x790] sm:$0xff]
      %v666 = vld [vmem:[%s413 + $0x798] sm:$0xff]
      %v667 = vld [vmem:[%s413 + $0x7a0] sm:$0xff]
      %v668 = vld [vmem:[%s413 + $0x7a8] sm:$0xff]
      %v669 = vld [vmem:[%s413 + $0x7b0] sm:$0xff]
      %v670 = vld [vmem:[%s413 + $0x7b8] sm:$0xff]
      %v671 = vld [vmem:[%s413 + $0x7c0] sm:$0xff]
      %v672 = vld [vmem:[%s413 + $0x7c8] sm:$0xff]
      %v673 = vld [vmem:[%s413 + $0x7d0] sm:$0xff]
      %v674 = vld [vmem:[%s413 + $0x7d8] sm:$0xff]
      %v675 = vld [vmem:[%s413 + $0x7e0] sm:$0xff]
      %v676 = vld [vmem:[%s413 + $0x7e8] sm:$0xff]
      %v677 = vld [vmem:[%s413 + $0x7f0] sm:$0xff]
      %v678 = vld [vmem:[%s413 + $0x7f8] sm:$0xff]
      %v679 = vld [vmem:[%s413 + $0x800] sm:$0xff]
      %v680 = vld [vmem:[%s413 + $0x808] sm:$0xff]
      %v681 = vld [vmem:[%s413 + $0x810] sm:$0xff]
      %v682 = vld [vmem:[%s413 + $0x818] sm:$0xff]
      %v683 = vld [vmem:[%s413 + $0x820] sm:$0xff]
      %v684 = vld [vmem:[%s413 + $0x828] sm:$0xff]
      %v685 = vld [vmem:[%s413 + $0x830] sm:$0xff]
      %v686 = vld [vmem:[%s413 + $0x838] sm:$0xff]
      %v687 = vld [vmem:[%s413 + $0x840] sm:$0xff]
      %v688 = vld [vmem:[%s413 + $0x848] sm:$0xff]
      %v689 = vld [vmem:[%s413 + $0x850] sm:$0xff]
      %v690 = vld [vmem:[%s413 + $0x858] sm:$0xff]
      %v691 = vld [vmem:[%s413 + $0x860] sm:$0xff]
      %v692 = vld [vmem:[%s413 + $0x868] sm:$0xff]
      %v693 = vld [vmem:[%s413 + $0x870] sm:$0xff]
      %v694 = vld [vmem:[%s413 + $0x878] sm:$0xff]
      %v695 = vld [vmem:[%s413 + $0x880] sm:$0xff]
      %v696 = vld [vmem:[%s413 + $0x888] sm:$0xff]
      %v697 = vld [vmem:[%s413 + $0x890] sm:$0xff]
      %v698 = vld [vmem:[%s413 + $0x898] sm:$0xff]
      %v699 = vld [vmem:[%s413 + $0x8a0] sm:$0xff]
      %v700 = vld [vmem:[%s413 + $0x8a8] sm:$0xff]
      %v701 = vld [vmem:[%s413 + $0x8b0] sm:$0xff]
      %v702 = vld [vmem:[%s413 + $0x8b8] sm:$0xff]
      %v703 = vld [vmem:[%s413 + $0x8c0] sm:$0xff]
      %v704 = vld [vmem:[%s413 + $0x8c8] sm:$0xff]
      %v705 = vld [vmem:[%s413 + $0x8d0] sm:$0xff]
      %v706 = vld [vmem:[%s413 + $0x8d8] sm:$0xff]
      %v707 = vld [vmem:[%s413 + $0x8e0] sm:$0xff]
      %v708 = vld [vmem:[%s413 + $0x8e8] sm:$0xff]
      %v709 = vld [vmem:[%s413 + $0x8f0] sm:$0xff]
      %v710 = vld [vmem:[%s413 + $0x8f8] sm:$0xff]
      %v711 = vld [vmem:[%s413 + $0x900] sm:$0xff]
      %v712 = vld [vmem:[%s413 + $0x908] sm:$0xff]
      %v713 = vld [vmem:[%s413 + $0x910] sm:$0xff]
      %v714 = vld [vmem:[%s413 + $0x918] sm:$0xff]
      %v715 = vld [vmem:[%s413 + $0x920] sm:$0xff]
      %v716 = vld [vmem:[%s413 + $0x928] sm:$0xff]
      %v717 = vld [vmem:[%s413 + $0x930] sm:$0xff]
      %v718 = vld [vmem:[%s413 + $0x938] sm:$0xff]
      %v719 = vld [vmem:[%s413 + $0x940] sm:$0xff]
      %v720 = vld [vmem:[%s413 + $0x948] sm:$0xff]
      %v721 = vld [vmem:[%s413 + $0x950] sm:$0xff]
      %v722 = vld [vmem:[%s413 + $0x958] sm:$0xff]
      %v723 = vld [vmem:[%s413 + $0x960] sm:$0xff]
      %v724 = vld [vmem:[%s413 + $0x968] sm:$0xff]
      %v725 = vld [vmem:[%s413 + $0x970] sm:$0xff]
      %v726 = vld [vmem:[%s413 + $0x978] sm:$0xff]
      %v727 = vld [vmem:[%s413 + $0x980] sm:$0xff]
      %v728 = vld [vmem:[%s413 + $0x988] sm:$0xff]
      %v729 = vld [vmem:[%s413 + $0x990] sm:$0xff]
      %v730 = vld [vmem:[%s413 + $0x998] sm:$0xff]
      %v731 = vld [vmem:[%s413 + $0x9a0] sm:$0xff]
      %v732 = vld [vmem:[%s413 + $0x9a8] sm:$0xff]
      %v733 = vld [vmem:[%s413 + $0x9b0] sm:$0xff]
      %v734 = vld [vmem:[%s413 + $0x9b8] sm:$0xff]
      %v735 = vld [vmem:[%s413 + $0x9c0] sm:$0xff]
      %v736 = vld [vmem:[%s413 + $0x9c8] sm:$0xff]
      %v737 = vld [vmem:[%s413 + $0x9d0] sm:$0xff]
      %v738 = vld [vmem:[%s413 + $0x9d8] sm:$0xff]
      %v739 = vld [vmem:[%s413 + $0x9e0] sm:$0xff]
      %v740 = vld [vmem:[%s413 + $0x9e8] sm:$0xff]
      %v741 = vld [vmem:[%s413 + $0x9f0] sm:$0xff]
      %v742 = vld [vmem:[%s413 + $0x9f8] sm:$0xff]
      %v743 = vld [vmem:[%s413 + $0xa00] sm:$0xff]
      %v744 = vld [vmem:[%s413 + $0xa08] sm:$0xff]
      %v745 = vld [vmem:[%s413 + $0xa10] sm:$0xff]
      %v746 = vld [vmem:[%s413 + $0xa18] sm:$0xff]
      %v747 = vld [vmem:[%s413 + $0xa20] sm:$0xff]
      %v748 = vld [vmem:[%s413 + $0xa28] sm:$0xff]
      %v749 = vld [vmem:[%s413 + $0xa30] sm:$0xff]
      %v750 = vld [vmem:[%s413 + $0xa38] sm:$0xff]
      %v751 = vld [vmem:[%s413 + $0xa40] sm:$0xff]
      %v752 = vld [vmem:[%s413 + $0xa48] sm:$0xff]
      %v753 = vld [vmem:[%s413 + $0xa50] sm:$0xff]
      %v754 = vld [vmem:[%s413 + $0xa58] sm:$0xff]
      %v755 = vld [vmem:[%s413 + $0xa60] sm:$0xff]
      %v756 = vld [vmem:[%s413 + $0xa68] sm:$0xff]
      %v757 = vld [vmem:[%s413 + $0xa70] sm:$0xff]
      %v758 = vld [vmem:[%s413 + $0xa78] sm:$0xff]
      %v759 = vld [vmem:[%s413 + $0xa80] sm:$0xff]
      %v760 = vld [vmem:[%s413 + $0xa88] sm:$0xff]
      %v761 = vld [vmem:[%s413 + $0xa90] sm:$0xff]
      %v762 = vld [vmem:[%s413 + $0xa98] sm:$0xff]
      %v763 = vld [vmem:[%s413 + $0xaa0] sm:$0xff]
      %v764 = vld [vmem:[%s413 + $0xaa8] sm:$0xff]
      %v765 = vld [vmem:[%s413 + $0xab0] sm:$0xff]
      %v766 = vld [vmem:[%s413 + $0xab8] sm:$0xff]
      %v767 = vld [vmem:[%s413 + $0xac0] sm:$0xff]
      %v768 = vld [vmem:[%s413 + $0xac8] sm:$0xff]
      %v769 = vld [vmem:[%s413 + $0xad0] sm:$0xff]
      %v770 = vld [vmem:[%s413 + $0xad8] sm:$0xff]
      %v771 = vld [vmem:[%s413 + $0xae0] sm:$0xff]
      %v772 = vld [vmem:[%s413 + $0xae8] sm:$0xff]
      %v773 = vld [vmem:[%s413 + $0xaf0] sm:$0xff]
      %v774 = vld [vmem:[%s413 + $0xaf8] sm:$0xff]
      %v775 = vld [vmem:[%s413 + $0xb00] sm:$0xff]
      %v776 = vld [vmem:[%s413 + $0xb08] sm:$0xff]
      %v777 = vld [vmem:[%s413 + $0xb10] sm:$0xff]
      %v778 = vld [vmem:[%s413 + $0xb18] sm:$0xff]
      %v779 = vld [vmem:[%s413 + $0xb20] sm:$0xff]
      %v780 = vld [vmem:[%s413 + $0xb28] sm:$0xff]
      %v781 = vld [vmem:[%s413 + $0xb30] sm:$0xff]
      %v782 = vld [vmem:[%s413 + $0xb38] sm:$0xff]
      %v783 = vld [vmem:[%s413 + $0xb40] sm:$0xff]
      %v784 = vld [vmem:[%s413 + $0xb48] sm:$0xff]
      %v785 = vld [vmem:[%s413 + $0xb50] sm:$0xff]
      %v786 = vld [vmem:[%s413 + $0xb58] sm:$0xff]
      %v787 = vld [vmem:[%s413 + $0xb60] sm:$0xff]
      %v788 = vld [vmem:[%s413 + $0xb68] sm:$0xff]
      %v789 = vld [vmem:[%s413 + $0xb70] sm:$0xff]
      %v790 = vld [vmem:[%s413 + $0xb78] sm:$0xff]
      %v791 = vld [vmem:[%s413 + $0xb80] sm:$0xff]
      %v792 = vld [vmem:[%s413 + $0xb88] sm:$0xff]
      %v793 = vld [vmem:[%s413 + $0xb90] sm:$0xff]
      %v794 = vld [vmem:[%s413 + $0xb98] sm:$0xff]
      %v795 = vld [vmem:[%s413 + $0xba0] sm:$0xff]
      %v796 = vld [vmem:[%s413 + $0xba8] sm:$0xff]
      %v797 = vld [vmem:[%s413 + $0xbb0] sm:$0xff]
      %v798 = vld [vmem:[%s413 + $0xbb8] sm:$0xff]
      %v799 = vld [vmem:[%s413 + $0xbc0] sm:$0xff]
      %v800 = vld [vmem:[%s413 + $0xbc8] sm:$0xff]
      %v801 = vld [vmem:[%s413 + $0xbd0] sm:$0xff]
      %v802 = vld [vmem:[%s413 + $0xbd8] sm:$0xff]
      %v803 = vld [vmem:[%s413 + $0xbe0] sm:$0xff]
      %v804 = vld [vmem:[%s413 + $0xbe8] sm:$0xff]
      %v805 = vld [vmem:[%s413 + $0xbf0] sm:$0xff]
      %v806 = vld [vmem:[%s413 + $0xbf8] sm:$0xff]
      %v807 = vld [vmem:[%s413 + $0xc00] sm:$0xff]
      %v808 = vld [vmem:[%s413 + $0xc08] sm:$0xff]
      %v809 = vld [vmem:[%s413 + $0xc10] sm:$0xff]
      %v810 = vld [vmem:[%s413 + $0xc18] sm:$0xff]
      %v811 = vld [vmem:[%s413 + $0xc20] sm:$0xff]
      %v812 = vld [vmem:[%s413 + $0xc28] sm:$0xff]
      %v813 = vld [vmem:[%s413 + $0xc30] sm:$0xff]
      %v814 = vld [vmem:[%s413 + $0xc38] sm:$0xff]
      %v815 = vld [vmem:[%s413 + $0xc40] sm:$0xff]
      %v816 = vld [vmem:[%s413 + $0xc48] sm:$0xff]
      %v817 = vld [vmem:[%s413 + $0xc50] sm:$0xff]
      %v818 = vld [vmem:[%s413 + $0xc58] sm:$0xff]
      %v819 = vld [vmem:[%s413 + $0xc60] sm:$0xff]
      %v820 = vld [vmem:[%s413 + $0xc68] sm:$0xff]
      %v821 = vld [vmem:[%s413 + $0xc70] sm:$0xff]
      %v822 = vld [vmem:[%s413 + $0xc78] sm:$0xff]
      %v823 = vld [vmem:[%s413 + $0xc80] sm:$0xff]
      %v824 = vld [vmem:[%s413 + $0xc88] sm:$0xff]
      %v825 = vld [vmem:[%s413 + $0xc90] sm:$0xff]
      %v826 = vld [vmem:[%s413 + $0xc98] sm:$0xff]
      %v827 = vld [vmem:[%s413 + $0xca0] sm:$0xff]
      %v828 = vld [vmem:[%s413 + $0xca8] sm:$0xff]
      %v829 = vld [vmem:[%s413 + $0xcb0] sm:$0xff]
      %v830 = vld [vmem:[%s413 + $0xcb8] sm:$0xff]
      %v831 = vld [vmem:[%s413 + $0xcc0] sm:$0xff]
      %v832 = vld [vmem:[%s413 + $0xcc8] sm:$0xff]
      %v833 = vld [vmem:[%s413 + $0xcd0] sm:$0xff]
      %v834 = vld [vmem:[%s413 + $0xcd8] sm:$0xff]
      %v835 = vld [vmem:[%s413 + $0xce0] sm:$0xff]
      %v836 = vld [vmem:[%s413 + $0xce8] sm:$0xff]
      %v837 = vld [vmem:[%s413 + $0xcf0] sm:$0xff]
      %v838 = vld [vmem:[%s413 + $0xcf8] sm:$0xff]
      %v839 = vld [vmem:[%s413 + $0xd00] sm:$0xff]
      %v840 = vld [vmem:[%s413 + $0xd08] sm:$0xff]
      %v841 = vld [vmem:[%s413 + $0xd10] sm:$0xff]
      %v842 = vld [vmem:[%s413 + $0xd18] sm:$0xff]
      %v843 = vld [vmem:[%s413 + $0xd20] sm:$0xff]
      %v844 = vld [vmem:[%s413 + $0xd28] sm:$0xff]
      %v845 = vld [vmem:[%s413 + $0xd30] sm:$0xff]
      %v846 = vld [vmem:[%s413 + $0xd38] sm:$0xff]
      %v847 = vld [vmem:[%s413 + $0xd40] sm:$0xff]
      %v848 = vld [vmem:[%s413 + $0xd48] sm:$0xff]
      %v849 = vld [vmem:[%s413 + $0xd50] sm:$0xff]
      %v850 = vld [vmem:[%s413 + $0xd58] sm:$0xff]
      %v851 = vld [vmem:[%s413 + $0xd60] sm:$0xff]
      %v852 = vld [vmem:[%s413 + $0xd68] sm:$0xff]
      %v853 = vld [vmem:[%s413 + $0xd70] sm:$0xff]
      %v854 = vld [vmem:[%s413 + $0xd78] sm:$0xff]
      %v855 = vld [vmem:[%s413 + $0xd80] sm:$0xff]
      %v856 = vld [vmem:[%s413 + $0xd88] sm:$0xff]
      %v857 = vld [vmem:[%s413 + $0xd90] sm:$0xff]
      %v858 = vld [vmem:[%s413 + $0xd98] sm:$0xff]
      %v859 = vld [vmem:[%s413 + $0xda0] sm:$0xff]
      %v860 = vld [vmem:[%s413 + $0xda8] sm:$0xff]
      %v861 = vld [vmem:[%s413 + $0xdb0] sm:$0xff]
      %v862 = vld [vmem:[%s413 + $0xdb8] sm:$0xff]
      %v863 = vld [vmem:[%s413 + $0xdc0] sm:$0xff]
      %v864 = vld [vmem:[%s413 + $0xdc8] sm:$0xff]
      %v865 = vld [vmem:[%s413 + $0xdd0] sm:$0xff]
      %v866 = vld [vmem:[%s413 + $0xdd8] sm:$0xff]
      %v867 = vld [vmem:[%s413 + $0xde0] sm:$0xff]
      %v868 = vld [vmem:[%s413 + $0xde8] sm:$0xff]
      %v869 = vld [vmem:[%s413 + $0xdf0] sm:$0xff]
      %v870 = vld [vmem:[%s413 + $0xdf8] sm:$0xff]
      %v871 = vpack.c.bf16 %v430, %v423
      %v872 = vpack.c.bf16 %v431, %v424
      %v873 = vpack.c.bf16 %v432, %v425
      %v874 = vpack.c.bf16 %v433, %v426
      %v875 = vpack.c.bf16 %v434, %v427
      %v876 = vpack.c.bf16 %v435, %v428
      %v877 = vpack.c.bf16 %v436, %v429
      %v878 = vpack.c.bf16 %v444, %v437
      %v879 = vpack.c.bf16 %v445, %v438
      %v880 = vpack.c.bf16 %v446, %v439
      %v881 = vpack.c.bf16 %v447, %v440
      %v882 = vpack.c.bf16 %v448, %v441
      %v883 = vpack.c.bf16 %v449, %v442
      %v884 = vpack.c.bf16 %v450, %v443
      %v885 = vpack.c.bf16 %v458, %v451
      %v886 = vpack.c.bf16 %v459, %v452
      %v887 = vpack.c.bf16 %v460, %v453
      %v888 = vpack.c.bf16 %v461, %v454
      %v889 = vpack.c.bf16 %v462, %v455
      %v890 = vpack.c.bf16 %v463, %v456
      %v891 = vpack.c.bf16 %v464, %v457
      %v892 = vpack.c.bf16 %v472, %v465
      %v893 = vpack.c.bf16 %v473, %v466
      %v894 = vpack.c.bf16 %v474, %v467
      %v895 = vpack.c.bf16 %v475, %v468
      %v896 = vpack.c.bf16 %v476, %v469
      %v897 = vpack.c.bf16 %v477, %v470
      %v898 = vpack.c.bf16 %v478, %v471
      %v899 = vpack.c.bf16 %v486, %v479
      %v900 = vpack.c.bf16 %v487, %v480
      %v901 = vpack.c.bf16 %v488, %v481
      %v902 = vpack.c.bf16 %v489, %v482
      %v903 = vpack.c.bf16 %v490, %v483
      %v904 = vpack.c.bf16 %v491, %v484
      %v905 = vpack.c.bf16 %v492, %v485
      %v906 = vpack.c.bf16 %v500, %v493
      %v907 = vpack.c.bf16 %v501, %v494
      %v908 = vpack.c.bf16 %v502, %v495
      %v909 = vpack.c.bf16 %v503, %v496
      %v910 = vpack.c.bf16 %v504, %v497
      %v911 = vpack.c.bf16 %v505, %v498
      %v912 = vpack.c.bf16 %v506, %v499
      %v913 = vpack.c.bf16 %v514, %v507
      %v914 = vpack.c.bf16 %v515, %v508
      %v915 = vpack.c.bf16 %v516, %v509
      %v916 = vpack.c.bf16 %v517, %v510
      %v917 = vpack.c.bf16 %v518, %v511
      %v918 = vpack.c.bf16 %v519, %v512
      %v919 = vpack.c.bf16 %v520, %v513
      %v920 = vpack.c.bf16 %v528, %v521
      %v921 = vpack.c.bf16 %v529, %v522
      %v922 = vpack.c.bf16 %v530, %v523
      %v923 = vpack.c.bf16 %v531, %v524
      %v924 = vpack.c.bf16 %v532, %v525
      %v925 = vpack.c.bf16 %v533, %v526
      %v926 = vpack.c.bf16 %v534, %v527
      %v927 = vpack.c.bf16 %v542, %v535
      %v928 = vpack.c.bf16 %v543, %v536
      %v929 = vpack.c.bf16 %v544, %v537
      %v930 = vpack.c.bf16 %v545, %v538
      %v931 = vpack.c.bf16 %v546, %v539
      %v932 = vpack.c.bf16 %v547, %v540
      %v933 = vpack.c.bf16 %v548, %v541
      %v934 = vpack.c.bf16 %v556, %v549
      %v935 = vpack.c.bf16 %v557, %v550
      %v936 = vpack.c.bf16 %v558, %v551
      %v937 = vpack.c.bf16 %v559, %v552
      %v938 = vpack.c.bf16 %v560, %v553
      %v939 = vpack.c.bf16 %v561, %v554
      %v940 = vpack.c.bf16 %v562, %v555
      %v941 = vpack.c.bf16 %v570, %v563
      %v942 = vpack.c.bf16 %v571, %v564
      %v943 = vpack.c.bf16 %v572, %v565
      %v944 = vpack.c.bf16 %v573, %v566
      %v945 = vpack.c.bf16 %v574, %v567
      %v946 = vpack.c.bf16 %v575, %v568
      %v947 = vpack.c.bf16 %v576, %v569
      %v948 = vpack.c.bf16 %v584, %v577
      %v949 = vpack.c.bf16 %v585, %v578
      %v950 = vpack.c.bf16 %v586, %v579
      %v951 = vpack.c.bf16 %v587, %v580
      %v952 = vpack.c.bf16 %v588, %v581
      %v953 = vpack.c.bf16 %v589, %v582
      %v954 = vpack.c.bf16 %v590, %v583
      %v955 = vpack.c.bf16 %v598, %v591
      %v956 = vpack.c.bf16 %v599, %v592
      %v957 = vpack.c.bf16 %v600, %v593
      %v958 = vpack.c.bf16 %v601, %v594
      %v959 = vpack.c.bf16 %v602, %v595
      %v960 = vpack.c.bf16 %v603, %v596
      %v961 = vpack.c.bf16 %v604, %v597
      %v962 = vpack.c.bf16 %v612, %v605
      %v963 = vpack.c.bf16 %v613, %v606
      %v964 = vpack.c.bf16 %v614, %v607
      %v965 = vpack.c.bf16 %v615, %v608
      %v966 = vpack.c.bf16 %v616, %v609
      %v967 = vpack.c.bf16 %v617, %v610
      %v968 = vpack.c.bf16 %v618, %v611
      %v969 = vpack.c.bf16 %v626, %v619
      %v970 = vpack.c.bf16 %v627, %v620
      %v971 = vpack.c.bf16 %v628, %v621
      %v972 = vpack.c.bf16 %v629, %v622
      %v973 = vpack.c.bf16 %v630, %v623
      %v974 = vpack.c.bf16 %v631, %v624
      %v975 = vpack.c.bf16 %v632, %v625
      %v976 = vpack.c.bf16 %v640, %v633
      %v977 = vpack.c.bf16 %v641, %v634
      %v978 = vpack.c.bf16 %v642, %v635
      %v979 = vpack.c.bf16 %v643, %v636
      %v980 = vpack.c.bf16 %v644, %v637
      %v981 = vpack.c.bf16 %v645, %v638
      %v982 = vpack.c.bf16 %v646, %v639
      %v983 = vpack.c.bf16 %v654, %v647
      %v984 = vpack.c.bf16 %v655, %v648
      %v985 = vpack.c.bf16 %v656, %v649
      %v986 = vpack.c.bf16 %v657, %v650
      %v987 = vpack.c.bf16 %v658, %v651
      %v988 = vpack.c.bf16 %v659, %v652
      %v989 = vpack.c.bf16 %v660, %v653
      %v990 = vpack.c.bf16 %v668, %v661
      %v991 = vpack.c.bf16 %v669, %v662
      %v992 = vpack.c.bf16 %v670, %v663
      %v993 = vpack.c.bf16 %v671, %v664
      %v994 = vpack.c.bf16 %v672, %v665
      %v995 = vpack.c.bf16 %v673, %v666
      %v996 = vpack.c.bf16 %v674, %v667
      %v997 = vpack.c.bf16 %v682, %v675
      %v998 = vpack.c.bf16 %v683, %v676
      %v999 = vpack.c.bf16 %v684, %v677
      %v1000 = vpack.c.bf16 %v685, %v678
      %v1001 = vpack.c.bf16 %v686, %v679
      %v1002 = vpack.c.bf16 %v687, %v680
      %v1003 = vpack.c.bf16 %v688, %v681
      %v1004 = vpack.c.bf16 %v696, %v689
      %v1005 = vpack.c.bf16 %v697, %v690
      %v1006 = vpack.c.bf16 %v698, %v691
      %v1007 = vpack.c.bf16 %v699, %v692
      %v1008 = vpack.c.bf16 %v700, %v693
      %v1009 = vpack.c.bf16 %v701, %v694
      %v1010 = vpack.c.bf16 %v702, %v695
      %v1011 = vpack.c.bf16 %v710, %v703
      %v1012 = vpack.c.bf16 %v711, %v704
      %v1013 = vpack.c.bf16 %v712, %v705
      %v1014 = vpack.c.bf16 %v713, %v706
      %v1015 = vpack.c.bf16 %v714, %v707
      %v1016 = vpack.c.bf16 %v715, %v708
      %v1017 = vpack.c.bf16 %v716, %v709
      %v1018 = vpack.c.bf16 %v724, %v717
      %v1019 = vpack.c.bf16 %v725, %v718
      %v1020 = vpack.c.bf16 %v726, %v719
      %v1021 = vpack.c.bf16 %v727, %v720
      %v1022 = vpack.c.bf16 %v728, %v721
      %v1023 = vpack.c.bf16 %v729, %v722
      %v1024 = vpack.c.bf16 %v730, %v723
      %v1025 = vpack.c.bf16 %v738, %v731
      %v1026 = vpack.c.bf16 %v739, %v732
      %v1027 = vpack.c.bf16 %v740, %v733
      %v1028 = vpack.c.bf16 %v741, %v734
      %v1029 = vpack.c.bf16 %v742, %v735
      %v1030 = vpack.c.bf16 %v743, %v736
      %v1031 = vpack.c.bf16 %v744, %v737
      %v1032 = vpack.c.bf16 %v752, %v745
      %v1033 = vpack.c.bf16 %v753, %v746
      %v1034 = vpack.c.bf16 %v754, %v747
      %v1035 = vpack.c.bf16 %v755, %v748
      %v1036 = vpack.c.bf16 %v756, %v749
      %v1037 = vpack.c.bf16 %v757, %v750
      %v1038 = vpack.c.bf16 %v758, %v751
      %v1039 = vpack.c.bf16 %v766, %v759
      %v1040 = vpack.c.bf16 %v767, %v760
      %v1041 = vpack.c.bf16 %v768, %v761
      %v1042 = vpack.c.bf16 %v769, %v762
      %v1043 = vpack.c.bf16 %v770, %v763
      %v1044 = vpack.c.bf16 %v771, %v764
      %v1045 = vpack.c.bf16 %v772, %v765
      %v1046 = vpack.c.bf16 %v780, %v773
      %v1047 = vpack.c.bf16 %v781, %v774
      %v1048 = vpack.c.bf16 %v782, %v775
      %v1049 = vpack.c.bf16 %v783, %v776
      %v1050 = vpack.c.bf16 %v784, %v777
      %v1051 = vpack.c.bf16 %v785, %v778
      %v1052 = vpack.c.bf16 %v786, %v779
      %v1053 = vpack.c.bf16 %v794, %v787
      %v1054 = vpack.c.bf16 %v795, %v788
      %v1055 = vpack.c.bf16 %v796, %v789
      %v1056 = vpack.c.bf16 %v797, %v790
      %v1057 = vpack.c.bf16 %v798, %v791
      %v1058 = vpack.c.bf16 %v799, %v792
      %v1059 = vpack.c.bf16 %v800, %v793
      %v1060 = vpack.c.bf16 %v808, %v801
      %v1061 = vpack.c.bf16 %v809, %v802
      %v1062 = vpack.c.bf16 %v810, %v803
      %v1063 = vpack.c.bf16 %v811, %v804
      %v1064 = vpack.c.bf16 %v812, %v805
      %v1065 = vpack.c.bf16 %v813, %v806
      %v1066 = vpack.c.bf16 %v814, %v807
      %v1067 = vpack.c.bf16 %v822, %v815
      %v1068 = vpack.c.bf16 %v823, %v816
      %v1069 = vpack.c.bf16 %v824, %v817
      %v1070 = vpack.c.bf16 %v825, %v818
      %v1071 = vpack.c.bf16 %v826, %v819
      %v1072 = vpack.c.bf16 %v827, %v820
      %v1073 = vpack.c.bf16 %v828, %v821
      %v1074 = vpack.c.bf16 %v836, %v829
      %v1075 = vpack.c.bf16 %v837, %v830
      %v1076 = vpack.c.bf16 %v838, %v831
      %v1077 = vpack.c.bf16 %v839, %v832
      %v1078 = vpack.c.bf16 %v840, %v833
      %v1079 = vpack.c.bf16 %v841, %v834
      %v1080 = vpack.c.bf16 %v842, %v835
      %v1081 = vpack.c.bf16 %v850, %v843
      %v1082 = vpack.c.bf16 %v851, %v844
      %v1083 = vpack.c.bf16 %v852, %v845
      %v1084 = vpack.c.bf16 %v853, %v846
      %v1085 = vpack.c.bf16 %v854, %v847
      %v1086 = vpack.c.bf16 %v855, %v848
      %v1087 = vpack.c.bf16 %v856, %v849
      %v1088 = vpack.c.bf16 %v864, %v857
      %v1089 = vpack.c.bf16 %v865, %v858
      %v1090 = vpack.c.bf16 %v866, %v859
      %v1091 = vpack.c.bf16 %v867, %v860
      %v1092 = vpack.c.bf16 %v868, %v861
      %v1093 = vpack.c.bf16 %v869, %v862
      %v1094 = vpack.c.bf16 %v870, %v863
      %v1095 = vld [vmem:[%s1] sm:$0xf]
      %v1096 = vld [vmem:[%s1 + $0x4] sm:$0xf]
      %v1097 = vld [vmem:[%s1 + $0x8] sm:$0xf]
      %v1098 = vld [vmem:[%s1 + $0xc] sm:$0xf]
      %v1099 = vld [vmem:[%s1 + $0x10] sm:$0xf]
      %v1100 = vld [vmem:[%s1 + $0x14] sm:$0xf]
      %v1101 = vld [vmem:[%s1 + $0x18] sm:$0xf]
      %v1102 = vld [vmem:[%s1 + $0x1c] sm:$0xf]
      %v1103 = vld [vmem:[%s1 + $0x20] sm:$0xf]
      %v1104 = vld [vmem:[%s1 + $0x24] sm:$0xf]
      %v1105 = vld [vmem:[%s1 + $0x28] sm:$0xf]
      %v1106 = vld [vmem:[%s1 + $0x2c] sm:$0xf]
      %v1107 = vld [vmem:[%s1 + $0x30] sm:$0xf]
      %v1108 = vld [vmem:[%s1 + $0x34] sm:$0xf]
      %v1109 = vld [vmem:[%s1 + $0x38] sm:$0xf]
      %v1110 = vld [vmem:[%s1 + $0x3c] sm:$0xf]
      %v1111 = vld [vmem:[%s1 + $0x40] sm:$0xf]
      %v1112 = vld [vmem:[%s1 + $0x44] sm:$0xf]
      %v1113 = vld [vmem:[%s1 + $0x48] sm:$0xf]
      %v1114 = vld [vmem:[%s1 + $0x4c] sm:$0xf]
      %v1115 = vld [vmem:[%s1 + $0x50] sm:$0xf]
      %v1116 = vld [vmem:[%s1 + $0x54] sm:$0xf]
      %v1117 = vld [vmem:[%s1 + $0x58] sm:$0xf]
      %v1118 = vld [vmem:[%s1 + $0x5c] sm:$0xf]
      %v1119 = vld [vmem:[%s1 + $0x60] sm:$0xf]
      %v1120 = vld [vmem:[%s1 + $0x64] sm:$0xf]
      %v1121 = vld [vmem:[%s1 + $0x68] sm:$0xf]
      %v1122 = vld [vmem:[%s1 + $0x6c] sm:$0xf]
      %v1123 = vld [vmem:[%s1 + $0x70] sm:$0xf]
      %v1124 = vld [vmem:[%s1 + $0x74] sm:$0xf]
      %v1125 = vld [vmem:[%s1 + $0x78] sm:$0xf]
      %v1126 = vld [vmem:[%s1 + $0x7c] sm:$0xf]
      %v1127 = vld [vmem:[%s1 + $0x80] sm:$0xf]
      %v1128 = vld [vmem:[%s1 + $0x84] sm:$0xf]
      %v1129 = vld [vmem:[%s1 + $0x88] sm:$0xf]
      %v1130 = vld [vmem:[%s1 + $0x8c] sm:$0xf]
      %v1131 = vld [vmem:[%s1 + $0x90] sm:$0xf]
      %v1132 = vld [vmem:[%s1 + $0x94] sm:$0xf]
      %v1133 = vld [vmem:[%s1 + $0x98] sm:$0xf]
      %v1134 = vld [vmem:[%s1 + $0x9c] sm:$0xf]
      %v1135 = vld [vmem:[%s1 + $0xa0] sm:$0xf]
      %v1136 = vld [vmem:[%s1 + $0xa4] sm:$0xf]
      %v1137 = vld [vmem:[%s1 + $0xa8] sm:$0xf]
      %v1138 = vld [vmem:[%s1 + $0xac] sm:$0xf]
      %v1139 = vld [vmem:[%s1 + $0xb0] sm:$0xf]
      %v1140 = vld [vmem:[%s1 + $0xb4] sm:$0xf]
      %v1141 = vld [vmem:[%s1 + $0xb8] sm:$0xf]
      %v1142 = vld [vmem:[%s1 + $0xbc] sm:$0xf]
      %v1143 = vld [vmem:[%s1 + $0xc0] sm:$0xf]
      %v1144 = vld [vmem:[%s1 + $0xc4] sm:$0xf]
      %v1145 = vld [vmem:[%s1 + $0xc8] sm:$0xf]
      %v1146 = vld [vmem:[%s1 + $0xcc] sm:$0xf]
      %v1147 = vld [vmem:[%s1 + $0xd0] sm:$0xf]
      %v1148 = vld [vmem:[%s1 + $0xd4] sm:$0xf]
      %v1149 = vld [vmem:[%s1 + $0xd8] sm:$0xf]
      %v1150 = vld [vmem:[%s1 + $0xdc] sm:$0xf]
      %v1151 = vld [vmem:[%s1 + $0xe0] sm:$0xf]
      %v1152 = vld [vmem:[%s1 + $0xe4] sm:$0xf]
      %v1153 = vld [vmem:[%s1 + $0xe8] sm:$0xf]
      %v1154 = vld [vmem:[%s1 + $0xec] sm:$0xf]
      %v1155 = vld [vmem:[%s1 + $0xf0] sm:$0xf]
      %v1156 = vld [vmem:[%s1 + $0xf4] sm:$0xf]
      %v1157 = vld [vmem:[%s1 + $0xf8] sm:$0xf]
      %v1158 = vld [vmem:[%s1 + $0xfc] sm:$0xf]
      %v1159 = vld [vmem:[%s1 + $0x100] sm:$0xf]
      %v1160 = vld [vmem:[%s1 + $0x104] sm:$0xf]
      %v1161 = vld [vmem:[%s1 + $0x108] sm:$0xf]
      %v1162 = vld [vmem:[%s1 + $0x10c] sm:$0xf]
      %v1163 = vld [vmem:[%s1 + $0x110] sm:$0xf]
      %v1164 = vld [vmem:[%s1 + $0x114] sm:$0xf]
      %v1165 = vld [vmem:[%s1 + $0x118] sm:$0xf]
      %v1166 = vld [vmem:[%s1 + $0x11c] sm:$0xf]
      %v1167 = vld [vmem:[%s1 + $0x120] sm:$0xf]
      %v1168 = vld [vmem:[%s1 + $0x124] sm:$0xf]
      %v1169 = vld [vmem:[%s1 + $0x128] sm:$0xf]
      %v1170 = vld [vmem:[%s1 + $0x12c] sm:$0xf]
      %v1171 = vld [vmem:[%s1 + $0x130] sm:$0xf]
      %v1172 = vld [vmem:[%s1 + $0x134] sm:$0xf]
      %v1173 = vld [vmem:[%s1 + $0x138] sm:$0xf]
      %v1174 = vld [vmem:[%s1 + $0x13c] sm:$0xf]
      %v1175 = vld [vmem:[%s1 + $0x140] sm:$0xf]
      %v1176 = vld [vmem:[%s1 + $0x144] sm:$0xf]
      %v1177 = vld [vmem:[%s1 + $0x148] sm:$0xf]
      %v1178 = vld [vmem:[%s1 + $0x14c] sm:$0xf]
      %v1179 = vld [vmem:[%s1 + $0x150] sm:$0xf]
      %v1180 = vld [vmem:[%s1 + $0x154] sm:$0xf]
      %v1181 = vld [vmem:[%s1 + $0x158] sm:$0xf]
      %v1182 = vld [vmem:[%s1 + $0x15c] sm:$0xf]
      %v1183 = vld [vmem:[%s1 + $0x160] sm:$0xf]
      %v1184 = vld [vmem:[%s1 + $0x164] sm:$0xf]
      %v1185 = vld [vmem:[%s1 + $0x168] sm:$0xf]
      %v1186 = vld [vmem:[%s1 + $0x16c] sm:$0xf]
      %v1187 = vld [vmem:[%s1 + $0x170] sm:$0xf]
      %v1188 = vld [vmem:[%s1 + $0x174] sm:$0xf]
      %v1189 = vld [vmem:[%s1 + $0x178] sm:$0xf]
      %v1190 = vld [vmem:[%s1 + $0x17c] sm:$0xf]
      %v1191 = vld [vmem:[%s1 + $0x180] sm:$0xf]
      %v1192 = vld [vmem:[%s1 + $0x184] sm:$0xf]
      %v1193 = vld [vmem:[%s11] ss:$0 sm:$0xff]
      %v1292 = vunpack.c.l.b16 %v1095
      %v1293 = vunpack.c.l.b16 %v1096
      %v1294 = vunpack.c.l.b16 %v1097
      %v1295 = vunpack.c.l.b16 %v1098
      %v1296 = vunpack.c.l.b16 %v1099
      %v1297 = vunpack.c.l.b16 %v1100
      %v1298 = vunpack.c.l.b16 %v1101
      %v1299 = vunpack.c.l.b16 %v1102
      %v1300 = vunpack.c.l.b16 %v1103
      %v1301 = vunpack.c.l.b16 %v1104
      %v1302 = vunpack.c.l.b16 %v1105
      %v1303 = vunpack.c.l.b16 %v1106
      %v1304 = vunpack.c.l.b16 %v1107
      %v1305 = vunpack.c.l.b16 %v1108
      %v1306 = vunpack.c.l.b16 %v1109
      %v1307 = vunpack.c.l.b16 %v1110
      %v1308 = vunpack.c.l.b16 %v1111
      %v1309 = vunpack.c.l.b16 %v1112
      %v1310 = vunpack.c.l.b16 %v1113
      %v1311 = vunpack.c.l.b16 %v1114
      %v1312 = vunpack.c.l.b16 %v1115
      %v1313 = vunpack.c.l.b16 %v1116
      %v1314 = vunpack.c.l.b16 %v1117
      %v1315 = vunpack.c.l.b16 %v1118
      %v1316 = vunpack.c.l.b16 %v1119
      %v1317 = vunpack.c.l.b16 %v1120
      %v1318 = vunpack.c.l.b16 %v1121
      %v1319 = vunpack.c.l.b16 %v1122
      %v1320 = vunpack.c.l.b16 %v1123
      %v1321 = vunpack.c.l.b16 %v1124
      %v1322 = vunpack.c.l.b16 %v1125
      %v1323 = vunpack.c.l.b16 %v1126
      %v1324 = vunpack.c.l.b16 %v1127
      %v1325 = vunpack.c.l.b16 %v1128
      %v1326 = vunpack.c.l.b16 %v1129
      %v1327 = vunpack.c.l.b16 %v1130
      %v1328 = vunpack.c.l.b16 %v1131
      %v1329 = vunpack.c.l.b16 %v1132
      %v1330 = vunpack.c.l.b16 %v1133
      %v1331 = vunpack.c.l.b16 %v1134
      %v1332 = vunpack.c.l.b16 %v1135
      %v1333 = vunpack.c.l.b16 %v1136
      %v1334 = vunpack.c.l.b16 %v1137
      %v1335 = vunpack.c.l.b16 %v1138
      %v1336 = vunpack.c.l.b16 %v1139
      %v1337 = vunpack.c.l.b16 %v1140
      %v1338 = vunpack.c.l.b16 %v1141
      %v1339 = vunpack.c.l.b16 %v1142
      %v1340 = vunpack.c.l.b16 %v1143
      %v1341 = vunpack.c.l.b16 %v1144
      %v1342 = vunpack.c.l.b16 %v1145
      %v1343 = vunpack.c.l.b16 %v1146
      %v1344 = vunpack.c.l.b16 %v1147
      %v1345 = vunpack.c.l.b16 %v1148
      %v1346 = vunpack.c.l.b16 %v1149
      %v1347 = vunpack.c.l.b16 %v1150
      %v1348 = vunpack.c.l.b16 %v1151
      %v1349 = vunpack.c.l.b16 %v1152
      %v1350 = vunpack.c.l.b16 %v1153
      %v1351 = vunpack.c.l.b16 %v1154
      %v1352 = vunpack.c.l.b16 %v1155
      %v1353 = vunpack.c.l.b16 %v1156
      %v1354 = vunpack.c.l.b16 %v1157
      %v1355 = vunpack.c.l.b16 %v1158
      %v1356 = vunpack.c.l.b16 %v1159
      %v1357 = vunpack.c.l.b16 %v1160
      %v1358 = vunpack.c.l.b16 %v1161
      %v1359 = vunpack.c.l.b16 %v1162
      %v1360 = vunpack.c.l.b16 %v1163
      %v1361 = vunpack.c.l.b16 %v1164
      %v1362 = vunpack.c.l.b16 %v1165
      %v1363 = vunpack.c.l.b16 %v1166
      %v1364 = vunpack.c.l.b16 %v1167
      %v1365 = vunpack.c.l.b16 %v1168
      %v1366 = vunpack.c.l.b16 %v1169
      %v1367 = vunpack.c.l.b16 %v1170
      %v1368 = vunpack.c.l.b16 %v1171
      %v1369 = vunpack.c.l.b16 %v1172
      %v1370 = vunpack.c.l.b16 %v1173
      %v1371 = vunpack.c.l.b16 %v1174
      %v1372 = vunpack.c.l.b16 %v1175
      %v1373 = vunpack.c.l.b16 %v1176
      %v1374 = vunpack.c.l.b16 %v1177
      %v1375 = vunpack.c.l.b16 %v1178
      %v1376 = vunpack.c.l.b16 %v1179
      %v1377 = vunpack.c.l.b16 %v1180
      %v1378 = vunpack.c.l.b16 %v1181
      %v1379 = vunpack.c.l.b16 %v1182
      %v1380 = vunpack.c.l.b16 %v1183
      %v1381 = vunpack.c.l.b16 %v1184
      %v1382 = vunpack.c.l.b16 %v1185
      %v1383 = vunpack.c.l.b16 %v1186
      %v1384 = vunpack.c.l.b16 %v1187
      %v1385 = vunpack.c.l.b16 %v1188
      %v1386 = vunpack.c.l.b16 %v1189
      %v1387 = vunpack.c.l.b16 %v1190
      %v1388 = vunpack.c.l.b16 %v1191
      %v1389 = vunpack.c.l.b16 %v1192
      %v1390 = vpack.c.b16 %v1293, %v1292
      %v1391 = vpack.c.b16 %v1295, %v1294
      %v1392 = vpack.c.b16 %v1297, %v1296
      %v1393 = vpack.c.b16 %v1299, %v1298
      %v1394 = vpack.c.b16 %v1301, %v1300
      %v1395 = vpack.c.b16 %v1303, %v1302
      %v1396 = vpack.c.b16 %v1305, %v1304
      %v1397 = vpack.c.b16 %v1307, %v1306
      %v1398 = vpack.c.b16 %v1309, %v1308
      %v1399 = vpack.c.b16 %v1311, %v1310
      %v1400 = vpack.c.b16 %v1313, %v1312
      %v1401 = vpack.c.b16 %v1315, %v1314
      %v1402 = vpack.c.b16 %v1317, %v1316
      %v1403 = vpack.c.b16 %v1319, %v1318
      %v1404 = vpack.c.b16 %v1321, %v1320
      %v1405 = vpack.c.b16 %v1323, %v1322
      %v1406 = vpack.c.b16 %v1325, %v1324
      %v1407 = vpack.c.b16 %v1327, %v1326
      %v1408 = vpack.c.b16 %v1329, %v1328
      %v1409 = vpack.c.b16 %v1331, %v1330
      %v1410 = vpack.c.b16 %v1333, %v1332
      %v1411 = vpack.c.b16 %v1335, %v1334
      %v1412 = vpack.c.b16 %v1337, %v1336
      %v1413 = vpack.c.b16 %v1339, %v1338
      %v1414 = vpack.c.b16 %v1341, %v1340
      %v1415 = vpack.c.b16 %v1343, %v1342
      %v1416 = vpack.c.b16 %v1345, %v1344
      %v1417 = vpack.c.b16 %v1347, %v1346
      %v1418 = vpack.c.b16 %v1349, %v1348
      %v1419 = vpack.c.b16 %v1351, %v1350
      %v1420 = vpack.c.b16 %v1353, %v1352
      %v1421 = vpack.c.b16 %v1355, %v1354
      %v1422 = vpack.c.b16 %v1357, %v1356
      %v1423 = vpack.c.b16 %v1359, %v1358
      %v1424 = vpack.c.b16 %v1361, %v1360
      %v1425 = vpack.c.b16 %v1363, %v1362
      %v1426 = vpack.c.b16 %v1365, %v1364
      %v1427 = vpack.c.b16 %v1367, %v1366
      %v1428 = vpack.c.b16 %v1369, %v1368
      %v1429 = vpack.c.b16 %v1371, %v1370
      %v1430 = vpack.c.b16 %v1373, %v1372
      %v1431 = vpack.c.b16 %v1375, %v1374
      %v1432 = vpack.c.b16 %v1377, %v1376
      %v1433 = vpack.c.b16 %v1379, %v1378
      %v1434 = vpack.c.b16 %v1381, %v1380
      %v1435 = vpack.c.b16 %v1383, %v1382
      %v1436 = vpack.c.b16 %v1385, %v1384
      %v1437 = vpack.c.b16 %v1387, %v1386
      %v1438 = vpack.c.b16 %v1389, %v1388
      %vm1488 = vcmask 130048
      %v1490 = vsel %vm1488, %v877, 0
      %v1493 = vsel %vm1488, %v884, 0
      %v1496 = vsel %vm1488, %v891, 0
      %v1499 = vsel %vm1488, %v898, 0
      %v1502 = vsel %vm1488, %v905, 0
      %v1505 = vsel %vm1488, %v912, 0
      %v1508 = vsel %vm1488, %v919, 0
      %v1511 = vsel %vm1488, %v926, 0
      %v1514 = vsel %vm1488, %v933, 0
      %v1517 = vsel %vm1488, %v940, 0
      %v1520 = vsel %vm1488, %v947, 0
      %v1523 = vsel %vm1488, %v954, 0
      %v1526 = vsel %vm1488, %v961, 0
      %v1529 = vsel %vm1488, %v968, 0
      %v1532 = vsel %vm1488, %v975, 0
      %v1535 = vsel %vm1488, %v982, 0
      %v1538 = vsel %vm1488, %v989, 0
      %v1541 = vsel %vm1488, %v996, 0
      %v1544 = vsel %vm1488, %v1003, 0
      %v1547 = vsel %vm1488, %v1010, 0
      %v1550 = vsel %vm1488, %v1017, 0
      %v1553 = vsel %vm1488, %v1024, 0
      %v1556 = vsel %vm1488, %v1031, 0
      %v1559 = vsel %vm1488, %v1038, 0
      %v1562 = vsel %vm1488, %v1045, 0
      %v1565 = vsel %vm1488, %v1052, 0
      %v1568 = vsel %vm1488, %v1059, 0
      %v1571 = vsel %vm1488, %v1066, 0
      %v1574 = vsel %vm1488, %v1073, 0
      %v1577 = vsel %vm1488, %v1080, 0
      %v1580 = vsel %vm1488, %v1087, 0
      %v1583 = vsel %vm1488, %v1094, 0
      %1585 = vmatprep.subr.bf16.mxu0 0
      %1586 = vmatpush1.bf16.msra.mxu0 %v1390
      %1587 = vmatprep.subr.bf16.mxu0 0
      %1588 = vmatpush1.bf16.msra.mxu0 %v1391
      %1589 = vmatprep.subr.bf16.mxu0 0
      %1590 = vmatpush1.bf16.msra.mxu0 %v1392
      %1591 = vmatprep.subr.bf16.mxu0 0
      %1592 = vmatpush1.bf16.msra.mxu0 %v1393
      %1593 = vmatprep.subr.bf16.mxu0 0
      %1594 = vmatpush1.bf16.msra.mxu0 %v1394
      %1595 = vmatprep.subr.bf16.mxu0 0
      %1596 = vmatpush1.bf16.msra.mxu0 %v1395
      %1597 = vmatprep.subr.bf16.mxu0 0
      %1598 = vmatpush1.bf16.msra.mxu0 %v1396
      %1599 = vmatprep.subr.bf16.mxu0 0
      %1600 = vmatpush1.bf16.msra.mxu0 %v1397
      %1601 = vmatprep.subr.bf16.mxu0 0
      %1602 = vmatpush1.bf16.msra.mxu0 %v1398
      %1603 = vmatprep.subr.bf16.mxu0 0
      %1604 = vmatpush1.bf16.msra.mxu0 %v1399
      %1605 = vmatprep.subr.bf16.mxu0 0
      %1606 = vmatpush1.bf16.msra.mxu0 %v1400
      %1607 = vmatprep.subr.bf16.mxu0 0
      %1608 = vmatpush1.bf16.msra.mxu0 %v1401
      %1609 = vmatprep.subr.bf16.mxu0 0
      %1610 = vmatpush1.bf16.msra.mxu0 %v1402
      %1611 = vmatprep.subr.bf16.mxu0 0
      %1612 = vmatpush1.bf16.msra.mxu0 %v1403
      %1613 = vmatprep.subr.bf16.mxu0 0
      %1614 = vmatpush1.bf16.msra.mxu0 %v1404
      %1615 = vmatprep.subr.bf16.mxu0 0
      %1616 = vmatpush1.bf16.msra.mxu0 %v1405
      %1617 = vmatprep.mubr.bf16.mxu0 %v872
      %1618 = vmatmul.mubr.bf16.gmra.mrb[0].mxu0 %v871
      %v1619 = vpop.f32.mrb[0].mxu0
      %v1620 = vadd.f32 %v1193, %v1619
      %v1621 = vpop.f32.mrb[0].mxu0
      %v1622 = vpop.f32.mrb[0].mxu0
      %v1623 = vadd.f32 %v1193, %v1622
      %v1624 = vpop.f32.mrb[0].mxu0
      %1625 = vmatprep.mubr.bf16.mxu0 %v879
      %1626 = vmatmul.mubr.bf16.gmra.mrb[0].mxu0 %v878
      %v1627 = vpop.f32.mrb[0].mxu0
      %v1628 = vadd.f32 %v1193, %v1627
      %v1629 = vpop.f32.mrb[0].mxu0
      %v1630 = vpop.f32.mrb[0].mxu0
      %v1631 = vadd.f32 %v1193, %v1630
      %v1632 = vpop.f32.mrb[0].mxu0
      %1633 = vmatprep.mubr.bf16.mxu0 %v886
      %1634 = vmatmul.mubr.bf16.gmra.mrb[0].mxu0 %v885
      %v1635 = vpop.f32.mrb[0].mxu0
      %v1636 = vadd.f32 %v1193, %v1635
      %v1637 = vpop.f32.mrb[0].mxu0
      %v1638 = vpop.f32.mrb[0].mxu0
      %v1639 = vadd.f32 %v1193, %v1638
      %v1640 = vpop.f32.mrb[0].mxu0
      %1641 = vmatprep.mubr.bf16.mxu0 %v893
      %1642 = vmatmul.mubr.bf16.gmra.mrb[0].mxu0 %v892
      %v1643 = vpop.f32.mrb[0].mxu0
      %v1644 = vadd.f32 %v1193, %v1643
      %v1645 = vpop.f32.mrb[0].mxu0
      %v1646 = vpop.f32.mrb[0].mxu0
      %v1647 = vadd.f32 %v1193, %v1646
      %v1648 = vpop.f32.mrb[0].mxu0
      %1649 = vmatprep.mubr.bf16.mxu0 %v900
      %1650 = vmatmul.mubr.bf16.gmra.mrb[0].mxu0 %v899
      %v1651 = vpop.f32.mrb[0].mxu0
      %v1652 = vadd.f32 %v1193, %v1651
      %v1653 = vpop.f32.mrb[0].mxu0
      %v1654 = vpop.f32.mrb[0].mxu0
      %v1655 = vadd.f32 %v1193, %v1654
      %v1656 = vpop.f32.mrb[0].mxu0
      %1657 = vmatprep.mubr.bf16.mxu0 %v907
      %1658 = vmatmul.mubr.bf16.gmra.mrb[0].mxu0 %v906
      %v1659 = vpop.f32.mrb[0].mxu0
      %v1660 = vadd.f32 %v1193, %v1659
      %v1661 = vpop.f32.mrb[0].mxu0
      %v1662 = vpop.f32.mrb[0].mxu0
      %v1663 = vadd.f32 %v1193, %v1662
      %v1664 = vpop.f32.mrb[0].mxu0
      %1665 = vmatprep.mubr.bf16.mxu0 %v914
      %1666 = vmatmul.mubr.bf16.gmra.mrb[0].mxu0 %v913
      %v1667 = vpop.f32.mrb[0].mxu0
      %v1668 = vadd.f32 %v1193, %v1667
      %v1669 = vpop.f32.mrb[0].mxu0
      %v1670 = vpop.f32.mrb[0].mxu0
      %v1671 = vadd.f32 %v1193, %v1670
      %v1672 = vpop.f32.mrb[0].mxu0
      %1673 = vmatprep.mubr.bf16.mxu0 %v921
      %1674 = vmatmul.mubr.bf16.gmra.mrb[0].mxu0 %v920
      %v1675 = vpop.f32.mrb[0].mxu0
      %v1676 = vadd.f32 %v1193, %v1675
      %v1677 = vpop.f32.mrb[0].mxu0
      %v1678 = vpop.f32.mrb[0].mxu0
      %v1679 = vadd.f32 %v1193, %v1678
      %v1680 = vpop.f32.mrb[0].mxu0
      %1681 = vmatprep.mubr.bf16.mxu0 %v928
      %1682 = vmatmul.mubr.bf16.gmra.mrb[0].mxu0 %v927
      %v1683 = vpop.f32.mrb[0].mxu0
      %v1684 = vadd.f32 %v1193, %v1683
      %v1685 = vpop.f32.mrb[0].mxu0
      %v1686 = vpop.f32.mrb[0].mxu0
      %v1687 = vadd.f32 %v1193, %v1686
      %v1688 = vpop.f32.mrb[0].mxu0
      %1689 = vmatprep.mubr.bf16.mxu0 %v935
      %1690 = vmatmul.mubr.bf16.gmra.mrb[0].mxu0 %v934
      %v1691 = vpop.f32.mrb[0].mxu0
      %v1692 = vadd.f32 %v1193, %v1691
      %v1693 = vpop.f32.mrb[0].mxu0
      %v1694 = vpop.f32.mrb[0].mxu0
      %v1695 = vadd.f32 %v1193, %v1694
      %v1696 = vpop.f32.mrb[0].mxu0
      %1697 = vmatprep.mubr.bf16.mxu0 %v942
      %1698 = vmatmul.mubr.bf16.gmra.mrb[0].mxu0 %v941
      %v1699 = vpop.f32.mrb[0].mxu0
      %v1700 = vadd.f32 %v1193, %v1699
      %v1701 = vpop.f32.mrb[0].mxu0
      %v1702 = vpop.f32.mrb[0].mxu0
      %v1703 = vadd.f32 %v1193, %v1702
      %v1704 = vpop.f32.mrb[0].mxu0
      %1705 = vmatprep.mubr.bf16.mxu0 %v949
      %1706 = vmatmul.mubr.bf16.gmra.mrb[0].mxu0 %v948
      %v1707 = vpop.f32.mrb[0].mxu0
      %v1708 = vadd.f32 %v1193, %v1707
      %v1709 = vpop.f32.mrb[0].mxu0
      %v1710 = vpop.f32.mrb[0].mxu0
      %v1711 = vadd.f32 %v1193, %v1710
      %v1712 = vpop.f32.mrb[0].mxu0
      %1713 = vmatprep.mubr.bf16.mxu0 %v956
      %1714 = vmatmul.mubr.bf16.gmra.mrb[0].mxu0 %v955
      %v1715 = vpop.f32.mrb[0].mxu0
      %v1716 = vadd.f32 %v1193, %v1715
      %v1717 = vpop.f32.mrb[0].mxu0
      %v1718 = vpop.f32.mrb[0].mxu0
      %v1719 = vadd.f32 %v1193, %v1718
      %v1720 = vpop.f32.mrb[0].mxu0
      %1721 = vmatprep.mubr.bf16.mxu0 %v963
      %1722 = vmatmul.mubr.bf16.gmra.mrb[0].mxu0 %v962
      %v1723 = vpop.f32.mrb[0].mxu0
      %v1724 = vadd.f32 %v1193, %v1723
      %v1725 = vpop.f32.mrb[0].mxu0
      %v1726 = vpop.f32.mrb[0].mxu0
      %v1727 = vadd.f32 %v1193, %v1726
      %v1728 = vpop.f32.mrb[0].mxu0
      %1729 = vmatprep.mubr.bf16.mxu0 %v970
      %1730 = vmatmul.mubr.bf16.gmra.mrb[0].mxu0 %v969
      %v1731 = vpop.f32.mrb[0].mxu0
      %v1732 = vadd.f32 %v1193, %v1731
      %v1733 = vpop.f32.mrb[0].mxu0
      %v1734 = vpop.f32.mrb[0].mxu0
      %v1735 = vadd.f32 %v1193, %v1734
      %v1736 = vpop.f32.mrb[0].mxu0
      %1737 = vmatprep.mubr.bf16.mxu0 %v977
      %1738 = vmatmul.mubr.bf16.gmra.mrb[0].mxu0 %v976
      %v1739 = vpop.f32.mrb[0].mxu0
      %v1740 = vadd.f32 %v1193, %v1739
      %v1741 = vpop.f32.mrb[0].mxu0
      %v1742 = vpop.f32.mrb[0].mxu0
      %v1743 = vadd.f32 %v1193, %v1742
      %v1744 = vpop.f32.mrb[0].mxu0
      %1745 = vmatprep.mubr.bf16.mxu0 %v984
      %1746 = vmatmul.mubr.bf16.gmra.mrb[0].mxu0 %v983
      %v1747 = vpop.f32.mrb[0].mxu0
      %v1748 = vadd.f32 %v1193, %v1747
      %v1749 = vpop.f32.mrb[0].mxu0
      %v1750 = vpop.f32.mrb[0].mxu0
      %v1751 = vadd.f32 %v1193, %v1750
      %v1752 = vpop.f32.mrb[0].mxu0
      %1753 = vmatprep.mubr.bf16.mxu0 %v991
      %1754 = vmatmul.mubr.bf16.gmra.mrb[0].mxu0 %v990
      %v1755 = vpop.f32.mrb[0].mxu0
      %v1756 = vadd.f32 %v1193, %v1755
      %v1757 = vpop.f32.mrb[0].mxu0
      %v1758 = vpop.f32.mrb[0].mxu0
      %v1759 = vadd.f32 %v1193, %v1758
      %v1760 = vpop.f32.mrb[0].mxu0
      %1761 = vmatprep.mubr.bf16.mxu0 %v998
      %1762 = vmatmul.mubr.bf16.gmra.mrb[0].mxu0 %v997
      %v1763 = vpop.f32.mrb[0].mxu0
      %v1764 = vadd.f32 %v1193, %v1763
      %v1765 = vpop.f32.mrb[0].mxu0
      %v1766 = vpop.f32.mrb[0].mxu0
      %v1767 = vadd.f32 %v1193, %v1766
      %v1768 = vpop.f32.mrb[0].mxu0
      %1769 = vmatprep.mubr.bf16.mxu0 %v1005
      %1770 = vmatmul.mubr.bf16.gmra.mrb[0].mxu0 %v1004
      %v1771 = vpop.f32.mrb[0].mxu0
      %v1772 = vadd.f32 %v1193, %v1771
      %v1773 = vpop.f32.mrb[0].mxu0
      %v1774 = vpop.f32.mrb[0].mxu0
      %v1775 = vadd.f32 %v1193, %v1774
      %v1776 = vpop.f32.mrb[0].mxu0
      %1777 = vmatprep.mubr.bf16.mxu0 %v1012
      %1778 = vmatmul.mubr.bf16.gmra.mrb[0].mxu0 %v1011
      %v1779 = vpop.f32.mrb[0].mxu0
      %v1780 = vadd.f32 %v1193, %v1779
      %v1781 = vpop.f32.mrb[0].mxu0
      %v1782 = vpop.f32.mrb[0].mxu0
      %v1783 = vadd.f32 %v1193, %v1782
      %v1784 = vpop.f32.mrb[0].mxu0
      %1785 = vmatprep.mubr.bf16.mxu0 %v1019
      %1786 = vmatmul.mubr.bf16.gmra.mrb[0].mxu0 %v1018
      %v1787 = vpop.f32.mrb[0].mxu0
      %v1788 = vadd.f32 %v1193, %v1787
      %v1789 = vpop.f32.mrb[0].mxu0
      %v1790 = vpop.f32.mrb[0].mxu0
      %v1791 = vadd.f32 %v1193, %v1790
      %v1792 = vpop.f32.mrb[0].mxu0
      %1793 = vmatprep.mubr.bf16.mxu0 %v1026
      %1794 = vmatmul.mubr.bf16.gmra.mrb[0].mxu0 %v1025
      %v1795 = vpop.f32.mrb[0].mxu0
      %v1796 = vadd.f32 %v1193, %v1795
      %v1797 = vpop.f32.mrb[0].mxu0
      %v1798 = vpop.f32.mrb[0].mxu0
      %v1799 = vadd.f32 %v1193, %v1798
      %v1800 = vpop.f32.mrb[0].mxu0
      %1801 = vmatprep.mubr.bf16.mxu0 %v1033
      %1802 = vmatmul.mubr.bf16.gmra.mrb[0].mxu0 %v1032
      %v1803 = vpop.f32.mrb[0].mxu0
      %v1804 = vadd.f32 %v1193, %v1803
      %v1805 = vpop.f32.mrb[0].mxu0
      %v1806 = vpop.f32.mrb[0].mxu0
      %v1807 = vadd.f32 %v1193, %v1806
      %v1808 = vpop.f32.mrb[0].mxu0
      %1809 = vmatprep.mubr.bf16.mxu0 %v1040
      %1810 = vmatmul.mubr.bf16.gmra.mrb[0].mxu0 %v1039
      %v1811 = vpop.f32.mrb[0].mxu0
      %v1812 = vadd.f32 %v1193, %v1811
      %v1813 = vpop.f32.mrb[0].mxu0
      %v1814 = vpop.f32.mrb[0].mxu0
      %v1815 = vadd.f32 %v1193, %v1814
      %v1816 = vpop.f32.mrb[0].mxu0
      %1817 = vmatprep.mubr.bf16.mxu0 %v1047
      %1818 = vmatmul.mubr.bf16.gmra.mrb[0].mxu0 %v1046
      %v1819 = vpop.f32.mrb[0].mxu0
      %v1820 = vadd.f32 %v1193, %v1819
      %v1821 = vpop.f32.mrb[0].mxu0
      %v1822 = vpop.f32.mrb[0].mxu0
      %v1823 = vadd.f32 %v1193, %v1822
      %v1824 = vpop.f32.mrb[0].mxu0
      %1825 = vmatprep.mubr.bf16.mxu0 %v1054
      %1826 = vmatmul.mubr.bf16.gmra.mrb[0].mxu0 %v1053
      %v1827 = vpop.f32.mrb[0].mxu0
      %v1828 = vadd.f32 %v1193, %v1827
      %v1829 = vpop.f32.mrb[0].mxu0
      %v1830 = vpop.f32.mrb[0].mxu0
      %v1831 = vadd.f32 %v1193, %v1830
      %v1832 = vpop.f32.mrb[0].mxu0
      %1833 = vmatprep.mubr.bf16.mxu0 %v1061
      %1834 = vmatmul.mubr.bf16.gmra.mrb[0].mxu0 %v1060
      %v1835 = vpop.f32.mrb[0].mxu0
      %v1836 = vadd.f32 %v1193, %v1835
      %v1837 = vpop.f32.mrb[0].mxu0
      %v1838 = vpop.f32.mrb[0].mxu0
      %v1839 = vadd.f32 %v1193, %v1838
      %v1840 = vpop.f32.mrb[0].mxu0
      %1841 = vmatprep.mubr.bf16.mxu0 %v1068
      %1842 = vmatmul.mubr.bf16.gmra.mrb[0].mxu0 %v1067
      %v1843 = vpop.f32.mrb[0].mxu0
      %v1844 = vadd.f32 %v1193, %v1843
      %v1845 = vpop.f32.mrb[0].mxu0
      %v1846 = vpop.f32.mrb[0].mxu0
      %v1847 = vadd.f32 %v1193, %v1846
      %v1848 = vpop.f32.mrb[0].mxu0
      %1849 = vmatprep.mubr.bf16.mxu0 %v1075
      %1850 = vmatmul.mubr.bf16.gmra.mrb[0].mxu0 %v1074
      %v1851 = vpop.f32.mrb[0].mxu0
      %v1852 = vadd.f32 %v1193, %v1851
      %v1853 = vpop.f32.mrb[0].mxu0
      %v1854 = vpop.f32.mrb[0].mxu0
      %v1855 = vadd.f32 %v1193, %v1854
      %v1856 = vpop.f32.mrb[0].mxu0
      %1857 = vmatprep.mubr.bf16.mxu0 %v1082
      %1858 = vmatmul.mubr.bf16.gmra.mrb[0].mxu0 %v1081
      %v1859 = vpop.f32.mrb[0].mxu0
      %v1860 = vadd.f32 %v1193, %v1859
      %v1861 = vpop.f32.mrb[0].mxu0
      %v1862 = vpop.f32.mrb[0].mxu0
      %v1863 = vadd.f32 %v1193, %v1862
      %v1864 = vpop.f32.mrb[0].mxu0
      %1865 = vmatprep.mubr.bf16.mxu0 %v1089
      %1866 = vmatmul.mubr.bf16.gmra.mrb[0].mxu0 %v1088
      %v1867 = vpop.f32.mrb[0].mxu0
      %v1868 = vadd.f32 %v1193, %v1867
      %v1869 = vpop.f32.mrb[0].mxu0
      %v1870 = vpop.f32.mrb[0].mxu0
      %v1871 = vadd.f32 %v1193, %v1870
      %v1872 = vpop.f32.mrb[0].mxu0
      %1873 = vdwg.mxu0
      %1874 = vmatprep.subr.bf16.mxu0 0
      %1875 = vmatpush1.bf16.msra.mxu0 %v1406
      %1876 = vmatprep.subr.bf16.mxu0 0
      %1877 = vmatpush1.bf16.msra.mxu0 %v1407
      %1878 = vmatprep.subr.bf16.mxu0 0
      %1879 = vmatpush1.bf16.msra.mxu0 %v1408
      %1880 = vmatprep.subr.bf16.mxu0 0
      %1881 = vmatpush1.bf16.msra.mxu0 %v1409
      %1882 = vmatprep.subr.bf16.mxu0 0
      %1883 = vmatpush1.bf16.msra.mxu0 %v1410
      %1884 = vmatprep.subr.bf16.mxu0 0
      %1885 = vmatpush1.bf16.msra.mxu0 %v1411
      %1886 = vmatprep.subr.bf16.mxu0 0
      %1887 = vmatpush1.bf16.msra.mxu0 %v1412
      %1888 = vmatprep.subr.bf16.mxu0 0
      %1889 = vmatpush1.bf16.msra.mxu0 %v1413
      %1890 = vmatprep.subr.bf16.mxu0 0
      %1891 = vmatpush1.bf16.msra.mxu0 %v1414
      %1892 = vmatprep.subr.bf16.mxu0 0
      %1893 = vmatpush1.bf16.msra.mxu0 %v1415
      %1894 = vmatprep.subr.bf16.mxu0 0
      %1895 = vmatpush1.bf16.msra.mxu0 %v1416
      %1896 = vmatprep.subr.bf16.mxu0 0
      %1897 = vmatpush1.bf16.msra.mxu0 %v1417
      %1898 = vmatprep.subr.bf16.mxu0 0
      %1899 = vmatpush1.bf16.msra.mxu0 %v1418
      %1900 = vmatprep.subr.bf16.mxu0 0
      %1901 = vmatpush1.bf16.msra.mxu0 %v1419
      %1902 = vmatprep.subr.bf16.mxu0 0
      %1903 = vmatpush1.bf16.msra.mxu0 %v1420
      %1904 = vmatprep.subr.bf16.mxu0 0
      %1905 = vmatpush1.bf16.msra.mxu0 %v1421
      %1906 = vmatprep.mubr.bf16.mxu0 %v874
      %1907 = vmatmul.mubr.bf16.gmra.mrb[0].mxu0 %v873
      %v1908 = vpop.f32.mrb[0].mxu0
      %v1909 = vadd.f32 %v1620, %v1908
      %v1910 = vpop.f32.mrb[0].mxu0
      %v1911 = vpop.f32.mrb[0].mxu0
      %v1912 = vadd.f32 %v1623, %v1911
      %v1913 = vpop.f32.mrb[0].mxu0
      %1914 = vmatprep.mubr.bf16.mxu0 %v881
      %1915 = vmatmul.mubr.bf16.gmra.mrb[0].mxu0 %v880
      %v1916 = vpop.f32.mrb[0].mxu0
      %v1917 = vadd.f32 %v1628, %v1916
      %v1918 = vpop.f32.mrb[0].mxu0
      %v1919 = vpop.f32.mrb[0].mxu0
      %v1920 = vadd.f32 %v1631, %v1919
      %v1921 = vpop.f32.mrb[0].mxu0
      %1922 = vmatprep.mubr.bf16.mxu0 %v888
      %1923 = vmatmul.mubr.bf16.gmra.mrb[0].mxu0 %v887
      %v1924 = vpop.f32.mrb[0].mxu0
      %v1925 = vadd.f32 %v1636, %v1924
      %v1926 = vpop.f32.mrb[0].mxu0
      %v1927 = vpop.f32.mrb[0].mxu0
      %v1928 = vadd.f32 %v1639, %v1927
      %v1929 = vpop.f32.mrb[0].mxu0
      %1930 = vmatprep.mubr.bf16.mxu0 %v895
      %1931 = vmatmul.mubr.bf16.gmra.mrb[0].mxu0 %v894
      %v1932 = vpop.f32.mrb[0].mxu0
      %v1933 = vadd.f32 %v1644, %v1932
      %v1934 = vpop.f32.mrb[0].mxu0
      %v1935 = vpop.f32.mrb[0].mxu0
      %v1936 = vadd.f32 %v1647, %v1935
      %v1937 = vpop.f32.mrb[0].mxu0
      %1938 = vmatprep.mubr.bf16.mxu0 %v902
      %1939 = vmatmul.mubr.bf16.gmra.mrb[0].mxu0 %v901
      %v1940 = vpop.f32.mrb[0].mxu0
      %v1941 = vadd.f32 %v1652, %v1940
      %v1942 = vpop.f32.mrb[0].mxu0
      %v1943 = vpop.f32.mrb[0].mxu0
      %v1944 = vadd.f32 %v1655, %v1943
      %v1945 = vpop.f32.mrb[0].mxu0
      %1946 = vmatprep.mubr.bf16.mxu0 %v909
      %1947 = vmatmul.mubr.bf16.gmra.mrb[0].mxu0 %v908
      %v1948 = vpop.f32.mrb[0].mxu0
      %v1949 = vadd.f32 %v1660, %v1948
      %v1950 = vpop.f32.mrb[0].mxu0
      %v1951 = vpop.f32.mrb[0].mxu0
      %v1952 = vadd.f32 %v1663, %v1951
      %v1953 = vpop.f32.mrb[0].mxu0
      %1954 = vmatprep.mubr.bf16.mxu0 %v916
      %1955 = vmatmul.mubr.bf16.gmra.mrb[0].mxu0 %v915
      %v1956 = vpop.f32.mrb[0].mxu0
      %v1957 = vadd.f32 %v1668, %v1956
      %v1958 = vpop.f32.mrb[0].mxu0
      %v1959 = vpop.f32.mrb[0].mxu0
      %v1960 = vadd.f32 %v1671, %v1959
      %v1961 = vpop.f32.mrb[0].mxu0
      %1962 = vmatprep.mubr.bf16.mxu0 %v923
      %1963 = vmatmul.mubr.bf16.gmra.mrb[0].mxu0 %v922
      %v1964 = vpop.f32.mrb[0].mxu0
      %v1965 = vadd.f32 %v1676, %v1964
      %v1966 = vpop.f32.mrb[0].mxu0
      %v1967 = vpop.f32.mrb[0].mxu0
      %v1968 = vadd.f32 %v1679, %v1967
      %v1969 = vpop.f32.mrb[0].mxu0
      %1970 = vmatprep.mubr.bf16.mxu0 %v930
      %1971 = vmatmul.mubr.bf16.gmra.mrb[0].mxu0 %v929
      %v1972 = vpop.f32.mrb[0].mxu0
      %v1973 = vadd.f32 %v1684, %v1972
      %v1974 = vpop.f32.mrb[0].mxu0
      %v1975 = vpop.f32.mrb[0].mxu0
      %v1976 = vadd.f32 %v1687, %v1975
      %v1977 = vpop.f32.mrb[0].mxu0
      %1978 = vmatprep.mubr.bf16.mxu0 %v937
      %1979 = vmatmul.mubr.bf16.gmra.mrb[0].mxu0 %v936
      %v1980 = vpop.f32.mrb[0].mxu0
      %v1981 = vadd.f32 %v1692, %v1980
      %v1982 = vpop.f32.mrb[0].mxu0
      %v1983 = vpop.f32.mrb[0].mxu0
      %v1984 = vadd.f32 %v1695, %v1983
      %v1985 = vpop.f32.mrb[0].mxu0
      %1986 = vmatprep.mubr.bf16.mxu0 %v944
      %1987 = vmatmul.mubr.bf16.gmra.mrb[0].mxu0 %v943
      %v1988 = vpop.f32.mrb[0].mxu0
      %v1989 = vadd.f32 %v1700, %v1988
      %v1990 = vpop.f32.mrb[0].mxu0
      %v1991 = vpop.f32.mrb[0].mxu0
      %v1992 = vadd.f32 %v1703, %v1991
      %v1993 = vpop.f32.mrb[0].mxu0
      %1994 = vmatprep.mubr.bf16.mxu0 %v951
      %1995 = vmatmul.mubr.bf16.gmra.mrb[0].mxu0 %v950
      %v1996 = vpop.f32.mrb[0].mxu0
      %v1997 = vadd.f32 %v1708, %v1996
      %v1998 = vpop.f32.mrb[0].mxu0
      %v1999 = vpop.f32.mrb[0].mxu0
      %v2000 = vadd.f32 %v1711, %v1999
      %v2001 = vpop.f32.mrb[0].mxu0
      %2002 = vmatprep.mubr.bf16.mxu0 %v958
      %2003 = vmatmul.mubr.bf16.gmra.mrb[0].mxu0 %v957
      %v2004 = vpop.f32.mrb[0].mxu0
      %v2005 = vadd.f32 %v1716, %v2004
      %v2006 = vpop.f32.mrb[0].mxu0
      %v2007 = vpop.f32.mrb[0].mxu0
      %v2008 = vadd.f32 %v1719, %v2007
      %v2009 = vpop.f32.mrb[0].mxu0
      %2010 = vmatprep.mubr.bf16.mxu0 %v965
      %2011 = vmatmul.mubr.bf16.gmra.mrb[0].mxu0 %v964
      %v2012 = vpop.f32.mrb[0].mxu0
      %v2013 = vadd.f32 %v1724, %v2012
      %v2014 = vpop.f32.mrb[0].mxu0
      %v2015 = vpop.f32.mrb[0].mxu0
      %v2016 = vadd.f32 %v1727, %v2015
      %v2017 = vpop.f32.mrb[0].mxu0
      %2018 = vmatprep.mubr.bf16.mxu0 %v972
      %2019 = vmatmul.mubr.bf16.gmra.mrb[0].mxu0 %v971
      %v2020 = vpop.f32.mrb[0].mxu0
      %v2021 = vadd.f32 %v1732, %v2020
      %v2022 = vpop.f32.mrb[0].mxu0
      %v2023 = vpop.f32.mrb[0].mxu0
      %v2024 = vadd.f32 %v1735, %v2023
      %v2025 = vpop.f32.mrb[0].mxu0
      %2026 = vmatprep.mubr.bf16.mxu0 %v979
      %2027 = vmatmul.mubr.bf16.gmra.mrb[0].mxu0 %v978
      %v2028 = vpop.f32.mrb[0].mxu0
      %v2029 = vadd.f32 %v1740, %v2028
      %v2030 = vpop.f32.mrb[0].mxu0
      %v2031 = vpop.f32.mrb[0].mxu0
      %v2032 = vadd.f32 %v1743, %v2031
      %v2033 = vpop.f32.mrb[0].mxu0
      %2034 = vmatprep.mubr.bf16.mxu0 %v986
      %2035 = vmatmul.mubr.bf16.gmra.mrb[0].mxu0 %v985
      %v2036 = vpop.f32.mrb[0].mxu0
      %v2037 = vadd.f32 %v1748, %v2036
      %v2038 = vpop.f32.mrb[0].mxu0
      %v2039 = vpop.f32.mrb[0].mxu0
      %v2040 = vadd.f32 %v1751, %v2039
      %v2041 = vpop.f32.mrb[0].mxu0
      %2042 = vmatprep.mubr.bf16.mxu0 %v993
      %2043 = vmatmul.mubr.bf16.gmra.mrb[0].mxu0 %v992
      %v2044 = vpop.f32.mrb[0].mxu0
      %v2045 = vadd.f32 %v1756, %v2044
      %v2046 = vpop.f32.mrb[0].mxu0
      %v2047 = vpop.f32.mrb[0].mxu0
      %v2048 = vadd.f32 %v1759, %v2047
      %v2049 = vpop.f32.mrb[0].mxu0
      %2050 = vmatprep.mubr.bf16.mxu0 %v1000
      %2051 = vmatmul.mubr.bf16.gmra.mrb[0].mxu0 %v999
      %v2052 = vpop.f32.mrb[0].mxu0
      %v2053 = vadd.f32 %v1764, %v2052
      %v2054 = vpop.f32.mrb[0].mxu0
      %v2055 = vpop.f32.mrb[0].mxu0
      %v2056 = vadd.f32 %v1767, %v2055
      %v2057 = vpop.f32.mrb[0].mxu0
      %2058 = vmatprep.mubr.bf16.mxu0 %v1007
      %2059 = vmatmul.mubr.bf16.gmra.mrb[0].mxu0 %v1006
      %v2060 = vpop.f32.mrb[0].mxu0
      %v2061 = vadd.f32 %v1772, %v2060
      %v2062 = vpop.f32.mrb[0].mxu0
      %v2063 = vpop.f32.mrb[0].mxu0
      %v2064 = vadd.f32 %v1775, %v2063
      %v2065 = vpop.f32.mrb[0].mxu0
      %2066 = vmatprep.mubr.bf16.mxu0 %v1014
      %2067 = vmatmul.mubr.bf16.gmra.mrb[0].mxu0 %v1013
      %v2068 = vpop.f32.mrb[0].mxu0
      %v2069 = vadd.f32 %v1780, %v2068
      %v2070 = vpop.f32.mrb[0].mxu0
      %v2071 = vpop.f32.mrb[0].mxu0
      %v2072 = vadd.f32 %v1783, %v2071
      %v2073 = vpop.f32.mrb[0].mxu0
      %2074 = vmatprep.mubr.bf16.mxu0 %v1021
      %2075 = vmatmul.mubr.bf16.gmra.mrb[0].mxu0 %v1020
      %v2076 = vpop.f32.mrb[0].mxu0
      %v2077 = vadd.f32 %v1788, %v2076
      %v2078 = vpop.f32.mrb[0].mxu0
      %v2079 = vpop.f32.mrb[0].mxu0
      %v2080 = vadd.f32 %v1791, %v2079
      %v2081 = vpop.f32.mrb[0].mxu0
      %2082 = vmatprep.mubr.bf16.mxu0 %v1028
      %2083 = vmatmul.mubr.bf16.gmra.mrb[0].mxu0 %v1027
      %v2084 = vpop.f32.mrb[0].mxu0
      %v2085 = vadd.f32 %v1796, %v2084
      %v2086 = vpop.f32.mrb[0].mxu0
      %v2087 = vpop.f32.mrb[0].mxu0
      %v2088 = vadd.f32 %v1799, %v2087
      %v2089 = vpop.f32.mrb[0].mxu0
      %2090 = vmatprep.mubr.bf16.mxu0 %v1035
      %2091 = vmatmul.mubr.bf16.gmra.mrb[0].mxu0 %v1034
      %v2092 = vpop.f32.mrb[0].mxu0
      %v2093 = vadd.f32 %v1804, %v2092
      %v2094 = vpop.f32.mrb[0].mxu0
      %v2095 = vpop.f32.mrb[0].mxu0
      %v2096 = vadd.f32 %v1807, %v2095
      %v2097 = vpop.f32.mrb[0].mxu0
      %2098 = vmatprep.mubr.bf16.mxu0 %v1042
      %2099 = vmatmul.mubr.bf16.gmra.mrb[0].mxu0 %v1041
      %v2100 = vpop.f32.mrb[0].mxu0
      %v2101 = vadd.f32 %v1812, %v2100
      %v2102 = vpop.f32.mrb[0].mxu0
      %v2103 = vpop.f32.mrb[0].mxu0
      %v2104 = vadd.f32 %v1815, %v2103
      %v2105 = vpop.f32.mrb[0].mxu0
      %2106 = vmatprep.mubr.bf16.mxu0 %v1049
      %2107 = vmatmul.mubr.bf16.gmra.mrb[0].mxu0 %v1048
      %v2108 = vpop.f32.mrb[0].mxu0
      %v2109 = vadd.f32 %v1820, %v2108
      %v2110 = vpop.f32.mrb[0].mxu0
      %v2111 = vpop.f32.mrb[0].mxu0
      %v2112 = vadd.f32 %v1823, %v2111
      %v2113 = vpop.f32.mrb[0].mxu0
      %2114 = vmatprep.mubr.bf16.mxu0 %v1056
      %2115 = vmatmul.mubr.bf16.gmra.mrb[0].mxu0 %v1055
      %v2116 = vpop.f32.mrb[0].mxu0
      %v2117 = vadd.f32 %v1828, %v2116
      %v2118 = vpop.f32.mrb[0].mxu0
      %v2119 = vpop.f32.mrb[0].mxu0
      %v2120 = vadd.f32 %v1831, %v2119
      %v2121 = vpop.f32.mrb[0].mxu0
      %2122 = vmatprep.mubr.bf16.mxu0 %v1063
      %2123 = vmatmul.mubr.bf16.gmra.mrb[0].mxu0 %v1062
      %v2124 = vpop.f32.mrb[0].mxu0
      %v2125 = vadd.f32 %v1836, %v2124
      %v2126 = vpop.f32.mrb[0].mxu0
      %v2127 = vpop.f32.mrb[0].mxu0
      %v2128 = vadd.f32 %v1839, %v2127
      %v2129 = vpop.f32.mrb[0].mxu0
      %2130 = vmatprep.mubr.bf16.mxu0 %v1070
      %2131 = vmatmul.mubr.bf16.gmra.mrb[0].mxu0 %v1069
      %v2132 = vpop.f32.mrb[0].mxu0
      %v2133 = vadd.f32 %v1844, %v2132
      %v2134 = vpop.f32.mrb[0].mxu0
      %v2135 = vpop.f32.mrb[0].mxu0
      %v2136 = vadd.f32 %v1847, %v2135
      %v2137 = vpop.f32.mrb[0].mxu0
      %2138 = vmatprep.mubr.bf16.mxu0 %v1077
      %2139 = vmatmul.mubr.bf16.gmra.mrb[0].mxu0 %v1076
      %v2140 = vpop.f32.mrb[0].mxu0
      %v2141 = vadd.f32 %v1852, %v2140
      %v2142 = vpop.f32.mrb[0].mxu0
      %v2143 = vpop.f32.mrb[0].mxu0
      %v2144 = vadd.f32 %v1855, %v2143
      %v2145 = vpop.f32.mrb[0].mxu0
      %2146 = vmatprep.mubr.bf16.mxu0 %v1084
      %2147 = vmatmul.mubr.bf16.gmra.mrb[0].mxu0 %v1083
      %v2148 = vpop.f32.mrb[0].mxu0
      %v2149 = vadd.f32 %v1860, %v2148
      %v2150 = vpop.f32.mrb[0].mxu0
      %v2151 = vpop.f32.mrb[0].mxu0
      %v2152 = vadd.f32 %v1863, %v2151
      %v2153 = vpop.f32.mrb[0].mxu0
      %2154 = vmatprep.mubr.bf16.mxu0 %v1091
      %2155 = vmatmul.mubr.bf16.gmra.mrb[0].mxu0 %v1090
      %v2156 = vpop.f32.mrb[0].mxu0
      %v2157 = vadd.f32 %v1868, %v2156
      %v2158 = vpop.f32.mrb[0].mxu0
      %v2159 = vpop.f32.mrb[0].mxu0
      %v2160 = vadd.f32 %v1871, %v2159
      %v2161 = vpop.f32.mrb[0].mxu0
      %2162 = vdwg.mxu0
      %2163 = vmatprep.subr.bf16.mxu0 0
      %2164 = vmatpush1.bf16.msra.mxu0 %v1422
      %2165 = vmatprep.subr.bf16.mxu0 0
      %2166 = vmatpush1.bf16.msra.mxu0 %v1423
      %2167 = vmatprep.subr.bf16.mxu0 0
      %2168 = vmatpush1.bf16.msra.mxu0 %v1424
      %2169 = vmatprep.subr.bf16.mxu0 0
      %2170 = vmatpush1.bf16.msra.mxu0 %v1425
      %2171 = vmatprep.subr.bf16.mxu0 0
      %2172 = vmatpush1.bf16.msra.mxu0 %v1426
      %2173 = vmatprep.subr.bf16.mxu0 0
      %2174 = vmatpush1.bf16.msra.mxu0 %v1427
      %2175 = vmatprep.subr.bf16.mxu0 0
      %2176 = vmatpush1.bf16.msra.mxu0 %v1428
      %2177 = vmatprep.subr.bf16.mxu0 0
      %2178 = vmatpush1.bf16.msra.mxu0 %v1429
      %2179 = vmatprep.subr.bf16.mxu0 0
      %2180 = vmatpush1.bf16.msra.mxu0 %v1430
      %2181 = vmatprep.subr.bf16.mxu0 0
      %2182 = vmatpush1.bf16.msra.mxu0 %v1431
      %2183 = vmatprep.subr.bf16.mxu0 0
      %2184 = vmatpush1.bf16.msra.mxu0 %v1432
      %2185 = vmatprep.subr.bf16.mxu0 0
      %2186 = vmatpush1.bf16.msra.mxu0 %v1433
      %2187 = vmatprep.subr.bf16.mxu0 0
      %2188 = vmatpush1.bf16.msra.mxu0 %v1434
      %2189 = vmatprep.subr.bf16.mxu0 0
      %2190 = vmatpush1.bf16.msra.mxu0 %v1435
      %2191 = vmatprep.subr.bf16.mxu0 0
      %2192 = vmatpush1.bf16.msra.mxu0 %v1436
      %2193 = vmatprep.subr.bf16.mxu0 0
      %2194 = vmatpush1.bf16.msra.mxu0 %v1437
      %2195 = vmatprep.mubr.bf16.mxu0 %v876
      %2196 = vmatmul.mubr.bf16.gmra.mrb[0].mxu0 %v875
      %v2197 = vpop.f32.mrb[0].mxu0
      %v2198 = vadd.f32 %v1909, %v2197
      %v2199 = vpop.f32.mrb[0].mxu0
      %v2200 = vpop.f32.mrb[0].mxu0
      %v2201 = vadd.f32 %v1912, %v2200
      %v2202 = vpop.f32.mrb[0].mxu0
      %2203 = vmatprep.mubr.bf16.mxu0 %v883
      %2204 = vmatmul.mubr.bf16.gmra.mrb[0].mxu0 %v882
      %v2205 = vpop.f32.mrb[0].mxu0
      %v2206 = vadd.f32 %v1917, %v2205
      %v2207 = vpop.f32.mrb[0].mxu0
      %v2208 = vpop.f32.mrb[0].mxu0
      %v2209 = vadd.f32 %v1920, %v2208
      %v2210 = vpop.f32.mrb[0].mxu0
      %2211 = vmatprep.mubr.bf16.mxu0 %v890
      %2212 = vmatmul.mubr.bf16.gmra.mrb[0].mxu0 %v889
      %v2213 = vpop.f32.mrb[0].mxu0
      %v2214 = vadd.f32 %v1925, %v2213
      %v2215 = vpop.f32.mrb[0].mxu0
      %v2216 = vpop.f32.mrb[0].mxu0
      %v2217 = vadd.f32 %v1928, %v2216
      %v2218 = vpop.f32.mrb[0].mxu0
      %2219 = vmatprep.mubr.bf16.mxu0 %v897
      %2220 = vmatmul.mubr.bf16.gmra.mrb[0].mxu0 %v896
      %v2221 = vpop.f32.mrb[0].mxu0
      %v2222 = vadd.f32 %v1933, %v2221
      %v2223 = vpop.f32.mrb[0].mxu0
      %v2224 = vpop.f32.mrb[0].mxu0
      %v2225 = vadd.f32 %v1936, %v2224
      %v2226 = vpop.f32.mrb[0].mxu0
      %2227 = vmatprep.mubr.bf16.mxu0 %v904
      %2228 = vmatmul.mubr.bf16.gmra.mrb[0].mxu0 %v903
      %v2229 = vpop.f32.mrb[0].mxu0
      %v2230 = vadd.f32 %v1941, %v2229
      %v2231 = vpop.f32.mrb[0].mxu0
      %v2232 = vpop.f32.mrb[0].mxu0
      %v2233 = vadd.f32 %v1944, %v2232
      %v2234 = vpop.f32.mrb[0].mxu0
      %2235 = vmatprep.mubr.bf16.mxu0 %v911
      %2236 = vmatmul.mubr.bf16.gmra.mrb[0].mxu0 %v910
      %v2237 = vpop.f32.mrb[0].mxu0
      %v2238 = vadd.f32 %v1949, %v2237
      %v2239 = vpop.f32.mrb[0].mxu0
      %v2240 = vpop.f32.mrb[0].mxu0
      %v2241 = vadd.f32 %v1952, %v2240
      %v2242 = vpop.f32.mrb[0].mxu0
      %2243 = vmatprep.mubr.bf16.mxu0 %v918
      %2244 = vmatmul.mubr.bf16.gmra.mrb[0].mxu0 %v917
      %v2245 = vpop.f32.mrb[0].mxu0
      %v2246 = vadd.f32 %v1957, %v2245
      %v2247 = vpop.f32.mrb[0].mxu0
      %v2248 = vpop.f32.mrb[0].mxu0
      %v2249 = vadd.f32 %v1960, %v2248
      %v2250 = vpop.f32.mrb[0].mxu0
      %2251 = vmatprep.mubr.bf16.mxu0 %v925
      %2252 = vmatmul.mubr.bf16.gmra.mrb[0].mxu0 %v924
      %v2253 = vpop.f32.mrb[0].mxu0
      %v2254 = vadd.f32 %v1965, %v2253
      %v2255 = vpop.f32.mrb[0].mxu0
      %v2256 = vpop.f32.mrb[0].mxu0
      %v2257 = vadd.f32 %v1968, %v2256
      %v2258 = vpop.f32.mrb[0].mxu0
      %2259 = vmatprep.mubr.bf16.mxu0 %v932
      %2260 = vmatmul.mubr.bf16.gmra.mrb[0].mxu0 %v931
      %v2261 = vpop.f32.mrb[0].mxu0
      %v2262 = vadd.f32 %v1973, %v2261
      %v2263 = vpop.f32.mrb[0].mxu0
      %v2264 = vpop.f32.mrb[0].mxu0
      %v2265 = vadd.f32 %v1976, %v2264
      %v2266 = vpop.f32.mrb[0].mxu0
      %2267 = vmatprep.mubr.bf16.mxu0 %v939
      %2268 = vmatmul.mubr.bf16.gmra.mrb[0].mxu0 %v938
      %v2269 = vpop.f32.mrb[0].mxu0
      %v2270 = vadd.f32 %v1981, %v2269
      %v2271 = vpop.f32.mrb[0].mxu0
      %v2272 = vpop.f32.mrb[0].mxu0
      %v2273 = vadd.f32 %v1984, %v2272
      %v2274 = vpop.f32.mrb[0].mxu0
      %2275 = vmatprep.mubr.bf16.mxu0 %v946
      %2276 = vmatmul.mubr.bf16.gmra.mrb[0].mxu0 %v945
      %v2277 = vpop.f32.mrb[0].mxu0
      %v2278 = vadd.f32 %v1989, %v2277
      %v2279 = vpop.f32.mrb[0].mxu0
      %v2280 = vpop.f32.mrb[0].mxu0
      %v2281 = vadd.f32 %v1992, %v2280
      %v2282 = vpop.f32.mrb[0].mxu0
      %2283 = vmatprep.mubr.bf16.mxu0 %v953
      %2284 = vmatmul.mubr.bf16.gmra.mrb[0].mxu0 %v952
      %v2285 = vpop.f32.mrb[0].mxu0
      %v2286 = vadd.f32 %v1997, %v2285
      %v2287 = vpop.f32.mrb[0].mxu0
      %v2288 = vpop.f32.mrb[0].mxu0
      %v2289 = vadd.f32 %v2000, %v2288
      %v2290 = vpop.f32.mrb[0].mxu0
      %2291 = vmatprep.mubr.bf16.mxu0 %v960
      %2292 = vmatmul.mubr.bf16.gmra.mrb[0].mxu0 %v959
      %v2293 = vpop.f32.mrb[0].mxu0
      %v2294 = vadd.f32 %v2005, %v2293
      %v2295 = vpop.f32.mrb[0].mxu0
      %v2296 = vpop.f32.mrb[0].mxu0
      %v2297 = vadd.f32 %v2008, %v2296
      %v2298 = vpop.f32.mrb[0].mxu0
      %2299 = vmatprep.mubr.bf16.mxu0 %v967
      %2300 = vmatmul.mubr.bf16.gmra.mrb[0].mxu0 %v966
      %v2301 = vpop.f32.mrb[0].mxu0
      %v2302 = vadd.f32 %v2013, %v2301
      %v2303 = vpop.f32.mrb[0].mxu0
      %v2304 = vpop.f32.mrb[0].mxu0
      %v2305 = vadd.f32 %v2016, %v2304
      %v2306 = vpop.f32.mrb[0].mxu0
      %2307 = vmatprep.mubr.bf16.mxu0 %v974
      %2308 = vmatmul.mubr.bf16.gmra.mrb[0].mxu0 %v973
      %v2309 = vpop.f32.mrb[0].mxu0
      %v2310 = vadd.f32 %v2021, %v2309
      %v2311 = vpop.f32.mrb[0].mxu0
      %v2312 = vpop.f32.mrb[0].mxu0
      %v2313 = vadd.f32 %v2024, %v2312
      %v2314 = vpop.f32.mrb[0].mxu0
      %2315 = vmatprep.mubr.bf16.mxu0 %v981
      %2316 = vmatmul.mubr.bf16.gmra.mrb[0].mxu0 %v980
      %v2317 = vpop.f32.mrb[0].mxu0
      %v2318 = vadd.f32 %v2029, %v2317
      %v2319 = vpop.f32.mrb[0].mxu0
      %v2320 = vpop.f32.mrb[0].mxu0
      %v2321 = vadd.f32 %v2032, %v2320
      %v2322 = vpop.f32.mrb[0].mxu0
      %2323 = vmatprep.mubr.bf16.mxu0 %v988
      %2324 = vmatmul.mubr.bf16.gmra.mrb[0].mxu0 %v987
      %v2325 = vpop.f32.mrb[0].mxu0
      %v2326 = vadd.f32 %v2037, %v2325
      %v2327 = vpop.f32.mrb[0].mxu0
      %v2328 = vpop.f32.mrb[0].mxu0
      %v2329 = vadd.f32 %v2040, %v2328
      %v2330 = vpop.f32.mrb[0].mxu0
      %2331 = vmatprep.mubr.bf16.mxu0 %v995
      %2332 = vmatmul.mubr.bf16.gmra.mrb[0].mxu0 %v994
      %v2333 = vpop.f32.mrb[0].mxu0
      %v2334 = vadd.f32 %v2045, %v2333
      %v2335 = vpop.f32.mrb[0].mxu0
      %v2336 = vpop.f32.mrb[0].mxu0
      %v2337 = vadd.f32 %v2048, %v2336
      %v2338 = vpop.f32.mrb[0].mxu0
      %2339 = vmatprep.mubr.bf16.mxu0 %v1002
      %2340 = vmatmul.mubr.bf16.gmra.mrb[0].mxu0 %v1001
      %v2341 = vpop.f32.mrb[0].mxu0
      %v2342 = vadd.f32 %v2053, %v2341
      %v2343 = vpop.f32.mrb[0].mxu0
      %v2344 = vpop.f32.mrb[0].mxu0
      %v2345 = vadd.f32 %v2056, %v2344
      %v2346 = vpop.f32.mrb[0].mxu0
      %2347 = vmatprep.mubr.bf16.mxu0 %v1009
      %2348 = vmatmul.mubr.bf16.gmra.mrb[0].mxu0 %v1008
      %v2349 = vpop.f32.mrb[0].mxu0
      %v2350 = vadd.f32 %v2061, %v2349
      %v2351 = vpop.f32.mrb[0].mxu0
      %v2352 = vpop.f32.mrb[0].mxu0
      %v2353 = vadd.f32 %v2064, %v2352
      %v2354 = vpop.f32.mrb[0].mxu0
      %2355 = vmatprep.mubr.bf16.mxu0 %v1016
      %2356 = vmatmul.mubr.bf16.gmra.mrb[0].mxu0 %v1015
      %v2357 = vpop.f32.mrb[0].mxu0
      %v2358 = vadd.f32 %v2069, %v2357
      %v2359 = vpop.f32.mrb[0].mxu0
      %v2360 = vpop.f32.mrb[0].mxu0
      %v2361 = vadd.f32 %v2072, %v2360
      %v2362 = vpop.f32.mrb[0].mxu0
      %2363 = vmatprep.mubr.bf16.mxu0 %v1023
      %2364 = vmatmul.mubr.bf16.gmra.mrb[0].mxu0 %v1022
      %v2365 = vpop.f32.mrb[0].mxu0
      %v2366 = vadd.f32 %v2077, %v2365
      %v2367 = vpop.f32.mrb[0].mxu0
      %v2368 = vpop.f32.mrb[0].mxu0
      %v2369 = vadd.f32 %v2080, %v2368
      %v2370 = vpop.f32.mrb[0].mxu0
      %2371 = vmatprep.mubr.bf16.mxu0 %v1030
      %2372 = vmatmul.mubr.bf16.gmra.mrb[0].mxu0 %v1029
      %v2373 = vpop.f32.mrb[0].mxu0
      %v2374 = vadd.f32 %v2085, %v2373
      %v2375 = vpop.f32.mrb[0].mxu0
      %v2376 = vpop.f32.mrb[0].mxu0
      %v2377 = vadd.f32 %v2088, %v2376
      %v2378 = vpop.f32.mrb[0].mxu0
      %2379 = vmatprep.mubr.bf16.mxu0 %v1037
      %2380 = vmatmul.mubr.bf16.gmra.mrb[0].mxu0 %v1036
      %v2381 = vpop.f32.mrb[0].mxu0
      %v2382 = vadd.f32 %v2093, %v2381
      %v2383 = vpop.f32.mrb[0].mxu0
      %v2384 = vpop.f32.mrb[0].mxu0
      %v2385 = vadd.f32 %v2096, %v2384
      %v2386 = vpop.f32.mrb[0].mxu0
      %2387 = vmatprep.mubr.bf16.mxu0 %v1044
      %2388 = vmatmul.mubr.bf16.gmra.mrb[0].mxu0 %v1043
      %v2389 = vpop.f32.mrb[0].mxu0
      %v2390 = vadd.f32 %v2101, %v2389
      %v2391 = vpop.f32.mrb[0].mxu0
      %v2392 = vpop.f32.mrb[0].mxu0
      %v2393 = vadd.f32 %v2104, %v2392
      %v2394 = vpop.f32.mrb[0].mxu0
      %2395 = vmatprep.mubr.bf16.mxu0 %v1051
      %2396 = vmatmul.mubr.bf16.gmra.mrb[0].mxu0 %v1050
      %v2397 = vpop.f32.mrb[0].mxu0
      %v2398 = vadd.f32 %v2109, %v2397
      %v2399 = vpop.f32.mrb[0].mxu0
      %v2400 = vpop.f32.mrb[0].mxu0
      %v2401 = vadd.f32 %v2112, %v2400
      %v2402 = vpop.f32.mrb[0].mxu0
      %2403 = vmatprep.mubr.bf16.mxu0 %v1058
      %2404 = vmatmul.mubr.bf16.gmra.mrb[0].mxu0 %v1057
      %v2405 = vpop.f32.mrb[0].mxu0
      %v2406 = vadd.f32 %v2117, %v2405
      %v2407 = vpop.f32.mrb[0].mxu0
      %v2408 = vpop.f32.mrb[0].mxu0
      %v2409 = vadd.f32 %v2120, %v2408
      %v2410 = vpop.f32.mrb[0].mxu0
      %2411 = vmatprep.mubr.bf16.mxu0 %v1065
      %2412 = vmatmul.mubr.bf16.gmra.mrb[0].mxu0 %v1064
      %v2413 = vpop.f32.mrb[0].mxu0
      %v2414 = vadd.f32 %v2125, %v2413
      %v2415 = vpop.f32.mrb[0].mxu0
      %v2416 = vpop.f32.mrb[0].mxu0
      %v2417 = vadd.f32 %v2128, %v2416
      %v2418 = vpop.f32.mrb[0].mxu0
      %2419 = vmatprep.mubr.bf16.mxu0 %v1072
      %2420 = vmatmul.mubr.bf16.gmra.mrb[0].mxu0 %v1071
      %v2421 = vpop.f32.mrb[0].mxu0
      %v2422 = vadd.f32 %v2133, %v2421
      %v2423 = vpop.f32.mrb[0].mxu0
      %v2424 = vpop.f32.mrb[0].mxu0
      %v2425 = vadd.f32 %v2136, %v2424
      %v2426 = vpop.f32.mrb[0].mxu0
      %2427 = vmatprep.mubr.bf16.mxu0 %v1079
      %2428 = vmatmul.mubr.bf16.gmra.mrb[0].mxu0 %v1078
      %v2429 = vpop.f32.mrb[0].mxu0
      %v2430 = vadd.f32 %v2141, %v2429
      %v2431 = vpop.f32.mrb[0].mxu0
      %v2432 = vpop.f32.mrb[0].mxu0
      %v2433 = vadd.f32 %v2144, %v2432
      %v2434 = vpop.f32.mrb[0].mxu0
      %2435 = vmatprep.mubr.bf16.mxu0 %v1086
      %2436 = vmatmul.mubr.bf16.gmra.mrb[0].mxu0 %v1085
      %v2437 = vpop.f32.mrb[0].mxu0
      %v2438 = vadd.f32 %v2149, %v2437
      %v2439 = vpop.f32.mrb[0].mxu0
      %v2440 = vpop.f32.mrb[0].mxu0
      %v2441 = vadd.f32 %v2152, %v2440
      %v2442 = vpop.f32.mrb[0].mxu0
      %2443 = vmatprep.mubr.bf16.mxu0 %v1093
      %2444 = vmatmul.mubr.bf16.gmra.mrb[0].mxu0 %v1092
      %v2445 = vpop.f32.mrb[0].mxu0
      %v2446 = vadd.f32 %v2157, %v2445
      %v2447 = vpop.f32.mrb[0].mxu0
      %v2448 = vpop.f32.mrb[0].mxu0
      %v2449 = vadd.f32 %v2160, %v2448
      %v2450 = vpop.f32.mrb[0].mxu0
      %2451 = vdwg.mxu0
      %2452 = vmatprep.subr.bf16.mxu0 0
      %2453 = vmatpush1.bf16.msra.mxu0 %v1438
      %2454 = vmatprep.subr.bf16.mxu0 0
      %2455 = vmatpush1.bf16.msra.mxu0 0
      %2456 = vmatprep.subr.bf16.mxu0 0
      %2457 = vmatpush1.bf16.msra.mxu0 0
      %2458 = vmatprep.subr.bf16.mxu0 0
      %2459 = vmatpush1.bf16.msra.mxu0 0
      %2460 = vmatprep.subr.bf16.mxu0 0
      %2461 = vmatpush1.bf16.msra.mxu0 0
      %2462 = vmatprep.subr.bf16.mxu0 0
      %2463 = vmatpush1.bf16.msra.mxu0 0
      %2464 = vmatprep.subr.bf16.mxu0 0
      %2465 = vmatpush1.bf16.msra.mxu0 0
      %2466 = vmatprep.subr.bf16.mxu0 0
      %2467 = vmatpush1.bf16.msra.mxu0 0
      %2468 = vmatprep.subr.bf16.mxu0 0
      %2469 = vmatpush1.bf16.msra.mxu0 0
      %2470 = vmatprep.subr.bf16.mxu0 0
      %2471 = vmatpush1.bf16.msra.mxu0 0
      %2472 = vmatprep.subr.bf16.mxu0 0
      %2473 = vmatpush1.bf16.msra.mxu0 0
      %2474 = vmatprep.subr.bf16.mxu0 0
      %2475 = vmatpush1.bf16.msra.mxu0 0
      %2476 = vmatprep.subr.bf16.mxu0 0
      %2477 = vmatpush1.bf16.msra.mxu0 0
      %2478 = vmatprep.subr.bf16.mxu0 0
      %2479 = vmatpush1.bf16.msra.mxu0 0
      %2480 = vmatprep.subr.bf16.mxu0 0
      %2481 = vmatpush1.bf16.msra.mxu0 0
      %2482 = vmatprep.subr.bf16.mxu0 0
      %2483 = vmatpush1.bf16.msra.mxu0 0
      %2484 = vmatprep.mubr.bf16.mxu0 0
      %2485 = vmatmul.mubr.bf16.gmra.mrb[0].mxu0 %v1490
      %v2486 = vpop.f32.mrb[0].mxu0
      %v2487 = vadd.f32 %v2198, %v2486
      %v2488 = vpop.f32.mrb[0].mxu0
      %v2489 = vpop.f32.mrb[0].mxu0
      %v2490 = vadd.f32 %v2201, %v2489
      %v2491 = vpop.f32.mrb[0].mxu0
      %2492 = vmatprep.mubr.bf16.mxu0 0
      %2493 = vmatmul.mubr.bf16.gmra.mrb[0].mxu0 %v1493
      %v2494 = vpop.f32.mrb[0].mxu0
      %v2495 = vadd.f32 %v2206, %v2494
      %v2496 = vpop.f32.mrb[0].mxu0
      %v2497 = vpop.f32.mrb[0].mxu0
      %v2498 = vadd.f32 %v2209, %v2497
      %v2499 = vpop.f32.mrb[0].mxu0
      %2500 = vmatprep.mubr.bf16.mxu0 0
      %2501 = vmatmul.mubr.bf16.gmra.mrb[0].mxu0 %v1496
      %v2502 = vpop.f32.mrb[0].mxu0
      %v2503 = vadd.f32 %v2214, %v2502
      %v2504 = vpop.f32.mrb[0].mxu0
      %v2505 = vpop.f32.mrb[0].mxu0
      %v2506 = vadd.f32 %v2217, %v2505
      %v2507 = vpop.f32.mrb[0].mxu0
      %2508 = vmatprep.mubr.bf16.mxu0 0
      %2509 = vmatmul.mubr.bf16.gmra.mrb[0].mxu0 %v1499
      %v2510 = vpop.f32.mrb[0].mxu0
      %v2511 = vadd.f32 %v2222, %v2510
      %v2512 = vpop.f32.mrb[0].mxu0
      %v2513 = vpop.f32.mrb[0].mxu0
      %v2514 = vadd.f32 %v2225, %v2513
      %v2515 = vpop.f32.mrb[0].mxu0
      %2516 = vmatprep.mubr.bf16.mxu0 0
      %2517 = vmatmul.mubr.bf16.gmra.mrb[0].mxu0 %v1502
      %v2518 = vpop.f32.mrb[0].mxu0
      %v2519 = vadd.f32 %v2230, %v2518
      %v2520 = vpop.f32.mrb[0].mxu0
      %v2521 = vpop.f32.mrb[0].mxu0
      %v2522 = vadd.f32 %v2233, %v2521
      %v2523 = vpop.f32.mrb[0].mxu0
      %2524 = vmatprep.mubr.bf16.mxu0 0
      %2525 = vmatmul.mubr.bf16.gmra.mrb[0].mxu0 %v1505
      %v2526 = vpop.f32.mrb[0].mxu0
      %v2527 = vadd.f32 %v2238, %v2526
      %v2528 = vpop.f32.mrb[0].mxu0
      %v2529 = vpop.f32.mrb[0].mxu0
      %v2530 = vadd.f32 %v2241, %v2529
      %v2531 = vpop.f32.mrb[0].mxu0
      %2532 = vmatprep.mubr.bf16.mxu0 0
      %2533 = vmatmul.mubr.bf16.gmra.mrb[0].mxu0 %v1508
      %v2534 = vpop.f32.mrb[0].mxu0
      %v2535 = vadd.f32 %v2246, %v2534
      %v2536 = vpop.f32.mrb[0].mxu0
      %v2537 = vpop.f32.mrb[0].mxu0
      %v2538 = vadd.f32 %v2249, %v2537
      %v2539 = vpop.f32.mrb[0].mxu0
      %2540 = vmatprep.mubr.bf16.mxu0 0
      %2541 = vmatmul.mubr.bf16.gmra.mrb[0].mxu0 %v1511
      %v2542 = vpop.f32.mrb[0].mxu0
      %v2543 = vadd.f32 %v2254, %v2542
      %v2544 = vpop.f32.mrb[0].mxu0
      %v2545 = vpop.f32.mrb[0].mxu0
      %v2546 = vadd.f32 %v2257, %v2545
      %v2547 = vpop.f32.mrb[0].mxu0
      %2548 = vmatprep.mubr.bf16.mxu0 0
      %2549 = vmatmul.mubr.bf16.gmra.mrb[0].mxu0 %v1514
      %v2550 = vpop.f32.mrb[0].mxu0
      %v2551 = vadd.f32 %v2262, %v2550
      %v2552 = vpop.f32.mrb[0].mxu0
      %v2553 = vpop.f32.mrb[0].mxu0
      %v2554 = vadd.f32 %v2265, %v2553
      %v2555 = vpop.f32.mrb[0].mxu0
      %2556 = vmatprep.mubr.bf16.mxu0 0
      %2557 = vmatmul.mubr.bf16.gmra.mrb[0].mxu0 %v1517
      %v2558 = vpop.f32.mrb[0].mxu0
      %v2559 = vadd.f32 %v2270, %v2558
      %v2560 = vpop.f32.mrb[0].mxu0
      %v2561 = vpop.f32.mrb[0].mxu0
      %v2562 = vadd.f32 %v2273, %v2561
      %v2563 = vpop.f32.mrb[0].mxu0
      %2564 = vmatprep.mubr.bf16.mxu0 0
      %2565 = vmatmul.mubr.bf16.gmra.mrb[0].mxu0 %v1520
      %v2566 = vpop.f32.mrb[0].mxu0
      %v2567 = vadd.f32 %v2278, %v2566
      %v2568 = vpop.f32.mrb[0].mxu0
      %v2569 = vpop.f32.mrb[0].mxu0
      %v2570 = vadd.f32 %v2281, %v2569
      %v2571 = vpop.f32.mrb[0].mxu0
      %2572 = vmatprep.mubr.bf16.mxu0 0
      %2573 = vmatmul.mubr.bf16.gmra.mrb[0].mxu0 %v1523
      %v2574 = vpop.f32.mrb[0].mxu0
      %v2575 = vadd.f32 %v2286, %v2574
      %v2576 = vpop.f32.mrb[0].mxu0
      %v2577 = vpop.f32.mrb[0].mxu0
      %v2578 = vadd.f32 %v2289, %v2577
      %v2579 = vpop.f32.mrb[0].mxu0
      %2580 = vmatprep.mubr.bf16.mxu0 0
      %2581 = vmatmul.mubr.bf16.gmra.mrb[0].mxu0 %v1526
      %v2582 = vpop.f32.mrb[0].mxu0
      %v2583 = vadd.f32 %v2294, %v2582
      %v2584 = vpop.f32.mrb[0].mxu0
      %v2585 = vpop.f32.mrb[0].mxu0
      %v2586 = vadd.f32 %v2297, %v2585
      %v2587 = vpop.f32.mrb[0].mxu0
      %2588 = vmatprep.mubr.bf16.mxu0 0
      %2589 = vmatmul.mubr.bf16.gmra.mrb[0].mxu0 %v1529
      %v2590 = vpop.f32.mrb[0].mxu0
      %v2591 = vadd.f32 %v2302, %v2590
      %v2592 = vpop.f32.mrb[0].mxu0
      %v2593 = vpop.f32.mrb[0].mxu0
      %v2594 = vadd.f32 %v2305, %v2593
      %v2595 = vpop.f32.mrb[0].mxu0
      %2596 = vmatprep.mubr.bf16.mxu0 0
      %2597 = vmatmul.mubr.bf16.gmra.mrb[0].mxu0 %v1532
      %v2598 = vpop.f32.mrb[0].mxu0
      %v2599 = vadd.f32 %v2310, %v2598
      %v2600 = vpop.f32.mrb[0].mxu0
      %v2601 = vpop.f32.mrb[0].mxu0
      %v2602 = vadd.f32 %v2313, %v2601
      %v2603 = vpop.f32.mrb[0].mxu0
      %2604 = vmatprep.mubr.bf16.mxu0 0
      %2605 = vmatmul.mubr.bf16.gmra.mrb[0].mxu0 %v1535
      %v2606 = vpop.f32.mrb[0].mxu0
      %v2607 = vadd.f32 %v2318, %v2606
      %v2608 = vpop.f32.mrb[0].mxu0
      %v2609 = vpop.f32.mrb[0].mxu0
      %v2610 = vadd.f32 %v2321, %v2609
      %v2611 = vpop.f32.mrb[0].mxu0
      %2612 = vmatprep.mubr.bf16.mxu0 0
      %2613 = vmatmul.mubr.bf16.gmra.mrb[0].mxu0 %v1538
      %v2614 = vpop.f32.mrb[0].mxu0
      %v2615 = vadd.f32 %v2326, %v2614
      %v2616 = vpop.f32.mrb[0].mxu0
      %v2617 = vpop.f32.mrb[0].mxu0
      %v2618 = vadd.f32 %v2329, %v2617
      %v2619 = vpop.f32.mrb[0].mxu0
      %2620 = vmatprep.mubr.bf16.mxu0 0
      %2621 = vmatmul.mubr.bf16.gmra.mrb[0].mxu0 %v1541
      %v2622 = vpop.f32.mrb[0].mxu0
      %v2623 = vadd.f32 %v2334, %v2622
      %v2624 = vpop.f32.mrb[0].mxu0
      %v2625 = vpop.f32.mrb[0].mxu0
      %v2626 = vadd.f32 %v2337, %v2625
      %v2627 = vpop.f32.mrb[0].mxu0
      %2628 = vmatprep.mubr.bf16.mxu0 0
      %2629 = vmatmul.mubr.bf16.gmra.mrb[0].mxu0 %v1544
      %v2630 = vpop.f32.mrb[0].mxu0
      %v2631 = vadd.f32 %v2342, %v2630
      %v2632 = vpop.f32.mrb[0].mxu0
      %v2633 = vpop.f32.mrb[0].mxu0
      %v2634 = vadd.f32 %v2345, %v2633
      %v2635 = vpop.f32.mrb[0].mxu0
      %2636 = vmatprep.mubr.bf16.mxu0 0
      %2637 = vmatmul.mubr.bf16.gmra.mrb[0].mxu0 %v1547
      %v2638 = vpop.f32.mrb[0].mxu0
      %v2639 = vadd.f32 %v2350, %v2638
      %v2640 = vpop.f32.mrb[0].mxu0
      %v2641 = vpop.f32.mrb[0].mxu0
      %v2642 = vadd.f32 %v2353, %v2641
      %v2643 = vpop.f32.mrb[0].mxu0
      %2644 = vmatprep.mubr.bf16.mxu0 0
      %2645 = vmatmul.mubr.bf16.gmra.mrb[0].mxu0 %v1550
      %v2646 = vpop.f32.mrb[0].mxu0
      %v2647 = vadd.f32 %v2358, %v2646
      %v2648 = vpop.f32.mrb[0].mxu0
      %v2649 = vpop.f32.mrb[0].mxu0
      %v2650 = vadd.f32 %v2361, %v2649
      %v2651 = vpop.f32.mrb[0].mxu0
      %2652 = vmatprep.mubr.bf16.mxu0 0
      %2653 = vmatmul.mubr.bf16.gmra.mrb[0].mxu0 %v1553
      %v2654 = vpop.f32.mrb[0].mxu0
      %v2655 = vadd.f32 %v2366, %v2654
      %v2656 = vpop.f32.mrb[0].mxu0
      %v2657 = vpop.f32.mrb[0].mxu0
      %v2658 = vadd.f32 %v2369, %v2657
      %v2659 = vpop.f32.mrb[0].mxu0
      %2660 = vmatprep.mubr.bf16.mxu0 0
      %2661 = vmatmul.mubr.bf16.gmra.mrb[0].mxu0 %v1556
      %v2662 = vpop.f32.mrb[0].mxu0
      %v2663 = vadd.f32 %v2374, %v2662
      %v2664 = vpop.f32.mrb[0].mxu0
      %v2665 = vpop.f32.mrb[0].mxu0
      %v2666 = vadd.f32 %v2377, %v2665
      %v2667 = vpop.f32.mrb[0].mxu0
      %2668 = vmatprep.mubr.bf16.mxu0 0
      %2669 = vmatmul.mubr.bf16.gmra.mrb[0].mxu0 %v1559
      %v2670 = vpop.f32.mrb[0].mxu0
      %v2671 = vadd.f32 %v2382, %v2670
      %v2672 = vpop.f32.mrb[0].mxu0
      %v2673 = vpop.f32.mrb[0].mxu0
      %v2674 = vadd.f32 %v2385, %v2673
      %v2675 = vpop.f32.mrb[0].mxu0
      %2676 = vmatprep.mubr.bf16.mxu0 0
      %2677 = vmatmul.mubr.bf16.gmra.mrb[0].mxu0 %v1562
      %v2678 = vpop.f32.mrb[0].mxu0
      %v2679 = vadd.f32 %v2390, %v2678
      %v2680 = vpop.f32.mrb[0].mxu0
      %v2681 = vpop.f32.mrb[0].mxu0
      %v2682 = vadd.f32 %v2393, %v2681
      %v2683 = vpop.f32.mrb[0].mxu0
      %2684 = vmatprep.mubr.bf16.mxu0 0
      %2685 = vmatmul.mubr.bf16.gmra.mrb[0].mxu0 %v1565
      %v2686 = vpop.f32.mrb[0].mxu0
      %v2687 = vadd.f32 %v2398, %v2686
      %v2688 = vpop.f32.mrb[0].mxu0
      %v2689 = vpop.f32.mrb[0].mxu0
      %v2690 = vadd.f32 %v2401, %v2689
      %v2691 = vpop.f32.mrb[0].mxu0
      %2692 = vmatprep.mubr.bf16.mxu0 0
      %2693 = vmatmul.mubr.bf16.gmra.mrb[0].mxu0 %v1568
      %v2694 = vpop.f32.mrb[0].mxu0
      %v2695 = vadd.f32 %v2406, %v2694
      %v2696 = vpop.f32.mrb[0].mxu0
      %v2697 = vpop.f32.mrb[0].mxu0
      %v2698 = vadd.f32 %v2409, %v2697
      %v2699 = vpop.f32.mrb[0].mxu0
      %2700 = vmatprep.mubr.bf16.mxu0 0
      %2701 = vmatmul.mubr.bf16.gmra.mrb[0].mxu0 %v1571
      %v2702 = vpop.f32.mrb[0].mxu0
      %v2703 = vadd.f32 %v2414, %v2702
      %v2704 = vpop.f32.mrb[0].mxu0
      %v2705 = vpop.f32.mrb[0].mxu0
      %v2706 = vadd.f32 %v2417, %v2705
      %v2707 = vpop.f32.mrb[0].mxu0
      %2708 = vmatprep.mubr.bf16.mxu0 0
      %2709 = vmatmul.mubr.bf16.gmra.mrb[0].mxu0 %v1574
      %v2710 = vpop.f32.mrb[0].mxu0
      %v2711 = vadd.f32 %v2422, %v2710
      %v2712 = vpop.f32.mrb[0].mxu0
      %v2713 = vpop.f32.mrb[0].mxu0
      %v2714 = vadd.f32 %v2425, %v2713
      %v2715 = vpop.f32.mrb[0].mxu0
      %2716 = vmatprep.mubr.bf16.mxu0 0
      %2717 = vmatmul.mubr.bf16.gmra.mrb[0].mxu0 %v1577
      %v2718 = vpop.f32.mrb[0].mxu0
      %v2719 = vadd.f32 %v2430, %v2718
      %v2720 = vpop.f32.mrb[0].mxu0
      %v2721 = vpop.f32.mrb[0].mxu0
      %v2722 = vadd.f32 %v2433, %v2721
      %v2723 = vpop.f32.mrb[0].mxu0
      %2724 = vmatprep.mubr.bf16.mxu0 0
      %2725 = vmatmul.mubr.bf16.gmra.mrb[0].mxu0 %v1580
      %v2726 = vpop.f32.mrb[0].mxu0
      %v2727 = vadd.f32 %v2438, %v2726
      %v2728 = vpop.f32.mrb[0].mxu0
      %v2729 = vpop.f32.mrb[0].mxu0
      %v2730 = vadd.f32 %v2441, %v2729
      %v2731 = vpop.f32.mrb[0].mxu0
      %2732 = vmatprep.mubr.bf16.mxu0 0
      %2733 = vmatmul.mubr.bf16.gmra.mrb[0].mxu0 %v1583
      %v2734 = vpop.f32.mrb[0].mxu0
      %v2735 = vadd.f32 %v2446, %v2734
      %v2736 = vpop.f32.mrb[0].mxu0
      %v2737 = vpop.f32.mrb[0].mxu0
      %v2738 = vadd.f32 %v2449, %v2737
      %v2739 = vpop.f32.mrb[0].mxu0
      %2740 = vdwg.mxu0
      %v2741 = vtanh.pop %v2487
      %v2742 = vtanh.pop %v2490
      %v2743 = vtanh.pop %v2495
      %v2744 = vtanh.pop %v2498
      %v2745 = vtanh.pop %v2503
      %v2746 = vtanh.pop %v2506
      %v2747 = vtanh.pop %v2511
      %v2748 = vtanh.pop %v2514
      %v2749 = vtanh.pop %v2519
      %v2750 = vtanh.pop %v2522
      %v2751 = vtanh.pop %v2527
      %v2752 = vtanh.pop %v2530
      %v2753 = vtanh.pop %v2535
      %v2754 = vtanh.pop %v2538
      %v2755 = vtanh.pop %v2543
      %v2756 = vtanh.pop %v2546
      %v2757 = vtanh.pop %v2551
      %v2758 = vtanh.pop %v2554
      %v2759 = vtanh.pop %v2559
      %v2760 = vtanh.pop %v2562
      %v2761 = vtanh.pop %v2567
      %v2762 = vtanh.pop %v2570
      %v2763 = vtanh.pop %v2575
      %v2764 = vtanh.pop %v2578
      %v2765 = vtanh.pop %v2583
      %v2766 = vtanh.pop %v2586
      %v2767 = vtanh.pop %v2591
      %v2768 = vtanh.pop %v2594
      %v2769 = vtanh.pop %v2599
      %v2770 = vtanh.pop %v2602
      %v2771 = vtanh.pop %v2607
      %v2772 = vtanh.pop %v2610
      %v2773 = vtanh.pop %v2615
      %v2774 = vtanh.pop %v2618
      %v2775 = vtanh.pop %v2623
      %v2776 = vtanh.pop %v2626
      %v2777 = vtanh.pop %v2631
      %v2778 = vtanh.pop %v2634
      %v2779 = vtanh.pop %v2639
      %v2780 = vtanh.pop %v2642
      %v2781 = vtanh.pop %v2647
      %v2782 = vtanh.pop %v2650
      %v2783 = vtanh.pop %v2655
      %v2784 = vtanh.pop %v2658
      %v2785 = vtanh.pop %v2663
      %v2786 = vtanh.pop %v2666
      %v2787 = vtanh.pop %v2671
      %v2788 = vtanh.pop %v2674
      %v2789 = vtanh.pop %v2679
      %v2790 = vtanh.pop %v2682
      %v2791 = vtanh.pop %v2687
      %v2792 = vtanh.pop %v2690
      %v2793 = vtanh.pop %v2695
      %v2794 = vtanh.pop %v2698
      %v2795 = vtanh.pop %v2703
      %v2796 = vtanh.pop %v2706
      %v2797 = vtanh.pop %v2711
      %v2798 = vtanh.pop %v2714
      %v2799 = vtanh.pop %v2719
      %v2800 = vtanh.pop %v2722
      %v2801 = vtanh.pop %v2727
      %v2802 = vtanh.pop %v2730
      %v2803 = vtanh.pop %v2735
      %v2804 = vtanh.pop %v2738
      %v2805 = vpack.c.bf16 %v2742, %v2741
      %v2806 = vpack.c.bf16 %v2744, %v2743
      %v2807 = vpack.c.bf16 %v2746, %v2745
      %v2808 = vpack.c.bf16 %v2748, %v2747
      %v2809 = vpack.c.bf16 %v2750, %v2749
      %v2810 = vpack.c.bf16 %v2752, %v2751
      %v2811 = vpack.c.bf16 %v2754, %v2753
      %v2812 = vpack.c.bf16 %v2756, %v2755
      %v2813 = vpack.c.bf16 %v2758, %v2757
      %v2814 = vpack.c.bf16 %v2760, %v2759
      %v2815 = vpack.c.bf16 %v2762, %v2761
      %v2816 = vpack.c.bf16 %v2764, %v2763
      %v2817 = vpack.c.bf16 %v2766, %v2765
      %v2818 = vpack.c.bf16 %v2768, %v2767
      %v2819 = vpack.c.bf16 %v2770, %v2769
      %v2820 = vpack.c.bf16 %v2772, %v2771
      %v2821 = vpack.c.bf16 %v2774, %v2773
      %v2822 = vpack.c.bf16 %v2776, %v2775
      %v2823 = vpack.c.bf16 %v2778, %v2777
      %v2824 = vpack.c.bf16 %v2780, %v2779
      %v2825 = vpack.c.bf16 %v2782, %v2781
      %v2826 = vpack.c.bf16 %v2784, %v2783
      %v2827 = vpack.c.bf16 %v2786, %v2785
      %v2828 = vpack.c.bf16 %v2788, %v2787
      %v2829 = vpack.c.bf16 %v2790, %v2789
      %v2830 = vpack.c.bf16 %v2792, %v2791
      %v2831 = vpack.c.bf16 %v2794, %v2793
      %v2832 = vpack.c.bf16 %v2796, %v2795
      %v2833 = vpack.c.bf16 %v2798, %v2797
      %v2834 = vpack.c.bf16 %v2800, %v2799
      %v2835 = vpack.c.bf16 %v2802, %v2801
      %v2836 = vpack.c.bf16 %v2804, %v2803
      %v2837 = vld [vmem:[%s2] sm:$0xf]
      %v2838 = vld [vmem:[%s2 + $0x4] sm:$0xf]
      %v2839 = vld [vmem:[%s2 + $0x8] sm:$0xf]
      %v2840 = vld [vmem:[%s2 + $0xc] sm:$0xf]
      %v2841 = vld [vmem:[%s2 + $0x10] sm:$0xf]
      %v2842 = vld [vmem:[%s2 + $0x14] sm:$0xf]
      %v2843 = vld [vmem:[%s2 + $0x18] sm:$0xf]
      %v2844 = vld [vmem:[%s2 + $0x1c] sm:$0xf]
      %v2845 = vld [vmem:[%s2 + $0x20] sm:$0xf]
      %v2846 = vld [vmem:[%s2 + $0x24] sm:$0xf]
      %v2847 = vld [vmem:[%s2 + $0x28] sm:$0xf]
      %v2848 = vld [vmem:[%s2 + $0x2c] sm:$0xf]
      %v2849 = vld [vmem:[%s2 + $0x30] sm:$0xf]
      %v2850 = vld [vmem:[%s2 + $0x34] sm:$0xf]
      %v2851 = vld [vmem:[%s2 + $0x38] sm:$0xf]
      %v2852 = vld [vmem:[%s2 + $0x3c] sm:$0xf]
      %v2853 = vld [vmem:[%s11 + $0x1] ss:$0 sm:$0xff]
      %v2870 = vunpack.c.l.b16 %v2837
      %v2871 = vunpack.c.l.b16 %v2838
      %v2872 = vunpack.c.l.b16 %v2839
      %v2873 = vunpack.c.l.b16 %v2840
      %v2874 = vunpack.c.l.b16 %v2841
      %v2875 = vunpack.c.l.b16 %v2842
      %v2876 = vunpack.c.l.b16 %v2843
      %v2877 = vunpack.c.l.b16 %v2844
      %v2878 = vunpack.c.l.b16 %v2845
      %v2879 = vunpack.c.l.b16 %v2846
      %v2880 = vunpack.c.l.b16 %v2847
      %v2881 = vunpack.c.l.b16 %v2848
      %v2882 = vunpack.c.l.b16 %v2849
      %v2883 = vunpack.c.l.b16 %v2850
      %v2884 = vunpack.c.l.b16 %v2851
      %v2885 = vunpack.c.l.b16 %v2852
      %v2886 = vpack.c.b16 %v2871, %v2870
      %v2887 = vpack.c.b16 %v2873, %v2872
      %v2888 = vpack.c.b16 %v2875, %v2874
      %v2889 = vpack.c.b16 %v2877, %v2876
      %v2890 = vpack.c.b16 %v2879, %v2878
      %v2891 = vpack.c.b16 %v2881, %v2880
      %v2892 = vpack.c.b16 %v2883, %v2882
      %v2893 = vpack.c.b16 %v2885, %v2884
      %2902 = vmatprep.subr.bf16.mxu0 0
      %2903 = vmatpush1.bf16.msra.mxu0 %v2886
      %2904 = vmatprep.subr.bf16.mxu0 0
      %2905 = vmatpush1.bf16.msra.mxu0 %v2887
      %2906 = vmatprep.subr.bf16.mxu0 0
      %2907 = vmatpush1.bf16.msra.mxu0 %v2888
      %2908 = vmatprep.subr.bf16.mxu0 0
      %2909 = vmatpush1.bf16.msra.mxu0 %v2889
      %2910 = vmatprep.subr.bf16.mxu0 0
      %2911 = vmatpush1.bf16.msra.mxu0 %v2890
      %2912 = vmatprep.subr.bf16.mxu0 0
      %2913 = vmatpush1.bf16.msra.mxu0 %v2891
      %2914 = vmatprep.subr.bf16.mxu0 0
      %2915 = vmatpush1.bf16.msra.mxu0 %v2892
      %2916 = vmatprep.subr.bf16.mxu0 0
      %2917 = vmatpush1.bf16.msra.mxu0 %v2893
      %2918 = vmatprep.subr.bf16.mxu0 0
      %2919 = vmatpush1.bf16.msra.mxu0 0
      %2920 = vmatprep.subr.bf16.mxu0 0
      %2921 = vmatpush1.bf16.msra.mxu0 0
      %2922 = vmatprep.subr.bf16.mxu0 0
      %2923 = vmatpush1.bf16.msra.mxu0 0
      %2924 = vmatprep.subr.bf16.mxu0 0
      %2925 = vmatpush1.bf16.msra.mxu0 0
      %2926 = vmatprep.subr.bf16.mxu0 0
      %2927 = vmatpush1.bf16.msra.mxu0 0
      %2928 = vmatprep.subr.bf16.mxu0 0
      %2929 = vmatpush1.bf16.msra.mxu0 0
      %2930 = vmatprep.subr.bf16.mxu0 0
      %2931 = vmatpush1.bf16.msra.mxu0 0
      %2932 = vmatprep.subr.bf16.mxu0 0
      %2933 = vmatpush1.bf16.msra.mxu0 0
      %2934 = vmatprep.mubr.bf16.mxu0 0
      %2935 = vmatmul.mubr.bf16.gmra.mrb[0].mxu0 %v2805
      %v2936 = vpop.f32.mrb[0].mxu0
      %v2937 = vadd.f32 %v2853, %v2936
      %v2938 = vpop.f32.mrb[0].mxu0
      %v2939 = vpop.f32.mrb[0].mxu0
      %v2940 = vadd.f32 %v2853, %v2939
      %v2941 = vpop.f32.mrb[0].mxu0
      %2942 = vmatprep.mubr.bf16.mxu0 0
      %2943 = vmatmul.mubr.bf16.gmra.mrb[0].mxu0 %v2806
      %v2944 = vpop.f32.mrb[0].mxu0
      %v2945 = vadd.f32 %v2853, %v2944
      %v2946 = vpop.f32.mrb[0].mxu0
      %v2947 = vpop.f32.mrb[0].mxu0
      %v2948 = vadd.f32 %v2853, %v2947
      %v2949 = vpop.f32.mrb[0].mxu0
      %2950 = vmatprep.mubr.bf16.mxu0 0
      %2951 = vmatmul.mubr.bf16.gmra.mrb[0].mxu0 %v2807
      %v2952 = vpop.f32.mrb[0].mxu0
      %v2953 = vadd.f32 %v2853, %v2952
      %v2954 = vpop.f32.mrb[0].mxu0
      %v2955 = vpop.f32.mrb[0].mxu0
      %v2956 = vadd.f32 %v2853, %v2955
      %v2957 = vpop.f32.mrb[0].mxu0
      %2958 = vmatprep.mubr.bf16.mxu0 0
      %2959 = vmatmul.mubr.bf16.gmra.mrb[0].mxu0 %v2808
      %v2960 = vpop.f32.mrb[0].mxu0
      %v2961 = vadd.f32 %v2853, %v2960
      %v2962 = vpop.f32.mrb[0].mxu0
      %v2963 = vpop.f32.mrb[0].mxu0
      %v2964 = vadd.f32 %v2853, %v2963
      %v2965 = vpop.f32.mrb[0].mxu0
      %2966 = vmatprep.mubr.bf16.mxu0 0
      %2967 = vmatmul.mubr.bf16.gmra.mrb[0].mxu0 %v2809
      %v2968 = vpop.f32.mrb[0].mxu0
      %v2969 = vadd.f32 %v2853, %v2968
      %v2970 = vpop.f32.mrb[0].mxu0
      %v2971 = vpop.f32.mrb[0].mxu0
      %v2972 = vadd.f32 %v2853, %v2971
      %v2973 = vpop.f32.mrb[0].mxu0
      %2974 = vmatprep.mubr.bf16.mxu0 0
      %2975 = vmatmul.mubr.bf16.gmra.mrb[0].mxu0 %v2810
      %v2976 = vpop.f32.mrb[0].mxu0
      %v2977 = vadd.f32 %v2853, %v2976
      %v2978 = vpop.f32.mrb[0].mxu0
      %v2979 = vpop.f32.mrb[0].mxu0
      %v2980 = vadd.f32 %v2853, %v2979
      %v2981 = vpop.f32.mrb[0].mxu0
      %2982 = vmatprep.mubr.bf16.mxu0 0
      %2983 = vmatmul.mubr.bf16.gmra.mrb[0].mxu0 %v2811
      %v2984 = vpop.f32.mrb[0].mxu0
      %v2985 = vadd.f32 %v2853, %v2984
      %v2986 = vpop.f32.mrb[0].mxu0
      %v2987 = vpop.f32.mrb[0].mxu0
      %v2988 = vadd.f32 %v2853, %v2987
      %v2989 = vpop.f32.mrb[0].mxu0
      %2990 = vmatprep.mubr.bf16.mxu0 0
      %2991 = vmatmul.mubr.bf16.gmra.mrb[0].mxu0 %v2812
      %v2992 = vpop.f32.mrb[0].mxu0
      %v2993 = vadd.f32 %v2853, %v2992
      %v2994 = vpop.f32.mrb[0].mxu0
      %v2995 = vpop.f32.mrb[0].mxu0
      %v2996 = vadd.f32 %v2853, %v2995
      %v2997 = vpop.f32.mrb[0].mxu0
      %2998 = vmatprep.mubr.bf16.mxu0 0
      %2999 = vmatmul.mubr.bf16.gmra.mrb[0].mxu0 %v2813
      %v3000 = vpop.f32.mrb[0].mxu0
      %v3001 = vadd.f32 %v2853, %v3000
      %v3002 = vpop.f32.mrb[0].mxu0
      %v3003 = vpop.f32.mrb[0].mxu0
      %v3004 = vadd.f32 %v2853, %v3003
      %v3005 = vpop.f32.mrb[0].mxu0
      %3006 = vmatprep.mubr.bf16.mxu0 0
      %3007 = vmatmul.mubr.bf16.gmra.mrb[0].mxu0 %v2814
      %v3008 = vpop.f32.mrb[0].mxu0
      %v3009 = vadd.f32 %v2853, %v3008
      %v3010 = vpop.f32.mrb[0].mxu0
      %v3011 = vpop.f32.mrb[0].mxu0
      %v3012 = vadd.f32 %v2853, %v3011
      %v3013 = vpop.f32.mrb[0].mxu0
      %3014 = vmatprep.mubr.bf16.mxu0 0
      %3015 = vmatmul.mubr.bf16.gmra.mrb[0].mxu0 %v2815
      %v3016 = vpop.f32.mrb[0].mxu0
      %v3017 = vadd.f32 %v2853, %v3016
      %v3018 = vpop.f32.mrb[0].mxu0
      %v3019 = vpop.f32.mrb[0].mxu0
      %v3020 = vadd.f32 %v2853, %v3019
      %v3021 = vpop.f32.mrb[0].mxu0
      %3022 = vmatprep.mubr.bf16.mxu0 0
      %3023 = vmatmul.mubr.bf16.gmra.mrb[0].mxu0 %v2816
      %v3024 = vpop.f32.mrb[0].mxu0
      %v3025 = vadd.f32 %v2853, %v3024
      %v3026 = vpop.f32.mrb[0].mxu0
      %v3027 = vpop.f32.mrb[0].mxu0
      %v3028 = vadd.f32 %v2853, %v3027
      %v3029 = vpop.f32.mrb[0].mxu0
      %3030 = vmatprep.mubr.bf16.mxu0 0
      %3031 = vmatmul.mubr.bf16.gmra.mrb[0].mxu0 %v2817
      %v3032 = vpop.f32.mrb[0].mxu0
      %v3033 = vadd.f32 %v2853, %v3032
      %v3034 = vpop.f32.mrb[0].mxu0
      %v3035 = vpop.f32.mrb[0].mxu0
      %v3036 = vadd.f32 %v2853, %v3035
      %v3037 = vpop.f32.mrb[0].mxu0
      %3038 = vmatprep.mubr.bf16.mxu0 0
      %3039 = vmatmul.mubr.bf16.gmra.mrb[0].mxu0 %v2818
      %v3040 = vpop.f32.mrb[0].mxu0
      %v3041 = vadd.f32 %v2853, %v3040
      %v3042 = vpop.f32.mrb[0].mxu0
      %v3043 = vpop.f32.mrb[0].mxu0
      %v3044 = vadd.f32 %v2853, %v3043
      %v3045 = vpop.f32.mrb[0].mxu0
      %3046 = vmatprep.mubr.bf16.mxu0 0
      %3047 = vmatmul.mubr.bf16.gmra.mrb[0].mxu0 %v2819
      %v3048 = vpop.f32.mrb[0].mxu0
      %v3049 = vadd.f32 %v2853, %v3048
      %v3050 = vpop.f32.mrb[0].mxu0
      %v3051 = vpop.f32.mrb[0].mxu0
      %v3052 = vadd.f32 %v2853, %v3051
      %v3053 = vpop.f32.mrb[0].mxu0
      %3054 = vmatprep.mubr.bf16.mxu0 0
      %3055 = vmatmul.mubr.bf16.gmra.mrb[0].mxu0 %v2820
      %v3056 = vpop.f32.mrb[0].mxu0
      %v3057 = vadd.f32 %v2853, %v3056
      %v3058 = vpop.f32.mrb[0].mxu0
      %v3059 = vpop.f32.mrb[0].mxu0
      %v3060 = vadd.f32 %v2853, %v3059
      %v3061 = vpop.f32.mrb[0].mxu0
      %3062 = vmatprep.mubr.bf16.mxu0 0
      %3063 = vmatmul.mubr.bf16.gmra.mrb[0].mxu0 %v2821
      %v3064 = vpop.f32.mrb[0].mxu0
      %v3065 = vadd.f32 %v2853, %v3064
      %v3066 = vpop.f32.mrb[0].mxu0
      %v3067 = vpop.f32.mrb[0].mxu0
      %v3068 = vadd.f32 %v2853, %v3067
      %v3069 = vpop.f32.mrb[0].mxu0
      %3070 = vmatprep.mubr.bf16.mxu0 0
      %3071 = vmatmul.mubr.bf16.gmra.mrb[0].mxu0 %v2822
      %v3072 = vpop.f32.mrb[0].mxu0
      %v3073 = vadd.f32 %v2853, %v3072
      %v3074 = vpop.f32.mrb[0].mxu0
      %v3075 = vpop.f32.mrb[0].mxu0
      %v3076 = vadd.f32 %v2853, %v3075
      %v3077 = vpop.f32.mrb[0].mxu0
      %3078 = vmatprep.mubr.bf16.mxu0 0
      %3079 = vmatmul.mubr.bf16.gmra.mrb[0].mxu0 %v2823
      %v3080 = vpop.f32.mrb[0].mxu0
      %v3081 = vadd.f32 %v2853, %v3080
      %v3082 = vpop.f32.mrb[0].mxu0
      %v3083 = vpop.f32.mrb[0].mxu0
      %v3084 = vadd.f32 %v2853, %v3083
      %v3085 = vpop.f32.mrb[0].mxu0
      %3086 = vmatprep.mubr.bf16.mxu0 0
      %3087 = vmatmul.mubr.bf16.gmra.mrb[0].mxu0 %v2824
      %v3088 = vpop.f32.mrb[0].mxu0
      %v3089 = vadd.f32 %v2853, %v3088
      %v3090 = vpop.f32.mrb[0].mxu0
      %v3091 = vpop.f32.mrb[0].mxu0
      %v3092 = vadd.f32 %v2853, %v3091
      %v3093 = vpop.f32.mrb[0].mxu0
      %3094 = vmatprep.mubr.bf16.mxu0 0
      %3095 = vmatmul.mubr.bf16.gmra.mrb[0].mxu0 %v2825
      %v3096 = vpop.f32.mrb[0].mxu0
      %v3097 = vadd.f32 %v2853, %v3096
      %v3098 = vpop.f32.mrb[0].mxu0
      %v3099 = vpop.f32.mrb[0].mxu0
      %v3100 = vadd.f32 %v2853, %v3099
      %v3101 = vpop.f32.mrb[0].mxu0
      %3102 = vmatprep.mubr.bf16.mxu0 0
      %3103 = vmatmul.mubr.bf16.gmra.mrb[0].mxu0 %v2826
      %v3104 = vpop.f32.mrb[0].mxu0
      %v3105 = vadd.f32 %v2853, %v3104
      %v3106 = vpop.f32.mrb[0].mxu0
      %v3107 = vpop.f32.mrb[0].mxu0
      %v3108 = vadd.f32 %v2853, %v3107
      %v3109 = vpop.f32.mrb[0].mxu0
      %3110 = vmatprep.mubr.bf16.mxu0 0
      %3111 = vmatmul.mubr.bf16.gmra.mrb[0].mxu0 %v2827
      %v3112 = vpop.f32.mrb[0].mxu0
      %v3113 = vadd.f32 %v2853, %v3112
      %v3114 = vpop.f32.mrb[0].mxu0
      %v3115 = vpop.f32.mrb[0].mxu0
      %v3116 = vadd.f32 %v2853, %v3115
      %v3117 = vpop.f32.mrb[0].mxu0
      %3118 = vmatprep.mubr.bf16.mxu0 0
      %3119 = vmatmul.mubr.bf16.gmra.mrb[0].mxu0 %v2828
      %v3120 = vpop.f32.mrb[0].mxu0
      %v3121 = vadd.f32 %v2853, %v3120
      %v3122 = vpop.f32.mrb[0].mxu0
      %v3123 = vpop.f32.mrb[0].mxu0
      %v3124 = vadd.f32 %v2853, %v3123
      %v3125 = vpop.f32.mrb[0].mxu0
      %3126 = vmatprep.mubr.bf16.mxu0 0
      %3127 = vmatmul.mubr.bf16.gmra.mrb[0].mxu0 %v2829
      %v3128 = vpop.f32.mrb[0].mxu0
      %v3129 = vadd.f32 %v2853, %v3128
      %v3130 = vpop.f32.mrb[0].mxu0
      %v3131 = vpop.f32.mrb[0].mxu0
      %v3132 = vadd.f32 %v2853, %v3131
      %v3133 = vpop.f32.mrb[0].mxu0
      %3134 = vmatprep.mubr.bf16.mxu0 0
      %3135 = vmatmul.mubr.bf16.gmra.mrb[0].mxu0 %v2830
      %v3136 = vpop.f32.mrb[0].mxu0
      %v3137 = vadd.f32 %v2853, %v3136
      %v3138 = vpop.f32.mrb[0].mxu0
      %v3139 = vpop.f32.mrb[0].mxu0
      %v3140 = vadd.f32 %v2853, %v3139
      %v3141 = vpop.f32.mrb[0].mxu0
      %3142 = vmatprep.mubr.bf16.mxu0 0
      %3143 = vmatmul.mubr.bf16.gmra.mrb[0].mxu0 %v2831
      %v3144 = vpop.f32.mrb[0].mxu0
      %v3145 = vadd.f32 %v2853, %v3144
      %v3146 = vpop.f32.mrb[0].mxu0
      %v3147 = vpop.f32.mrb[0].mxu0
      %v3148 = vadd.f32 %v2853, %v3147
      %v3149 = vpop.f32.mrb[0].mxu0
      %3150 = vmatprep.mubr.bf16.mxu0 0
      %3151 = vmatmul.mubr.bf16.gmra.mrb[0].mxu0 %v2832
      %v3152 = vpop.f32.mrb[0].mxu0
      %v3153 = vadd.f32 %v2853, %v3152
      %v3154 = vpop.f32.mrb[0].mxu0
      %v3155 = vpop.f32.mrb[0].mxu0
      %v3156 = vadd.f32 %v2853, %v3155
      %v3157 = vpop.f32.mrb[0].mxu0
      %3158 = vmatprep.mubr.bf16.mxu0 0
      %3159 = vmatmul.mubr.bf16.gmra.mrb[0].mxu0 %v2833
      %v3160 = vpop.f32.mrb[0].mxu0
      %v3161 = vadd.f32 %v2853, %v3160
      %v3162 = vpop.f32.mrb[0].mxu0
      %v3163 = vpop.f32.mrb[0].mxu0
      %v3164 = vadd.f32 %v2853, %v3163
      %v3165 = vpop.f32.mrb[0].mxu0
      %3166 = vmatprep.mubr.bf16.mxu0 0
      %3167 = vmatmul.mubr.bf16.gmra.mrb[0].mxu0 %v2834
      %v3168 = vpop.f32.mrb[0].mxu0
      %v3169 = vadd.f32 %v2853, %v3168
      %v3170 = vpop.f32.mrb[0].mxu0
      %v3171 = vpop.f32.mrb[0].mxu0
      %v3172 = vadd.f32 %v2853, %v3171
      %v3173 = vpop.f32.mrb[0].mxu0
      %3174 = vmatprep.mubr.bf16.mxu0 0
      %3175 = vmatmul.mubr.bf16.gmra.mrb[0].mxu0 %v2835
      %v3176 = vpop.f32.mrb[0].mxu0
      %v3177 = vadd.f32 %v2853, %v3176
      %v3178 = vpop.f32.mrb[0].mxu0
      %v3179 = vpop.f32.mrb[0].mxu0
      %v3180 = vadd.f32 %v2853, %v3179
      %v3181 = vpop.f32.mrb[0].mxu0
      %3182 = vmatprep.mubr.bf16.mxu0 0
      %3183 = vmatmul.mubr.bf16.gmra.mrb[0].mxu0 %v2836
      %v3184 = vpop.f32.mrb[0].mxu0
      %v3185 = vadd.f32 %v2853, %v3184
      %v3186 = vpop.f32.mrb[0].mxu0
      %v3187 = vpop.f32.mrb[0].mxu0
      %v3188 = vadd.f32 %v2853, %v3187
      %v3189 = vpop.f32.mrb[0].mxu0
      %3190 = vdwg.mxu0
      %v3191 = vtanh.pop %v2937
      %v3192 = vtanh.pop %v2940
      %v3193 = vtanh.pop %v2945
      %v3194 = vtanh.pop %v2948
      %v3195 = vtanh.pop %v2953
      %v3196 = vtanh.pop %v2956
      %v3197 = vtanh.pop %v2961
      %v3198 = vtanh.pop %v2964
      %v3199 = vtanh.pop %v2969
      %v3200 = vtanh.pop %v2972
      %v3201 = vtanh.pop %v2977
      %v3202 = vtanh.pop %v2980
      %v3203 = vtanh.pop %v2985
      %v3204 = vtanh.pop %v2988
      %v3205 = vtanh.pop %v2993
      %v3206 = vtanh.pop %v2996
      %v3207 = vtanh.pop %v3001
      %v3208 = vtanh.pop %v3004
      %v3209 = vtanh.pop %v3009
      %v3210 = vtanh.pop %v3012
      %v3211 = vtanh.pop %v3017
      %v3212 = vtanh.pop %v3020
      %v3213 = vtanh.pop %v3025
      %v3214 = vtanh.pop %v3028
      %v3215 = vtanh.pop %v3033
      %v3216 = vtanh.pop %v3036
      %v3217 = vtanh.pop %v3041
      %v3218 = vtanh.pop %v3044
      %v3219 = vtanh.pop %v3049
      %v3220 = vtanh.pop %v3052
      %v3221 = vtanh.pop %v3057
      %v3222 = vtanh.pop %v3060
      %v3223 = vtanh.pop %v3065
      %v3224 = vtanh.pop %v3068
      %v3225 = vtanh.pop %v3073
      %v3226 = vtanh.pop %v3076
      %v3227 = vtanh.pop %v3081
      %v3228 = vtanh.pop %v3084
      %v3229 = vtanh.pop %v3089
      %v3230 = vtanh.pop %v3092
      %v3231 = vtanh.pop %v3097
      %v3232 = vtanh.pop %v3100
      %v3233 = vtanh.pop %v3105
      %v3234 = vtanh.pop %v3108
      %v3235 = vtanh.pop %v3113
      %v3236 = vtanh.pop %v3116
      %v3237 = vtanh.pop %v3121
      %v3238 = vtanh.pop %v3124
      %v3239 = vtanh.pop %v3129
      %v3240 = vtanh.pop %v3132
      %v3241 = vtanh.pop %v3137
      %v3242 = vtanh.pop %v3140
      %v3243 = vtanh.pop %v3145
      %v3244 = vtanh.pop %v3148
      %v3245 = vtanh.pop %v3153
      %v3246 = vtanh.pop %v3156
      %v3247 = vtanh.pop %v3161
      %v3248 = vtanh.pop %v3164
      %v3249 = vtanh.pop %v3169
      %v3250 = vtanh.pop %v3172
      %v3251 = vtanh.pop %v3177
      %v3252 = vtanh.pop %v3180
      %v3253 = vtanh.pop %v3185
      %v3254 = vtanh.pop %v3188
      %v3255 = vpack.c.bf16 %v3192, %v3191
      %v3256 = vpack.c.bf16 %v3194, %v3193
      %v3257 = vpack.c.bf16 %v3196, %v3195
      %v3258 = vpack.c.bf16 %v3198, %v3197
      %v3259 = vpack.c.bf16 %v3200, %v3199
      %v3260 = vpack.c.bf16 %v3202, %v3201
      %v3261 = vpack.c.bf16 %v3204, %v3203
      %v3262 = vpack.c.bf16 %v3206, %v3205
      %v3263 = vpack.c.bf16 %v3208, %v3207
      %v3264 = vpack.c.bf16 %v3210, %v3209
      %v3265 = vpack.c.bf16 %v3212, %v3211
      %v3266 = vpack.c.bf16 %v3214, %v3213
      %v3267 = vpack.c.bf16 %v3216, %v3215
      %v3268 = vpack.c.bf16 %v3218, %v3217
      %v3269 = vpack.c.bf16 %v3220, %v3219
      %v3270 = vpack.c.bf16 %v3222, %v3221
      %v3271 = vpack.c.bf16 %v3224, %v3223
      %v3272 = vpack.c.bf16 %v3226, %v3225
      %v3273 = vpack.c.bf16 %v3228, %v3227
      %v3274 = vpack.c.bf16 %v3230, %v3229
      %v3275 = vpack.c.bf16 %v3232, %v3231
      %v3276 = vpack.c.bf16 %v3234, %v3233
      %v3277 = vpack.c.bf16 %v3236, %v3235
      %v3278 = vpack.c.bf16 %v3238, %v3237
      %v3279 = vpack.c.bf16 %v3240, %v3239
      %v3280 = vpack.c.bf16 %v3242, %v3241
      %v3281 = vpack.c.bf16 %v3244, %v3243
      %v3282 = vpack.c.bf16 %v3246, %v3245
      %v3283 = vpack.c.bf16 %v3248, %v3247
      %v3284 = vpack.c.bf16 %v3250, %v3249
      %v3285 = vpack.c.bf16 %v3252, %v3251
      %v3286 = vpack.c.bf16 %v3254, %v3253
      %v3287 = vld [vmem:[%s3] sm:$0xf]
      %v3288 = vld [vmem:[%s3 + $0x4] sm:$0xf]
      %v3289 = vld [vmem:[%s3 + $0x8] sm:$0xf]
      %v3290 = vld [vmem:[%s3 + $0xc] sm:$0xf]
      %v3291 = vld [vmem:[%s3 + $0x10] sm:$0xf]
      %v3292 = vld [vmem:[%s3 + $0x14] sm:$0xf]
      %v3293 = vld [vmem:[%s3 + $0x18] sm:$0xf]
      %v3294 = vld [vmem:[%s3 + $0x1c] sm:$0xf]
      %v3295 = vld [vmem:[%s11 + $0x2] ss:$0 sm:$0xff]
      %v3304 = vunpack.c.l.b16 %v3287
      %v3305 = vunpack.c.l.b16 %v3288
      %v3306 = vunpack.c.l.b16 %v3289
      %v3307 = vunpack.c.l.b16 %v3290
      %v3308 = vunpack.c.l.b16 %v3291
      %v3309 = vunpack.c.l.b16 %v3292
      %v3310 = vunpack.c.l.b16 %v3293
      %v3311 = vunpack.c.l.b16 %v3294
      %v3312 = vpack.c.b16 %v3305, %v3304
      %v3313 = vpack.c.b16 %v3307, %v3306
      %v3314 = vpack.c.b16 %v3309, %v3308
      %v3315 = vpack.c.b16 %v3311, %v3310
      %vm3320 = vcmask 523264
      %v3322 = vsel %vm3320, %v3255, 0
      %v3325 = vsel %vm3320, %v3256, 0
      %v3328 = vsel %vm3320, %v3257, 0
      %v3331 = vsel %vm3320, %v3258, 0
      %v3334 = vsel %vm3320, %v3259, 0
      %v3337 = vsel %vm3320, %v3260, 0
      %v3340 = vsel %vm3320, %v3261, 0
      %v3343 = vsel %vm3320, %v3262, 0
      %v3346 = vsel %vm3320, %v3263, 0
      %v3349 = vsel %vm3320, %v3264, 0
      %v3352 = vsel %vm3320, %v3265, 0
      %v3355 = vsel %vm3320, %v3266, 0
      %v3358 = vsel %vm3320, %v3267, 0
      %v3361 = vsel %vm3320, %v3268, 0
      %v3364 = vsel %vm3320, %v3269, 0
      %v3367 = vsel %vm3320, %v3270, 0
      %v3370 = vsel %vm3320, %v3271, 0
      %v3373 = vsel %vm3320, %v3272, 0
      %v3376 = vsel %vm3320, %v3273, 0
      %v3379 = vsel %vm3320, %v3274, 0
      %v3382 = vsel %vm3320, %v3275, 0
      %v3385 = vsel %vm3320, %v3276, 0
      %v3388 = vsel %vm3320, %v3277, 0
      %v3391 = vsel %vm3320, %v3278, 0
      %v3394 = vsel %vm3320, %v3279, 0
      %v3397 = vsel %vm3320, %v3280, 0
      %v3400 = vsel %vm3320, %v3281, 0
      %v3403 = vsel %vm3320, %v3282, 0
      %v3406 = vsel %vm3320, %v3283, 0
      %v3409 = vsel %vm3320, %v3284, 0
      %v3412 = vsel %vm3320, %v3285, 0
      %v3415 = vsel %vm3320, %v3286, 0
      %3417 = vmatprep.subr.bf16.mxu0 0
      %3418 = vmatpush1.bf16.msra.mxu0 %v3312
      %3419 = vmatprep.subr.bf16.mxu0 0
      %3420 = vmatpush1.bf16.msra.mxu0 %v3313
      %3421 = vmatprep.subr.bf16.mxu0 0
      %3422 = vmatpush1.bf16.msra.mxu0 %v3314
      %3423 = vmatprep.subr.bf16.mxu0 0
      %3424 = vmatpush1.bf16.msra.mxu0 %v3315
      %3425 = vmatprep.subr.bf16.mxu0 0
      %3426 = vmatpush1.bf16.msra.mxu0 0
      %3427 = vmatprep.subr.bf16.mxu0 0
      %3428 = vmatpush1.bf16.msra.mxu0 0
      %3429 = vmatprep.subr.bf16.mxu0 0
      %3430 = vmatpush1.bf16.msra.mxu0 0
      %3431 = vmatprep.subr.bf16.mxu0 0
      %3432 = vmatpush1.bf16.msra.mxu0 0
      %3433 = vmatprep.subr.bf16.mxu0 0
      %3434 = vmatpush1.bf16.msra.mxu0 0
      %3435 = vmatprep.subr.bf16.mxu0 0
      %3436 = vmatpush1.bf16.msra.mxu0 0
      %3437 = vmatprep.subr.bf16.mxu0 0
      %3438 = vmatpush1.bf16.msra.mxu0 0
      %3439 = vmatprep.subr.bf16.mxu0 0
      %3440 = vmatpush1.bf16.msra.mxu0 0
      %3441 = vmatprep.subr.bf16.mxu0 0
      %3442 = vmatpush1.bf16.msra.mxu0 0
      %3443 = vmatprep.subr.bf16.mxu0 0
      %3444 = vmatpush1.bf16.msra.mxu0 0
      %3445 = vmatprep.subr.bf16.mxu0 0
      %3446 = vmatpush1.bf16.msra.mxu0 0
      %3447 = vmatprep.subr.bf16.mxu0 0
      %3448 = vmatpush1.bf16.msra.mxu0 0
      %3449 = vmatprep.mubr.bf16.mxu0 0
      %3450 = vmatmul.mubr.bf16.gmra.mrb[0].mxu0 %v3322
      %v3451 = vpop.f32.mrb[0].mxu0
      %v3452 = vadd.f32 %v3295, %v3451
      %v3453 = vpop.f32.mrb[0].mxu0
      %v3454 = vpop.f32.mrb[0].mxu0
      %v3455 = vadd.f32 %v3295, %v3454
      %v3456 = vpop.f32.mrb[0].mxu0
      %3457 = vmatprep.mubr.bf16.mxu0 0
      %3458 = vmatmul.mubr.bf16.gmra.mrb[0].mxu0 %v3325
      %v3459 = vpop.f32.mrb[0].mxu0
      %v3460 = vadd.f32 %v3295, %v3459
      %v3461 = vpop.f32.mrb[0].mxu0
      %v3462 = vpop.f32.mrb[0].mxu0
      %v3463 = vadd.f32 %v3295, %v3462
      %v3464 = vpop.f32.mrb[0].mxu0
      %3465 = vmatprep.mubr.bf16.mxu0 0
      %3466 = vmatmul.mubr.bf16.gmra.mrb[0].mxu0 %v3328
      %v3467 = vpop.f32.mrb[0].mxu0
      %v3468 = vadd.f32 %v3295, %v3467
      %v3469 = vpop.f32.mrb[0].mxu0
      %v3470 = vpop.f32.mrb[0].mxu0
      %v3471 = vadd.f32 %v3295, %v3470
      %v3472 = vpop.f32.mrb[0].mxu0
      %3473 = vmatprep.mubr.bf16.mxu0 0
      %3474 = vmatmul.mubr.bf16.gmra.mrb[0].mxu0 %v3331
      %v3475 = vpop.f32.mrb[0].mxu0
      %v3476 = vadd.f32 %v3295, %v3475
      %v3477 = vpop.f32.mrb[0].mxu0
      %v3478 = vpop.f32.mrb[0].mxu0
      %v3479 = vadd.f32 %v3295, %v3478
      %v3480 = vpop.f32.mrb[0].mxu0
      %3481 = vmatprep.mubr.bf16.mxu0 0
      %3482 = vmatmul.mubr.bf16.gmra.mrb[0].mxu0 %v3334
      %v3483 = vpop.f32.mrb[0].mxu0
      %v3484 = vadd.f32 %v3295, %v3483
      %v3485 = vpop.f32.mrb[0].mxu0
      %v3486 = vpop.f32.mrb[0].mxu0
      %v3487 = vadd.f32 %v3295, %v3486
      %v3488 = vpop.f32.mrb[0].mxu0
      %3489 = vmatprep.mubr.bf16.mxu0 0
      %3490 = vmatmul.mubr.bf16.gmra.mrb[0].mxu0 %v3337
      %v3491 = vpop.f32.mrb[0].mxu0
      %v3492 = vadd.f32 %v3295, %v3491
      %v3493 = vpop.f32.mrb[0].mxu0
      %v3494 = vpop.f32.mrb[0].mxu0
      %v3495 = vadd.f32 %v3295, %v3494
      %v3496 = vpop.f32.mrb[0].mxu0
      %3497 = vmatprep.mubr.bf16.mxu0 0
      %3498 = vmatmul.mubr.bf16.gmra.mrb[0].mxu0 %v3340
      %v3499 = vpop.f32.mrb[0].mxu0
      %v3500 = vadd.f32 %v3295, %v3499
      %v3501 = vpop.f32.mrb[0].mxu0
      %v3502 = vpop.f32.mrb[0].mxu0
      %v3503 = vadd.f32 %v3295, %v3502
      %v3504 = vpop.f32.mrb[0].mxu0
      %3505 = vmatprep.mubr.bf16.mxu0 0
      %3506 = vmatmul.mubr.bf16.gmra.mrb[0].mxu0 %v3343
      %v3507 = vpop.f32.mrb[0].mxu0
      %v3508 = vadd.f32 %v3295, %v3507
      %v3509 = vpop.f32.mrb[0].mxu0
      %v3510 = vpop.f32.mrb[0].mxu0
      %v3511 = vadd.f32 %v3295, %v3510
      %v3512 = vpop.f32.mrb[0].mxu0
      %3513 = vmatprep.mubr.bf16.mxu0 0
      %3514 = vmatmul.mubr.bf16.gmra.mrb[0].mxu0 %v3346
      %v3515 = vpop.f32.mrb[0].mxu0
      %v3516 = vadd.f32 %v3295, %v3515
      %v3517 = vpop.f32.mrb[0].mxu0
      %v3518 = vpop.f32.mrb[0].mxu0
      %v3519 = vadd.f32 %v3295, %v3518
      %v3520 = vpop.f32.mrb[0].mxu0
      %3521 = vmatprep.mubr.bf16.mxu0 0
      %3522 = vmatmul.mubr.bf16.gmra.mrb[0].mxu0 %v3349
      %v3523 = vpop.f32.mrb[0].mxu0
      %v3524 = vadd.f32 %v3295, %v3523
      %v3525 = vpop.f32.mrb[0].mxu0
      %v3526 = vpop.f32.mrb[0].mxu0
      %v3527 = vadd.f32 %v3295, %v3526
      %v3528 = vpop.f32.mrb[0].mxu0
      %3529 = vmatprep.mubr.bf16.mxu0 0
      %3530 = vmatmul.mubr.bf16.gmra.mrb[0].mxu0 %v3352
      %v3531 = vpop.f32.mrb[0].mxu0
      %v3532 = vadd.f32 %v3295, %v3531
      %v3533 = vpop.f32.mrb[0].mxu0
      %v3534 = vpop.f32.mrb[0].mxu0
      %v3535 = vadd.f32 %v3295, %v3534
      %v3536 = vpop.f32.mrb[0].mxu0
      %3537 = vmatprep.mubr.bf16.mxu0 0
      %3538 = vmatmul.mubr.bf16.gmra.mrb[0].mxu0 %v3355
      %v3539 = vpop.f32.mrb[0].mxu0
      %v3540 = vadd.f32 %v3295, %v3539
      %v3541 = vpop.f32.mrb[0].mxu0
      %v3542 = vpop.f32.mrb[0].mxu0
      %v3543 = vadd.f32 %v3295, %v3542
      %v3544 = vpop.f32.mrb[0].mxu0
      %3545 = vmatprep.mubr.bf16.mxu0 0
      %3546 = vmatmul.mubr.bf16.gmra.mrb[0].mxu0 %v3358
      %v3547 = vpop.f32.mrb[0].mxu0
      %v3548 = vadd.f32 %v3295, %v3547
      %v3549 = vpop.f32.mrb[0].mxu0
      %v3550 = vpop.f32.mrb[0].mxu0
      %v3551 = vadd.f32 %v3295, %v3550
      %v3552 = vpop.f32.mrb[0].mxu0
      %3553 = vmatprep.mubr.bf16.mxu0 0
      %3554 = vmatmul.mubr.bf16.gmra.mrb[0].mxu0 %v3361
      %v3555 = vpop.f32.mrb[0].mxu0
      %v3556 = vadd.f32 %v3295, %v3555
      %v3557 = vpop.f32.mrb[0].mxu0
      %v3558 = vpop.f32.mrb[0].mxu0
      %v3559 = vadd.f32 %v3295, %v3558
      %v3560 = vpop.f32.mrb[0].mxu0
      %3561 = vmatprep.mubr.bf16.mxu0 0
      %3562 = vmatmul.mubr.bf16.gmra.mrb[0].mxu0 %v3364
      %v3563 = vpop.f32.mrb[0].mxu0
      %v3564 = vadd.f32 %v3295, %v3563
      %v3565 = vpop.f32.mrb[0].mxu0
      %v3566 = vpop.f32.mrb[0].mxu0
      %v3567 = vadd.f32 %v3295, %v3566
      %v3568 = vpop.f32.mrb[0].mxu0
      %3569 = vmatprep.mubr.bf16.mxu0 0
      %3570 = vmatmul.mubr.bf16.gmra.mrb[0].mxu0 %v3367
      %v3571 = vpop.f32.mrb[0].mxu0
      %v3572 = vadd.f32 %v3295, %v3571
      %v3573 = vpop.f32.mrb[0].mxu0
      %v3574 = vpop.f32.mrb[0].mxu0
      %v3575 = vadd.f32 %v3295, %v3574
      %v3576 = vpop.f32.mrb[0].mxu0
      %3577 = vmatprep.mubr.bf16.mxu0 0
      %3578 = vmatmul.mubr.bf16.gmra.mrb[0].mxu0 %v3370
      %v3579 = vpop.f32.mrb[0].mxu0
      %v3580 = vadd.f32 %v3295, %v3579
      %v3581 = vpop.f32.mrb[0].mxu0
      %v3582 = vpop.f32.mrb[0].mxu0
      %v3583 = vadd.f32 %v3295, %v3582
      %v3584 = vpop.f32.mrb[0].mxu0
      %3585 = vmatprep.mubr.bf16.mxu0 0
      %3586 = vmatmul.mubr.bf16.gmra.mrb[0].mxu0 %v3373
      %v3587 = vpop.f32.mrb[0].mxu0
      %v3588 = vadd.f32 %v3295, %v3587
      %v3589 = vpop.f32.mrb[0].mxu0
      %v3590 = vpop.f32.mrb[0].mxu0
      %v3591 = vadd.f32 %v3295, %v3590
      %v3592 = vpop.f32.mrb[0].mxu0
      %3593 = vmatprep.mubr.bf16.mxu0 0
      %3594 = vmatmul.mubr.bf16.gmra.mrb[0].mxu0 %v3376
      %v3595 = vpop.f32.mrb[0].mxu0
      %v3596 = vadd.f32 %v3295, %v3595
      %v3597 = vpop.f32.mrb[0].mxu0
      %v3598 = vpop.f32.mrb[0].mxu0
      %v3599 = vadd.f32 %v3295, %v3598
      %v3600 = vpop.f32.mrb[0].mxu0
      %3601 = vmatprep.mubr.bf16.mxu0 0
      %3602 = vmatmul.mubr.bf16.gmra.mrb[0].mxu0 %v3379
      %v3603 = vpop.f32.mrb[0].mxu0
      %v3604 = vadd.f32 %v3295, %v3603
      %v3605 = vpop.f32.mrb[0].mxu0
      %v3606 = vpop.f32.mrb[0].mxu0
      %v3607 = vadd.f32 %v3295, %v3606
      %v3608 = vpop.f32.mrb[0].mxu0
      %3609 = vmatprep.mubr.bf16.mxu0 0
      %3610 = vmatmul.mubr.bf16.gmra.mrb[0].mxu0 %v3382
      %v3611 = vpop.f32.mrb[0].mxu0
      %v3612 = vadd.f32 %v3295, %v3611
      %v3613 = vpop.f32.mrb[0].mxu0
      %v3614 = vpop.f32.mrb[0].mxu0
      %v3615 = vadd.f32 %v3295, %v3614
      %v3616 = vpop.f32.mrb[0].mxu0
      %3617 = vmatprep.mubr.bf16.mxu0 0
      %3618 = vmatmul.mubr.bf16.gmra.mrb[0].mxu0 %v3385
      %v3619 = vpop.f32.mrb[0].mxu0
      %v3620 = vadd.f32 %v3295, %v3619
      %v3621 = vpop.f32.mrb[0].mxu0
      %v3622 = vpop.f32.mrb[0].mxu0
      %v3623 = vadd.f32 %v3295, %v3622
      %v3624 = vpop.f32.mrb[0].mxu0
      %3625 = vmatprep.mubr.bf16.mxu0 0
      %3626 = vmatmul.mubr.bf16.gmra.mrb[0].mxu0 %v3388
      %v3627 = vpop.f32.mrb[0].mxu0
      %v3628 = vadd.f32 %v3295, %v3627
      %v3629 = vpop.f32.mrb[0].mxu0
      %v3630 = vpop.f32.mrb[0].mxu0
      %v3631 = vadd.f32 %v3295, %v3630
      %v3632 = vpop.f32.mrb[0].mxu0
      %3633 = vmatprep.mubr.bf16.mxu0 0
      %3634 = vmatmul.mubr.bf16.gmra.mrb[0].mxu0 %v3391
      %v3635 = vpop.f32.mrb[0].mxu0
      %v3636 = vadd.f32 %v3295, %v3635
      %v3637 = vpop.f32.mrb[0].mxu0
      %v3638 = vpop.f32.mrb[0].mxu0
      %v3639 = vadd.f32 %v3295, %v3638
      %v3640 = vpop.f32.mrb[0].mxu0
      %3641 = vmatprep.mubr.bf16.mxu0 0
      %3642 = vmatmul.mubr.bf16.gmra.mrb[0].mxu0 %v3394
      %v3643 = vpop.f32.mrb[0].mxu0
      %v3644 = vadd.f32 %v3295, %v3643
      %v3645 = vpop.f32.mrb[0].mxu0
      %v3646 = vpop.f32.mrb[0].mxu0
      %v3647 = vadd.f32 %v3295, %v3646
      %v3648 = vpop.f32.mrb[0].mxu0
      %3649 = vmatprep.mubr.bf16.mxu0 0
      %3650 = vmatmul.mubr.bf16.gmra.mrb[0].mxu0 %v3397
      %v3651 = vpop.f32.mrb[0].mxu0
      %v3652 = vadd.f32 %v3295, %v3651
      %v3653 = vpop.f32.mrb[0].mxu0
      %v3654 = vpop.f32.mrb[0].mxu0
      %v3655 = vadd.f32 %v3295, %v3654
      %v3656 = vpop.f32.mrb[0].mxu0
      %3657 = vmatprep.mubr.bf16.mxu0 0
      %3658 = vmatmul.mubr.bf16.gmra.mrb[0].mxu0 %v3400
      %v3659 = vpop.f32.mrb[0].mxu0
      %v3660 = vadd.f32 %v3295, %v3659
      %v3661 = vpop.f32.mrb[0].mxu0
      %v3662 = vpop.f32.mrb[0].mxu0
      %v3663 = vadd.f32 %v3295, %v3662
      %v3664 = vpop.f32.mrb[0].mxu0
      %3665 = vmatprep.mubr.bf16.mxu0 0
      %3666 = vmatmul.mubr.bf16.gmra.mrb[0].mxu0 %v3403
      %v3667 = vpop.f32.mrb[0].mxu0
      %v3668 = vadd.f32 %v3295, %v3667
      %v3669 = vpop.f32.mrb[0].mxu0
      %v3670 = vpop.f32.mrb[0].mxu0
      %v3671 = vadd.f32 %v3295, %v3670
      %v3672 = vpop.f32.mrb[0].mxu0
      %3673 = vmatprep.mubr.bf16.mxu0 0
      %3674 = vmatmul.mubr.bf16.gmra.mrb[0].mxu0 %v3406
      %v3675 = vpop.f32.mrb[0].mxu0
      %v3676 = vadd.f32 %v3295, %v3675
      %v3677 = vpop.f32.mrb[0].mxu0
      %v3678 = vpop.f32.mrb[0].mxu0
      %v3679 = vadd.f32 %v3295, %v3678
      %v3680 = vpop.f32.mrb[0].mxu0
      %3681 = vmatprep.mubr.bf16.mxu0 0
      %3682 = vmatmul.mubr.bf16.gmra.mrb[0].mxu0 %v3409
      %v3683 = vpop.f32.mrb[0].mxu0
      %v3684 = vadd.f32 %v3295, %v3683
      %v3685 = vpop.f32.mrb[0].mxu0
      %v3686 = vpop.f32.mrb[0].mxu0
      %v3687 = vadd.f32 %v3295, %v3686
      %v3688 = vpop.f32.mrb[0].mxu0
      %3689 = vmatprep.mubr.bf16.mxu0 0
      %3690 = vmatmul.mubr.bf16.gmra.mrb[0].mxu0 %v3412
      %v3691 = vpop.f32.mrb[0].mxu0
      %v3692 = vadd.f32 %v3295, %v3691
      %v3693 = vpop.f32.mrb[0].mxu0
      %v3694 = vpop.f32.mrb[0].mxu0
      %v3695 = vadd.f32 %v3295, %v3694
      %v3696 = vpop.f32.mrb[0].mxu0
      %3697 = vmatprep.mubr.bf16.mxu0 0
      %3698 = vmatmul.mubr.bf16.gmra.mrb[0].mxu0 %v3415
      %v3699 = vpop.f32.mrb[0].mxu0
      %v3700 = vadd.f32 %v3295, %v3699
      %v3701 = vpop.f32.mrb[0].mxu0
      %v3702 = vpop.f32.mrb[0].mxu0
      %v3703 = vadd.f32 %v3295, %v3702
      %v3704 = vpop.f32.mrb[0].mxu0
      %3705 = vdwg.mxu0
      %v3706 = vtanh.pop %v3452
      %v3707 = vtanh.pop %v3455
      %v3708 = vtanh.pop %v3460
      %v3709 = vtanh.pop %v3463
      %v3710 = vtanh.pop %v3468
      %v3711 = vtanh.pop %v3471
      %v3712 = vtanh.pop %v3476
      %v3713 = vtanh.pop %v3479
      %v3714 = vtanh.pop %v3484
      %v3715 = vtanh.pop %v3487
      %v3716 = vtanh.pop %v3492
      %v3717 = vtanh.pop %v3495
      %v3718 = vtanh.pop %v3500
      %v3719 = vtanh.pop %v3503
      %v3720 = vtanh.pop %v3508
      %v3721 = vtanh.pop %v3511
      %v3722 = vtanh.pop %v3516
      %v3723 = vtanh.pop %v3519
      %v3724 = vtanh.pop %v3524
      %v3725 = vtanh.pop %v3527
      %v3726 = vtanh.pop %v3532
      %v3727 = vtanh.pop %v3535
      %v3728 = vtanh.pop %v3540
      %v3729 = vtanh.pop %v3543
      %v3730 = vtanh.pop %v3548
      %v3731 = vtanh.pop %v3551
      %v3732 = vtanh.pop %v3556
      %v3733 = vtanh.pop %v3559
      %v3734 = vtanh.pop %v3564
      %v3735 = vtanh.pop %v3567
      %v3736 = vtanh.pop %v3572
      %v3737 = vtanh.pop %v3575
      %v3738 = vtanh.pop %v3580
      %v3739 = vtanh.pop %v3583
      %v3740 = vtanh.pop %v3588
      %v3741 = vtanh.pop %v3591
      %v3742 = vtanh.pop %v3596
      %v3743 = vtanh.pop %v3599
      %v3744 = vtanh.pop %v3604
      %v3745 = vtanh.pop %v3607
      %v3746 = vtanh.pop %v3612
      %v3747 = vtanh.pop %v3615
      %v3748 = vtanh.pop %v3620
      %v3749 = vtanh.pop %v3623
      %v3750 = vtanh.pop %v3628
      %v3751 = vtanh.pop %v3631
      %v3752 = vtanh.pop %v3636
      %v3753 = vtanh.pop %v3639
      %v3754 = vtanh.pop %v3644
      %v3755 = vtanh.pop %v3647
      %v3756 = vtanh.pop %v3652
      %v3757 = vtanh.pop %v3655
      %v3758 = vtanh.pop %v3660
      %v3759 = vtanh.pop %v3663
      %v3760 = vtanh.pop %v3668
      %v3761 = vtanh.pop %v3671
      %v3762 = vtanh.pop %v3676
      %v3763 = vtanh.pop %v3679
      %v3764 = vtanh.pop %v3684
      %v3765 = vtanh.pop %v3687
      %v3766 = vtanh.pop %v3692
      %v3767 = vtanh.pop %v3695
      %v3768 = vtanh.pop %v3700
      %v3769 = vtanh.pop %v3703
      %v3770 = vpack.c.bf16 %v3707, %v3706
      %v3771 = vpack.c.bf16 %v3709, %v3708
      %v3772 = vpack.c.bf16 %v3711, %v3710
      %v3773 = vpack.c.bf16 %v3713, %v3712
      %v3774 = vpack.c.bf16 %v3715, %v3714
      %v3775 = vpack.c.bf16 %v3717, %v3716
      %v3776 = vpack.c.bf16 %v3719, %v3718
      %v3777 = vpack.c.bf16 %v3721, %v3720
      %v3778 = vpack.c.bf16 %v3723, %v3722
      %v3779 = vpack.c.bf16 %v3725, %v3724
      %v3780 = vpack.c.bf16 %v3727, %v3726
      %v3781 = vpack.c.bf16 %v3729, %v3728
      %v3782 = vpack.c.bf16 %v3731, %v3730
      %v3783 = vpack.c.bf16 %v3733, %v3732
      %v3784 = vpack.c.bf16 %v3735, %v3734
      %v3785 = vpack.c.bf16 %v3737, %v3736
      %v3786 = vpack.c.bf16 %v3739, %v3738
      %v3787 = vpack.c.bf16 %v3741, %v3740
      %v3788 = vpack.c.bf16 %v3743, %v3742
      %v3789 = vpack.c.bf16 %v3745, %v3744
      %v3790 = vpack.c.bf16 %v3747, %v3746
      %v3791 = vpack.c.bf16 %v3749, %v3748
      %v3792 = vpack.c.bf16 %v3751, %v3750
      %v3793 = vpack.c.bf16 %v3753, %v3752
      %v3794 = vpack.c.bf16 %v3755, %v3754
      %v3795 = vpack.c.bf16 %v3757, %v3756
      %v3796 = vpack.c.bf16 %v3759, %v3758
      %v3797 = vpack.c.bf16 %v3761, %v3760
      %v3798 = vpack.c.bf16 %v3763, %v3762
      %v3799 = vpack.c.bf16 %v3765, %v3764
      %v3800 = vpack.c.bf16 %v3767, %v3766
      %v3801 = vpack.c.bf16 %v3769, %v3768
      %v3802 = vld [vmem:[%s4] sm:$0xf]
      %v3803 = vld [vmem:[%s4 + $0x4] sm:$0xf]
      %v3804 = vld [vmem:[%s4 + $0x8] sm:$0xf]
      %v3805 = vld [vmem:[%s4 + $0xc] sm:$0xf]
      %v3806 = vld [vmem:[%s11 + $0x3] ss:$0 sm:$0xff]
      %v3811 = vunpack.c.l.b16 %v3802
      %v3812 = vunpack.c.l.b16 %v3803
      %v3813 = vunpack.c.l.b16 %v3804
      %v3814 = vunpack.c.l.b16 %v3805
      %v3815 = vpack.c.b16 %v3812, %v3811
      %v3816 = vpack.c.b16 %v3814, %v3813
      %vm3819 = vcmask 261120
      %v3821 = vsel %vm3819, %v3770, 0
      %v3824 = vsel %vm3819, %v3771, 0
      %v3827 = vsel %vm3819, %v3772, 0
      %v3830 = vsel %vm3819, %v3773, 0
      %v3833 = vsel %vm3819, %v3774, 0
      %v3836 = vsel %vm3819, %v3775, 0
      %v3839 = vsel %vm3819, %v3776, 0
      %v3842 = vsel %vm3819, %v3777, 0
      %v3845 = vsel %vm3819, %v3778, 0
      %v3848 = vsel %vm3819, %v3779, 0
      %v3851 = vsel %vm3819, %v3780, 0
      %v3854 = vsel %vm3819, %v3781, 0
      %v3857 = vsel %vm3819, %v3782, 0
      %v3860 = vsel %vm3819, %v3783, 0
      %v3863 = vsel %vm3819, %v3784, 0
      %v3866 = vsel %vm3819, %v3785, 0
      %v3869 = vsel %vm3819, %v3786, 0
      %v3872 = vsel %vm3819, %v3787, 0
      %v3875 = vsel %vm3819, %v3788, 0
      %v3878 = vsel %vm3819, %v3789, 0
      %v3881 = vsel %vm3819, %v3790, 0
      %v3884 = vsel %vm3819, %v3791, 0
      %v3887 = vsel %vm3819, %v3792, 0
      %v3890 = vsel %vm3819, %v3793, 0
      %v3893 = vsel %vm3819, %v3794, 0
      %v3896 = vsel %vm3819, %v3795, 0
      %v3899 = vsel %vm3819, %v3796, 0
      %v3902 = vsel %vm3819, %v3797, 0
      %v3905 = vsel %vm3819, %v3798, 0
      %v3908 = vsel %vm3819, %v3799, 0
      %v3911 = vsel %vm3819, %v3800, 0
      %v3914 = vsel %vm3819, %v3801, 0
      %3916 = vmatprep.subr.bf16.mxu0 0
      %3917 = vmatpush1.bf16.msra.mxu0 %v3815
      %3918 = vmatprep.subr.bf16.mxu0 0
      %3919 = vmatpush1.bf16.msra.mxu0 %v3816
      %3920 = vmatprep.subr.bf16.mxu0 0
      %3921 = vmatpush1.bf16.msra.mxu0 0
      %3922 = vmatprep.subr.bf16.mxu0 0
      %3923 = vmatpush1.bf16.msra.mxu0 0
      %3924 = vmatprep.subr.bf16.mxu0 0
      %3925 = vmatpush1.bf16.msra.mxu0 0
      %3926 = vmatprep.subr.bf16.mxu0 0
      %3927 = vmatpush1.bf16.msra.mxu0 0
      %3928 = vmatprep.subr.bf16.mxu0 0
      %3929 = vmatpush1.bf16.msra.mxu0 0
      %3930 = vmatprep.subr.bf16.mxu0 0
      %3931 = vmatpush1.bf16.msra.mxu0 0
      %3932 = vmatprep.subr.bf16.mxu0 0
      %3933 = vmatpush1.bf16.msra.mxu0 0
      %3934 = vmatprep.subr.bf16.mxu0 0
      %3935 = vmatpush1.bf16.msra.mxu0 0
      %3936 = vmatprep.subr.bf16.mxu0 0
      %3937 = vmatpush1.bf16.msra.mxu0 0
      %3938 = vmatprep.subr.bf16.mxu0 0
      %3939 = vmatpush1.bf16.msra.mxu0 0
      %3940 = vmatprep.subr.bf16.mxu0 0
      %3941 = vmatpush1.bf16.msra.mxu0 0
      %3942 = vmatprep.subr.bf16.mxu0 0
      %3943 = vmatpush1.bf16.msra.mxu0 0
      %3944 = vmatprep.subr.bf16.mxu0 0
      %3945 = vmatpush1.bf16.msra.mxu0 0
      %3946 = vmatprep.subr.bf16.mxu0 0
      %3947 = vmatpush1.bf16.msra.mxu0 0
      %3948 = vmatprep.mubr.bf16.mxu0 0
      %3949 = vmatmul.mubr.bf16.gmra.mrb[0].mxu0 %v3821
      %v3950 = vpop.f32.mrb[0].mxu0
      %v3951 = vadd.f32 %v3806, %v3950
      %v3952 = vpop.f32.mrb[0].mxu0
      %v3953 = vpop.f32.mrb[0].mxu0
      %v3954 = vadd.f32 %v3806, %v3953
      %v3955 = vpop.f32.mrb[0].mxu0
      %3956 = vmatprep.mubr.bf16.mxu0 0
      %3957 = vmatmul.mubr.bf16.gmra.mrb[0].mxu0 %v3824
      %v3958 = vpop.f32.mrb[0].mxu0
      %v3959 = vadd.f32 %v3806, %v3958
      %v3960 = vpop.f32.mrb[0].mxu0
      %v3961 = vpop.f32.mrb[0].mxu0
      %v3962 = vadd.f32 %v3806, %v3961
      %v3963 = vpop.f32.mrb[0].mxu0
      %3964 = vmatprep.mubr.bf16.mxu0 0
      %3965 = vmatmul.mubr.bf16.gmra.mrb[0].mxu0 %v3827
      %v3966 = vpop.f32.mrb[0].mxu0
      %v3967 = vadd.f32 %v3806, %v3966
      %v3968 = vpop.f32.mrb[0].mxu0
      %v3969 = vpop.f32.mrb[0].mxu0
      %v3970 = vadd.f32 %v3806, %v3969
      %v3971 = vpop.f32.mrb[0].mxu0
      %3972 = vmatprep.mubr.bf16.mxu0 0
      %3973 = vmatmul.mubr.bf16.gmra.mrb[0].mxu0 %v3830
      %v3974 = vpop.f32.mrb[0].mxu0
      %v3975 = vadd.f32 %v3806, %v3974
      %v3976 = vpop.f32.mrb[0].mxu0
      %v3977 = vpop.f32.mrb[0].mxu0
      %v3978 = vadd.f32 %v3806, %v3977
      %v3979 = vpop.f32.mrb[0].mxu0
      %3980 = vmatprep.mubr.bf16.mxu0 0
      %3981 = vmatmul.mubr.bf16.gmra.mrb[0].mxu0 %v3833
      %v3982 = vpop.f32.mrb[0].mxu0
      %v3983 = vadd.f32 %v3806, %v3982
      %v3984 = vpop.f32.mrb[0].mxu0
      %v3985 = vpop.f32.mrb[0].mxu0
      %v3986 = vadd.f32 %v3806, %v3985
      %v3987 = vpop.f32.mrb[0].mxu0
      %3988 = vmatprep.mubr.bf16.mxu0 0
      %3989 = vmatmul.mubr.bf16.gmra.mrb[0].mxu0 %v3836
      %v3990 = vpop.f32.mrb[0].mxu0
      %v3991 = vadd.f32 %v3806, %v3990
      %v3992 = vpop.f32.mrb[0].mxu0
      %v3993 = vpop.f32.mrb[0].mxu0
      %v3994 = vadd.f32 %v3806, %v3993
      %v3995 = vpop.f32.mrb[0].mxu0
      %3996 = vmatprep.mubr.bf16.mxu0 0
      %3997 = vmatmul.mubr.bf16.gmra.mrb[0].mxu0 %v3839
      %v3998 = vpop.f32.mrb[0].mxu0
      %v3999 = vadd.f32 %v3806, %v3998
      %v4000 = vpop.f32.mrb[0].mxu0
      %v4001 = vpop.f32.mrb[0].mxu0
      %v4002 = vadd.f32 %v3806, %v4001
      %v4003 = vpop.f32.mrb[0].mxu0
      %4004 = vmatprep.mubr.bf16.mxu0 0
      %4005 = vmatmul.mubr.bf16.gmra.mrb[0].mxu0 %v3842
      %v4006 = vpop.f32.mrb[0].mxu0
      %v4007 = vadd.f32 %v3806, %v4006
      %v4008 = vpop.f32.mrb[0].mxu0
      %v4009 = vpop.f32.mrb[0].mxu0
      %v4010 = vadd.f32 %v3806, %v4009
      %v4011 = vpop.f32.mrb[0].mxu0
      %4012 = vmatprep.mubr.bf16.mxu0 0
      %4013 = vmatmul.mubr.bf16.gmra.mrb[0].mxu0 %v3845
      %v4014 = vpop.f32.mrb[0].mxu0
      %v4015 = vadd.f32 %v3806, %v4014
      %v4016 = vpop.f32.mrb[0].mxu0
      %v4017 = vpop.f32.mrb[0].mxu0
      %v4018 = vadd.f32 %v3806, %v4017
      %v4019 = vpop.f32.mrb[0].mxu0
      %4020 = vmatprep.mubr.bf16.mxu0 0
      %4021 = vmatmul.mubr.bf16.gmra.mrb[0].mxu0 %v3848
      %v4022 = vpop.f32.mrb[0].mxu0
      %v4023 = vadd.f32 %v3806, %v4022
      %v4024 = vpop.f32.mrb[0].mxu0
      %v4025 = vpop.f32.mrb[0].mxu0
      %v4026 = vadd.f32 %v3806, %v4025
      %v4027 = vpop.f32.mrb[0].mxu0
      %4028 = vmatprep.mubr.bf16.mxu0 0
      %4029 = vmatmul.mubr.bf16.gmra.mrb[0].mxu0 %v3851
      %v4030 = vpop.f32.mrb[0].mxu0
      %v4031 = vadd.f32 %v3806, %v4030
      %v4032 = vpop.f32.mrb[0].mxu0
      %v4033 = vpop.f32.mrb[0].mxu0
      %v4034 = vadd.f32 %v3806, %v4033
      %v4035 = vpop.f32.mrb[0].mxu0
      %4036 = vmatprep.mubr.bf16.mxu0 0
      %4037 = vmatmul.mubr.bf16.gmra.mrb[0].mxu0 %v3854
      %v4038 = vpop.f32.mrb[0].mxu0
      %v4039 = vadd.f32 %v3806, %v4038
      %v4040 = vpop.f32.mrb[0].mxu0
      %v4041 = vpop.f32.mrb[0].mxu0
      %v4042 = vadd.f32 %v3806, %v4041
      %v4043 = vpop.f32.mrb[0].mxu0
      %4044 = vmatprep.mubr.bf16.mxu0 0
      %4045 = vmatmul.mubr.bf16.gmra.mrb[0].mxu0 %v3857
      %v4046 = vpop.f32.mrb[0].mxu0
      %v4047 = vadd.f32 %v3806, %v4046
      %v4048 = vpop.f32.mrb[0].mxu0
      %v4049 = vpop.f32.mrb[0].mxu0
      %v4050 = vadd.f32 %v3806, %v4049
      %v4051 = vpop.f32.mrb[0].mxu0
      %4052 = vmatprep.mubr.bf16.mxu0 0
      %4053 = vmatmul.mubr.bf16.gmra.mrb[0].mxu0 %v3860
      %v4054 = vpop.f32.mrb[0].mxu0
      %v4055 = vadd.f32 %v3806, %v4054
      %v4056 = vpop.f32.mrb[0].mxu0
      %v4057 = vpop.f32.mrb[0].mxu0
      %v4058 = vadd.f32 %v3806, %v4057
      %v4059 = vpop.f32.mrb[0].mxu0
      %4060 = vmatprep.mubr.bf16.mxu0 0
      %4061 = vmatmul.mubr.bf16.gmra.mrb[0].mxu0 %v3863
      %v4062 = vpop.f32.mrb[0].mxu0
      %v4063 = vadd.f32 %v3806, %v4062
      %v4064 = vpop.f32.mrb[0].mxu0
      %v4065 = vpop.f32.mrb[0].mxu0
      %v4066 = vadd.f32 %v3806, %v4065
      %v4067 = vpop.f32.mrb[0].mxu0
      %4068 = vmatprep.mubr.bf16.mxu0 0
      %4069 = vmatmul.mubr.bf16.gmra.mrb[0].mxu0 %v3866
      %v4070 = vpop.f32.mrb[0].mxu0
      %v4071 = vadd.f32 %v3806, %v4070
      %v4072 = vpop.f32.mrb[0].mxu0
      %v4073 = vpop.f32.mrb[0].mxu0
      %v4074 = vadd.f32 %v3806, %v4073
      %v4075 = vpop.f32.mrb[0].mxu0
      %4076 = vmatprep.mubr.bf16.mxu0 0
      %4077 = vmatmul.mubr.bf16.gmra.mrb[0].mxu0 %v3869
      %v4078 = vpop.f32.mrb[0].mxu0
      %v4079 = vadd.f32 %v3806, %v4078
      %v4080 = vpop.f32.mrb[0].mxu0
      %v4081 = vpop.f32.mrb[0].mxu0
      %v4082 = vadd.f32 %v3806, %v4081
      %v4083 = vpop.f32.mrb[0].mxu0
      %4084 = vmatprep.mubr.bf16.mxu0 0
      %4085 = vmatmul.mubr.bf16.gmra.mrb[0].mxu0 %v3872
      %v4086 = vpop.f32.mrb[0].mxu0
      %v4087 = vadd.f32 %v3806, %v4086
      %v4088 = vpop.f32.mrb[0].mxu0
      %v4089 = vpop.f32.mrb[0].mxu0
      %v4090 = vadd.f32 %v3806, %v4089
      %v4091 = vpop.f32.mrb[0].mxu0
      %4092 = vmatprep.mubr.bf16.mxu0 0
      %4093 = vmatmul.mubr.bf16.gmra.mrb[0].mxu0 %v3875
      %v4094 = vpop.f32.mrb[0].mxu0
      %v4095 = vadd.f32 %v3806, %v4094
      %v4096 = vpop.f32.mrb[0].mxu0
      %v4097 = vpop.f32.mrb[0].mxu0
      %v4098 = vadd.f32 %v3806, %v4097
      %v4099 = vpop.f32.mrb[0].mxu0
      %4100 = vmatprep.mubr.bf16.mxu0 0
      %4101 = vmatmul.mubr.bf16.gmra.mrb[0].mxu0 %v3878
      %v4102 = vpop.f32.mrb[0].mxu0
      %v4103 = vadd.f32 %v3806, %v4102
      %v4104 = vpop.f32.mrb[0].mxu0
      %v4105 = vpop.f32.mrb[0].mxu0
      %v4106 = vadd.f32 %v3806, %v4105
      %v4107 = vpop.f32.mrb[0].mxu0
      %4108 = vmatprep.mubr.bf16.mxu0 0
      %4109 = vmatmul.mubr.bf16.gmra.mrb[0].mxu0 %v3881
      %v4110 = vpop.f32.mrb[0].mxu0
      %v4111 = vadd.f32 %v3806, %v4110
      %v4112 = vpop.f32.mrb[0].mxu0
      %v4113 = vpop.f32.mrb[0].mxu0
      %v4114 = vadd.f32 %v3806, %v4113
      %v4115 = vpop.f32.mrb[0].mxu0
      %4116 = vmatprep.mubr.bf16.mxu0 0
      %4117 = vmatmul.mubr.bf16.gmra.mrb[0].mxu0 %v3884
      %v4118 = vpop.f32.mrb[0].mxu0
      %v4119 = vadd.f32 %v3806, %v4118
      %v4120 = vpop.f32.mrb[0].mxu0
      %v4121 = vpop.f32.mrb[0].mxu0
      %v4122 = vadd.f32 %v3806, %v4121
      %v4123 = vpop.f32.mrb[0].mxu0
      %4124 = vmatprep.mubr.bf16.mxu0 0
      %4125 = vmatmul.mubr.bf16.gmra.mrb[0].mxu0 %v3887
      %v4126 = vpop.f32.mrb[0].mxu0
      %v4127 = vadd.f32 %v3806, %v4126
      %v4128 = vpop.f32.mrb[0].mxu0
      %v4129 = vpop.f32.mrb[0].mxu0
      %v4130 = vadd.f32 %v3806, %v4129
      %v4131 = vpop.f32.mrb[0].mxu0
      %4132 = vmatprep.mubr.bf16.mxu0 0
      %4133 = vmatmul.mubr.bf16.gmra.mrb[0].mxu0 %v3890
      %v4134 = vpop.f32.mrb[0].mxu0
      %v4135 = vadd.f32 %v3806, %v4134
      %v4136 = vpop.f32.mrb[0].mxu0
      %v4137 = vpop.f32.mrb[0].mxu0
      %v4138 = vadd.f32 %v3806, %v4137
      %v4139 = vpop.f32.mrb[0].mxu0
      %4140 = vmatprep.mubr.bf16.mxu0 0
      %4141 = vmatmul.mubr.bf16.gmra.mrb[0].mxu0 %v3893
      %v4142 = vpop.f32.mrb[0].mxu0
      %v4143 = vadd.f32 %v3806, %v4142
      %v4144 = vpop.f32.mrb[0].mxu0
      %v4145 = vpop.f32.mrb[0].mxu0
      %v4146 = vadd.f32 %v3806, %v4145
      %v4147 = vpop.f32.mrb[0].mxu0
      %4148 = vmatprep.mubr.bf16.mxu0 0
      %4149 = vmatmul.mubr.bf16.gmra.mrb[0].mxu0 %v3896
      %v4150 = vpop.f32.mrb[0].mxu0
      %v4151 = vadd.f32 %v3806, %v4150
      %v4152 = vpop.f32.mrb[0].mxu0
      %v4153 = vpop.f32.mrb[0].mxu0
      %v4154 = vadd.f32 %v3806, %v4153
      %v4155 = vpop.f32.mrb[0].mxu0
      %4156 = vmatprep.mubr.bf16.mxu0 0
      %4157 = vmatmul.mubr.bf16.gmra.mrb[0].mxu0 %v3899
      %v4158 = vpop.f32.mrb[0].mxu0
      %v4159 = vadd.f32 %v3806, %v4158
      %v4160 = vpop.f32.mrb[0].mxu0
      %v4161 = vpop.f32.mrb[0].mxu0
      %v4162 = vadd.f32 %v3806, %v4161
      %v4163 = vpop.f32.mrb[0].mxu0
      %4164 = vmatprep.mubr.bf16.mxu0 0
      %4165 = vmatmul.mubr.bf16.gmra.mrb[0].mxu0 %v3902
      %v4166 = vpop.f32.mrb[0].mxu0
      %v4167 = vadd.f32 %v3806, %v4166
      %v4168 = vpop.f32.mrb[0].mxu0
      %v4169 = vpop.f32.mrb[0].mxu0
      %v4170 = vadd.f32 %v3806, %v4169
      %v4171 = vpop.f32.mrb[0].mxu0
      %4172 = vmatprep.mubr.bf16.mxu0 0
      %4173 = vmatmul.mubr.bf16.gmra.mrb[0].mxu0 %v3905
      %v4174 = vpop.f32.mrb[0].mxu0
      %v4175 = vadd.f32 %v3806, %v4174
      %v4176 = vpop.f32.mrb[0].mxu0
      %v4177 = vpop.f32.mrb[0].mxu0
      %v4178 = vadd.f32 %v3806, %v4177
      %v4179 = vpop.f32.mrb[0].mxu0
      %4180 = vmatprep.mubr.bf16.mxu0 0
      %4181 = vmatmul.mubr.bf16.gmra.mrb[0].mxu0 %v3908
      %v4182 = vpop.f32.mrb[0].mxu0
      %v4183 = vadd.f32 %v3806, %v4182
      %v4184 = vpop.f32.mrb[0].mxu0
      %v4185 = vpop.f32.mrb[0].mxu0
      %v4186 = vadd.f32 %v3806, %v4185
      %v4187 = vpop.f32.mrb[0].mxu0
      %4188 = vmatprep.mubr.bf16.mxu0 0
      %4189 = vmatmul.mubr.bf16.gmra.mrb[0].mxu0 %v3911
      %v4190 = vpop.f32.mrb[0].mxu0
      %v4191 = vadd.f32 %v3806, %v4190
      %v4192 = vpop.f32.mrb[0].mxu0
      %v4193 = vpop.f32.mrb[0].mxu0
      %v4194 = vadd.f32 %v3806, %v4193
      %v4195 = vpop.f32.mrb[0].mxu0
      %4196 = vmatprep.mubr.bf16.mxu0 0
      %4197 = vmatmul.mubr.bf16.gmra.mrb[0].mxu0 %v3914
      %v4198 = vpop.f32.mrb[0].mxu0
      %v4199 = vadd.f32 %v3806, %v4198
      %v4200 = vpop.f32.mrb[0].mxu0
      %v4201 = vpop.f32.mrb[0].mxu0
      %v4202 = vadd.f32 %v3806, %v4201
      %v4203 = vpop.f32.mrb[0].mxu0
      %4204 = vdwg.mxu0
      %v4205 = vtanh.pop %v3951
      %v4206 = vtanh.pop %v3954
      %v4207 = vtanh.pop %v3959
      %v4208 = vtanh.pop %v3962
      %v4209 = vtanh.pop %v3967
      %v4210 = vtanh.pop %v3970
      %v4211 = vtanh.pop %v3975
      %v4212 = vtanh.pop %v3978
      %v4213 = vtanh.pop %v3983
      %v4214 = vtanh.pop %v3986
      %v4215 = vtanh.pop %v3991
      %v4216 = vtanh.pop %v3994
      %v4217 = vtanh.pop %v3999
      %v4218 = vtanh.pop %v4002
      %v4219 = vtanh.pop %v4007
      %v4220 = vtanh.pop %v4010
      %v4221 = vtanh.pop %v4015
      %v4222 = vtanh.pop %v4018
      %v4223 = vtanh.pop %v4023
      %v4224 = vtanh.pop %v4026
      %v4225 = vtanh.pop %v4031
      %v4226 = vtanh.pop %v4034
      %v4227 = vtanh.pop %v4039
      %v4228 = vtanh.pop %v4042
      %v4229 = vtanh.pop %v4047
      %v4230 = vtanh.pop %v4050
      %v4231 = vtanh.pop %v4055
      %v4232 = vtanh.pop %v4058
      %v4233 = vtanh.pop %v4063
      %v4234 = vtanh.pop %v4066
      %v4235 = vtanh.pop %v4071
      %v4236 = vtanh.pop %v4074
      %v4237 = vtanh.pop %v4079
      %v4238 = vtanh.pop %v4082
      %v4239 = vtanh.pop %v4087
      %v4240 = vtanh.pop %v4090
      %v4241 = vtanh.pop %v4095
      %v4242 = vtanh.pop %v4098
      %v4243 = vtanh.pop %v4103
      %v4244 = vtanh.pop %v4106
      %v4245 = vtanh.pop %v4111
      %v4246 = vtanh.pop %v4114
      %v4247 = vtanh.pop %v4119
      %v4248 = vtanh.pop %v4122
      %v4249 = vtanh.pop %v4127
      %v4250 = vtanh.pop %v4130
      %v4251 = vtanh.pop %v4135
      %v4252 = vtanh.pop %v4138
      %v4253 = vtanh.pop %v4143
      %v4254 = vtanh.pop %v4146
      %v4255 = vtanh.pop %v4151
      %v4256 = vtanh.pop %v4154
      %v4257 = vtanh.pop %v4159
      %v4258 = vtanh.pop %v4162
      %v4259 = vtanh.pop %v4167
      %v4260 = vtanh.pop %v4170
      %v4261 = vtanh.pop %v4175
      %v4262 = vtanh.pop %v4178
      %v4263 = vtanh.pop %v4183
      %v4264 = vtanh.pop %v4186
      %v4265 = vtanh.pop %v4191
      %v4266 = vtanh.pop %v4194
      %v4267 = vtanh.pop %v4199
      %v4268 = vtanh.pop %v4202
      %v4269 = vpack.c.bf16 %v4206, %v4205
      %v4270 = vpack.c.bf16 %v4208, %v4207
      %v4271 = vpack.c.bf16 %v4210, %v4209
      %v4272 = vpack.c.bf16 %v4212, %v4211
      %v4273 = vpack.c.bf16 %v4214, %v4213
      %v4274 = vpack.c.bf16 %v4216, %v4215
      %v4275 = vpack.c.bf16 %v4218, %v4217
      %v4276 = vpack.c.bf16 %v4220, %v4219
      %v4277 = vpack.c.bf16 %v4222, %v4221
      %v4278 = vpack.c.bf16 %v4224, %v4223
      %v4279 = vpack.c.bf16 %v4226, %v4225
      %v4280 = vpack.c.bf16 %v4228, %v4227
      %v4281 = vpack.c.bf16 %v4230, %v4229
      %v4282 = vpack.c.bf16 %v4232, %v4231
      %v4283 = vpack.c.bf16 %v4234, %v4233
      %v4284 = vpack.c.bf16 %v4236, %v4235
      %v4285 = vpack.c.bf16 %v4238, %v4237
      %v4286 = vpack.c.bf16 %v4240, %v4239
      %v4287 = vpack.c.bf16 %v4242, %v4241
      %v4288 = vpack.c.bf16 %v4244, %v4243
      %v4289 = vpack.c.bf16 %v4246, %v4245
      %v4290 = vpack.c.bf16 %v4248, %v4247
      %v4291 = vpack.c.bf16 %v4250, %v4249
      %v4292 = vpack.c.bf16 %v4252, %v4251
      %v4293 = vpack.c.bf16 %v4254, %v4253
      %v4294 = vpack.c.bf16 %v4256, %v4255
      %v4295 = vpack.c.bf16 %v4258, %v4257
      %v4296 = vpack.c.bf16 %v4260, %v4259
      %v4297 = vpack.c.bf16 %v4262, %v4261
      %v4298 = vpack.c.bf16 %v4264, %v4263
      %v4299 = vpack.c.bf16 %v4266, %v4265
      %v4300 = vpack.c.bf16 %v4268, %v4267
      %v4301 = vld [vmem:[%s5] sm:$0xf]
      %v4302 = vld [vmem:[%s5 + $0x4] sm:$0xf]
      %v4303 = vld [vmem:[%s11 + $0x4] ss:$0 sm:$0xff]
      %v4306 = vunpack.c.l.b16 %v4301
      %v4307 = vunpack.c.l.b16 %v4302
      %v4308 = vpack.c.b16 %v4307, %v4306
      %v4311 = vsel %vm1488, %v4269, 0
      %v4314 = vsel %vm1488, %v4270, 0
      %v4317 = vsel %vm1488, %v4271, 0
      %v4320 = vsel %vm1488, %v4272, 0
      %v4323 = vsel %vm1488, %v4273, 0
      %v4326 = vsel %vm1488, %v4274, 0
      %v4329 = vsel %vm1488, %v4275, 0
      %v4332 = vsel %vm1488, %v4276, 0
      %v4335 = vsel %vm1488, %v4277, 0
      %v4338 = vsel %vm1488, %v4278, 0
      %v4341 = vsel %vm1488, %v4279, 0
      %v4344 = vsel %vm1488, %v4280, 0
      %v4347 = vsel %vm1488, %v4281, 0
      %v4350 = vsel %vm1488, %v4282, 0
      %v4353 = vsel %vm1488, %v4283, 0
      %v4356 = vsel %vm1488, %v4284, 0
      %v4359 = vsel %vm1488, %v4285, 0
      %v4362 = vsel %vm1488, %v4286, 0
      %v4365 = vsel %vm1488, %v4287, 0
      %v4368 = vsel %vm1488, %v4288, 0
      %v4371 = vsel %vm1488, %v4289, 0
      %v4374 = vsel %vm1488, %v4290, 0
      %v4377 = vsel %vm1488, %v4291, 0
      %v4380 = vsel %vm1488, %v4292, 0
      %v4383 = vsel %vm1488, %v4293, 0
      %v4386 = vsel %vm1488, %v4294, 0
      %v4389 = vsel %vm1488, %v4295, 0
      %v4392 = vsel %vm1488, %v4296, 0
      %v4395 = vsel %vm1488, %v4297, 0
      %v4398 = vsel %vm1488, %v4298, 0
      %v4401 = vsel %vm1488, %v4299, 0
      %v4404 = vsel %vm1488, %v4300, 0
      %4406 = vmatprep.subr.bf16.mxu0 0
      %4407 = vmatpush1.bf16.msra.mxu0 %v4308
      %4408 = vmatprep.subr.bf16.mxu0 0
      %4409 = vmatpush1.bf16.msra.mxu0 0
      %4410 = vmatprep.subr.bf16.mxu0 0
      %4411 = vmatpush1.bf16.msra.mxu0 0
      %4412 = vmatprep.subr.bf16.mxu0 0
      %4413 = vmatpush1.bf16.msra.mxu0 0
      %4414 = vmatprep.subr.bf16.mxu0 0
      %4415 = vmatpush1.bf16.msra.mxu0 0
      %4416 = vmatprep.subr.bf16.mxu0 0
      %4417 = vmatpush1.bf16.msra.mxu0 0
      %4418 = vmatprep.subr.bf16.mxu0 0
      %4419 = vmatpush1.bf16.msra.mxu0 0
      %4420 = vmatprep.subr.bf16.mxu0 0
      %4421 = vmatpush1.bf16.msra.mxu0 0
      %4422 = vmatprep.subr.bf16.mxu0 0
      %4423 = vmatpush1.bf16.msra.mxu0 0
      %4424 = vmatprep.subr.bf16.mxu0 0
      %4425 = vmatpush1.bf16.msra.mxu0 0
      %4426 = vmatprep.subr.bf16.mxu0 0
      %4427 = vmatpush1.bf16.msra.mxu0 0
      %4428 = vmatprep.subr.bf16.mxu0 0
      %4429 = vmatpush1.bf16.msra.mxu0 0
      %4430 = vmatprep.subr.bf16.mxu0 0
      %4431 = vmatpush1.bf16.msra.mxu0 0
      %4432 = vmatprep.subr.bf16.mxu0 0
      %4433 = vmatpush1.bf16.msra.mxu0 0
      %4434 = vmatprep.subr.bf16.mxu0 0
      %4435 = vmatpush1.bf16.msra.mxu0 0
      %4436 = vmatprep.subr.bf16.mxu0 0
      %4437 = vmatpush1.bf16.msra.mxu0 0
      %4438 = vmatprep.mubr.bf16.mxu0 0
      %4439 = vmatmul.mubr.bf16.gmra.mrb[0].mxu0 %v4311
      %v4440 = vpop.f32.mrb[0].mxu0
      %v4441 = vadd.f32 %v4303, %v4440
      %v4442 = vpop.f32.mrb[0].mxu0
      %v4443 = vpop.f32.mrb[0].mxu0
      %v4444 = vadd.f32 %v4303, %v4443
      %v4445 = vpop.f32.mrb[0].mxu0
      %4446 = vmatprep.mubr.bf16.mxu0 0
      %4447 = vmatmul.mubr.bf16.gmra.mrb[0].mxu0 %v4314
      %v4448 = vpop.f32.mrb[0].mxu0
      %v4449 = vadd.f32 %v4303, %v4448
      %v4450 = vpop.f32.mrb[0].mxu0
      %v4451 = vpop.f32.mrb[0].mxu0
      %v4452 = vadd.f32 %v4303, %v4451
      %v4453 = vpop.f32.mrb[0].mxu0
      %4454 = vmatprep.mubr.bf16.mxu0 0
      %4455 = vmatmul.mubr.bf16.gmra.mrb[0].mxu0 %v4317
      %v4456 = vpop.f32.mrb[0].mxu0
      %v4457 = vadd.f32 %v4303, %v4456
      %v4458 = vpop.f32.mrb[0].mxu0
      %v4459 = vpop.f32.mrb[0].mxu0
      %v4460 = vadd.f32 %v4303, %v4459
      %v4461 = vpop.f32.mrb[0].mxu0
      %4462 = vmatprep.mubr.bf16.mxu0 0
      %4463 = vmatmul.mubr.bf16.gmra.mrb[0].mxu0 %v4320
      %v4464 = vpop.f32.mrb[0].mxu0
      %v4465 = vadd.f32 %v4303, %v4464
      %v4466 = vpop.f32.mrb[0].mxu0
      %v4467 = vpop.f32.mrb[0].mxu0
      %v4468 = vadd.f32 %v4303, %v4467
      %v4469 = vpop.f32.mrb[0].mxu0
      %4470 = vmatprep.mubr.bf16.mxu0 0
      %4471 = vmatmul.mubr.bf16.gmra.mrb[0].mxu0 %v4323
      %v4472 = vpop.f32.mrb[0].mxu0
      %v4473 = vadd.f32 %v4303, %v4472
      %v4474 = vpop.f32.mrb[0].mxu0
      %v4475 = vpop.f32.mrb[0].mxu0
      %v4476 = vadd.f32 %v4303, %v4475
      %v4477 = vpop.f32.mrb[0].mxu0
      %4478 = vmatprep.mubr.bf16.mxu0 0
      %4479 = vmatmul.mubr.bf16.gmra.mrb[0].mxu0 %v4326
      %v4480 = vpop.f32.mrb[0].mxu0
      %v4481 = vadd.f32 %v4303, %v4480
      %v4482 = vpop.f32.mrb[0].mxu0
      %v4483 = vpop.f32.mrb[0].mxu0
      %v4484 = vadd.f32 %v4303, %v4483
      %v4485 = vpop.f32.mrb[0].mxu0
      %4486 = vmatprep.mubr.bf16.mxu0 0
      %4487 = vmatmul.mubr.bf16.gmra.mrb[0].mxu0 %v4329
      %v4488 = vpop.f32.mrb[0].mxu0
      %v4489 = vadd.f32 %v4303, %v4488
      %v4490 = vpop.f32.mrb[0].mxu0
      %v4491 = vpop.f32.mrb[0].mxu0
      %v4492 = vadd.f32 %v4303, %v4491
      %v4493 = vpop.f32.mrb[0].mxu0
      %4494 = vmatprep.mubr.bf16.mxu0 0
      %4495 = vmatmul.mubr.bf16.gmra.mrb[0].mxu0 %v4332
      %v4496 = vpop.f32.mrb[0].mxu0
      %v4497 = vadd.f32 %v4303, %v4496
      %v4498 = vpop.f32.mrb[0].mxu0
      %v4499 = vpop.f32.mrb[0].mxu0
      %v4500 = vadd.f32 %v4303, %v4499
      %v4501 = vpop.f32.mrb[0].mxu0
      %4502 = vmatprep.mubr.bf16.mxu0 0
      %4503 = vmatmul.mubr.bf16.gmra.mrb[0].mxu0 %v4335
      %v4504 = vpop.f32.mrb[0].mxu0
      %v4505 = vadd.f32 %v4303, %v4504
      %v4506 = vpop.f32.mrb[0].mxu0
      %v4507 = vpop.f32.mrb[0].mxu0
      %v4508 = vadd.f32 %v4303, %v4507
      %v4509 = vpop.f32.mrb[0].mxu0
      %4510 = vmatprep.mubr.bf16.mxu0 0
      %4511 = vmatmul.mubr.bf16.gmra.mrb[0].mxu0 %v4338
      %v4512 = vpop.f32.mrb[0].mxu0
      %v4513 = vadd.f32 %v4303, %v4512
      %v4514 = vpop.f32.mrb[0].mxu0
      %v4515 = vpop.f32.mrb[0].mxu0
      %v4516 = vadd.f32 %v4303, %v4515
      %v4517 = vpop.f32.mrb[0].mxu0
      %4518 = vmatprep.mubr.bf16.mxu0 0
      %4519 = vmatmul.mubr.bf16.gmra.mrb[0].mxu0 %v4341
      %v4520 = vpop.f32.mrb[0].mxu0
      %v4521 = vadd.f32 %v4303, %v4520
      %v4522 = vpop.f32.mrb[0].mxu0
      %v4523 = vpop.f32.mrb[0].mxu0
      %v4524 = vadd.f32 %v4303, %v4523
      %v4525 = vpop.f32.mrb[0].mxu0
      %4526 = vmatprep.mubr.bf16.mxu0 0
      %4527 = vmatmul.mubr.bf16.gmra.mrb[0].mxu0 %v4344
      %v4528 = vpop.f32.mrb[0].mxu0
      %v4529 = vadd.f32 %v4303, %v4528
      %v4530 = vpop.f32.mrb[0].mxu0
      %v4531 = vpop.f32.mrb[0].mxu0
      %v4532 = vadd.f32 %v4303, %v4531
      %v4533 = vpop.f32.mrb[0].mxu0
      %4534 = vmatprep.mubr.bf16.mxu0 0
      %4535 = vmatmul.mubr.bf16.gmra.mrb[0].mxu0 %v4347
      %v4536 = vpop.f32.mrb[0].mxu0
      %v4537 = vadd.f32 %v4303, %v4536
      %v4538 = vpop.f32.mrb[0].mxu0
      %v4539 = vpop.f32.mrb[0].mxu0
      %v4540 = vadd.f32 %v4303, %v4539
      %v4541 = vpop.f32.mrb[0].mxu0
      %4542 = vmatprep.mubr.bf16.mxu0 0
      %4543 = vmatmul.mubr.bf16.gmra.mrb[0].mxu0 %v4350
      %v4544 = vpop.f32.mrb[0].mxu0
      %v4545 = vadd.f32 %v4303, %v4544
      %v4546 = vpop.f32.mrb[0].mxu0
      %v4547 = vpop.f32.mrb[0].mxu0
      %v4548 = vadd.f32 %v4303, %v4547
      %v4549 = vpop.f32.mrb[0].mxu0
      %4550 = vmatprep.mubr.bf16.mxu0 0
      %4551 = vmatmul.mubr.bf16.gmra.mrb[0].mxu0 %v4353
      %v4552 = vpop.f32.mrb[0].mxu0
      %v4553 = vadd.f32 %v4303, %v4552
      %v4554 = vpop.f32.mrb[0].mxu0
      %v4555 = vpop.f32.mrb[0].mxu0
      %v4556 = vadd.f32 %v4303, %v4555
      %v4557 = vpop.f32.mrb[0].mxu0
      %4558 = vmatprep.mubr.bf16.mxu0 0
      %4559 = vmatmul.mubr.bf16.gmra.mrb[0].mxu0 %v4356
      %v4560 = vpop.f32.mrb[0].mxu0
      %v4561 = vadd.f32 %v4303, %v4560
      %v4562 = vpop.f32.mrb[0].mxu0
      %v4563 = vpop.f32.mrb[0].mxu0
      %v4564 = vadd.f32 %v4303, %v4563
      %v4565 = vpop.f32.mrb[0].mxu0
      %4566 = vmatprep.mubr.bf16.mxu0 0
      %4567 = vmatmul.mubr.bf16.gmra.mrb[0].mxu0 %v4359
      %v4568 = vpop.f32.mrb[0].mxu0
      %v4569 = vadd.f32 %v4303, %v4568
      %v4570 = vpop.f32.mrb[0].mxu0
      %v4571 = vpop.f32.mrb[0].mxu0
      %v4572 = vadd.f32 %v4303, %v4571
      %v4573 = vpop.f32.mrb[0].mxu0
      %4574 = vmatprep.mubr.bf16.mxu0 0
      %4575 = vmatmul.mubr.bf16.gmra.mrb[0].mxu0 %v4362
      %v4576 = vpop.f32.mrb[0].mxu0
      %v4577 = vadd.f32 %v4303, %v4576
      %v4578 = vpop.f32.mrb[0].mxu0
      %v4579 = vpop.f32.mrb[0].mxu0
      %v4580 = vadd.f32 %v4303, %v4579
      %v4581 = vpop.f32.mrb[0].mxu0
      %4582 = vmatprep.mubr.bf16.mxu0 0
      %4583 = vmatmul.mubr.bf16.gmra.mrb[0].mxu0 %v4365
      %v4584 = vpop.f32.mrb[0].mxu0
      %v4585 = vadd.f32 %v4303, %v4584
      %v4586 = vpop.f32.mrb[0].mxu0
      %v4587 = vpop.f32.mrb[0].mxu0
      %v4588 = vadd.f32 %v4303, %v4587
      %v4589 = vpop.f32.mrb[0].mxu0
      %4590 = vmatprep.mubr.bf16.mxu0 0
      %4591 = vmatmul.mubr.bf16.gmra.mrb[0].mxu0 %v4368
      %v4592 = vpop.f32.mrb[0].mxu0
      %v4593 = vadd.f32 %v4303, %v4592
      %v4594 = vpop.f32.mrb[0].mxu0
      %v4595 = vpop.f32.mrb[0].mxu0
      %v4596 = vadd.f32 %v4303, %v4595
      %v4597 = vpop.f32.mrb[0].mxu0
      %4598 = vmatprep.mubr.bf16.mxu0 0
      %4599 = vmatmul.mubr.bf16.gmra.mrb[0].mxu0 %v4371
      %v4600 = vpop.f32.mrb[0].mxu0
      %v4601 = vadd.f32 %v4303, %v4600
      %v4602 = vpop.f32.mrb[0].mxu0
      %v4603 = vpop.f32.mrb[0].mxu0
      %v4604 = vadd.f32 %v4303, %v4603
      %v4605 = vpop.f32.mrb[0].mxu0
      %4606 = vmatprep.mubr.bf16.mxu0 0
      %4607 = vmatmul.mubr.bf16.gmra.mrb[0].mxu0 %v4374
      %v4608 = vpop.f32.mrb[0].mxu0
      %v4609 = vadd.f32 %v4303, %v4608
      %v4610 = vpop.f32.mrb[0].mxu0
      %v4611 = vpop.f32.mrb[0].mxu0
      %v4612 = vadd.f32 %v4303, %v4611
      %v4613 = vpop.f32.mrb[0].mxu0
      %4614 = vmatprep.mubr.bf16.mxu0 0
      %4615 = vmatmul.mubr.bf16.gmra.mrb[0].mxu0 %v4377
      %v4616 = vpop.f32.mrb[0].mxu0
      %v4617 = vadd.f32 %v4303, %v4616
      %v4618 = vpop.f32.mrb[0].mxu0
      %v4619 = vpop.f32.mrb[0].mxu0
      %v4620 = vadd.f32 %v4303, %v4619
      %v4621 = vpop.f32.mrb[0].mxu0
      %4622 = vmatprep.mubr.bf16.mxu0 0
      %4623 = vmatmul.mubr.bf16.gmra.mrb[0].mxu0 %v4380
      %v4624 = vpop.f32.mrb[0].mxu0
      %v4625 = vadd.f32 %v4303, %v4624
      %v4626 = vpop.f32.mrb[0].mxu0
      %v4627 = vpop.f32.mrb[0].mxu0
      %v4628 = vadd.f32 %v4303, %v4627
      %v4629 = vpop.f32.mrb[0].mxu0
      %4630 = vmatprep.mubr.bf16.mxu0 0
      %4631 = vmatmul.mubr.bf16.gmra.mrb[0].mxu0 %v4383
      %v4632 = vpop.f32.mrb[0].mxu0
      %v4633 = vadd.f32 %v4303, %v4632
      %v4634 = vpop.f32.mrb[0].mxu0
      %v4635 = vpop.f32.mrb[0].mxu0
      %v4636 = vadd.f32 %v4303, %v4635
      %v4637 = vpop.f32.mrb[0].mxu0
      %4638 = vmatprep.mubr.bf16.mxu0 0
      %4639 = vmatmul.mubr.bf16.gmra.mrb[0].mxu0 %v4386
      %v4640 = vpop.f32.mrb[0].mxu0
      %v4641 = vadd.f32 %v4303, %v4640
      %v4642 = vpop.f32.mrb[0].mxu0
      %v4643 = vpop.f32.mrb[0].mxu0
      %v4644 = vadd.f32 %v4303, %v4643
      %v4645 = vpop.f32.mrb[0].mxu0
      %4646 = vmatprep.mubr.bf16.mxu0 0
      %4647 = vmatmul.mubr.bf16.gmra.mrb[0].mxu0 %v4389
      %v4648 = vpop.f32.mrb[0].mxu0
      %v4649 = vadd.f32 %v4303, %v4648
      %v4650 = vpop.f32.mrb[0].mxu0
      %v4651 = vpop.f32.mrb[0].mxu0
      %v4652 = vadd.f32 %v4303, %v4651
      %v4653 = vpop.f32.mrb[0].mxu0
      %4654 = vmatprep.mubr.bf16.mxu0 0
      %4655 = vmatmul.mubr.bf16.gmra.mrb[0].mxu0 %v4392
      %v4656 = vpop.f32.mrb[0].mxu0
      %v4657 = vadd.f32 %v4303, %v4656
      %v4658 = vpop.f32.mrb[0].mxu0
      %v4659 = vpop.f32.mrb[0].mxu0
      %v4660 = vadd.f32 %v4303, %v4659
      %v4661 = vpop.f32.mrb[0].mxu0
      %4662 = vmatprep.mubr.bf16.mxu0 0
      %4663 = vmatmul.mubr.bf16.gmra.mrb[0].mxu0 %v4395
      %v4664 = vpop.f32.mrb[0].mxu0
      %v4665 = vadd.f32 %v4303, %v4664
      %v4666 = vpop.f32.mrb[0].mxu0
      %v4667 = vpop.f32.mrb[0].mxu0
      %v4668 = vadd.f32 %v4303, %v4667
      %v4669 = vpop.f32.mrb[0].mxu0
      %4670 = vmatprep.mubr.bf16.mxu0 0
      %4671 = vmatmul.mubr.bf16.gmra.mrb[0].mxu0 %v4398
      %v4672 = vpop.f32.mrb[0].mxu0
      %v4673 = vadd.f32 %v4303, %v4672
      %v4674 = vpop.f32.mrb[0].mxu0
      %v4675 = vpop.f32.mrb[0].mxu0
      %v4676 = vadd.f32 %v4303, %v4675
      %v4677 = vpop.f32.mrb[0].mxu0
      %4678 = vmatprep.mubr.bf16.mxu0 0
      %4679 = vmatmul.mubr.bf16.gmra.mrb[0].mxu0 %v4401
      %v4680 = vpop.f32.mrb[0].mxu0
      %v4681 = vadd.f32 %v4303, %v4680
      %v4682 = vpop.f32.mrb[0].mxu0
      %v4683 = vpop.f32.mrb[0].mxu0
      %v4684 = vadd.f32 %v4303, %v4683
      %v4685 = vpop.f32.mrb[0].mxu0
      %4686 = vmatprep.mubr.bf16.mxu0 0
      %4687 = vmatmul.mubr.bf16.gmra.mrb[0].mxu0 %v4404
      %v4688 = vpop.f32.mrb[0].mxu0
      %v4689 = vadd.f32 %v4303, %v4688
      %v4690 = vpop.f32.mrb[0].mxu0
      %v4691 = vpop.f32.mrb[0].mxu0
      %v4692 = vadd.f32 %v4303, %v4691
      %v4693 = vpop.f32.mrb[0].mxu0
      %4694 = vdwg.mxu0
      %v4695 = vpack.c.bf16 %v4444, %v4441
      %v4696 = vpack.c.bf16 %v4452, %v4449
      %v4697 = vpack.c.bf16 %v4460, %v4457
      %v4698 = vpack.c.bf16 %v4468, %v4465
      %v4699 = vpack.c.bf16 %v4476, %v4473
      %v4700 = vpack.c.bf16 %v4484, %v4481
      %v4701 = vpack.c.bf16 %v4492, %v4489
      %v4702 = vpack.c.bf16 %v4500, %v4497
      %v4703 = vpack.c.bf16 %v4508, %v4505
      %v4704 = vpack.c.bf16 %v4516, %v4513
      %v4705 = vpack.c.bf16 %v4524, %v4521
      %v4706 = vpack.c.bf16 %v4532, %v4529
      %v4707 = vpack.c.bf16 %v4540, %v4537
      %v4708 = vpack.c.bf16 %v4548, %v4545
      %v4709 = vpack.c.bf16 %v4556, %v4553
      %v4710 = vpack.c.bf16 %v4564, %v4561
      %v4711 = vpack.c.bf16 %v4572, %v4569
      %v4712 = vpack.c.bf16 %v4580, %v4577
      %v4713 = vpack.c.bf16 %v4588, %v4585
      %v4714 = vpack.c.bf16 %v4596, %v4593
      %v4715 = vpack.c.bf16 %v4604, %v4601
      %v4716 = vpack.c.bf16 %v4612, %v4609
      %v4717 = vpack.c.bf16 %v4620, %v4617
      %v4718 = vpack.c.bf16 %v4628, %v4625
      %v4719 = vpack.c.bf16 %v4636, %v4633
      %v4720 = vpack.c.bf16 %v4644, %v4641
      %v4721 = vpack.c.bf16 %v4652, %v4649
      %v4722 = vpack.c.bf16 %v4660, %v4657
      %v4723 = vpack.c.bf16 %v4668, %v4665
      %v4724 = vpack.c.bf16 %v4676, %v4673
      %v4725 = vpack.c.bf16 %v4684, %v4681
      %v4726 = vpack.c.bf16 %v4692, %v4689
      %v4727 = vld [vmem:[%s6] sm:$0x3]
      %v4728 = vld [vmem:[%s11 + $0x5] ss:$0 sm:$0xff]
      %vm4729 = vcmask 23552
      %v4731 = vsel %vm4729, %v4695, 0
      %v4734 = vsel %vm4729, %v4696, 0
      %v4737 = vsel %vm4729, %v4697, 0
      %v4740 = vsel %vm4729, %v4698, 0
      %v4743 = vsel %vm4729, %v4699, 0
      %v4746 = vsel %vm4729, %v4700, 0
      %v4749 = vsel %vm4729, %v4701, 0
      %v4752 = vsel %vm4729, %v4702, 0
      %v4755 = vsel %vm4729, %v4703, 0
      %v4758 = vsel %vm4729, %v4704, 0
      %v4761 = vsel %vm4729, %v4705, 0
      %v4764 = vsel %vm4729, %v4706, 0
      %v4767 = vsel %vm4729, %v4707, 0
      %v4770 = vsel %vm4729, %v4708, 0
      %v4773 = vsel %vm4729, %v4709, 0
      %v4776 = vsel %vm4729, %v4710, 0
      %v4779 = vsel %vm4729, %v4711, 0
      %v4782 = vsel %vm4729, %v4712, 0
      %v4785 = vsel %vm4729, %v4713, 0
      %v4788 = vsel %vm4729, %v4714, 0
      %v4791 = vsel %vm4729, %v4715, 0
      %v4794 = vsel %vm4729, %v4716, 0
      %v4797 = vsel %vm4729, %v4717, 0
      %v4800 = vsel %vm4729, %v4718, 0
      %v4803 = vsel %vm4729, %v4719, 0
      %v4806 = vsel %vm4729, %v4720, 0
      %v4809 = vsel %vm4729, %v4721, 0
      %v4812 = vsel %vm4729, %v4722, 0
      %v4815 = vsel %vm4729, %v4723, 0
      %v4818 = vsel %vm4729, %v4724, 0
      %v4821 = vsel %vm4729, %v4725, 0
      %v4824 = vsel %vm4729, %v4726, 0
      %vm4826 = vcmask 1040384
      %vm4827 = vcmask 1041408
      %v4828 = vsel %vm4826, 4294967295, 65535
      %v4829 = vsel %vm4827, %v4828, 0
      %v4831 = vand.u32 %v4727, %v4829
      %4833 = vmatprep.subr.bf16.mxu0 0
      %4834 = vmatpush1.bf16.msra.mxu0 %v4831
      %4835 = vmatprep.subr.bf16.mxu0 0
      %4836 = vmatpush1.bf16.msra.mxu0 0
      %4837 = vmatprep.subr.bf16.mxu0 0
      %4838 = vmatpush1.bf16.msra.mxu0 0
      %4839 = vmatprep.subr.bf16.mxu0 0
      %4840 = vmatpush1.bf16.msra.mxu0 0
      %4841 = vmatprep.subr.bf16.mxu0 0
      %4842 = vmatpush1.bf16.msra.mxu0 0
      %4843 = vmatprep.subr.bf16.mxu0 0
      %4844 = vmatpush1.bf16.msra.mxu0 0
      %4845 = vmatprep.subr.bf16.mxu0 0
      %4846 = vmatpush1.bf16.msra.mxu0 0
      %4847 = vmatprep.subr.bf16.mxu0 0
      %4848 = vmatpush1.bf16.msra.mxu0 0
      %4849 = vmatprep.subr.bf16.mxu0 0
      %4850 = vmatpush1.bf16.msra.mxu0 0
      %4851 = vmatprep.subr.bf16.mxu0 0
      %4852 = vmatpush1.bf16.msra.mxu0 0
      %4853 = vmatprep.subr.bf16.mxu0 0
      %4854 = vmatpush1.bf16.msra.mxu0 0
      %4855 = vmatprep.subr.bf16.mxu0 0
      %4856 = vmatpush1.bf16.msra.mxu0 0
      %4857 = vmatprep.subr.bf16.mxu0 0
      %4858 = vmatpush1.bf16.msra.mxu0 0
      %4859 = vmatprep.subr.bf16.mxu0 0
      %4860 = vmatpush1.bf16.msra.mxu0 0
      %4861 = vmatprep.subr.bf16.mxu0 0
      %4862 = vmatpush1.bf16.msra.mxu0 0
      %4863 = vmatprep.subr.bf16.mxu0 0
      %4864 = vmatpush1.bf16.msra.mxu0 0
      %4865 = vmatprep.mubr.bf16.mxu0 0
      %4866 = vmatmul.mubr.bf16.gmra.mrb[0].mxu0 %v4731
      %v4867 = vpop.f32.mrb[0].mxu0
      %v4868 = vadd.f32 %v4728, %v4867
      %v4869 = vpop.f32.mrb[0].mxu0
      %v4870 = vpop.f32.mrb[0].mxu0
      %v4871 = vadd.f32 %v4728, %v4870
      %v4872 = vpop.f32.mrb[0].mxu0
      %4873 = vmatprep.mubr.bf16.mxu0 0
      %4874 = vmatmul.mubr.bf16.gmra.mrb[0].mxu0 %v4734
      %v4875 = vpop.f32.mrb[0].mxu0
      %v4876 = vadd.f32 %v4728, %v4875
      %v4877 = vpop.f32.mrb[0].mxu0
      %v4878 = vpop.f32.mrb[0].mxu0
      %v4879 = vadd.f32 %v4728, %v4878
      %v4880 = vpop.f32.mrb[0].mxu0
      %4881 = vmatprep.mubr.bf16.mxu0 0
      %4882 = vmatmul.mubr.bf16.gmra.mrb[0].mxu0 %v4737
      %v4883 = vpop.f32.mrb[0].mxu0
      %v4884 = vadd.f32 %v4728, %v4883
      %v4885 = vpop.f32.mrb[0].mxu0
      %v4886 = vpop.f32.mrb[0].mxu0
      %v4887 = vadd.f32 %v4728, %v4886
      %v4888 = vpop.f32.mrb[0].mxu0
      %4889 = vmatprep.mubr.bf16.mxu0 0
      %4890 = vmatmul.mubr.bf16.gmra.mrb[0].mxu0 %v4740
      %v4891 = vpop.f32.mrb[0].mxu0
      %v4892 = vadd.f32 %v4728, %v4891
      %v4893 = vpop.f32.mrb[0].mxu0
      %v4894 = vpop.f32.mrb[0].mxu0
      %v4895 = vadd.f32 %v4728, %v4894
      %v4896 = vpop.f32.mrb[0].mxu0
      %4897 = vmatprep.mubr.bf16.mxu0 0
      %4898 = vmatmul.mubr.bf16.gmra.mrb[0].mxu0 %v4743
      %v4899 = vpop.f32.mrb[0].mxu0
      %v4900 = vadd.f32 %v4728, %v4899
      %v4901 = vpop.f32.mrb[0].mxu0
      %v4902 = vpop.f32.mrb[0].mxu0
      %v4903 = vadd.f32 %v4728, %v4902
      %v4904 = vpop.f32.mrb[0].mxu0
      %4905 = vmatprep.mubr.bf16.mxu0 0
      %4906 = vmatmul.mubr.bf16.gmra.mrb[0].mxu0 %v4746
      %v4907 = vpop.f32.mrb[0].mxu0
      %v4908 = vadd.f32 %v4728, %v4907
      %v4909 = vpop.f32.mrb[0].mxu0
      %v4910 = vpop.f32.mrb[0].mxu0
      %v4911 = vadd.f32 %v4728, %v4910
      %v4912 = vpop.f32.mrb[0].mxu0
      %4913 = vmatprep.mubr.bf16.mxu0 0
      %4914 = vmatmul.mubr.bf16.gmra.mrb[0].mxu0 %v4749
      %v4915 = vpop.f32.mrb[0].mxu0
      %v4916 = vadd.f32 %v4728, %v4915
      %v4917 = vpop.f32.mrb[0].mxu0
      %v4918 = vpop.f32.mrb[0].mxu0
      %v4919 = vadd.f32 %v4728, %v4918
      %v4920 = vpop.f32.mrb[0].mxu0
      %4921 = vmatprep.mubr.bf16.mxu0 0
      %4922 = vmatmul.mubr.bf16.gmra.mrb[0].mxu0 %v4752
      %v4923 = vpop.f32.mrb[0].mxu0
      %v4924 = vadd.f32 %v4728, %v4923
      %v4925 = vpop.f32.mrb[0].mxu0
      %v4926 = vpop.f32.mrb[0].mxu0
      %v4927 = vadd.f32 %v4728, %v4926
      %v4928 = vpop.f32.mrb[0].mxu0
      %4929 = vmatprep.mubr.bf16.mxu0 0
      %4930 = vmatmul.mubr.bf16.gmra.mrb[0].mxu0 %v4755
      %v4931 = vpop.f32.mrb[0].mxu0
      %v4932 = vadd.f32 %v4728, %v4931
      %v4933 = vpop.f32.mrb[0].mxu0
      %v4934 = vpop.f32.mrb[0].mxu0
      %v4935 = vadd.f32 %v4728, %v4934
      %v4936 = vpop.f32.mrb[0].mxu0
      %4937 = vmatprep.mubr.bf16.mxu0 0
      %4938 = vmatmul.mubr.bf16.gmra.mrb[0].mxu0 %v4758
      %v4939 = vpop.f32.mrb[0].mxu0
      %v4940 = vadd.f32 %v4728, %v4939
      %v4941 = vpop.f32.mrb[0].mxu0
      %v4942 = vpop.f32.mrb[0].mxu0
      %v4943 = vadd.f32 %v4728, %v4942
      %v4944 = vpop.f32.mrb[0].mxu0
      %4945 = vmatprep.mubr.bf16.mxu0 0
      %4946 = vmatmul.mubr.bf16.gmra.mrb[0].mxu0 %v4761
      %v4947 = vpop.f32.mrb[0].mxu0
      %v4948 = vadd.f32 %v4728, %v4947
      %v4949 = vpop.f32.mrb[0].mxu0
      %v4950 = vpop.f32.mrb[0].mxu0
      %v4951 = vadd.f32 %v4728, %v4950
      %v4952 = vpop.f32.mrb[0].mxu0
      %4953 = vmatprep.mubr.bf16.mxu0 0
      %4954 = vmatmul.mubr.bf16.gmra.mrb[0].mxu0 %v4764
      %v4955 = vpop.f32.mrb[0].mxu0
      %v4956 = vadd.f32 %v4728, %v4955
      %v4957 = vpop.f32.mrb[0].mxu0
      %v4958 = vpop.f32.mrb[0].mxu0
      %v4959 = vadd.f32 %v4728, %v4958
      %v4960 = vpop.f32.mrb[0].mxu0
      %4961 = vmatprep.mubr.bf16.mxu0 0
      %4962 = vmatmul.mubr.bf16.gmra.mrb[0].mxu0 %v4767
      %v4963 = vpop.f32.mrb[0].mxu0
      %v4964 = vadd.f32 %v4728, %v4963
      %v4965 = vpop.f32.mrb[0].mxu0
      %v4966 = vpop.f32.mrb[0].mxu0
      %v4967 = vadd.f32 %v4728, %v4966
      %v4968 = vpop.f32.mrb[0].mxu0
      %4969 = vmatprep.mubr.bf16.mxu0 0
      %4970 = vmatmul.mubr.bf16.gmra.mrb[0].mxu0 %v4770
      %v4971 = vpop.f32.mrb[0].mxu0
      %v4972 = vadd.f32 %v4728, %v4971
      %v4973 = vpop.f32.mrb[0].mxu0
      %v4974 = vpop.f32.mrb[0].mxu0
      %v4975 = vadd.f32 %v4728, %v4974
      %v4976 = vpop.f32.mrb[0].mxu0
      %4977 = vmatprep.mubr.bf16.mxu0 0
      %4978 = vmatmul.mubr.bf16.gmra.mrb[0].mxu0 %v4773
      %v4979 = vpop.f32.mrb[0].mxu0
      %v4980 = vadd.f32 %v4728, %v4979
      %v4981 = vpop.f32.mrb[0].mxu0
      %v4982 = vpop.f32.mrb[0].mxu0
      %v4983 = vadd.f32 %v4728, %v4982
      %v4984 = vpop.f32.mrb[0].mxu0
      %4985 = vmatprep.mubr.bf16.mxu0 0
      %4986 = vmatmul.mubr.bf16.gmra.mrb[0].mxu0 %v4776
      %v4987 = vpop.f32.mrb[0].mxu0
      %v4988 = vadd.f32 %v4728, %v4987
      %v4989 = vpop.f32.mrb[0].mxu0
      %v4990 = vpop.f32.mrb[0].mxu0
      %v4991 = vadd.f32 %v4728, %v4990
      %v4992 = vpop.f32.mrb[0].mxu0
      %4993 = vmatprep.mubr.bf16.mxu0 0
      %4994 = vmatmul.mubr.bf16.gmra.mrb[0].mxu0 %v4779
      %v4995 = vpop.f32.mrb[0].mxu0
      %v4996 = vadd.f32 %v4728, %v4995
      %v4997 = vpop.f32.mrb[0].mxu0
      %v4998 = vpop.f32.mrb[0].mxu0
      %v4999 = vadd.f32 %v4728, %v4998
      %v5000 = vpop.f32.mrb[0].mxu0
      %5001 = vmatprep.mubr.bf16.mxu0 0
      %5002 = vmatmul.mubr.bf16.gmra.mrb[0].mxu0 %v4782
      %v5003 = vpop.f32.mrb[0].mxu0
      %v5004 = vadd.f32 %v4728, %v5003
      %v5005 = vpop.f32.mrb[0].mxu0
      %v5006 = vpop.f32.mrb[0].mxu0
      %v5007 = vadd.f32 %v4728, %v5006
      %v5008 = vpop.f32.mrb[0].mxu0
      %5009 = vmatprep.mubr.bf16.mxu0 0
      %5010 = vmatmul.mubr.bf16.gmra.mrb[0].mxu0 %v4785
      %v5011 = vpop.f32.mrb[0].mxu0
      %v5012 = vadd.f32 %v4728, %v5011
      %v5013 = vpop.f32.mrb[0].mxu0
      %v5014 = vpop.f32.mrb[0].mxu0
      %v5015 = vadd.f32 %v4728, %v5014
      %v5016 = vpop.f32.mrb[0].mxu0
      %5017 = vmatprep.mubr.bf16.mxu0 0
      %5018 = vmatmul.mubr.bf16.gmra.mrb[0].mxu0 %v4788
      %v5019 = vpop.f32.mrb[0].mxu0
      %v5020 = vadd.f32 %v4728, %v5019
      %v5021 = vpop.f32.mrb[0].mxu0
      %v5022 = vpop.f32.mrb[0].mxu0
      %v5023 = vadd.f32 %v4728, %v5022
      %v5024 = vpop.f32.mrb[0].mxu0
      %5025 = vmatprep.mubr.bf16.mxu0 0
      %5026 = vmatmul.mubr.bf16.gmra.mrb[0].mxu0 %v4791
      %v5027 = vpop.f32.mrb[0].mxu0
      %v5028 = vadd.f32 %v4728, %v5027
      %v5029 = vpop.f32.mrb[0].mxu0
      %v5030 = vpop.f32.mrb[0].mxu0
      %v5031 = vadd.f32 %v4728, %v5030
      %v5032 = vpop.f32.mrb[0].mxu0
      %5033 = vmatprep.mubr.bf16.mxu0 0
      %5034 = vmatmul.mubr.bf16.gmra.mrb[0].mxu0 %v4794
      %v5035 = vpop.f32.mrb[0].mxu0
      %v5036 = vadd.f32 %v4728, %v5035
      %v5037 = vpop.f32.mrb[0].mxu0
      %v5038 = vpop.f32.mrb[0].mxu0
      %v5039 = vadd.f32 %v4728, %v5038
      %v5040 = vpop.f32.mrb[0].mxu0
      %5041 = vmatprep.mubr.bf16.mxu0 0
      %5042 = vmatmul.mubr.bf16.gmra.mrb[0].mxu0 %v4797
      %v5043 = vpop.f32.mrb[0].mxu0
      %v5044 = vadd.f32 %v4728, %v5043
      %v5045 = vpop.f32.mrb[0].mxu0
      %v5046 = vpop.f32.mrb[0].mxu0
      %v5047 = vadd.f32 %v4728, %v5046
      %v5048 = vpop.f32.mrb[0].mxu0
      %5049 = vmatprep.mubr.bf16.mxu0 0
      %5050 = vmatmul.mubr.bf16.gmra.mrb[0].mxu0 %v4800
      %v5051 = vpop.f32.mrb[0].mxu0
      %v5052 = vadd.f32 %v4728, %v5051
      %v5053 = vpop.f32.mrb[0].mxu0
      %v5054 = vpop.f32.mrb[0].mxu0
      %v5055 = vadd.f32 %v4728, %v5054
      %v5056 = vpop.f32.mrb[0].mxu0
      %5057 = vmatprep.mubr.bf16.mxu0 0
      %5058 = vmatmul.mubr.bf16.gmra.mrb[0].mxu0 %v4803
      %v5059 = vpop.f32.mrb[0].mxu0
      %v5060 = vadd.f32 %v4728, %v5059
      %v5061 = vpop.f32.mrb[0].mxu0
      %v5062 = vpop.f32.mrb[0].mxu0
      %v5063 = vadd.f32 %v4728, %v5062
      %v5064 = vpop.f32.mrb[0].mxu0
      %5065 = vmatprep.mubr.bf16.mxu0 0
      %5066 = vmatmul.mubr.bf16.gmra.mrb[0].mxu0 %v4806
      %v5067 = vpop.f32.mrb[0].mxu0
      %v5068 = vadd.f32 %v4728, %v5067
      %v5069 = vpop.f32.mrb[0].mxu0
      %v5070 = vpop.f32.mrb[0].mxu0
      %v5071 = vadd.f32 %v4728, %v5070
      %v5072 = vpop.f32.mrb[0].mxu0
      %5073 = vmatprep.mubr.bf16.mxu0 0
      %5074 = vmatmul.mubr.bf16.gmra.mrb[0].mxu0 %v4809
      %v5075 = vpop.f32.mrb[0].mxu0
      %v5076 = vadd.f32 %v4728, %v5075
      %v5077 = vpop.f32.mrb[0].mxu0
      %v5078 = vpop.f32.mrb[0].mxu0
      %v5079 = vadd.f32 %v4728, %v5078
      %v5080 = vpop.f32.mrb[0].mxu0
      %5081 = vmatprep.mubr.bf16.mxu0 0
      %5082 = vmatmul.mubr.bf16.gmra.mrb[0].mxu0 %v4812
      %v5083 = vpop.f32.mrb[0].mxu0
      %v5084 = vadd.f32 %v4728, %v5083
      %v5085 = vpop.f32.mrb[0].mxu0
      %v5086 = vpop.f32.mrb[0].mxu0
      %v5087 = vadd.f32 %v4728, %v5086
      %v5088 = vpop.f32.mrb[0].mxu0
      %5089 = vmatprep.mubr.bf16.mxu0 0
      %5090 = vmatmul.mubr.bf16.gmra.mrb[0].mxu0 %v4815
      %v5091 = vpop.f32.mrb[0].mxu0
      %v5092 = vadd.f32 %v4728, %v5091
      %v5093 = vpop.f32.mrb[0].mxu0
      %v5094 = vpop.f32.mrb[0].mxu0
      %v5095 = vadd.f32 %v4728, %v5094
      %v5096 = vpop.f32.mrb[0].mxu0
      %5097 = vmatprep.mubr.bf16.mxu0 0
      %5098 = vmatmul.mubr.bf16.gmra.mrb[0].mxu0 %v4818
      %v5099 = vpop.f32.mrb[0].mxu0
      %v5100 = vadd.f32 %v4728, %v5099
      %v5101 = vpop.f32.mrb[0].mxu0
      %v5102 = vpop.f32.mrb[0].mxu0
      %v5103 = vadd.f32 %v4728, %v5102
      %v5104 = vpop.f32.mrb[0].mxu0
      %5105 = vmatprep.mubr.bf16.mxu0 0
      %5106 = vmatmul.mubr.bf16.gmra.mrb[0].mxu0 %v4821
      %v5107 = vpop.f32.mrb[0].mxu0
      %v5108 = vadd.f32 %v4728, %v5107
      %v5109 = vpop.f32.mrb[0].mxu0
      %v5110 = vpop.f32.mrb[0].mxu0
      %v5111 = vadd.f32 %v4728, %v5110
      %v5112 = vpop.f32.mrb[0].mxu0
      %5113 = vmatprep.mubr.bf16.mxu0 0
      %5114 = vmatmul.mubr.bf16.gmra.mrb[0].mxu0 %v4824
      %v5115 = vpop.f32.mrb[0].mxu0
      %v5116 = vadd.f32 %v4728, %v5115
      %v5117 = vpop.f32.mrb[0].mxu0
      %v5118 = vpop.f32.mrb[0].mxu0
      %v5119 = vadd.f32 %v4728, %v5118
      %v5120 = vpop.f32.mrb[0].mxu0
      %5121 = vdwg.mxu0
      %v5122 = vtanh.pop %v4868
      %v5123 = vtanh.pop %v4871
      %v5124 = vtanh.pop %v4876
      %v5125 = vtanh.pop %v4879
      %v5126 = vtanh.pop %v4884
      %v5127 = vtanh.pop %v4887
      %v5128 = vtanh.pop %v4892
      %v5129 = vtanh.pop %v4895
      %v5130 = vtanh.pop %v4900
      %v5131 = vtanh.pop %v4903
      %v5132 = vtanh.pop %v4908
      %v5133 = vtanh.pop %v4911
      %v5134 = vtanh.pop %v4916
      %v5135 = vtanh.pop %v4919
      %v5136 = vtanh.pop %v4924
      %v5137 = vtanh.pop %v4927
      %v5138 = vtanh.pop %v4932
      %v5139 = vtanh.pop %v4935
      %v5140 = vtanh.pop %v4940
      %v5141 = vtanh.pop %v4943
      %v5142 = vtanh.pop %v4948
      %v5143 = vtanh.pop %v4951
      %v5144 = vtanh.pop %v4956
      %v5145 = vtanh.pop %v4959
      %v5146 = vtanh.pop %v4964
      %v5147 = vtanh.pop %v4967
      %v5148 = vtanh.pop %v4972
      %v5149 = vtanh.pop %v4975
      %v5150 = vtanh.pop %v4980
      %v5151 = vtanh.pop %v4983
      %v5152 = vtanh.pop %v4988
      %v5153 = vtanh.pop %v4991
      %v5154 = vtanh.pop %v4996
      %v5155 = vtanh.pop %v4999
      %v5156 = vtanh.pop %v5004
      %v5157 = vtanh.pop %v5007
      %v5158 = vtanh.pop %v5012
      %v5159 = vtanh.pop %v5015
      %v5160 = vtanh.pop %v5020
      %v5161 = vtanh.pop %v5023
      %v5162 = vtanh.pop %v5028
      %v5163 = vtanh.pop %v5031
      %v5164 = vtanh.pop %v5036
      %v5165 = vtanh.pop %v5039
      %v5166 = vtanh.pop %v5044
      %v5167 = vtanh.pop %v5047
      %v5168 = vtanh.pop %v5052
      %v5169 = vtanh.pop %v5055
      %v5170 = vtanh.pop %v5060
      %v5171 = vtanh.pop %v5063
      %v5172 = vtanh.pop %v5068
      %v5173 = vtanh.pop %v5071
      %v5174 = vtanh.pop %v5076
      %v5175 = vtanh.pop %v5079
      %v5176 = vtanh.pop %v5084
      %v5177 = vtanh.pop %v5087
      %v5178 = vtanh.pop %v5092
      %v5179 = vtanh.pop %v5095
      %v5180 = vtanh.pop %v5100
      %v5181 = vtanh.pop %v5103
      %v5182 = vtanh.pop %v5108
      %v5183 = vtanh.pop %v5111
      %v5184 = vtanh.pop %v5116
      %v5185 = vtanh.pop %v5119
      %v5186 = vpack.c.bf16 %v5123, %v5122
      %v5187 = vpack.c.bf16 %v5125, %v5124
      %v5188 = vpack.c.bf16 %v5127, %v5126
      %v5189 = vpack.c.bf16 %v5129, %v5128
      %v5190 = vpack.c.bf16 %v5131, %v5130
      %v5191 = vpack.c.bf16 %v5133, %v5132
      %v5192 = vpack.c.bf16 %v5135, %v5134
      %v5193 = vpack.c.bf16 %v5137, %v5136
      %v5194 = vpack.c.bf16 %v5139, %v5138
      %v5195 = vpack.c.bf16 %v5141, %v5140
      %v5196 = vpack.c.bf16 %v5143, %v5142
      %v5197 = vpack.c.bf16 %v5145, %v5144
      %v5198 = vpack.c.bf16 %v5147, %v5146
      %v5199 = vpack.c.bf16 %v5149, %v5148
      %v5200 = vpack.c.bf16 %v5151, %v5150
      %v5201 = vpack.c.bf16 %v5153, %v5152
      %v5202 = vpack.c.bf16 %v5155, %v5154
      %v5203 = vpack.c.bf16 %v5157, %v5156
      %v5204 = vpack.c.bf16 %v5159, %v5158
      %v5205 = vpack.c.bf16 %v5161, %v5160
      %v5206 = vpack.c.bf16 %v5163, %v5162
      %v5207 = vpack.c.bf16 %v5165, %v5164
      %v5208 = vpack.c.bf16 %v5167, %v5166
      %v5209 = vpack.c.bf16 %v5169, %v5168
      %v5210 = vpack.c.bf16 %v5171, %v5170
      %v5211 = vpack.c.bf16 %v5173, %v5172
      %v5212 = vpack.c.bf16 %v5175, %v5174
      %v5213 = vpack.c.bf16 %v5177, %v5176
      %v5214 = vpack.c.bf16 %v5179, %v5178
      %v5215 = vpack.c.bf16 %v5181, %v5180
      %v5216 = vpack.c.bf16 %v5183, %v5182
      %v5217 = vpack.c.bf16 %v5185, %v5184
      %v5218 = vld [vmem:[%s7] sm:$0xf]
      %v5219 = vld [vmem:[%s7 + $0x4] sm:$0xf]
      %v5220 = vld [vmem:[%s11 + $0x6] ss:$0 sm:$0xff]
      %v5223 = vunpack.c.l.b16 %v5218
      %v5224 = vunpack.c.l.b16 %v5219
      %v5225 = vpack.c.b16 %v5224, %v5223
      %v5228 = vsel %vm1488, %v5186, 0
      %v5231 = vsel %vm1488, %v5187, 0
      %v5234 = vsel %vm1488, %v5188, 0
      %v5237 = vsel %vm1488, %v5189, 0
      %v5240 = vsel %vm1488, %v5190, 0
      %v5243 = vsel %vm1488, %v5191, 0
      %v5246 = vsel %vm1488, %v5192, 0
      %v5249 = vsel %vm1488, %v5193, 0
      %v5252 = vsel %vm1488, %v5194, 0
      %v5255 = vsel %vm1488, %v5195, 0
      %v5258 = vsel %vm1488, %v5196, 0
      %v5261 = vsel %vm1488, %v5197, 0
      %v5264 = vsel %vm1488, %v5198, 0
      %v5267 = vsel %vm1488, %v5199, 0
      %v5270 = vsel %vm1488, %v5200, 0
      %v5273 = vsel %vm1488, %v5201, 0
      %v5276 = vsel %vm1488, %v5202, 0
      %v5279 = vsel %vm1488, %v5203, 0
      %v5282 = vsel %vm1488, %v5204, 0
      %v5285 = vsel %vm1488, %v5205, 0
      %v5288 = vsel %vm1488, %v5206, 0
      %v5291 = vsel %vm1488, %v5207, 0
      %v5294 = vsel %vm1488, %v5208, 0
      %v5297 = vsel %vm1488, %v5209, 0
      %v5300 = vsel %vm1488, %v5210, 0
      %v5303 = vsel %vm1488, %v5211, 0
      %v5306 = vsel %vm1488, %v5212, 0
      %v5309 = vsel %vm1488, %v5213, 0
      %v5312 = vsel %vm1488, %v5214, 0
      %v5315 = vsel %vm1488, %v5215, 0
      %v5318 = vsel %vm1488, %v5216, 0
      %v5321 = vsel %vm1488, %v5217, 0
      %5323 = vmatprep.subr.bf16.mxu0 0
      %5324 = vmatpush1.bf16.msra.mxu0 %v5225
      %5325 = vmatprep.subr.bf16.mxu0 0
      %5326 = vmatpush1.bf16.msra.mxu0 0
      %5327 = vmatprep.subr.bf16.mxu0 0
      %5328 = vmatpush1.bf16.msra.mxu0 0
      %5329 = vmatprep.subr.bf16.mxu0 0
      %5330 = vmatpush1.bf16.msra.mxu0 0
      %5331 = vmatprep.subr.bf16.mxu0 0
      %5332 = vmatpush1.bf16.msra.mxu0 0
      %5333 = vmatprep.subr.bf16.mxu0 0
      %5334 = vmatpush1.bf16.msra.mxu0 0
      %5335 = vmatprep.subr.bf16.mxu0 0
      %5336 = vmatpush1.bf16.msra.mxu0 0
      %5337 = vmatprep.subr.bf16.mxu0 0
      %5338 = vmatpush1.bf16.msra.mxu0 0
      %5339 = vmatprep.subr.bf16.mxu0 0
      %5340 = vmatpush1.bf16.msra.mxu0 0
      %5341 = vmatprep.subr.bf16.mxu0 0
      %5342 = vmatpush1.bf16.msra.mxu0 0
      %5343 = vmatprep.subr.bf16.mxu0 0
      %5344 = vmatpush1.bf16.msra.mxu0 0
      %5345 = vmatprep.subr.bf16.mxu0 0
      %5346 = vmatpush1.bf16.msra.mxu0 0
      %5347 = vmatprep.subr.bf16.mxu0 0
      %5348 = vmatpush1.bf16.msra.mxu0 0
      %5349 = vmatprep.subr.bf16.mxu0 0
      %5350 = vmatpush1.bf16.msra.mxu0 0
      %5351 = vmatprep.subr.bf16.mxu0 0
      %5352 = vmatpush1.bf16.msra.mxu0 0
      %5353 = vmatprep.subr.bf16.mxu0 0
      %5354 = vmatpush1.bf16.msra.mxu0 0
      %5355 = vmatprep.mubr.bf16.mxu0 0
      %5356 = vmatmul.mubr.bf16.gmra.mrb[0].mxu0 %v5228
      %v5357 = vpop.f32.mrb[0].mxu0
      %v5358 = vadd.f32 %v5220, %v5357
      %v5359 = vpop.f32.mrb[0].mxu0
      %v5360 = vpop.f32.mrb[0].mxu0
      %v5361 = vadd.f32 %v5220, %v5360
      %v5362 = vpop.f32.mrb[0].mxu0
      %5363 = vmatprep.mubr.bf16.mxu0 0
      %5364 = vmatmul.mubr.bf16.gmra.mrb[0].mxu0 %v5231
      %v5365 = vpop.f32.mrb[0].mxu0
      %v5366 = vadd.f32 %v5220, %v5365
      %v5367 = vpop.f32.mrb[0].mxu0
      %v5368 = vpop.f32.mrb[0].mxu0
      %v5369 = vadd.f32 %v5220, %v5368
      %v5370 = vpop.f32.mrb[0].mxu0
      %5371 = vmatprep.mubr.bf16.mxu0 0
      %5372 = vmatmul.mubr.bf16.gmra.mrb[0].mxu0 %v5234
      %v5373 = vpop.f32.mrb[0].mxu0
      %v5374 = vadd.f32 %v5220, %v5373
      %v5375 = vpop.f32.mrb[0].mxu0
      %v5376 = vpop.f32.mrb[0].mxu0
      %v5377 = vadd.f32 %v5220, %v5376
      %v5378 = vpop.f32.mrb[0].mxu0
      %5379 = vmatprep.mubr.bf16.mxu0 0
      %5380 = vmatmul.mubr.bf16.gmra.mrb[0].mxu0 %v5237
      %v5381 = vpop.f32.mrb[0].mxu0
      %v5382 = vadd.f32 %v5220, %v5381
      %v5383 = vpop.f32.mrb[0].mxu0
      %v5384 = vpop.f32.mrb[0].mxu0
      %v5385 = vadd.f32 %v5220, %v5384
      %v5386 = vpop.f32.mrb[0].mxu0
      %5387 = vmatprep.mubr.bf16.mxu0 0
      %5388 = vmatmul.mubr.bf16.gmra.mrb[0].mxu0 %v5240
      %v5389 = vpop.f32.mrb[0].mxu0
      %v5390 = vadd.f32 %v5220, %v5389
      %v5391 = vpop.f32.mrb[0].mxu0
      %v5392 = vpop.f32.mrb[0].mxu0
      %v5393 = vadd.f32 %v5220, %v5392
      %v5394 = vpop.f32.mrb[0].mxu0
      %5395 = vmatprep.mubr.bf16.mxu0 0
      %5396 = vmatmul.mubr.bf16.gmra.mrb[0].mxu0 %v5243
      %v5397 = vpop.f32.mrb[0].mxu0
      %v5398 = vadd.f32 %v5220, %v5397
      %v5399 = vpop.f32.mrb[0].mxu0
      %v5400 = vpop.f32.mrb[0].mxu0
      %v5401 = vadd.f32 %v5220, %v5400
      %v5402 = vpop.f32.mrb[0].mxu0
      %5403 = vmatprep.mubr.bf16.mxu0 0
      %5404 = vmatmul.mubr.bf16.gmra.mrb[0].mxu0 %v5246
      %v5405 = vpop.f32.mrb[0].mxu0
      %v5406 = vadd.f32 %v5220, %v5405
      %v5407 = vpop.f32.mrb[0].mxu0
      %v5408 = vpop.f32.mrb[0].mxu0
      %v5409 = vadd.f32 %v5220, %v5408
      %v5410 = vpop.f32.mrb[0].mxu0
      %5411 = vmatprep.mubr.bf16.mxu0 0
      %5412 = vmatmul.mubr.bf16.gmra.mrb[0].mxu0 %v5249
      %v5413 = vpop.f32.mrb[0].mxu0
      %v5414 = vadd.f32 %v5220, %v5413
      %v5415 = vpop.f32.mrb[0].mxu0
      %v5416 = vpop.f32.mrb[0].mxu0
      %v5417 = vadd.f32 %v5220, %v5416
      %v5418 = vpop.f32.mrb[0].mxu0
      %5419 = vmatprep.mubr.bf16.mxu0 0
      %5420 = vmatmul.mubr.bf16.gmra.mrb[0].mxu0 %v5252
      %v5421 = vpop.f32.mrb[0].mxu0
      %v5422 = vadd.f32 %v5220, %v5421
      %v5423 = vpop.f32.mrb[0].mxu0
      %v5424 = vpop.f32.mrb[0].mxu0
      %v5425 = vadd.f32 %v5220, %v5424
      %v5426 = vpop.f32.mrb[0].mxu0
      %5427 = vmatprep.mubr.bf16.mxu0 0
      %5428 = vmatmul.mubr.bf16.gmra.mrb[0].mxu0 %v5255
      %v5429 = vpop.f32.mrb[0].mxu0
      %v5430 = vadd.f32 %v5220, %v5429
      %v5431 = vpop.f32.mrb[0].mxu0
      %v5432 = vpop.f32.mrb[0].mxu0
      %v5433 = vadd.f32 %v5220, %v5432
      %v5434 = vpop.f32.mrb[0].mxu0
      %5435 = vmatprep.mubr.bf16.mxu0 0
      %5436 = vmatmul.mubr.bf16.gmra.mrb[0].mxu0 %v5258
      %v5437 = vpop.f32.mrb[0].mxu0
      %v5438 = vadd.f32 %v5220, %v5437
      %v5439 = vpop.f32.mrb[0].mxu0
      %v5440 = vpop.f32.mrb[0].mxu0
      %v5441 = vadd.f32 %v5220, %v5440
      %v5442 = vpop.f32.mrb[0].mxu0
      %5443 = vmatprep.mubr.bf16.mxu0 0
      %5444 = vmatmul.mubr.bf16.gmra.mrb[0].mxu0 %v5261
      %v5445 = vpop.f32.mrb[0].mxu0
      %v5446 = vadd.f32 %v5220, %v5445
      %v5447 = vpop.f32.mrb[0].mxu0
      %v5448 = vpop.f32.mrb[0].mxu0
      %v5449 = vadd.f32 %v5220, %v5448
      %v5450 = vpop.f32.mrb[0].mxu0
      %5451 = vmatprep.mubr.bf16.mxu0 0
      %5452 = vmatmul.mubr.bf16.gmra.mrb[0].mxu0 %v5264
      %v5453 = vpop.f32.mrb[0].mxu0
      %v5454 = vadd.f32 %v5220, %v5453
      %v5455 = vpop.f32.mrb[0].mxu0
      %v5456 = vpop.f32.mrb[0].mxu0
      %v5457 = vadd.f32 %v5220, %v5456
      %v5458 = vpop.f32.mrb[0].mxu0
      %5459 = vmatprep.mubr.bf16.mxu0 0
      %5460 = vmatmul.mubr.bf16.gmra.mrb[0].mxu0 %v5267
      %v5461 = vpop.f32.mrb[0].mxu0
      %v5462 = vadd.f32 %v5220, %v5461
      %v5463 = vpop.f32.mrb[0].mxu0
      %v5464 = vpop.f32.mrb[0].mxu0
      %v5465 = vadd.f32 %v5220, %v5464
      %v5466 = vpop.f32.mrb[0].mxu0
      %5467 = vmatprep.mubr.bf16.mxu0 0
      %5468 = vmatmul.mubr.bf16.gmra.mrb[0].mxu0 %v5270
      %v5469 = vpop.f32.mrb[0].mxu0
      %v5470 = vadd.f32 %v5220, %v5469
      %v5471 = vpop.f32.mrb[0].mxu0
      %v5472 = vpop.f32.mrb[0].mxu0
      %v5473 = vadd.f32 %v5220, %v5472
      %v5474 = vpop.f32.mrb[0].mxu0
      %5475 = vmatprep.mubr.bf16.mxu0 0
      %5476 = vmatmul.mubr.bf16.gmra.mrb[0].mxu0 %v5273
      %v5477 = vpop.f32.mrb[0].mxu0
      %v5478 = vadd.f32 %v5220, %v5477
      %v5479 = vpop.f32.mrb[0].mxu0
      %v5480 = vpop.f32.mrb[0].mxu0
      %v5481 = vadd.f32 %v5220, %v5480
      %v5482 = vpop.f32.mrb[0].mxu0
      %5483 = vmatprep.mubr.bf16.mxu0 0
      %5484 = vmatmul.mubr.bf16.gmra.mrb[0].mxu0 %v5276
      %v5485 = vpop.f32.mrb[0].mxu0
      %v5486 = vadd.f32 %v5220, %v5485
      %v5487 = vpop.f32.mrb[0].mxu0
      %v5488 = vpop.f32.mrb[0].mxu0
      %v5489 = vadd.f32 %v5220, %v5488
      %v5490 = vpop.f32.mrb[0].mxu0
      %5491 = vmatprep.mubr.bf16.mxu0 0
      %5492 = vmatmul.mubr.bf16.gmra.mrb[0].mxu0 %v5279
      %v5493 = vpop.f32.mrb[0].mxu0
      %v5494 = vadd.f32 %v5220, %v5493
      %v5495 = vpop.f32.mrb[0].mxu0
      %v5496 = vpop.f32.mrb[0].mxu0
      %v5497 = vadd.f32 %v5220, %v5496
      %v5498 = vpop.f32.mrb[0].mxu0
      %5499 = vmatprep.mubr.bf16.mxu0 0
      %5500 = vmatmul.mubr.bf16.gmra.mrb[0].mxu0 %v5282
      %v5501 = vpop.f32.mrb[0].mxu0
      %v5502 = vadd.f32 %v5220, %v5501
      %v5503 = vpop.f32.mrb[0].mxu0
      %v5504 = vpop.f32.mrb[0].mxu0
      %v5505 = vadd.f32 %v5220, %v5504
      %v5506 = vpop.f32.mrb[0].mxu0
      %5507 = vmatprep.mubr.bf16.mxu0 0
      %5508 = vmatmul.mubr.bf16.gmra.mrb[0].mxu0 %v5285
      %v5509 = vpop.f32.mrb[0].mxu0
      %v5510 = vadd.f32 %v5220, %v5509
      %v5511 = vpop.f32.mrb[0].mxu0
      %v5512 = vpop.f32.mrb[0].mxu0
      %v5513 = vadd.f32 %v5220, %v5512
      %v5514 = vpop.f32.mrb[0].mxu0
      %5515 = vmatprep.mubr.bf16.mxu0 0
      %5516 = vmatmul.mubr.bf16.gmra.mrb[0].mxu0 %v5288
      %v5517 = vpop.f32.mrb[0].mxu0
      %v5518 = vadd.f32 %v5220, %v5517
      %v5519 = vpop.f32.mrb[0].mxu0
      %v5520 = vpop.f32.mrb[0].mxu0
      %v5521 = vadd.f32 %v5220, %v5520
      %v5522 = vpop.f32.mrb[0].mxu0
      %5523 = vmatprep.mubr.bf16.mxu0 0
      %5524 = vmatmul.mubr.bf16.gmra.mrb[0].mxu0 %v5291
      %v5525 = vpop.f32.mrb[0].mxu0
      %v5526 = vadd.f32 %v5220, %v5525
      %v5527 = vpop.f32.mrb[0].mxu0
      %v5528 = vpop.f32.mrb[0].mxu0
      %v5529 = vadd.f32 %v5220, %v5528
      %v5530 = vpop.f32.mrb[0].mxu0
      %5531 = vmatprep.mubr.bf16.mxu0 0
      %5532 = vmatmul.mubr.bf16.gmra.mrb[0].mxu0 %v5294
      %v5533 = vpop.f32.mrb[0].mxu0
      %v5534 = vadd.f32 %v5220, %v5533
      %v5535 = vpop.f32.mrb[0].mxu0
      %v5536 = vpop.f32.mrb[0].mxu0
      %v5537 = vadd.f32 %v5220, %v5536
      %v5538 = vpop.f32.mrb[0].mxu0
      %5539 = vmatprep.mubr.bf16.mxu0 0
      %5540 = vmatmul.mubr.bf16.gmra.mrb[0].mxu0 %v5297
      %v5541 = vpop.f32.mrb[0].mxu0
      %v5542 = vadd.f32 %v5220, %v5541
      %v5543 = vpop.f32.mrb[0].mxu0
      %v5544 = vpop.f32.mrb[0].mxu0
      %v5545 = vadd.f32 %v5220, %v5544
      %v5546 = vpop.f32.mrb[0].mxu0
      %5547 = vmatprep.mubr.bf16.mxu0 0
      %5548 = vmatmul.mubr.bf16.gmra.mrb[0].mxu0 %v5300
      %v5549 = vpop.f32.mrb[0].mxu0
      %v5550 = vadd.f32 %v5220, %v5549
      %v5551 = vpop.f32.mrb[0].mxu0
      %v5552 = vpop.f32.mrb[0].mxu0
      %v5553 = vadd.f32 %v5220, %v5552
      %v5554 = vpop.f32.mrb[0].mxu0
      %5555 = vmatprep.mubr.bf16.mxu0 0
      %5556 = vmatmul.mubr.bf16.gmra.mrb[0].mxu0 %v5303
      %v5557 = vpop.f32.mrb[0].mxu0
      %v5558 = vadd.f32 %v5220, %v5557
      %v5559 = vpop.f32.mrb[0].mxu0
      %v5560 = vpop.f32.mrb[0].mxu0
      %v5561 = vadd.f32 %v5220, %v5560
      %v5562 = vpop.f32.mrb[0].mxu0
      %5563 = vmatprep.mubr.bf16.mxu0 0
      %5564 = vmatmul.mubr.bf16.gmra.mrb[0].mxu0 %v5306
      %v5565 = vpop.f32.mrb[0].mxu0
      %v5566 = vadd.f32 %v5220, %v5565
      %v5567 = vpop.f32.mrb[0].mxu0
      %v5568 = vpop.f32.mrb[0].mxu0
      %v5569 = vadd.f32 %v5220, %v5568
      %v5570 = vpop.f32.mrb[0].mxu0
      %5571 = vmatprep.mubr.bf16.mxu0 0
      %5572 = vmatmul.mubr.bf16.gmra.mrb[0].mxu0 %v5309
      %v5573 = vpop.f32.mrb[0].mxu0
      %v5574 = vadd.f32 %v5220, %v5573
      %v5575 = vpop.f32.mrb[0].mxu0
      %v5576 = vpop.f32.mrb[0].mxu0
      %v5577 = vadd.f32 %v5220, %v5576
      %v5578 = vpop.f32.mrb[0].mxu0
      %5579 = vmatprep.mubr.bf16.mxu0 0
      %5580 = vmatmul.mubr.bf16.gmra.mrb[0].mxu0 %v5312
      %v5581 = vpop.f32.mrb[0].mxu0
      %v5582 = vadd.f32 %v5220, %v5581
      %v5583 = vpop.f32.mrb[0].mxu0
      %v5584 = vpop.f32.mrb[0].mxu0
      %v5585 = vadd.f32 %v5220, %v5584
      %v5586 = vpop.f32.mrb[0].mxu0
      %5587 = vmatprep.mubr.bf16.mxu0 0
      %5588 = vmatmul.mubr.bf16.gmra.mrb[0].mxu0 %v5315
      %v5589 = vpop.f32.mrb[0].mxu0
      %v5590 = vadd.f32 %v5220, %v5589
      %v5591 = vpop.f32.mrb[0].mxu0
      %v5592 = vpop.f32.mrb[0].mxu0
      %v5593 = vadd.f32 %v5220, %v5592
      %v5594 = vpop.f32.mrb[0].mxu0
      %5595 = vmatprep.mubr.bf16.mxu0 0
      %5596 = vmatmul.mubr.bf16.gmra.mrb[0].mxu0 %v5318
      %v5597 = vpop.f32.mrb[0].mxu0
      %v5598 = vadd.f32 %v5220, %v5597
      %v5599 = vpop.f32.mrb[0].mxu0
      %v5600 = vpop.f32.mrb[0].mxu0
      %v5601 = vadd.f32 %v5220, %v5600
      %v5602 = vpop.f32.mrb[0].mxu0
      %5603 = vmatprep.mubr.bf16.mxu0 0
      %5604 = vmatmul.mubr.bf16.gmra.mrb[0].mxu0 %v5321
      %v5605 = vpop.f32.mrb[0].mxu0
      %v5606 = vadd.f32 %v5220, %v5605
      %v5607 = vpop.f32.mrb[0].mxu0
      %v5608 = vpop.f32.mrb[0].mxu0
      %v5609 = vadd.f32 %v5220, %v5608
      %v5610 = vpop.f32.mrb[0].mxu0
      %5611 = vdwg.mxu0
      %v5612 = vtanh.pop %v5358
      %v5613 = vtanh.pop %v5361
      %v5614 = vtanh.pop %v5366
      %v5615 = vtanh.pop %v5369
      %v5616 = vtanh.pop %v5374
      %v5617 = vtanh.pop %v5377
      %v5618 = vtanh.pop %v5382
      %v5619 = vtanh.pop %v5385
      %v5620 = vtanh.pop %v5390
      %v5621 = vtanh.pop %v5393
      %v5622 = vtanh.pop %v5398
      %v5623 = vtanh.pop %v5401
      %v5624 = vtanh.pop %v5406
      %v5625 = vtanh.pop %v5409
      %v5626 = vtanh.pop %v5414
      %v5627 = vtanh.pop %v5417
      %v5628 = vtanh.pop %v5422
      %v5629 = vtanh.pop %v5425
      %v5630 = vtanh.pop %v5430
      %v5631 = vtanh.pop %v5433
      %v5632 = vtanh.pop %v5438
      %v5633 = vtanh.pop %v5441
      %v5634 = vtanh.pop %v5446
      %v5635 = vtanh.pop %v5449
      %v5636 = vtanh.pop %v5454
      %v5637 = vtanh.pop %v5457
      %v5638 = vtanh.pop %v5462
      %v5639 = vtanh.pop %v5465
      %v5640 = vtanh.pop %v5470
      %v5641 = vtanh.pop %v5473
      %v5642 = vtanh.pop %v5478
      %v5643 = vtanh.pop %v5481
      %v5644 = vtanh.pop %v5486
      %v5645 = vtanh.pop %v5489
      %v5646 = vtanh.pop %v5494
      %v5647 = vtanh.pop %v5497
      %v5648 = vtanh.pop %v5502
      %v5649 = vtanh.pop %v5505
      %v5650 = vtanh.pop %v5510
      %v5651 = vtanh.pop %v5513
      %v5652 = vtanh.pop %v5518
      %v5653 = vtanh.pop %v5521
      %v5654 = vtanh.pop %v5526
      %v5655 = vtanh.pop %v5529
      %v5656 = vtanh.pop %v5534
      %v5657 = vtanh.pop %v5537
      %v5658 = vtanh.pop %v5542
      %v5659 = vtanh.pop %v5545
      %v5660 = vtanh.pop %v5550
      %v5661 = vtanh.pop %v5553
      %v5662 = vtanh.pop %v5558
      %v5663 = vtanh.pop %v5561
      %v5664 = vtanh.pop %v5566
      %v5665 = vtanh.pop %v5569
      %v5666 = vtanh.pop %v5574
      %v5667 = vtanh.pop %v5577
      %v5668 = vtanh.pop %v5582
      %v5669 = vtanh.pop %v5585
      %v5670 = vtanh.pop %v5590
      %v5671 = vtanh.pop %v5593
      %v5672 = vtanh.pop %v5598
      %v5673 = vtanh.pop %v5601
      %v5674 = vtanh.pop %v5606
      %v5675 = vtanh.pop %v5609
      %v5676 = vpack.c.bf16 %v5613, %v5612
      %v5677 = vpack.c.bf16 %v5615, %v5614
      %v5678 = vpack.c.bf16 %v5617, %v5616
      %v5679 = vpack.c.bf16 %v5619, %v5618
      %v5680 = vpack.c.bf16 %v5621, %v5620
      %v5681 = vpack.c.bf16 %v5623, %v5622
      %v5682 = vpack.c.bf16 %v5625, %v5624
      %v5683 = vpack.c.bf16 %v5627, %v5626
      %v5684 = vpack.c.bf16 %v5629, %v5628
      %v5685 = vpack.c.bf16 %v5631, %v5630
      %v5686 = vpack.c.bf16 %v5633, %v5632
      %v5687 = vpack.c.bf16 %v5635, %v5634
      %v5688 = vpack.c.bf16 %v5637, %v5636
      %v5689 = vpack.c.bf16 %v5639, %v5638
      %v5690 = vpack.c.bf16 %v5641, %v5640
      %v5691 = vpack.c.bf16 %v5643, %v5642
      %v5692 = vpack.c.bf16 %v5645, %v5644
      %v5693 = vpack.c.bf16 %v5647, %v5646
      %v5694 = vpack.c.bf16 %v5649, %v5648
      %v5695 = vpack.c.bf16 %v5651, %v5650
      %v5696 = vpack.c.bf16 %v5653, %v5652
      %v5697 = vpack.c.bf16 %v5655, %v5654
      %v5698 = vpack.c.bf16 %v5657, %v5656
      %v5699 = vpack.c.bf16 %v5659, %v5658
      %v5700 = vpack.c.bf16 %v5661, %v5660
      %v5701 = vpack.c.bf16 %v5663, %v5662
      %v5702 = vpack.c.bf16 %v5665, %v5664
      %v5703 = vpack.c.bf16 %v5667, %v5666
      %v5704 = vpack.c.bf16 %v5669, %v5668
      %v5705 = vpack.c.bf16 %v5671, %v5670
      %v5706 = vpack.c.bf16 %v5673, %v5672
      %v5707 = vpack.c.bf16 %v5675, %v5674
      %v5708 = vld [vmem:[%s8] sm:$0xf]
      %v5709 = vld [vmem:[%s8 + $0x4] sm:$0xf]
      %v5710 = vld [vmem:[%s8 + $0x8] sm:$0xf]
      %v5711 = vld [vmem:[%s8 + $0xc] sm:$0xf]
      %v5712 = vld [vmem:[%s11 + $0x7] ss:$0 sm:$0xff]
      %v5717 = vunpack.c.l.b16 %v5708
      %v5718 = vunpack.c.l.b16 %v5709
      %v5719 = vunpack.c.l.b16 %v5710
      %v5720 = vunpack.c.l.b16 %v5711
      %v5721 = vpack.c.b16 %v5718, %v5717
      %v5722 = vpack.c.b16 %v5720, %v5719
      %v5726 = vsel %vm3819, %v5676, 0
      %v5729 = vsel %vm3819, %v5677, 0
      %v5732 = vsel %vm3819, %v5678, 0
      %v5735 = vsel %vm3819, %v5679, 0
      %v5738 = vsel %vm3819, %v5680, 0
      %v5741 = vsel %vm3819, %v5681, 0
      %v5744 = vsel %vm3819, %v5682, 0
      %v5747 = vsel %vm3819, %v5683, 0
      %v5750 = vsel %vm3819, %v5684, 0
      %v5753 = vsel %vm3819, %v5685, 0
      %v5756 = vsel %vm3819, %v5686, 0
      %v5759 = vsel %vm3819, %v5687, 0
      %v5762 = vsel %vm3819, %v5688, 0
      %v5765 = vsel %vm3819, %v5689, 0
      %v5768 = vsel %vm3819, %v5690, 0
      %v5771 = vsel %vm3819, %v5691, 0
      %v5774 = vsel %vm3819, %v5692, 0
      %v5777 = vsel %vm3819, %v5693, 0
      %v5780 = vsel %vm3819, %v5694, 0
      %v5783 = vsel %vm3819, %v5695, 0
      %v5786 = vsel %vm3819, %v5696, 0
      %v5789 = vsel %vm3819, %v5697, 0
      %v5792 = vsel %vm3819, %v5698, 0
      %v5795 = vsel %vm3819, %v5699, 0
      %v5798 = vsel %vm3819, %v5700, 0
      %v5801 = vsel %vm3819, %v5701, 0
      %v5804 = vsel %vm3819, %v5702, 0
      %v5807 = vsel %vm3819, %v5703, 0
      %v5810 = vsel %vm3819, %v5704, 0
      %v5813 = vsel %vm3819, %v5705, 0
      %v5816 = vsel %vm3819, %v5706, 0
      %v5819 = vsel %vm3819, %v5707, 0
      %5821 = vmatprep.subr.bf16.mxu0 0
      %5822 = vmatpush1.bf16.msra.mxu0 %v5721
      %5823 = vmatprep.subr.bf16.mxu0 0
      %5824 = vmatpush1.bf16.msra.mxu0 %v5722
      %5825 = vmatprep.subr.bf16.mxu0 0
      %5826 = vmatpush1.bf16.msra.mxu0 0
      %5827 = vmatprep.subr.bf16.mxu0 0
      %5828 = vmatpush1.bf16.msra.mxu0 0
      %5829 = vmatprep.subr.bf16.mxu0 0
      %5830 = vmatpush1.bf16.msra.mxu0 0
      %5831 = vmatprep.subr.bf16.mxu0 0
      %5832 = vmatpush1.bf16.msra.mxu0 0
      %5833 = vmatprep.subr.bf16.mxu0 0
      %5834 = vmatpush1.bf16.msra.mxu0 0
      %5835 = vmatprep.subr.bf16.mxu0 0
      %5836 = vmatpush1.bf16.msra.mxu0 0
      %5837 = vmatprep.subr.bf16.mxu0 0
      %5838 = vmatpush1.bf16.msra.mxu0 0
      %5839 = vmatprep.subr.bf16.mxu0 0
      %5840 = vmatpush1.bf16.msra.mxu0 0
      %5841 = vmatprep.subr.bf16.mxu0 0
      %5842 = vmatpush1.bf16.msra.mxu0 0
      %5843 = vmatprep.subr.bf16.mxu0 0
      %5844 = vmatpush1.bf16.msra.mxu0 0
      %5845 = vmatprep.subr.bf16.mxu0 0
      %5846 = vmatpush1.bf16.msra.mxu0 0
      %5847 = vmatprep.subr.bf16.mxu0 0
      %5848 = vmatpush1.bf16.msra.mxu0 0
      %5849 = vmatprep.subr.bf16.mxu0 0
      %5850 = vmatpush1.bf16.msra.mxu0 0
      %5851 = vmatprep.subr.bf16.mxu0 0
      %5852 = vmatpush1.bf16.msra.mxu0 0
      %5853 = vmatprep.mubr.bf16.mxu0 0
      %5854 = vmatmul.mubr.bf16.gmra.mrb[0].mxu0 %v5726
      %v5855 = vpop.f32.mrb[0].mxu0
      %v5856 = vadd.f32 %v5712, %v5855
      %v5857 = vpop.f32.mrb[0].mxu0
      %v5858 = vpop.f32.mrb[0].mxu0
      %v5859 = vadd.f32 %v5712, %v5858
      %v5860 = vpop.f32.mrb[0].mxu0
      %5861 = vmatprep.mubr.bf16.mxu0 0
      %5862 = vmatmul.mubr.bf16.gmra.mrb[0].mxu0 %v5729
      %v5863 = vpop.f32.mrb[0].mxu0
      %v5864 = vadd.f32 %v5712, %v5863
      %v5865 = vpop.f32.mrb[0].mxu0
      %v5866 = vpop.f32.mrb[0].mxu0
      %v5867 = vadd.f32 %v5712, %v5866
      %v5868 = vpop.f32.mrb[0].mxu0
      %5869 = vmatprep.mubr.bf16.mxu0 0
      %5870 = vmatmul.mubr.bf16.gmra.mrb[0].mxu0 %v5732
      %v5871 = vpop.f32.mrb[0].mxu0
      %v5872 = vadd.f32 %v5712, %v5871
      %v5873 = vpop.f32.mrb[0].mxu0
      %v5874 = vpop.f32.mrb[0].mxu0
      %v5875 = vadd.f32 %v5712, %v5874
      %v5876 = vpop.f32.mrb[0].mxu0
      %5877 = vmatprep.mubr.bf16.mxu0 0
      %5878 = vmatmul.mubr.bf16.gmra.mrb[0].mxu0 %v5735
      %v5879 = vpop.f32.mrb[0].mxu0
      %v5880 = vadd.f32 %v5712, %v5879
      %v5881 = vpop.f32.mrb[0].mxu0
      %v5882 = vpop.f32.mrb[0].mxu0
      %v5883 = vadd.f32 %v5712, %v5882
      %v5884 = vpop.f32.mrb[0].mxu0
      %5885 = vmatprep.mubr.bf16.mxu0 0
      %5886 = vmatmul.mubr.bf16.gmra.mrb[0].mxu0 %v5738
      %v5887 = vpop.f32.mrb[0].mxu0
      %v5888 = vadd.f32 %v5712, %v5887
      %v5889 = vpop.f32.mrb[0].mxu0
      %v5890 = vpop.f32.mrb[0].mxu0
      %v5891 = vadd.f32 %v5712, %v5890
      %v5892 = vpop.f32.mrb[0].mxu0
      %5893 = vmatprep.mubr.bf16.mxu0 0
      %5894 = vmatmul.mubr.bf16.gmra.mrb[0].mxu0 %v5741
      %v5895 = vpop.f32.mrb[0].mxu0
      %v5896 = vadd.f32 %v5712, %v5895
      %v5897 = vpop.f32.mrb[0].mxu0
      %v5898 = vpop.f32.mrb[0].mxu0
      %v5899 = vadd.f32 %v5712, %v5898
      %v5900 = vpop.f32.mrb[0].mxu0
      %5901 = vmatprep.mubr.bf16.mxu0 0
      %5902 = vmatmul.mubr.bf16.gmra.mrb[0].mxu0 %v5744
      %v5903 = vpop.f32.mrb[0].mxu0
      %v5904 = vadd.f32 %v5712, %v5903
      %v5905 = vpop.f32.mrb[0].mxu0
      %v5906 = vpop.f32.mrb[0].mxu0
      %v5907 = vadd.f32 %v5712, %v5906
      %v5908 = vpop.f32.mrb[0].mxu0
      %5909 = vmatprep.mubr.bf16.mxu0 0
      %5910 = vmatmul.mubr.bf16.gmra.mrb[0].mxu0 %v5747
      %v5911 = vpop.f32.mrb[0].mxu0
      %v5912 = vadd.f32 %v5712, %v5911
      %v5913 = vpop.f32.mrb[0].mxu0
      %v5914 = vpop.f32.mrb[0].mxu0
      %v5915 = vadd.f32 %v5712, %v5914
      %v5916 = vpop.f32.mrb[0].mxu0
      %5917 = vmatprep.mubr.bf16.mxu0 0
      %5918 = vmatmul.mubr.bf16.gmra.mrb[0].mxu0 %v5750
      %v5919 = vpop.f32.mrb[0].mxu0
      %v5920 = vadd.f32 %v5712, %v5919
      %v5921 = vpop.f32.mrb[0].mxu0
      %v5922 = vpop.f32.mrb[0].mxu0
      %v5923 = vadd.f32 %v5712, %v5922
      %v5924 = vpop.f32.mrb[0].mxu0
      %5925 = vmatprep.mubr.bf16.mxu0 0
      %5926 = vmatmul.mubr.bf16.gmra.mrb[0].mxu0 %v5753
      %v5927 = vpop.f32.mrb[0].mxu0
      %v5928 = vadd.f32 %v5712, %v5927
      %v5929 = vpop.f32.mrb[0].mxu0
      %v5930 = vpop.f32.mrb[0].mxu0
      %v5931 = vadd.f32 %v5712, %v5930
      %v5932 = vpop.f32.mrb[0].mxu0
      %5933 = vmatprep.mubr.bf16.mxu0 0
      %5934 = vmatmul.mubr.bf16.gmra.mrb[0].mxu0 %v5756
      %v5935 = vpop.f32.mrb[0].mxu0
      %v5936 = vadd.f32 %v5712, %v5935
      %v5937 = vpop.f32.mrb[0].mxu0
      %v5938 = vpop.f32.mrb[0].mxu0
      %v5939 = vadd.f32 %v5712, %v5938
      %v5940 = vpop.f32.mrb[0].mxu0
      %5941 = vmatprep.mubr.bf16.mxu0 0
      %5942 = vmatmul.mubr.bf16.gmra.mrb[0].mxu0 %v5759
      %v5943 = vpop.f32.mrb[0].mxu0
      %v5944 = vadd.f32 %v5712, %v5943
      %v5945 = vpop.f32.mrb[0].mxu0
      %v5946 = vpop.f32.mrb[0].mxu0
      %v5947 = vadd.f32 %v5712, %v5946
      %v5948 = vpop.f32.mrb[0].mxu0
      %5949 = vmatprep.mubr.bf16.mxu0 0
      %5950 = vmatmul.mubr.bf16.gmra.mrb[0].mxu0 %v5762
      %v5951 = vpop.f32.mrb[0].mxu0
      %v5952 = vadd.f32 %v5712, %v5951
      %v5953 = vpop.f32.mrb[0].mxu0
      %v5954 = vpop.f32.mrb[0].mxu0
      %v5955 = vadd.f32 %v5712, %v5954
      %v5956 = vpop.f32.mrb[0].mxu0
      %5957 = vmatprep.mubr.bf16.mxu0 0
      %5958 = vmatmul.mubr.bf16.gmra.mrb[0].mxu0 %v5765
      %v5959 = vpop.f32.mrb[0].mxu0
      %v5960 = vadd.f32 %v5712, %v5959
      %v5961 = vpop.f32.mrb[0].mxu0
      %v5962 = vpop.f32.mrb[0].mxu0
      %v5963 = vadd.f32 %v5712, %v5962
      %v5964 = vpop.f32.mrb[0].mxu0
      %5965 = vmatprep.mubr.bf16.mxu0 0
      %5966 = vmatmul.mubr.bf16.gmra.mrb[0].mxu0 %v5768
      %v5967 = vpop.f32.mrb[0].mxu0
      %v5968 = vadd.f32 %v5712, %v5967
      %v5969 = vpop.f32.mrb[0].mxu0
      %v5970 = vpop.f32.mrb[0].mxu0
      %v5971 = vadd.f32 %v5712, %v5970
      %v5972 = vpop.f32.mrb[0].mxu0
      %5973 = vmatprep.mubr.bf16.mxu0 0
      %5974 = vmatmul.mubr.bf16.gmra.mrb[0].mxu0 %v5771
      %v5975 = vpop.f32.mrb[0].mxu0
      %v5976 = vadd.f32 %v5712, %v5975
      %v5977 = vpop.f32.mrb[0].mxu0
      %v5978 = vpop.f32.mrb[0].mxu0
      %v5979 = vadd.f32 %v5712, %v5978
      %v5980 = vpop.f32.mrb[0].mxu0
      %5981 = vmatprep.mubr.bf16.mxu0 0
      %5982 = vmatmul.mubr.bf16.gmra.mrb[0].mxu0 %v5774
      %v5983 = vpop.f32.mrb[0].mxu0
      %v5984 = vadd.f32 %v5712, %v5983
      %v5985 = vpop.f32.mrb[0].mxu0
      %v5986 = vpop.f32.mrb[0].mxu0
      %v5987 = vadd.f32 %v5712, %v5986
      %v5988 = vpop.f32.mrb[0].mxu0
      %5989 = vmatprep.mubr.bf16.mxu0 0
      %5990 = vmatmul.mubr.bf16.gmra.mrb[0].mxu0 %v5777
      %v5991 = vpop.f32.mrb[0].mxu0
      %v5992 = vadd.f32 %v5712, %v5991
      %v5993 = vpop.f32.mrb[0].mxu0
      %v5994 = vpop.f32.mrb[0].mxu0
      %v5995 = vadd.f32 %v5712, %v5994
      %v5996 = vpop.f32.mrb[0].mxu0
      %5997 = vmatprep.mubr.bf16.mxu0 0
      %5998 = vmatmul.mubr.bf16.gmra.mrb[0].mxu0 %v5780
      %v5999 = vpop.f32.mrb[0].mxu0
      %v6000 = vadd.f32 %v5712, %v5999
      %v6001 = vpop.f32.mrb[0].mxu0
      %v6002 = vpop.f32.mrb[0].mxu0
      %v6003 = vadd.f32 %v5712, %v6002
      %v6004 = vpop.f32.mrb[0].mxu0
      %6005 = vmatprep.mubr.bf16.mxu0 0
      %6006 = vmatmul.mubr.bf16.gmra.mrb[0].mxu0 %v5783
      %v6007 = vpop.f32.mrb[0].mxu0
      %v6008 = vadd.f32 %v5712, %v6007
      %v6009 = vpop.f32.mrb[0].mxu0
      %v6010 = vpop.f32.mrb[0].mxu0
      %v6011 = vadd.f32 %v5712, %v6010
      %v6012 = vpop.f32.mrb[0].mxu0
      %6013 = vmatprep.mubr.bf16.mxu0 0
      %6014 = vmatmul.mubr.bf16.gmra.mrb[0].mxu0 %v5786
      %v6015 = vpop.f32.mrb[0].mxu0
      %v6016 = vadd.f32 %v5712, %v6015
      %v6017 = vpop.f32.mrb[0].mxu0
      %v6018 = vpop.f32.mrb[0].mxu0
      %v6019 = vadd.f32 %v5712, %v6018
      %v6020 = vpop.f32.mrb[0].mxu0
      %6021 = vmatprep.mubr.bf16.mxu0 0
      %6022 = vmatmul.mubr.bf16.gmra.mrb[0].mxu0 %v5789
      %v6023 = vpop.f32.mrb[0].mxu0
      %v6024 = vadd.f32 %v5712, %v6023
      %v6025 = vpop.f32.mrb[0].mxu0
      %v6026 = vpop.f32.mrb[0].mxu0
      %v6027 = vadd.f32 %v5712, %v6026
      %v6028 = vpop.f32.mrb[0].mxu0
      %6029 = vmatprep.mubr.bf16.mxu0 0
      %6030 = vmatmul.mubr.bf16.gmra.mrb[0].mxu0 %v5792
      %v6031 = vpop.f32.mrb[0].mxu0
      %v6032 = vadd.f32 %v5712, %v6031
      %v6033 = vpop.f32.mrb[0].mxu0
      %v6034 = vpop.f32.mrb[0].mxu0
      %v6035 = vadd.f32 %v5712, %v6034
      %v6036 = vpop.f32.mrb[0].mxu0
      %6037 = vmatprep.mubr.bf16.mxu0 0
      %6038 = vmatmul.mubr.bf16.gmra.mrb[0].mxu0 %v5795
      %v6039 = vpop.f32.mrb[0].mxu0
      %v6040 = vadd.f32 %v5712, %v6039
      %v6041 = vpop.f32.mrb[0].mxu0
      %v6042 = vpop.f32.mrb[0].mxu0
      %v6043 = vadd.f32 %v5712, %v6042
      %v6044 = vpop.f32.mrb[0].mxu0
      %6045 = vmatprep.mubr.bf16.mxu0 0
      %6046 = vmatmul.mubr.bf16.gmra.mrb[0].mxu0 %v5798
      %v6047 = vpop.f32.mrb[0].mxu0
      %v6048 = vadd.f32 %v5712, %v6047
      %v6049 = vpop.f32.mrb[0].mxu0
      %v6050 = vpop.f32.mrb[0].mxu0
      %v6051 = vadd.f32 %v5712, %v6050
      %v6052 = vpop.f32.mrb[0].mxu0
      %6053 = vmatprep.mubr.bf16.mxu0 0
      %6054 = vmatmul.mubr.bf16.gmra.mrb[0].mxu0 %v5801
      %v6055 = vpop.f32.mrb[0].mxu0
      %v6056 = vadd.f32 %v5712, %v6055
      %v6057 = vpop.f32.mrb[0].mxu0
      %v6058 = vpop.f32.mrb[0].mxu0
      %v6059 = vadd.f32 %v5712, %v6058
      %v6060 = vpop.f32.mrb[0].mxu0
      %6061 = vmatprep.mubr.bf16.mxu0 0
      %6062 = vmatmul.mubr.bf16.gmra.mrb[0].mxu0 %v5804
      %v6063 = vpop.f32.mrb[0].mxu0
      %v6064 = vadd.f32 %v5712, %v6063
      %v6065 = vpop.f32.mrb[0].mxu0
      %v6066 = vpop.f32.mrb[0].mxu0
      %v6067 = vadd.f32 %v5712, %v6066
      %v6068 = vpop.f32.mrb[0].mxu0
      %6069 = vmatprep.mubr.bf16.mxu0 0
      %6070 = vmatmul.mubr.bf16.gmra.mrb[0].mxu0 %v5807
      %v6071 = vpop.f32.mrb[0].mxu0
      %v6072 = vadd.f32 %v5712, %v6071
      %v6073 = vpop.f32.mrb[0].mxu0
      %v6074 = vpop.f32.mrb[0].mxu0
      %v6075 = vadd.f32 %v5712, %v6074
      %v6076 = vpop.f32.mrb[0].mxu0
      %6077 = vmatprep.mubr.bf16.mxu0 0
      %6078 = vmatmul.mubr.bf16.gmra.mrb[0].mxu0 %v5810
      %v6079 = vpop.f32.mrb[0].mxu0
      %v6080 = vadd.f32 %v5712, %v6079
      %v6081 = vpop.f32.mrb[0].mxu0
      %v6082 = vpop.f32.mrb[0].mxu0
      %v6083 = vadd.f32 %v5712, %v6082
      %v6084 = vpop.f32.mrb[0].mxu0
      %6085 = vmatprep.mubr.bf16.mxu0 0
      %6086 = vmatmul.mubr.bf16.gmra.mrb[0].mxu0 %v5813
      %v6087 = vpop.f32.mrb[0].mxu0
      %v6088 = vadd.f32 %v5712, %v6087
      %v6089 = vpop.f32.mrb[0].mxu0
      %v6090 = vpop.f32.mrb[0].mxu0
      %v6091 = vadd.f32 %v5712, %v6090
      %v6092 = vpop.f32.mrb[0].mxu0
      %6093 = vmatprep.mubr.bf16.mxu0 0
      %6094 = vmatmul.mubr.bf16.gmra.mrb[0].mxu0 %v5816
      %v6095 = vpop.f32.mrb[0].mxu0
      %v6096 = vadd.f32 %v5712, %v6095
      %v6097 = vpop.f32.mrb[0].mxu0
      %v6098 = vpop.f32.mrb[0].mxu0
      %v6099 = vadd.f32 %v5712, %v6098
      %v6100 = vpop.f32.mrb[0].mxu0
      %6101 = vmatprep.mubr.bf16.mxu0 0
      %6102 = vmatmul.mubr.bf16.gmra.mrb[0].mxu0 %v5819
      %v6103 = vpop.f32.mrb[0].mxu0
      %v6104 = vadd.f32 %v5712, %v6103
      %v6105 = vpop.f32.mrb[0].mxu0
      %v6106 = vpop.f32.mrb[0].mxu0
      %v6107 = vadd.f32 %v5712, %v6106
      %v6108 = vpop.f32.mrb[0].mxu0
      %6109 = vdwg.mxu0
      %v6110 = vtanh.pop %v5856
      %v6111 = vtanh.pop %v5859
      %v6112 = vtanh.pop %v5864
      %v6113 = vtanh.pop %v5867
      %v6114 = vtanh.pop %v5872
      %v6115 = vtanh.pop %v5875
      %v6116 = vtanh.pop %v5880
      %v6117 = vtanh.pop %v5883
      %v6118 = vtanh.pop %v5888
      %v6119 = vtanh.pop %v5891
      %v6120 = vtanh.pop %v5896
      %v6121 = vtanh.pop %v5899
      %v6122 = vtanh.pop %v5904
      %v6123 = vtanh.pop %v5907
      %v6124 = vtanh.pop %v5912
      %v6125 = vtanh.pop %v5915
      %v6126 = vtanh.pop %v5920
      %v6127 = vtanh.pop %v5923
      %v6128 = vtanh.pop %v5928
      %v6129 = vtanh.pop %v5931
      %v6130 = vtanh.pop %v5936
      %v6131 = vtanh.pop %v5939
      %v6132 = vtanh.pop %v5944
      %v6133 = vtanh.pop %v5947
      %v6134 = vtanh.pop %v5952
      %v6135 = vtanh.pop %v5955
      %v6136 = vtanh.pop %v5960
      %v6137 = vtanh.pop %v5963
      %v6138 = vtanh.pop %v5968
      %v6139 = vtanh.pop %v5971
      %v6140 = vtanh.pop %v5976
      %v6141 = vtanh.pop %v5979
      %v6142 = vtanh.pop %v5984
      %v6143 = vtanh.pop %v5987
      %v6144 = vtanh.pop %v5992
      %v6145 = vtanh.pop %v5995
      %v6146 = vtanh.pop %v6000
      %v6147 = vtanh.pop %v6003
      %v6148 = vtanh.pop %v6008
      %v6149 = vtanh.pop %v6011
      %v6150 = vtanh.pop %v6016
      %v6151 = vtanh.pop %v6019
      %v6152 = vtanh.pop %v6024
      %v6153 = vtanh.pop %v6027
      %v6154 = vtanh.pop %v6032
      %v6155 = vtanh.pop %v6035
      %v6156 = vtanh.pop %v6040
      %v6157 = vtanh.pop %v6043
      %v6158 = vtanh.pop %v6048
      %v6159 = vtanh.pop %v6051
      %v6160 = vtanh.pop %v6056
      %v6161 = vtanh.pop %v6059
      %v6162 = vtanh.pop %v6064
      %v6163 = vtanh.pop %v6067
      %v6164 = vtanh.pop %v6072
      %v6165 = vtanh.pop %v6075
      %v6166 = vtanh.pop %v6080
      %v6167 = vtanh.pop %v6083
      %v6168 = vtanh.pop %v6088
      %v6169 = vtanh.pop %v6091
      %v6170 = vtanh.pop %v6096
      %v6171 = vtanh.pop %v6099
      %v6172 = vtanh.pop %v6104
      %v6173 = vtanh.pop %v6107
      %v6174 = vpack.c.bf16 %v6111, %v6110
      %v6175 = vpack.c.bf16 %v6113, %v6112
      %v6176 = vpack.c.bf16 %v6115, %v6114
      %v6177 = vpack.c.bf16 %v6117, %v6116
      %v6178 = vpack.c.bf16 %v6119, %v6118
      %v6179 = vpack.c.bf16 %v6121, %v6120
      %v6180 = vpack.c.bf16 %v6123, %v6122
      %v6181 = vpack.c.bf16 %v6125, %v6124
      %v6182 = vpack.c.bf16 %v6127, %v6126
      %v6183 = vpack.c.bf16 %v6129, %v6128
      %v6184 = vpack.c.bf16 %v6131, %v6130
      %v6185 = vpack.c.bf16 %v6133, %v6132
      %v6186 = vpack.c.bf16 %v6135, %v6134
      %v6187 = vpack.c.bf16 %v6137, %v6136
      %v6188 = vpack.c.bf16 %v6139, %v6138
      %v6189 = vpack.c.bf16 %v6141, %v6140
      %v6190 = vpack.c.bf16 %v6143, %v6142
      %v6191 = vpack.c.bf16 %v6145, %v6144
      %v6192 = vpack.c.bf16 %v6147, %v6146
      %v6193 = vpack.c.bf16 %v6149, %v6148
      %v6194 = vpack.c.bf16 %v6151, %v6150
      %v6195 = vpack.c.bf16 %v6153, %v6152
      %v6196 = vpack.c.bf16 %v6155, %v6154
      %v6197 = vpack.c.bf16 %v6157, %v6156
      %v6198 = vpack.c.bf16 %v6159, %v6158
      %v6199 = vpack.c.bf16 %v6161, %v6160
      %v6200 = vpack.c.bf16 %v6163, %v6162
      %v6201 = vpack.c.bf16 %v6165, %v6164
      %v6202 = vpack.c.bf16 %v6167, %v6166
      %v6203 = vpack.c.bf16 %v6169, %v6168
      %v6204 = vpack.c.bf16 %v6171, %v6170
      %v6205 = vpack.c.bf16 %v6173, %v6172
      %v6206 = vld [vmem:[%s9] sm:$0xf]
      %v6207 = vld [vmem:[%s9 + $0x4] sm:$0xf]
      %v6208 = vld [vmem:[%s9 + $0x8] sm:$0xf]
      %v6209 = vld [vmem:[%s9 + $0xc] sm:$0xf]
      %v6210 = vld [vmem:[%s9 + $0x10] sm:$0xf]
      %v6211 = vld [vmem:[%s9 + $0x14] sm:$0xf]
      %v6212 = vld [vmem:[%s9 + $0x18] sm:$0xf]
      %v6213 = vld [vmem:[%s9 + $0x1c] sm:$0xf]
      %v6214 = vld [vmem:[%s11 + $0x38] ss:$0 sm:$0xff]
      %v6223 = vunpack.c.l.b16 %v6206
      %v6224 = vunpack.c.l.b16 %v6207
      %v6225 = vunpack.c.l.b16 %v6208
      %v6226 = vunpack.c.l.b16 %v6209
      %v6227 = vunpack.c.l.b16 %v6210
      %v6228 = vunpack.c.l.b16 %v6211
      %v6229 = vunpack.c.l.b16 %v6212
      %v6230 = vunpack.c.l.b16 %v6213
      %v6231 = vpack.c.b16 %v6224, %v6223
      %v6232 = vpack.c.b16 %v6226, %v6225
      %v6233 = vpack.c.b16 %v6228, %v6227
      %v6234 = vpack.c.b16 %v6230, %v6229
      %v6240 = vsel %vm3320, %v6174, 0
      %v6243 = vsel %vm3320, %v6175, 0
      %v6246 = vsel %vm3320, %v6176, 0
      %v6249 = vsel %vm3320, %v6177, 0
      %v6252 = vsel %vm3320, %v6178, 0
      %v6255 = vsel %vm3320, %v6179, 0
      %v6258 = vsel %vm3320, %v6180, 0
      %v6261 = vsel %vm3320, %v6181, 0
      %v6264 = vsel %vm3320, %v6182, 0
      %v6267 = vsel %vm3320, %v6183, 0
      %v6270 = vsel %vm3320, %v6184, 0
      %v6273 = vsel %vm3320, %v6185, 0
      %v6276 = vsel %vm3320, %v6186, 0
      %v6279 = vsel %vm3320, %v6187, 0
      %v6282 = vsel %vm3320, %v6188, 0
      %v6285 = vsel %vm3320, %v6189, 0
      %v6288 = vsel %vm3320, %v6190, 0
      %v6291 = vsel %vm3320, %v6191, 0
      %v6294 = vsel %vm3320, %v6192, 0
      %v6297 = vsel %vm3320, %v6193, 0
      %v6300 = vsel %vm3320, %v6194, 0
      %v6303 = vsel %vm3320, %v6195, 0
      %v6306 = vsel %vm3320, %v6196, 0
      %v6309 = vsel %vm3320, %v6197, 0
      %v6312 = vsel %vm3320, %v6198, 0
      %v6315 = vsel %vm3320, %v6199, 0
      %v6318 = vsel %vm3320, %v6200, 0
      %v6321 = vsel %vm3320, %v6201, 0
      %v6324 = vsel %vm3320, %v6202, 0
      %v6327 = vsel %vm3320, %v6203, 0
      %v6330 = vsel %vm3320, %v6204, 0
      %v6333 = vsel %vm3320, %v6205, 0
      %6335 = vmatprep.subr.bf16.mxu0 0
      %6336 = vmatpush1.bf16.msra.mxu0 %v6231
      %6337 = vmatprep.subr.bf16.mxu0 0
      %6338 = vmatpush1.bf16.msra.mxu0 %v6232
      %6339 = vmatprep.subr.bf16.mxu0 0
      %6340 = vmatpush1.bf16.msra.mxu0 %v6233
      %6341 = vmatprep.subr.bf16.mxu0 0
      %6342 = vmatpush1.bf16.msra.mxu0 %v6234
      %6343 = vmatprep.subr.bf16.mxu0 0
      %6344 = vmatpush1.bf16.msra.mxu0 0
      %6345 = vmatprep.subr.bf16.mxu0 0
      %6346 = vmatpush1.bf16.msra.mxu0 0
      %6347 = vmatprep.subr.bf16.mxu0 0
      %6348 = vmatpush1.bf16.msra.mxu0 0
      %6349 = vmatprep.subr.bf16.mxu0 0
      %6350 = vmatpush1.bf16.msra.mxu0 0
      %6351 = vmatprep.subr.bf16.mxu0 0
      %6352 = vmatpush1.bf16.msra.mxu0 0
      %6353 = vmatprep.subr.bf16.mxu0 0
      %6354 = vmatpush1.bf16.msra.mxu0 0
      %6355 = vmatprep.subr.bf16.mxu0 0
      %6356 = vmatpush1.bf16.msra.mxu0 0
      %6357 = vmatprep.subr.bf16.mxu0 0
      %6358 = vmatpush1.bf16.msra.mxu0 0
      %6359 = vmatprep.subr.bf16.mxu0 0
      %6360 = vmatpush1.bf16.msra.mxu0 0
      %6361 = vmatprep.subr.bf16.mxu0 0
      %6362 = vmatpush1.bf16.msra.mxu0 0
      %6363 = vmatprep.subr.bf16.mxu0 0
      %6364 = vmatpush1.bf16.msra.mxu0 0
      %6365 = vmatprep.subr.bf16.mxu0 0
      %6366 = vmatpush1.bf16.msra.mxu0 0
      %6367 = vmatprep.mubr.bf16.mxu0 0
      %6368 = vmatmul.mubr.bf16.gmra.mrb[0].mxu0 %v6240
      %v6369 = vpop.f32.mrb[0].mxu0
      %v6370 = vadd.f32 %v6214, %v6369
      %v6371 = vpop.f32.mrb[0].mxu0
      %v6372 = vpop.f32.mrb[0].mxu0
      %v6373 = vadd.f32 %v6214, %v6372
      %v6374 = vpop.f32.mrb[0].mxu0
      %6375 = vmatprep.mubr.bf16.mxu0 0
      %6376 = vmatmul.mubr.bf16.gmra.mrb[0].mxu0 %v6243
      %v6377 = vpop.f32.mrb[0].mxu0
      %v6378 = vadd.f32 %v6214, %v6377
      %v6379 = vpop.f32.mrb[0].mxu0
      %v6380 = vpop.f32.mrb[0].mxu0
      %v6381 = vadd.f32 %v6214, %v6380
      %v6382 = vpop.f32.mrb[0].mxu0
      %6383 = vmatprep.mubr.bf16.mxu0 0
      %6384 = vmatmul.mubr.bf16.gmra.mrb[0].mxu0 %v6246
      %v6385 = vpop.f32.mrb[0].mxu0
      %v6386 = vadd.f32 %v6214, %v6385
      %v6387 = vpop.f32.mrb[0].mxu0
      %v6388 = vpop.f32.mrb[0].mxu0
      %v6389 = vadd.f32 %v6214, %v6388
      %v6390 = vpop.f32.mrb[0].mxu0
      %6391 = vmatprep.mubr.bf16.mxu0 0
      %6392 = vmatmul.mubr.bf16.gmra.mrb[0].mxu0 %v6249
      %v6393 = vpop.f32.mrb[0].mxu0
      %v6394 = vadd.f32 %v6214, %v6393
      %v6395 = vpop.f32.mrb[0].mxu0
      %v6396 = vpop.f32.mrb[0].mxu0
      %v6397 = vadd.f32 %v6214, %v6396
      %v6398 = vpop.f32.mrb[0].mxu0
      %6399 = vmatprep.mubr.bf16.mxu0 0
      %6400 = vmatmul.mubr.bf16.gmra.mrb[0].mxu0 %v6252
      %v6401 = vpop.f32.mrb[0].mxu0
      %v6402 = vadd.f32 %v6214, %v6401
      %v6403 = vpop.f32.mrb[0].mxu0
      %v6404 = vpop.f32.mrb[0].mxu0
      %v6405 = vadd.f32 %v6214, %v6404
      %v6406 = vpop.f32.mrb[0].mxu0
      %6407 = vmatprep.mubr.bf16.mxu0 0
      %6408 = vmatmul.mubr.bf16.gmra.mrb[0].mxu0 %v6255
      %v6409 = vpop.f32.mrb[0].mxu0
      %v6410 = vadd.f32 %v6214, %v6409
      %v6411 = vpop.f32.mrb[0].mxu0
      %v6412 = vpop.f32.mrb[0].mxu0
      %v6413 = vadd.f32 %v6214, %v6412
      %v6414 = vpop.f32.mrb[0].mxu0
      %6415 = vmatprep.mubr.bf16.mxu0 0
      %6416 = vmatmul.mubr.bf16.gmra.mrb[0].mxu0 %v6258
      %v6417 = vpop.f32.mrb[0].mxu0
      %v6418 = vadd.f32 %v6214, %v6417
      %v6419 = vpop.f32.mrb[0].mxu0
      %v6420 = vpop.f32.mrb[0].mxu0
      %v6421 = vadd.f32 %v6214, %v6420
      %v6422 = vpop.f32.mrb[0].mxu0
      %6423 = vmatprep.mubr.bf16.mxu0 0
      %6424 = vmatmul.mubr.bf16.gmra.mrb[0].mxu0 %v6261
      %v6425 = vpop.f32.mrb[0].mxu0
      %v6426 = vadd.f32 %v6214, %v6425
      %v6427 = vpop.f32.mrb[0].mxu0
      %v6428 = vpop.f32.mrb[0].mxu0
      %v6429 = vadd.f32 %v6214, %v6428
      %v6430 = vpop.f32.mrb[0].mxu0
      %6431 = vmatprep.mubr.bf16.mxu0 0
      %6432 = vmatmul.mubr.bf16.gmra.mrb[0].mxu0 %v6264
      %v6433 = vpop.f32.mrb[0].mxu0
      %v6434 = vadd.f32 %v6214, %v6433
      %v6435 = vpop.f32.mrb[0].mxu0
      %v6436 = vpop.f32.mrb[0].mxu0
      %v6437 = vadd.f32 %v6214, %v6436
      %v6438 = vpop.f32.mrb[0].mxu0
      %6439 = vmatprep.mubr.bf16.mxu0 0
      %6440 = vmatmul.mubr.bf16.gmra.mrb[0].mxu0 %v6267
      %v6441 = vpop.f32.mrb[0].mxu0
      %v6442 = vadd.f32 %v6214, %v6441
      %v6443 = vpop.f32.mrb[0].mxu0
      %v6444 = vpop.f32.mrb[0].mxu0
      %v6445 = vadd.f32 %v6214, %v6444
      %v6446 = vpop.f32.mrb[0].mxu0
      %6447 = vmatprep.mubr.bf16.mxu0 0
      %6448 = vmatmul.mubr.bf16.gmra.mrb[0].mxu0 %v6270
      %v6449 = vpop.f32.mrb[0].mxu0
      %v6450 = vadd.f32 %v6214, %v6449
      %v6451 = vpop.f32.mrb[0].mxu0
      %v6452 = vpop.f32.mrb[0].mxu0
      %v6453 = vadd.f32 %v6214, %v6452
      %v6454 = vpop.f32.mrb[0].mxu0
      %6455 = vmatprep.mubr.bf16.mxu0 0
      %6456 = vmatmul.mubr.bf16.gmra.mrb[0].mxu0 %v6273
      %v6457 = vpop.f32.mrb[0].mxu0
      %v6458 = vadd.f32 %v6214, %v6457
      %v6459 = vpop.f32.mrb[0].mxu0
      %v6460 = vpop.f32.mrb[0].mxu0
      %v6461 = vadd.f32 %v6214, %v6460
      %v6462 = vpop.f32.mrb[0].mxu0
      %6463 = vmatprep.mubr.bf16.mxu0 0
      %6464 = vmatmul.mubr.bf16.gmra.mrb[0].mxu0 %v6276
      %v6465 = vpop.f32.mrb[0].mxu0
      %v6466 = vadd.f32 %v6214, %v6465
      %v6467 = vpop.f32.mrb[0].mxu0
      %v6468 = vpop.f32.mrb[0].mxu0
      %v6469 = vadd.f32 %v6214, %v6468
      %v6470 = vpop.f32.mrb[0].mxu0
      %6471 = vmatprep.mubr.bf16.mxu0 0
      %6472 = vmatmul.mubr.bf16.gmra.mrb[0].mxu0 %v6279
      %v6473 = vpop.f32.mrb[0].mxu0
      %v6474 = vadd.f32 %v6214, %v6473
      %v6475 = vpop.f32.mrb[0].mxu0
      %v6476 = vpop.f32.mrb[0].mxu0
      %v6477 = vadd.f32 %v6214, %v6476
      %v6478 = vpop.f32.mrb[0].mxu0
      %6479 = vmatprep.mubr.bf16.mxu0 0
      %6480 = vmatmul.mubr.bf16.gmra.mrb[0].mxu0 %v6282
      %v6481 = vpop.f32.mrb[0].mxu0
      %v6482 = vadd.f32 %v6214, %v6481
      %v6483 = vpop.f32.mrb[0].mxu0
      %v6484 = vpop.f32.mrb[0].mxu0
      %v6485 = vadd.f32 %v6214, %v6484
      %v6486 = vpop.f32.mrb[0].mxu0
      %6487 = vmatprep.mubr.bf16.mxu0 0
      %6488 = vmatmul.mubr.bf16.gmra.mrb[0].mxu0 %v6285
      %v6489 = vpop.f32.mrb[0].mxu0
      %v6490 = vadd.f32 %v6214, %v6489
      %v6491 = vpop.f32.mrb[0].mxu0
      %v6492 = vpop.f32.mrb[0].mxu0
      %v6493 = vadd.f32 %v6214, %v6492
      %v6494 = vpop.f32.mrb[0].mxu0
      %6495 = vmatprep.mubr.bf16.mxu0 0
      %6496 = vmatmul.mubr.bf16.gmra.mrb[0].mxu0 %v6288
      %v6497 = vpop.f32.mrb[0].mxu0
      %v6498 = vadd.f32 %v6214, %v6497
      %v6499 = vpop.f32.mrb[0].mxu0
      %v6500 = vpop.f32.mrb[0].mxu0
      %v6501 = vadd.f32 %v6214, %v6500
      %v6502 = vpop.f32.mrb[0].mxu0
      %6503 = vmatprep.mubr.bf16.mxu0 0
      %6504 = vmatmul.mubr.bf16.gmra.mrb[0].mxu0 %v6291
      %v6505 = vpop.f32.mrb[0].mxu0
      %v6506 = vadd.f32 %v6214, %v6505
      %v6507 = vpop.f32.mrb[0].mxu0
      %v6508 = vpop.f32.mrb[0].mxu0
      %v6509 = vadd.f32 %v6214, %v6508
      %v6510 = vpop.f32.mrb[0].mxu0
      %6511 = vmatprep.mubr.bf16.mxu0 0
      %6512 = vmatmul.mubr.bf16.gmra.mrb[0].mxu0 %v6294
      %v6513 = vpop.f32.mrb[0].mxu0
      %v6514 = vadd.f32 %v6214, %v6513
      %v6515 = vpop.f32.mrb[0].mxu0
      %v6516 = vpop.f32.mrb[0].mxu0
      %v6517 = vadd.f32 %v6214, %v6516
      %v6518 = vpop.f32.mrb[0].mxu0
      %6519 = vmatprep.mubr.bf16.mxu0 0
      %6520 = vmatmul.mubr.bf16.gmra.mrb[0].mxu0 %v6297
      %v6521 = vpop.f32.mrb[0].mxu0
      %v6522 = vadd.f32 %v6214, %v6521
      %v6523 = vpop.f32.mrb[0].mxu0
      %v6524 = vpop.f32.mrb[0].mxu0
      %v6525 = vadd.f32 %v6214, %v6524
      %v6526 = vpop.f32.mrb[0].mxu0
      %6527 = vmatprep.mubr.bf16.mxu0 0
      %6528 = vmatmul.mubr.bf16.gmra.mrb[0].mxu0 %v6300
      %v6529 = vpop.f32.mrb[0].mxu0
      %v6530 = vadd.f32 %v6214, %v6529
      %v6531 = vpop.f32.mrb[0].mxu0
      %v6532 = vpop.f32.mrb[0].mxu0
      %v6533 = vadd.f32 %v6214, %v6532
      %v6534 = vpop.f32.mrb[0].mxu0
      %6535 = vmatprep.mubr.bf16.mxu0 0
      %6536 = vmatmul.mubr.bf16.gmra.mrb[0].mxu0 %v6303
      %v6537 = vpop.f32.mrb[0].mxu0
      %v6538 = vadd.f32 %v6214, %v6537
      %v6539 = vpop.f32.mrb[0].mxu0
      %v6540 = vpop.f32.mrb[0].mxu0
      %v6541 = vadd.f32 %v6214, %v6540
      %v6542 = vpop.f32.mrb[0].mxu0
      %6543 = vmatprep.mubr.bf16.mxu0 0
      %6544 = vmatmul.mubr.bf16.gmra.mrb[0].mxu0 %v6306
      %v6545 = vpop.f32.mrb[0].mxu0
      %v6546 = vadd.f32 %v6214, %v6545
      %v6547 = vpop.f32.mrb[0].mxu0
      %v6548 = vpop.f32.mrb[0].mxu0
      %v6549 = vadd.f32 %v6214, %v6548
      %v6550 = vpop.f32.mrb[0].mxu0
      %6551 = vmatprep.mubr.bf16.mxu0 0
      %6552 = vmatmul.mubr.bf16.gmra.mrb[0].mxu0 %v6309
      %v6553 = vpop.f32.mrb[0].mxu0
      %v6554 = vadd.f32 %v6214, %v6553
      %v6555 = vpop.f32.mrb[0].mxu0
      %v6556 = vpop.f32.mrb[0].mxu0
      %v6557 = vadd.f32 %v6214, %v6556
      %v6558 = vpop.f32.mrb[0].mxu0
      %6559 = vmatprep.mubr.bf16.mxu0 0
      %6560 = vmatmul.mubr.bf16.gmra.mrb[0].mxu0 %v6312
      %v6561 = vpop.f32.mrb[0].mxu0
      %v6562 = vadd.f32 %v6214, %v6561
      %v6563 = vpop.f32.mrb[0].mxu0
      %v6564 = vpop.f32.mrb[0].mxu0
      %v6565 = vadd.f32 %v6214, %v6564
      %v6566 = vpop.f32.mrb[0].mxu0
      %6567 = vmatprep.mubr.bf16.mxu0 0
      %6568 = vmatmul.mubr.bf16.gmra.mrb[0].mxu0 %v6315
      %v6569 = vpop.f32.mrb[0].mxu0
      %v6570 = vadd.f32 %v6214, %v6569
      %v6571 = vpop.f32.mrb[0].mxu0
      %v6572 = vpop.f32.mrb[0].mxu0
      %v6573 = vadd.f32 %v6214, %v6572
      %v6574 = vpop.f32.mrb[0].mxu0
      %6575 = vmatprep.mubr.bf16.mxu0 0
      %6576 = vmatmul.mubr.bf16.gmra.mrb[0].mxu0 %v6318
      %v6577 = vpop.f32.mrb[0].mxu0
      %v6578 = vadd.f32 %v6214, %v6577
      %v6579 = vpop.f32.mrb[0].mxu0
      %v6580 = vpop.f32.mrb[0].mxu0
      %v6581 = vadd.f32 %v6214, %v6580
      %v6582 = vpop.f32.mrb[0].mxu0
      %6583 = vmatprep.mubr.bf16.mxu0 0
      %6584 = vmatmul.mubr.bf16.gmra.mrb[0].mxu0 %v6321
      %v6585 = vpop.f32.mrb[0].mxu0
      %v6586 = vadd.f32 %v6214, %v6585
      %v6587 = vpop.f32.mrb[0].mxu0
      %v6588 = vpop.f32.mrb[0].mxu0
      %v6589 = vadd.f32 %v6214, %v6588
      %v6590 = vpop.f32.mrb[0].mxu0
      %6591 = vmatprep.mubr.bf16.mxu0 0
      %6592 = vmatmul.mubr.bf16.gmra.mrb[0].mxu0 %v6324
      %v6593 = vpop.f32.mrb[0].mxu0
      %v6594 = vadd.f32 %v6214, %v6593
      %v6595 = vpop.f32.mrb[0].mxu0
      %v6596 = vpop.f32.mrb[0].mxu0
      %v6597 = vadd.f32 %v6214, %v6596
      %v6598 = vpop.f32.mrb[0].mxu0
      %6599 = vmatprep.mubr.bf16.mxu0 0
      %6600 = vmatmul.mubr.bf16.gmra.mrb[0].mxu0 %v6327
      %v6601 = vpop.f32.mrb[0].mxu0
      %v6602 = vadd.f32 %v6214, %v6601
      %v6603 = vpop.f32.mrb[0].mxu0
      %v6604 = vpop.f32.mrb[0].mxu0
      %v6605 = vadd.f32 %v6214, %v6604
      %v6606 = vpop.f32.mrb[0].mxu0
      %6607 = vmatprep.mubr.bf16.mxu0 0
      %6608 = vmatmul.mubr.bf16.gmra.mrb[0].mxu0 %v6330
      %v6609 = vpop.f32.mrb[0].mxu0
      %v6610 = vadd.f32 %v6214, %v6609
      %v6611 = vpop.f32.mrb[0].mxu0
      %v6612 = vpop.f32.mrb[0].mxu0
      %v6613 = vadd.f32 %v6214, %v6612
      %v6614 = vpop.f32.mrb[0].mxu0
      %6615 = vmatprep.mubr.bf16.mxu0 0
      %6616 = vmatmul.mubr.bf16.gmra.mrb[0].mxu0 %v6333
      %v6617 = vpop.f32.mrb[0].mxu0
      %v6618 = vadd.f32 %v6214, %v6617
      %v6619 = vpop.f32.mrb[0].mxu0
      %v6620 = vpop.f32.mrb[0].mxu0
      %v6621 = vadd.f32 %v6214, %v6620
      %v6622 = vpop.f32.mrb[0].mxu0
      %6623 = vdwg.mxu0
      %v6624 = vtanh.pop %v6370
      %v6625 = vtanh.pop %v6373
      %v6626 = vtanh.pop %v6378
      %v6627 = vtanh.pop %v6381
      %v6628 = vtanh.pop %v6386
      %v6629 = vtanh.pop %v6389
      %v6630 = vtanh.pop %v6394
      %v6631 = vtanh.pop %v6397
      %v6632 = vtanh.pop %v6402
      %v6633 = vtanh.pop %v6405
      %v6634 = vtanh.pop %v6410
      %v6635 = vtanh.pop %v6413
      %v6636 = vtanh.pop %v6418
      %v6637 = vtanh.pop %v6421
      %v6638 = vtanh.pop %v6426
      %v6639 = vtanh.pop %v6429
      %v6640 = vtanh.pop %v6434
      %v6641 = vtanh.pop %v6437
      %v6642 = vtanh.pop %v6442
      %v6643 = vtanh.pop %v6445
      %v6644 = vtanh.pop %v6450
      %v6645 = vtanh.pop %v6453
      %v6646 = vtanh.pop %v6458
      %v6647 = vtanh.pop %v6461
      %v6648 = vtanh.pop %v6466
      %v6649 = vtanh.pop %v6469
      %v6650 = vtanh.pop %v6474
      %v6651 = vtanh.pop %v6477
      %v6652 = vtanh.pop %v6482
      %v6653 = vtanh.pop %v6485
      %v6654 = vtanh.pop %v6490
      %v6655 = vtanh.pop %v6493
      %v6656 = vtanh.pop %v6498
      %v6657 = vtanh.pop %v6501
      %v6658 = vtanh.pop %v6506
      %v6659 = vtanh.pop %v6509
      %v6660 = vtanh.pop %v6514
      %v6661 = vtanh.pop %v6517
      %v6662 = vtanh.pop %v6522
      %v6663 = vtanh.pop %v6525
      %v6664 = vtanh.pop %v6530
      %v6665 = vtanh.pop %v6533
      %v6666 = vtanh.pop %v6538
      %v6667 = vtanh.pop %v6541
      %v6668 = vtanh.pop %v6546
      %v6669 = vtanh.pop %v6549
      %v6670 = vtanh.pop %v6554
      %v6671 = vtanh.pop %v6557
      %v6672 = vtanh.pop %v6562
      %v6673 = vtanh.pop %v6565
      %v6674 = vtanh.pop %v6570
      %v6675 = vtanh.pop %v6573
      %v6676 = vtanh.pop %v6578
      %v6677 = vtanh.pop %v6581
      %v6678 = vtanh.pop %v6586
      %v6679 = vtanh.pop %v6589
      %v6680 = vtanh.pop %v6594
      %v6681 = vtanh.pop %v6597
      %v6682 = vtanh.pop %v6602
      %v6683 = vtanh.pop %v6605
      %v6684 = vtanh.pop %v6610
      %v6685 = vtanh.pop %v6613
      %v6686 = vtanh.pop %v6618
      %v6687 = vtanh.pop %v6621
      %v6688 = vpack.c.bf16 %v6625, %v6624
      %v6689 = vpack.c.bf16 %v6627, %v6626
      %v6690 = vpack.c.bf16 %v6629, %v6628
      %v6691 = vpack.c.bf16 %v6631, %v6630
      %v6692 = vpack.c.bf16 %v6633, %v6632
      %v6693 = vpack.c.bf16 %v6635, %v6634
      %v6694 = vpack.c.bf16 %v6637, %v6636
      %v6695 = vpack.c.bf16 %v6639, %v6638
      %v6696 = vpack.c.bf16 %v6641, %v6640
      %v6697 = vpack.c.bf16 %v6643, %v6642
      %v6698 = vpack.c.bf16 %v6645, %v6644
      %v6699 = vpack.c.bf16 %v6647, %v6646
      %v6700 = vpack.c.bf16 %v6649, %v6648
      %v6701 = vpack.c.bf16 %v6651, %v6650
      %v6702 = vpack.c.bf16 %v6653, %v6652
      %v6703 = vpack.c.bf16 %v6655, %v6654
      %v6704 = vpack.c.bf16 %v6657, %v6656
      %v6705 = vpack.c.bf16 %v6659, %v6658
      %v6706 = vpack.c.bf16 %v6661, %v6660
      %v6707 = vpack.c.bf16 %v6663, %v6662
      %v6708 = vpack.c.bf16 %v6665, %v6664
      %v6709 = vpack.c.bf16 %v6667, %v6666
      %v6710 = vpack.c.bf16 %v6669, %v6668
      %v6711 = vpack.c.bf16 %v6671, %v6670
      %v6712 = vpack.c.bf16 %v6673, %v6672
      %v6713 = vpack.c.bf16 %v6675, %v6674
      %v6714 = vpack.c.bf16 %v6677, %v6676
      %v6715 = vpack.c.bf16 %v6679, %v6678
      %v6716 = vpack.c.bf16 %v6681, %v6680
      %v6717 = vpack.c.bf16 %v6683, %v6682
      %v6718 = vpack.c.bf16 %v6685, %v6684
      %v6719 = vpack.c.bf16 %v6687, %v6686
      %v6720 = vld [vmem:[%s10] sm:$0xff]
      %v6721 = vld [vmem:[%s10 + $0x8] sm:$0xff]
      %v6722 = vld [vmem:[%s10 + $0x10] sm:$0xff]
      %v6723 = vld [vmem:[%s10 + $0x18] sm:$0xf]
      %v6724 = vld [vmem:[%s10 + $0x1c] sm:$0xff]
      %v6725 = vld [vmem:[%s10 + $0x24] sm:$0xff]
      %v6726 = vld [vmem:[%s10 + $0x2c] sm:$0xff]
      %v6727 = vld [vmem:[%s10 + $0x34] sm:$0xf]
      %v6728 = vld [vmem:[%s10 + $0x38] sm:$0xff]
      %v6729 = vld [vmem:[%s10 + $0x40] sm:$0xff]
      %v6730 = vld [vmem:[%s10 + $0x48] sm:$0xff]
      %v6731 = vld [vmem:[%s10 + $0x50] sm:$0xf]
      %v6732 = vld [vmem:[%s10 + $0x54] sm:$0xff]
      %v6733 = vld [vmem:[%s10 + $0x5c] sm:$0xff]
      %v6734 = vld [vmem:[%s10 + $0x64] sm:$0xff]
      %v6735 = vld [vmem:[%s10 + $0x6c] sm:$0xf]
      %v6736 = vld [vmem:[%s10 + $0x70] sm:$0xff]
      %v6737 = vld [vmem:[%s10 + $0x78] sm:$0xff]
      %v6738 = vld [vmem:[%s10 + $0x80] sm:$0xff]
      %v6739 = vld [vmem:[%s10 + $0x88] sm:$0xf]
      %v6740 = vld [vmem:[%s10 + $0x8c] sm:$0xff]
      %v6741 = vld [vmem:[%s10 + $0x94] sm:$0xff]
      %v6742 = vld [vmem:[%s10 + $0x9c] sm:$0xff]
      %v6743 = vld [vmem:[%s10 + $0xa4] sm:$0xf]
      %v6744 = vld [vmem:[%s10 + $0xa8] sm:$0xff]
      %v6745 = vld [vmem:[%s10 + $0xb0] sm:$0xff]
      %v6746 = vld [vmem:[%s10 + $0xb8] sm:$0xff]
      %v6747 = vld [vmem:[%s10 + $0xc0] sm:$0xf]
      %v6748 = vld [vmem:[%s10 + $0xc4] sm:$0xff]
      %v6749 = vld [vmem:[%s10 + $0xcc] sm:$0xff]
      %v6750 = vld [vmem:[%s10 + $0xd4] sm:$0xff]
      %v6751 = vld [vmem:[%s10 + $0xdc] sm:$0xf]
      %v6752 = vld [vmem:[%s10 + $0xe0] sm:$0xff]
      %v6753 = vld [vmem:[%s10 + $0xe8] sm:$0xff]
      %v6754 = vld [vmem:[%s10 + $0xf0] sm:$0xff]
      %v6755 = vld [vmem:[%s10 + $0xf8] sm:$0xf]
      %v6756 = vld [vmem:[%s10 + $0xfc] sm:$0xff]
      %v6757 = vld [vmem:[%s10 + $0x104] sm:$0xff]
      %v6758 = vld [vmem:[%s10 + $0x10c] sm:$0xff]
      %v6759 = vld [vmem:[%s10 + $0x114] sm:$0xf]
      %v6760 = vld [vmem:[%s10 + $0x118] sm:$0xff]
      %v6761 = vld [vmem:[%s10 + $0x120] sm:$0xff]
      %v6762 = vld [vmem:[%s10 + $0x128] sm:$0xff]
      %v6763 = vld [vmem:[%s10 + $0x130] sm:$0xf]
      %v6764 = vld [vmem:[%s10 + $0x134] sm:$0xff]
      %v6765 = vld [vmem:[%s10 + $0x13c] sm:$0xff]
      %v6766 = vld [vmem:[%s10 + $0x144] sm:$0xff]
      %v6767 = vld [vmem:[%s10 + $0x14c] sm:$0xf]
      %v6768 = vld [vmem:[%s10 + $0x150] sm:$0xff]
      %v6769 = vld [vmem:[%s10 + $0x158] sm:$0xff]
      %v6770 = vld [vmem:[%s10 + $0x160] sm:$0xff]
      %v6771 = vld [vmem:[%s10 + $0x168] sm:$0xf]
      %v6772 = vld [vmem:[%s10 + $0x16c] sm:$0xff]
      %v6773 = vld [vmem:[%s10 + $0x174] sm:$0xff]
      %v6774 = vld [vmem:[%s10 + $0x17c] sm:$0xff]
      %v6775 = vld [vmem:[%s10 + $0x184] sm:$0xf]
      %v6776 = vld [vmem:[%s10 + $0x188] sm:$0xff]
      %v6777 = vld [vmem:[%s10 + $0x190] sm:$0xff]
      %v6778 = vld [vmem:[%s10 + $0x198] sm:$0xff]
      %v6779 = vld [vmem:[%s10 + $0x1a0] sm:$0xf]
      %v6780 = vld [vmem:[%s10 + $0x1a4] sm:$0xff]
      %v6781 = vld [vmem:[%s10 + $0x1ac] sm:$0xff]
      %v6782 = vld [vmem:[%s10 + $0x1b4] sm:$0xff]
      %v6783 = vld [vmem:[%s10 + $0x1bc] sm:$0xf]
      %s6784 = scalar_lea.vmem %s11, 57
      %v6785 = vld [vmem:[%s6784] ss:$8 sm:$0xf]
      %v6786 = vld [vmem:[%s6784] ss:$8 sm:$0x70]
      %v6787 = vor.u32 %v6785, %v6786
      %v6789 = vlaneseq
      %v6790 = vshrl.u32 %v6789, 7
      %v6791 = vsub.s32 0, %v6790
      %v6792 = vrot.slane %v6787, %v6791
      %v6793 = vlaneseq
      %v6794 = vshrl.u32 %v6793, 7
      %v6795 = vsub.s32 1, %v6794
      %v6796 = vrot.slane %v6787, %v6795
      %v6797 = vlaneseq
      %v6798 = vshrl.u32 %v6797, 7
      %v6799 = vsub.s32 2, %v6798
      %v6800 = vrot.slane %v6787, %v6799
      %v6801 = vlaneseq
      %v6802 = vshrl.u32 %v6801, 7
      %v6803 = vsub.s32 3, %v6802
      %v6804 = vrot.slane %v6787, %v6803
      %v6805 = vlaneseq
      %v6806 = vshrl.u32 %v6805, 7
      %v6807 = vsub.s32 4, %v6806
      %v6808 = vrot.slane %v6787, %v6807
      %v6809 = vlaneseq
      %v6810 = vshrl.u32 %v6809, 7
      %v6811 = vsub.s32 5, %v6810
      %v6812 = vrot.slane %v6787, %v6811
      %v6813 = vlaneseq
      %v6814 = vshrl.u32 %v6813, 7
      %v6815 = vsub.s32 6, %v6814
      %v6816 = vrot.slane %v6787, %v6815
      %v6888 = vunpack.c.l.b16 %v6720
      %v6889 = vunpack.c.h.b16 %v6720
      %v6890 = vunpack.c.l.b16 %v6721
      %v6891 = vunpack.c.h.b16 %v6721
      %v6892 = vunpack.c.l.b16 %v6722
      %v6893 = vunpack.c.h.b16 %v6722
      %v6894 = vunpack.c.l.b16 %v6723
      %v6895 = vunpack.c.l.b16 %v6724
      %v6896 = vunpack.c.h.b16 %v6724
      %v6897 = vunpack.c.l.b16 %v6725
      %v6898 = vunpack.c.h.b16 %v6725
      %v6899 = vunpack.c.l.b16 %v6726
      %v6900 = vunpack.c.h.b16 %v6726
      %v6901 = vunpack.c.l.b16 %v6727
      %v6902 = vunpack.c.l.b16 %v6728
      %v6903 = vunpack.c.h.b16 %v6728
      %v6904 = vunpack.c.l.b16 %v6729
      %v6905 = vunpack.c.h.b16 %v6729
      %v6906 = vunpack.c.l.b16 %v6730
      %v6907 = vunpack.c.h.b16 %v6730
      %v6908 = vunpack.c.l.b16 %v6731
      %v6909 = vunpack.c.l.b16 %v6732
      %v6910 = vunpack.c.h.b16 %v6732
      %v6911 = vunpack.c.l.b16 %v6733
      %v6912 = vunpack.c.h.b16 %v6733
      %v6913 = vunpack.c.l.b16 %v6734
      %v6914 = vunpack.c.h.b16 %v6734
      %v6915 = vunpack.c.l.b16 %v6735
      %v6916 = vunpack.c.l.b16 %v6736
      %v6917 = vunpack.c.h.b16 %v6736
      %v6918 = vunpack.c.l.b16 %v6737
      %v6919 = vunpack.c.h.b16 %v6737
      %v6920 = vunpack.c.l.b16 %v6738
      %v6921 = vunpack.c.h.b16 %v6738
      %v6922 = vunpack.c.l.b16 %v6739
      %v6923 = vunpack.c.l.b16 %v6740
      %v6924 = vunpack.c.h.b16 %v6740
      %v6925 = vunpack.c.l.b16 %v6741
      %v6926 = vunpack.c.h.b16 %v6741
      %v6927 = vunpack.c.l.b16 %v6742
      %v6928 = vunpack.c.h.b16 %v6742
      %v6929 = vunpack.c.l.b16 %v6743
      %v6930 = vunpack.c.l.b16 %v6744
      %v6931 = vunpack.c.h.b16 %v6744
      %v6932 = vunpack.c.l.b16 %v6745
      %v6933 = vunpack.c.h.b16 %v6745
      %v6934 = vunpack.c.l.b16 %v6746
      %v6935 = vunpack.c.h.b16 %v6746
      %v6936 = vunpack.c.l.b16 %v6747
      %v6937 = vunpack.c.l.b16 %v6748
      %v6938 = vunpack.c.h.b16 %v6748
      %v6939 = vunpack.c.l.b16 %v6749
      %v6940 = vunpack.c.h.b16 %v6749
      %v6941 = vunpack.c.l.b16 %v6750
      %v6942 = vunpack.c.h.b16 %v6750
      %v6943 = vunpack.c.l.b16 %v6751
      %v6944 = vunpack.c.l.b16 %v6752
      %v6945 = vunpack.c.h.b16 %v6752
      %v6946 = vunpack.c.l.b16 %v6753
      %v6947 = vunpack.c.h.b16 %v6753
      %v6948 = vunpack.c.l.b16 %v6754
      %v6949 = vunpack.c.h.b16 %v6754
      %v6950 = vunpack.c.l.b16 %v6755
      %v6951 = vunpack.c.l.b16 %v6756
      %v6952 = vunpack.c.h.b16 %v6756
      %v6953 = vunpack.c.l.b16 %v6757
      %v6954 = vunpack.c.h.b16 %v6757
      %v6955 = vunpack.c.l.b16 %v6758
      %v6956 = vunpack.c.h.b16 %v6758
      %v6957 = vunpack.c.l.b16 %v6759
      %v6958 = vunpack.c.l.b16 %v6760
      %v6959 = vunpack.c.h.b16 %v6760
      %v6960 = vunpack.c.l.b16 %v6761
      %v6961 = vunpack.c.h.b16 %v6761
      %v6962 = vunpack.c.l.b16 %v6762
      %v6963 = vunpack.c.h.b16 %v6762
      %v6964 = vunpack.c.l.b16 %v6763
      %v6965 = vunpack.c.l.b16 %v6764
      %v6966 = vunpack.c.h.b16 %v6764
      %v6967 = vunpack.c.l.b16 %v6765
      %v6968 = vunpack.c.h.b16 %v6765
      %v6969 = vunpack.c.l.b16 %v6766
      %v6970 = vunpack.c.h.b16 %v6766
      %v6971 = vunpack.c.l.b16 %v6767
      %v6972 = vunpack.c.l.b16 %v6768
      %v6973 = vunpack.c.h.b16 %v6768
      %v6974 = vunpack.c.l.b16 %v6769
      %v6975 = vunpack.c.h.b16 %v6769
      %v6976 = vunpack.c.l.b16 %v6770
      %v6977 = vunpack.c.h.b16 %v6770
      %v6978 = vunpack.c.l.b16 %v6771
      %v6979 = vunpack.c.l.b16 %v6772
      %v6980 = vunpack.c.h.b16 %v6772
      %v6981 = vunpack.c.l.b16 %v6773
      %v6982 = vunpack.c.h.b16 %v6773
      %v6983 = vunpack.c.l.b16 %v6774
      %v6984 = vunpack.c.h.b16 %v6774
      %v6985 = vunpack.c.l.b16 %v6775
      %v6986 = vunpack.c.l.b16 %v6776
      %v6987 = vunpack.c.h.b16 %v6776
      %v6988 = vunpack.c.l.b16 %v6777
      %v6989 = vunpack.c.h.b16 %v6777
      %v6990 = vunpack.c.l.b16 %v6778
      %v6991 = vunpack.c.h.b16 %v6778
      %v6992 = vunpack.c.l.b16 %v6779
      %v6993 = vunpack.c.l.b16 %v6780
      %v6994 = vunpack.c.h.b16 %v6780
      %v6995 = vunpack.c.l.b16 %v6781
      %v6996 = vunpack.c.h.b16 %v6781
      %v6997 = vunpack.c.l.b16 %v6782
      %v6998 = vunpack.c.h.b16 %v6782
      %v6999 = vunpack.c.l.b16 %v6783
      %v7000 = vpack.c.b16 %v6895, %v6888
      %v7001 = vpack.c.b16 %v6896, %v6889
      %v7002 = vpack.c.b16 %v6897, %v6890
      %v7003 = vpack.c.b16 %v6898, %v6891
      %v7004 = vpack.c.b16 %v6899, %v6892
      %v7005 = vpack.c.b16 %v6900, %v6893
      %v7006 = vpack.c.b16 %v6901, %v6894
      %v7007 = vpack.c.b16 %v6909, %v6902
      %v7008 = vpack.c.b16 %v6910, %v6903
      %v7009 = vpack.c.b16 %v6911, %v6904
      %v7010 = vpack.c.b16 %v6912, %v6905
      %v7011 = vpack.c.b16 %v6913, %v6906
      %v7012 = vpack.c.b16 %v6914, %v6907
      %v7013 = vpack.c.b16 %v6915, %v6908
      %v7014 = vpack.c.b16 %v6923, %v6916
      %v7015 = vpack.c.b16 %v6924, %v6917
      %v7016 = vpack.c.b16 %v6925, %v6918
      %v7017 = vpack.c.b16 %v6926, %v6919
      %v7018 = vpack.c.b16 %v6927, %v6920
      %v7019 = vpack.c.b16 %v6928, %v6921
      %v7020 = vpack.c.b16 %v6929, %v6922
      %v7021 = vpack.c.b16 %v6937, %v6930
      %v7022 = vpack.c.b16 %v6938, %v6931
      %v7023 = vpack.c.b16 %v6939, %v6932
      %v7024 = vpack.c.b16 %v6940, %v6933
      %v7025 = vpack.c.b16 %v6941, %v6934
      %v7026 = vpack.c.b16 %v6942, %v6935
      %v7027 = vpack.c.b16 %v6943, %v6936
      %v7028 = vpack.c.b16 %v6951, %v6944
      %v7029 = vpack.c.b16 %v6952, %v6945
      %v7030 = vpack.c.b16 %v6953, %v6946
      %v7031 = vpack.c.b16 %v6954, %v6947
      %v7032 = vpack.c.b16 %v6955, %v6948
      %v7033 = vpack.c.b16 %v6956, %v6949
      %v7034 = vpack.c.b16 %v6957, %v6950
      %v7035 = vpack.c.b16 %v6965, %v6958
      %v7036 = vpack.c.b16 %v6966, %v6959
      %v7037 = vpack.c.b16 %v6967, %v6960
      %v7038 = vpack.c.b16 %v6968, %v6961
      %v7039 = vpack.c.b16 %v6969, %v6962
      %v7040 = vpack.c.b16 %v6970, %v6963
      %v7041 = vpack.c.b16 %v6971, %v6964
      %v7042 = vpack.c.b16 %v6979, %v6972
      %v7043 = vpack.c.b16 %v6980, %v6973
      %v7044 = vpack.c.b16 %v6981, %v6974
      %v7045 = vpack.c.b16 %v6982, %v6975
      %v7046 = vpack.c.b16 %v6983, %v6976
      %v7047 = vpack.c.b16 %v6984, %v6977
      %v7048 = vpack.c.b16 %v6985, %v6978
      %v7049 = vpack.c.b16 %v6993, %v6986
      %v7050 = vpack.c.b16 %v6994, %v6987
      %v7051 = vpack.c.b16 %v6995, %v6988
      %v7052 = vpack.c.b16 %v6996, %v6989
      %v7053 = vpack.c.b16 %v6997, %v6990
      %v7054 = vpack.c.b16 %v6998, %v6991
      %v7055 = vpack.c.b16 %v6999, %v6992
      %7112 = vmatprep.subr.bf16.mxu0 %v7001
      %7113 = vmatpush1.bf16.msra.mxu0 %v7000
      %7114 = vmatprep.subr.bf16.mxu0 %v7008
      %7115 = vmatpush1.bf16.msra.mxu0 %v7007
      %7116 = vmatprep.subr.bf16.mxu0 %v7015
      %7117 = vmatpush1.bf16.msra.mxu0 %v7014
      %7118 = vmatprep.subr.bf16.mxu0 %v7022
      %7119 = vmatpush1.bf16.msra.mxu0 %v7021
      %7120 = vmatprep.subr.bf16.mxu0 %v7029
      %7121 = vmatpush1.bf16.msra.mxu0 %v7028
      %7122 = vmatprep.subr.bf16.mxu0 %v7036
      %7123 = vmatpush1.bf16.msra.mxu0 %v7035
      %7124 = vmatprep.subr.bf16.mxu0 %v7043
      %7125 = vmatpush1.bf16.msra.mxu0 %v7042
      %7126 = vmatprep.subr.bf16.mxu0 %v7050
      %7127 = vmatpush1.bf16.msra.mxu0 %v7049
      %7128 = vmatprep.subr.bf16.mxu0 0
      %7129 = vmatpush1.bf16.msra.mxu0 0
      %7130 = vmatprep.subr.bf16.mxu0 0
      %7131 = vmatpush1.bf16.msra.mxu0 0
      %7132 = vmatprep.subr.bf16.mxu0 0
      %7133 = vmatpush1.bf16.msra.mxu0 0
      %7134 = vmatprep.subr.bf16.mxu0 0
      %7135 = vmatpush1.bf16.msra.mxu0 0
      %7136 = vmatprep.subr.bf16.mxu0 0
      %7137 = vmatpush1.bf16.msra.mxu0 0
      %7138 = vmatprep.subr.bf16.mxu0 0
      %7139 = vmatpush1.bf16.msra.mxu0 0
      %7140 = vmatprep.subr.bf16.mxu0 0
      %7141 = vmatpush1.bf16.msra.mxu0 0
      %7142 = vmatprep.subr.bf16.mxu0 0
      %7143 = vmatpush1.bf16.msra.mxu0 0
      %7144 = vmatprep.mubr.bf16.mxu0 0
      %7145 = vmatmul.mubr.bf16.gmra.mrb[0].mxu0 %v6688
      %v7146 = vpop.f32.mrb[0].mxu0
      %v7147 = vadd.f32 %v6792, %v7146
      %v7148 = vpop.f32.mrb[0].mxu0
      %v7149 = vadd.f32 %v6796, %v7148
      %v7150 = vpop.f32.mrb[0].mxu0
      %v7151 = vadd.f32 %v6792, %v7150
      %v7152 = vpop.f32.mrb[0].mxu0
      %v7153 = vadd.f32 %v6796, %v7152
      %7154 = vmatprep.mubr.bf16.mxu0 0
      %7155 = vmatmul.mubr.bf16.gmra.mrb[0].mxu0 %v6689
      %v7156 = vpop.f32.mrb[0].mxu0
      %v7157 = vadd.f32 %v6792, %v7156
      %v7158 = vpop.f32.mrb[0].mxu0
      %v7159 = vadd.f32 %v6796, %v7158
      %v7160 = vpop.f32.mrb[0].mxu0
      %v7161 = vadd.f32 %v6792, %v7160
      %v7162 = vpop.f32.mrb[0].mxu0
      %v7163 = vadd.f32 %v6796, %v7162
      %7164 = vmatprep.mubr.bf16.mxu0 0
      %7165 = vmatmul.mubr.bf16.gmra.mrb[0].mxu0 %v6690
      %v7166 = vpop.f32.mrb[0].mxu0
      %v7167 = vadd.f32 %v6792, %v7166
      %v7168 = vpop.f32.mrb[0].mxu0
      %v7169 = vadd.f32 %v6796, %v7168
      %v7170 = vpop.f32.mrb[0].mxu0
      %v7171 = vadd.f32 %v6792, %v7170
      %v7172 = vpop.f32.mrb[0].mxu0
      %v7173 = vadd.f32 %v6796, %v7172
      %7174 = vmatprep.mubr.bf16.mxu0 0
      %7175 = vmatmul.mubr.bf16.gmra.mrb[0].mxu0 %v6691
      %v7176 = vpop.f32.mrb[0].mxu0
      %v7177 = vadd.f32 %v6792, %v7176
      %v7178 = vpop.f32.mrb[0].mxu0
      %v7179 = vadd.f32 %v6796, %v7178
      %v7180 = vpop.f32.mrb[0].mxu0
      %v7181 = vadd.f32 %v6792, %v7180
      %v7182 = vpop.f32.mrb[0].mxu0
      %v7183 = vadd.f32 %v6796, %v7182
      %7184 = vmatprep.mubr.bf16.mxu0 0
      %7185 = vmatmul.mubr.bf16.gmra.mrb[0].mxu0 %v6692
      %v7186 = vpop.f32.mrb[0].mxu0
      %v7187 = vadd.f32 %v6792, %v7186
      %v7188 = vpop.f32.mrb[0].mxu0
      %v7189 = vadd.f32 %v6796, %v7188
      %v7190 = vpop.f32.mrb[0].mxu0
      %v7191 = vadd.f32 %v6792, %v7190
      %v7192 = vpop.f32.mrb[0].mxu0
      %v7193 = vadd.f32 %v6796, %v7192
      %7194 = vmatprep.mubr.bf16.mxu0 0
      %7195 = vmatmul.mubr.bf16.gmra.mrb[0].mxu0 %v6693
      %v7196 = vpop.f32.mrb[0].mxu0
      %v7197 = vadd.f32 %v6792, %v7196
      %v7198 = vpop.f32.mrb[0].mxu0
      %v7199 = vadd.f32 %v6796, %v7198
      %v7200 = vpop.f32.mrb[0].mxu0
      %v7201 = vadd.f32 %v6792, %v7200
      %v7202 = vpop.f32.mrb[0].mxu0
      %v7203 = vadd.f32 %v6796, %v7202
      %7204 = vmatprep.mubr.bf16.mxu0 0
      %7205 = vmatmul.mubr.bf16.gmra.mrb[0].mxu0 %v6694
      %v7206 = vpop.f32.mrb[0].mxu0
      %v7207 = vadd.f32 %v6792, %v7206
      %v7208 = vpop.f32.mrb[0].mxu0
      %v7209 = vadd.f32 %v6796, %v7208
      %v7210 = vpop.f32.mrb[0].mxu0
      %v7211 = vadd.f32 %v6792, %v7210
      %v7212 = vpop.f32.mrb[0].mxu0
      %v7213 = vadd.f32 %v6796, %v7212
      %7214 = vmatprep.mubr.bf16.mxu0 0
      %7215 = vmatmul.mubr.bf16.gmra.mrb[0].mxu0 %v6695
      %v7216 = vpop.f32.mrb[0].mxu0
      %v7217 = vadd.f32 %v6792, %v7216
      %v7218 = vpop.f32.mrb[0].mxu0
      %v7219 = vadd.f32 %v6796, %v7218
      %v7220 = vpop.f32.mrb[0].mxu0
      %v7221 = vadd.f32 %v6792, %v7220
      %v7222 = vpop.f32.mrb[0].mxu0
      %v7223 = vadd.f32 %v6796, %v7222
      %7224 = vmatprep.mubr.bf16.mxu0 0
      %7225 = vmatmul.mubr.bf16.gmra.mrb[0].mxu0 %v6696
      %v7226 = vpop.f32.mrb[0].mxu0
      %v7227 = vadd.f32 %v6792, %v7226
      %v7228 = vpop.f32.mrb[0].mxu0
      %v7229 = vadd.f32 %v6796, %v7228
      %v7230 = vpop.f32.mrb[0].mxu0
      %v7231 = vadd.f32 %v6792, %v7230
      %v7232 = vpop.f32.mrb[0].mxu0
      %v7233 = vadd.f32 %v6796, %v7232
      %7234 = vmatprep.mubr.bf16.mxu0 0
      %7235 = vmatmul.mubr.bf16.gmra.mrb[0].mxu0 %v6697
      %v7236 = vpop.f32.mrb[0].mxu0
      %v7237 = vadd.f32 %v6792, %v7236
      %v7238 = vpop.f32.mrb[0].mxu0
      %v7239 = vadd.f32 %v6796, %v7238
      %v7240 = vpop.f32.mrb[0].mxu0
      %v7241 = vadd.f32 %v6792, %v7240
      %v7242 = vpop.f32.mrb[0].mxu0
      %v7243 = vadd.f32 %v6796, %v7242
      %7244 = vmatprep.mubr.bf16.mxu0 0
      %7245 = vmatmul.mubr.bf16.gmra.mrb[0].mxu0 %v6698
      %v7246 = vpop.f32.mrb[0].mxu0
      %v7247 = vadd.f32 %v6792, %v7246
      %v7248 = vpop.f32.mrb[0].mxu0
      %v7249 = vadd.f32 %v6796, %v7248
      %v7250 = vpop.f32.mrb[0].mxu0
      %v7251 = vadd.f32 %v6792, %v7250
      %v7252 = vpop.f32.mrb[0].mxu0
      %v7253 = vadd.f32 %v6796, %v7252
      %7254 = vmatprep.mubr.bf16.mxu0 0
      %7255 = vmatmul.mubr.bf16.gmra.mrb[0].mxu0 %v6699
      %v7256 = vpop.f32.mrb[0].mxu0
      %v7257 = vadd.f32 %v6792, %v7256
      %v7258 = vpop.f32.mrb[0].mxu0
      %v7259 = vadd.f32 %v6796, %v7258
      %v7260 = vpop.f32.mrb[0].mxu0
      %v7261 = vadd.f32 %v6792, %v7260
      %v7262 = vpop.f32.mrb[0].mxu0
      %v7263 = vadd.f32 %v6796, %v7262
      %7264 = vmatprep.mubr.bf16.mxu0 0
      %7265 = vmatmul.mubr.bf16.gmra.mrb[0].mxu0 %v6700
      %v7266 = vpop.f32.mrb[0].mxu0
      %v7267 = vadd.f32 %v6792, %v7266
      %v7268 = vpop.f32.mrb[0].mxu0
      %v7269 = vadd.f32 %v6796, %v7268
      %v7270 = vpop.f32.mrb[0].mxu0
      %v7271 = vadd.f32 %v6792, %v7270
      %v7272 = vpop.f32.mrb[0].mxu0
      %v7273 = vadd.f32 %v6796, %v7272
      %7274 = vmatprep.mubr.bf16.mxu0 0
      %7275 = vmatmul.mubr.bf16.gmra.mrb[0].mxu0 %v6701
      %v7276 = vpop.f32.mrb[0].mxu0
      %v7277 = vadd.f32 %v6792, %v7276
      %v7278 = vpop.f32.mrb[0].mxu0
      %v7279 = vadd.f32 %v6796, %v7278
      %v7280 = vpop.f32.mrb[0].mxu0
      %v7281 = vadd.f32 %v6792, %v7280
      %v7282 = vpop.f32.mrb[0].mxu0
      %v7283 = vadd.f32 %v6796, %v7282
      %7284 = vmatprep.mubr.bf16.mxu0 0
      %7285 = vmatmul.mubr.bf16.gmra.mrb[0].mxu0 %v6702
      %v7286 = vpop.f32.mrb[0].mxu0
      %v7287 = vadd.f32 %v6792, %v7286
      %v7288 = vpop.f32.mrb[0].mxu0
      %v7289 = vadd.f32 %v6796, %v7288
      %v7290 = vpop.f32.mrb[0].mxu0
      %v7291 = vadd.f32 %v6792, %v7290
      %v7292 = vpop.f32.mrb[0].mxu0
      %v7293 = vadd.f32 %v6796, %v7292
      %7294 = vmatprep.mubr.bf16.mxu0 0
      %7295 = vmatmul.mubr.bf16.gmra.mrb[0].mxu0 %v6703
      %v7296 = vpop.f32.mrb[0].mxu0
      %v7297 = vadd.f32 %v6792, %v7296
      %v7298 = vpop.f32.mrb[0].mxu0
      %v7299 = vadd.f32 %v6796, %v7298
      %v7300 = vpop.f32.mrb[0].mxu0
      %v7301 = vadd.f32 %v6792, %v7300
      %v7302 = vpop.f32.mrb[0].mxu0
      %v7303 = vadd.f32 %v6796, %v7302
      %7304 = vmatprep.mubr.bf16.mxu0 0
      %7305 = vmatmul.mubr.bf16.gmra.mrb[0].mxu0 %v6704
      %v7306 = vpop.f32.mrb[0].mxu0
      %v7307 = vadd.f32 %v6792, %v7306
      %v7308 = vpop.f32.mrb[0].mxu0
      %v7309 = vadd.f32 %v6796, %v7308
      %v7310 = vpop.f32.mrb[0].mxu0
      %v7311 = vadd.f32 %v6792, %v7310
      %v7312 = vpop.f32.mrb[0].mxu0
      %v7313 = vadd.f32 %v6796, %v7312
      %7314 = vmatprep.mubr.bf16.mxu0 0
      %7315 = vmatmul.mubr.bf16.gmra.mrb[0].mxu0 %v6705
      %v7316 = vpop.f32.mrb[0].mxu0
      %v7317 = vadd.f32 %v6792, %v7316
      %v7318 = vpop.f32.mrb[0].mxu0
      %v7319 = vadd.f32 %v6796, %v7318
      %v7320 = vpop.f32.mrb[0].mxu0
      %v7321 = vadd.f32 %v6792, %v7320
      %v7322 = vpop.f32.mrb[0].mxu0
      %v7323 = vadd.f32 %v6796, %v7322
      %7324 = vmatprep.mubr.bf16.mxu0 0
      %7325 = vmatmul.mubr.bf16.gmra.mrb[0].mxu0 %v6706
      %v7326 = vpop.f32.mrb[0].mxu0
      %v7327 = vadd.f32 %v6792, %v7326
      %v7328 = vpop.f32.mrb[0].mxu0
      %v7329 = vadd.f32 %v6796, %v7328
      %v7330 = vpop.f32.mrb[0].mxu0
      %v7331 = vadd.f32 %v6792, %v7330
      %v7332 = vpop.f32.mrb[0].mxu0
      %v7333 = vadd.f32 %v6796, %v7332
      %7334 = vmatprep.mubr.bf16.mxu0 0
      %7335 = vmatmul.mubr.bf16.gmra.mrb[0].mxu0 %v6707
      %v7336 = vpop.f32.mrb[0].mxu0
      %v7337 = vadd.f32 %v6792, %v7336
      %v7338 = vpop.f32.mrb[0].mxu0
      %v7339 = vadd.f32 %v6796, %v7338
      %v7340 = vpop.f32.mrb[0].mxu0
      %v7341 = vadd.f32 %v6792, %v7340
      %v7342 = vpop.f32.mrb[0].mxu0
      %v7343 = vadd.f32 %v6796, %v7342
      %7344 = vmatprep.mubr.bf16.mxu0 0
      %7345 = vmatmul.mubr.bf16.gmra.mrb[0].mxu0 %v6708
      %v7346 = vpop.f32.mrb[0].mxu0
      %v7347 = vadd.f32 %v6792, %v7346
      %v7348 = vpop.f32.mrb[0].mxu0
      %v7349 = vadd.f32 %v6796, %v7348
      %v7350 = vpop.f32.mrb[0].mxu0
      %v7351 = vadd.f32 %v6792, %v7350
      %v7352 = vpop.f32.mrb[0].mxu0
      %v7353 = vadd.f32 %v6796, %v7352
      %7354 = vmatprep.mubr.bf16.mxu0 0
      %7355 = vmatmul.mubr.bf16.gmra.mrb[0].mxu0 %v6709
      %v7356 = vpop.f32.mrb[0].mxu0
      %v7357 = vadd.f32 %v6792, %v7356
      %v7358 = vpop.f32.mrb[0].mxu0
      %v7359 = vadd.f32 %v6796, %v7358
      %v7360 = vpop.f32.mrb[0].mxu0
      %v7361 = vadd.f32 %v6792, %v7360
      %v7362 = vpop.f32.mrb[0].mxu0
      %v7363 = vadd.f32 %v6796, %v7362
      %7364 = vmatprep.mubr.bf16.mxu0 0
      %7365 = vmatmul.mubr.bf16.gmra.mrb[0].mxu0 %v6710
      %v7366 = vpop.f32.mrb[0].mxu0
      %v7367 = vadd.f32 %v6792, %v7366
      %v7368 = vpop.f32.mrb[0].mxu0
      %v7369 = vadd.f32 %v6796, %v7368
      %v7370 = vpop.f32.mrb[0].mxu0
      %v7371 = vadd.f32 %v6792, %v7370
      %v7372 = vpop.f32.mrb[0].mxu0
      %v7373 = vadd.f32 %v6796, %v7372
      %7374 = vmatprep.mubr.bf16.mxu0 0
      %7375 = vmatmul.mubr.bf16.gmra.mrb[0].mxu0 %v6711
      %v7376 = vpop.f32.mrb[0].mxu0
      %v7377 = vadd.f32 %v6792, %v7376
      %v7378 = vpop.f32.mrb[0].mxu0
      %v7379 = vadd.f32 %v6796, %v7378
      %v7380 = vpop.f32.mrb[0].mxu0
      %v7381 = vadd.f32 %v6792, %v7380
      %v7382 = vpop.f32.mrb[0].mxu0
      %v7383 = vadd.f32 %v6796, %v7382
      %7384 = vmatprep.mubr.bf16.mxu0 0
      %7385 = vmatmul.mubr.bf16.gmra.mrb[0].mxu0 %v6712
      %v7386 = vpop.f32.mrb[0].mxu0
      %v7387 = vadd.f32 %v6792, %v7386
      %v7388 = vpop.f32.mrb[0].mxu0
      %v7389 = vadd.f32 %v6796, %v7388
      %v7390 = vpop.f32.mrb[0].mxu0
      %v7391 = vadd.f32 %v6792, %v7390
      %v7392 = vpop.f32.mrb[0].mxu0
      %v7393 = vadd.f32 %v6796, %v7392
      %7394 = vmatprep.mubr.bf16.mxu0 0
      %7395 = vmatmul.mubr.bf16.gmra.mrb[0].mxu0 %v6713
      %v7396 = vpop.f32.mrb[0].mxu0
      %v7397 = vadd.f32 %v6792, %v7396
      %v7398 = vpop.f32.mrb[0].mxu0
      %v7399 = vadd.f32 %v6796, %v7398
      %v7400 = vpop.f32.mrb[0].mxu0
      %v7401 = vadd.f32 %v6792, %v7400
      %v7402 = vpop.f32.mrb[0].mxu0
      %v7403 = vadd.f32 %v6796, %v7402
      %7404 = vmatprep.mubr.bf16.mxu0 0
      %7405 = vmatmul.mubr.bf16.gmra.mrb[0].mxu0 %v6714
      %v7406 = vpop.f32.mrb[0].mxu0
      %v7407 = vadd.f32 %v6792, %v7406
      %v7408 = vpop.f32.mrb[0].mxu0
      %v7409 = vadd.f32 %v6796, %v7408
      %v7410 = vpop.f32.mrb[0].mxu0
      %v7411 = vadd.f32 %v6792, %v7410
      %v7412 = vpop.f32.mrb[0].mxu0
      %v7413 = vadd.f32 %v6796, %v7412
      %7414 = vmatprep.mubr.bf16.mxu0 0
      %7415 = vmatmul.mubr.bf16.gmra.mrb[0].mxu0 %v6715
      %v7416 = vpop.f32.mrb[0].mxu0
      %v7417 = vadd.f32 %v6792, %v7416
      %v7418 = vpop.f32.mrb[0].mxu0
      %v7419 = vadd.f32 %v6796, %v7418
      %v7420 = vpop.f32.mrb[0].mxu0
      %v7421 = vadd.f32 %v6792, %v7420
      %v7422 = vpop.f32.mrb[0].mxu0
      %v7423 = vadd.f32 %v6796, %v7422
      %7424 = vmatprep.mubr.bf16.mxu0 0
      %7425 = vmatmul.mubr.bf16.gmra.mrb[0].mxu0 %v6716
      %v7426 = vpop.f32.mrb[0].mxu0
      %v7427 = vadd.f32 %v6792, %v7426
      %v7428 = vpop.f32.mrb[0].mxu0
      %v7429 = vadd.f32 %v6796, %v7428
      %v7430 = vpop.f32.mrb[0].mxu0
      %v7431 = vadd.f32 %v6792, %v7430
      %v7432 = vpop.f32.mrb[0].mxu0
      %v7433 = vadd.f32 %v6796, %v7432
      %7434 = vmatprep.mubr.bf16.mxu0 0
      %7435 = vmatmul.mubr.bf16.gmra.mrb[0].mxu0 %v6717
      %v7436 = vpop.f32.mrb[0].mxu0
      %v7437 = vadd.f32 %v6792, %v7436
      %v7438 = vpop.f32.mrb[0].mxu0
      %v7439 = vadd.f32 %v6796, %v7438
      %v7440 = vpop.f32.mrb[0].mxu0
      %v7441 = vadd.f32 %v6792, %v7440
      %v7442 = vpop.f32.mrb[0].mxu0
      %v7443 = vadd.f32 %v6796, %v7442
      %7444 = vmatprep.mubr.bf16.mxu0 0
      %7445 = vmatmul.mubr.bf16.gmra.mrb[0].mxu0 %v6718
      %v7446 = vpop.f32.mrb[0].mxu0
      %v7447 = vadd.f32 %v6792, %v7446
      %v7448 = vpop.f32.mrb[0].mxu0
      %v7449 = vadd.f32 %v6796, %v7448
      %v7450 = vpop.f32.mrb[0].mxu0
      %v7451 = vadd.f32 %v6792, %v7450
      %v7452 = vpop.f32.mrb[0].mxu0
      %v7453 = vadd.f32 %v6796, %v7452
      %7454 = vmatprep.mubr.bf16.mxu0 0
      %7455 = vmatmul.mubr.bf16.gmra.mrb[0].mxu0 %v6719
      %v7456 = vpop.f32.mrb[0].mxu0
      %v7457 = vadd.f32 %v6792, %v7456
      %v7458 = vpop.f32.mrb[0].mxu0
      %v7459 = vadd.f32 %v6796, %v7458
      %v7460 = vpop.f32.mrb[0].mxu0
      %v7461 = vadd.f32 %v6792, %v7460
      %v7462 = vpop.f32.mrb[0].mxu0
      %v7463 = vadd.f32 %v6796, %v7462
      %7464 = vdwg.mxu0
      %7465 = vmatprep.subr.bf16.mxu0 %v7003
      %7466 = vmatpush1.bf16.msra.mxu0 %v7002
      %7467 = vmatprep.subr.bf16.mxu0 %v7010
      %7468 = vmatpush1.bf16.msra.mxu0 %v7009
      %7469 = vmatprep.subr.bf16.mxu0 %v7017
      %7470 = vmatpush1.bf16.msra.mxu0 %v7016
      %7471 = vmatprep.subr.bf16.mxu0 %v7024
      %7472 = vmatpush1.bf16.msra.mxu0 %v7023
      %7473 = vmatprep.subr.bf16.mxu0 %v7031
      %7474 = vmatpush1.bf16.msra.mxu0 %v7030
      %7475 = vmatprep.subr.bf16.mxu0 %v7038
      %7476 = vmatpush1.bf16.msra.mxu0 %v7037
      %7477 = vmatprep.subr.bf16.mxu0 %v7045
      %7478 = vmatpush1.bf16.msra.mxu0 %v7044
      %7479 = vmatprep.subr.bf16.mxu0 %v7052
      %7480 = vmatpush1.bf16.msra.mxu0 %v7051
      %7481 = vmatprep.subr.bf16.mxu0 0
      %7482 = vmatpush1.bf16.msra.mxu0 0
      %7483 = vmatprep.subr.bf16.mxu0 0
      %7484 = vmatpush1.bf16.msra.mxu0 0
      %7485 = vmatprep.subr.bf16.mxu0 0
      %7486 = vmatpush1.bf16.msra.mxu0 0
      %7487 = vmatprep.subr.bf16.mxu0 0
      %7488 = vmatpush1.bf16.msra.mxu0 0
      %7489 = vmatprep.subr.bf16.mxu0 0
      %7490 = vmatpush1.bf16.msra.mxu0 0
      %7491 = vmatprep.subr.bf16.mxu0 0
      %7492 = vmatpush1.bf16.msra.mxu0 0
      %7493 = vmatprep.subr.bf16.mxu0 0
      %7494 = vmatpush1.bf16.msra.mxu0 0
      %7495 = vmatprep.subr.bf16.mxu0 0
      %7496 = vmatpush1.bf16.msra.mxu0 0
      %7497 = vmatprep.mubr.bf16.mxu0 0
      %7498 = vmatmul.mubr.bf16.gmra.mrb[0].mxu0 %v6688
      %v7499 = vpop.f32.mrb[0].mxu0
      %v7500 = vadd.f32 %v6800, %v7499
      %v7501 = vpop.f32.mrb[0].mxu0
      %v7502 = vadd.f32 %v6804, %v7501
      %v7503 = vpop.f32.mrb[0].mxu0
      %v7504 = vadd.f32 %v6800, %v7503
      %v7505 = vpop.f32.mrb[0].mxu0
      %v7506 = vadd.f32 %v6804, %v7505
      %7507 = vmatprep.mubr.bf16.mxu0 0
      %7508 = vmatmul.mubr.bf16.gmra.mrb[0].mxu0 %v6689
      %v7509 = vpop.f32.mrb[0].mxu0
      %v7510 = vadd.f32 %v6800, %v7509
      %v7511 = vpop.f32.mrb[0].mxu0
      %v7512 = vadd.f32 %v6804, %v7511
      %v7513 = vpop.f32.mrb[0].mxu0
      %v7514 = vadd.f32 %v6800, %v7513
      %v7515 = vpop.f32.mrb[0].mxu0
      %v7516 = vadd.f32 %v6804, %v7515
      %7517 = vmatprep.mubr.bf16.mxu0 0
      %7518 = vmatmul.mubr.bf16.gmra.mrb[0].mxu0 %v6690
      %v7519 = vpop.f32.mrb[0].mxu0
      %v7520 = vadd.f32 %v6800, %v7519
      %v7521 = vpop.f32.mrb[0].mxu0
      %v7522 = vadd.f32 %v6804, %v7521
      %v7523 = vpop.f32.mrb[0].mxu0
      %v7524 = vadd.f32 %v6800, %v7523
      %v7525 = vpop.f32.mrb[0].mxu0
      %v7526 = vadd.f32 %v6804, %v7525
      %7527 = vmatprep.mubr.bf16.mxu0 0
      %7528 = vmatmul.mubr.bf16.gmra.mrb[0].mxu0 %v6691
      %v7529 = vpop.f32.mrb[0].mxu0
      %v7530 = vadd.f32 %v6800, %v7529
      %v7531 = vpop.f32.mrb[0].mxu0
      %v7532 = vadd.f32 %v6804, %v7531
      %v7533 = vpop.f32.mrb[0].mxu0
      %v7534 = vadd.f32 %v6800, %v7533
      %v7535 = vpop.f32.mrb[0].mxu0
      %v7536 = vadd.f32 %v6804, %v7535
      %7537 = vmatprep.mubr.bf16.mxu0 0
      %7538 = vmatmul.mubr.bf16.gmra.mrb[0].mxu0 %v6692
      %v7539 = vpop.f32.mrb[0].mxu0
      %v7540 = vadd.f32 %v6800, %v7539
      %v7541 = vpop.f32.mrb[0].mxu0
      %v7542 = vadd.f32 %v6804, %v7541
      %v7543 = vpop.f32.mrb[0].mxu0
      %v7544 = vadd.f32 %v6800, %v7543
      %v7545 = vpop.f32.mrb[0].mxu0
      %v7546 = vadd.f32 %v6804, %v7545
      %7547 = vmatprep.mubr.bf16.mxu0 0
      %7548 = vmatmul.mubr.bf16.gmra.mrb[0].mxu0 %v6693
      %v7549 = vpop.f32.mrb[0].mxu0
      %v7550 = vadd.f32 %v6800, %v7549
      %v7551 = vpop.f32.mrb[0].mxu0
      %v7552 = vadd.f32 %v6804, %v7551
      %v7553 = vpop.f32.mrb[0].mxu0
      %v7554 = vadd.f32 %v6800, %v7553
      %v7555 = vpop.f32.mrb[0].mxu0
      %v7556 = vadd.f32 %v6804, %v7555
      %7557 = vmatprep.mubr.bf16.mxu0 0
      %7558 = vmatmul.mubr.bf16.gmra.mrb[0].mxu0 %v6694
      %v7559 = vpop.f32.mrb[0].mxu0
      %v7560 = vadd.f32 %v6800, %v7559
      %v7561 = vpop.f32.mrb[0].mxu0
      %v7562 = vadd.f32 %v6804, %v7561
      %v7563 = vpop.f32.mrb[0].mxu0
      %v7564 = vadd.f32 %v6800, %v7563
      %v7565 = vpop.f32.mrb[0].mxu0
      %v7566 = vadd.f32 %v6804, %v7565
      %7567 = vmatprep.mubr.bf16.mxu0 0
      %7568 = vmatmul.mubr.bf16.gmra.mrb[0].mxu0 %v6695
      %v7569 = vpop.f32.mrb[0].mxu0
      %v7570 = vadd.f32 %v6800, %v7569
      %v7571 = vpop.f32.mrb[0].mxu0
      %v7572 = vadd.f32 %v6804, %v7571
      %v7573 = vpop.f32.mrb[0].mxu0
      %v7574 = vadd.f32 %v6800, %v7573
      %v7575 = vpop.f32.mrb[0].mxu0
      %v7576 = vadd.f32 %v6804, %v7575
      %7577 = vmatprep.mubr.bf16.mxu0 0
      %7578 = vmatmul.mubr.bf16.gmra.mrb[0].mxu0 %v6696
      %v7579 = vpop.f32.mrb[0].mxu0
      %v7580 = vadd.f32 %v6800, %v7579
      %v7581 = vpop.f32.mrb[0].mxu0
      %v7582 = vadd.f32 %v6804, %v7581
      %v7583 = vpop.f32.mrb[0].mxu0
      %v7584 = vadd.f32 %v6800, %v7583
      %v7585 = vpop.f32.mrb[0].mxu0
      %v7586 = vadd.f32 %v6804, %v7585
      %7587 = vmatprep.mubr.bf16.mxu0 0
      %7588 = vmatmul.mubr.bf16.gmra.mrb[0].mxu0 %v6697
      %v7589 = vpop.f32.mrb[0].mxu0
      %v7590 = vadd.f32 %v6800, %v7589
      %v7591 = vpop.f32.mrb[0].mxu0
      %v7592 = vadd.f32 %v6804, %v7591
      %v7593 = vpop.f32.mrb[0].mxu0
      %v7594 = vadd.f32 %v6800, %v7593
      %v7595 = vpop.f32.mrb[0].mxu0
      %v7596 = vadd.f32 %v6804, %v7595
      %7597 = vmatprep.mubr.bf16.mxu0 0
      %7598 = vmatmul.mubr.bf16.gmra.mrb[0].mxu0 %v6698
      %v7599 = vpop.f32.mrb[0].mxu0
      %v7600 = vadd.f32 %v6800, %v7599
      %v7601 = vpop.f32.mrb[0].mxu0
      %v7602 = vadd.f32 %v6804, %v7601
      %v7603 = vpop.f32.mrb[0].mxu0
      %v7604 = vadd.f32 %v6800, %v7603
      %v7605 = vpop.f32.mrb[0].mxu0
      %v7606 = vadd.f32 %v6804, %v7605
      %7607 = vmatprep.mubr.bf16.mxu0 0
      %7608 = vmatmul.mubr.bf16.gmra.mrb[0].mxu0 %v6699
      %v7609 = vpop.f32.mrb[0].mxu0
      %v7610 = vadd.f32 %v6800, %v7609
      %v7611 = vpop.f32.mrb[0].mxu0
      %v7612 = vadd.f32 %v6804, %v7611
      %v7613 = vpop.f32.mrb[0].mxu0
      %v7614 = vadd.f32 %v6800, %v7613
      %v7615 = vpop.f32.mrb[0].mxu0
      %v7616 = vadd.f32 %v6804, %v7615
      %7617 = vmatprep.mubr.bf16.mxu0 0
      %7618 = vmatmul.mubr.bf16.gmra.mrb[0].mxu0 %v6700
      %v7619 = vpop.f32.mrb[0].mxu0
      %v7620 = vadd.f32 %v6800, %v7619
      %v7621 = vpop.f32.mrb[0].mxu0
      %v7622 = vadd.f32 %v6804, %v7621
      %v7623 = vpop.f32.mrb[0].mxu0
      %v7624 = vadd.f32 %v6800, %v7623
      %v7625 = vpop.f32.mrb[0].mxu0
      %v7626 = vadd.f32 %v6804, %v7625
      %7627 = vmatprep.mubr.bf16.mxu0 0
      %7628 = vmatmul.mubr.bf16.gmra.mrb[0].mxu0 %v6701
      %v7629 = vpop.f32.mrb[0].mxu0
      %v7630 = vadd.f32 %v6800, %v7629
      %v7631 = vpop.f32.mrb[0].mxu0
      %v7632 = vadd.f32 %v6804, %v7631
      %v7633 = vpop.f32.mrb[0].mxu0
      %v7634 = vadd.f32 %v6800, %v7633
      %v7635 = vpop.f32.mrb[0].mxu0
      %v7636 = vadd.f32 %v6804, %v7635
      %7637 = vmatprep.mubr.bf16.mxu0 0
      %7638 = vmatmul.mubr.bf16.gmra.mrb[0].mxu0 %v6702
      %v7639 = vpop.f32.mrb[0].mxu0
      %v7640 = vadd.f32 %v6800, %v7639
      %v7641 = vpop.f32.mrb[0].mxu0
      %v7642 = vadd.f32 %v6804, %v7641
      %v7643 = vpop.f32.mrb[0].mxu0
      %v7644 = vadd.f32 %v6800, %v7643
      %v7645 = vpop.f32.mrb[0].mxu0
      %v7646 = vadd.f32 %v6804, %v7645
      %7647 = vmatprep.mubr.bf16.mxu0 0
      %7648 = vmatmul.mubr.bf16.gmra.mrb[0].mxu0 %v6703
      %v7649 = vpop.f32.mrb[0].mxu0
      %v7650 = vadd.f32 %v6800, %v7649
      %v7651 = vpop.f32.mrb[0].mxu0
      %v7652 = vadd.f32 %v6804, %v7651
      %v7653 = vpop.f32.mrb[0].mxu0
      %v7654 = vadd.f32 %v6800, %v7653
      %v7655 = vpop.f32.mrb[0].mxu0
      %v7656 = vadd.f32 %v6804, %v7655
      %7657 = vmatprep.mubr.bf16.mxu0 0
      %7658 = vmatmul.mubr.bf16.gmra.mrb[0].mxu0 %v6704
      %v7659 = vpop.f32.mrb[0].mxu0
      %v7660 = vadd.f32 %v6800, %v7659
      %v7661 = vpop.f32.mrb[0].mxu0
      %v7662 = vadd.f32 %v6804, %v7661
      %v7663 = vpop.f32.mrb[0].mxu0
      %v7664 = vadd.f32 %v6800, %v7663
      %v7665 = vpop.f32.mrb[0].mxu0
      %v7666 = vadd.f32 %v6804, %v7665
      %7667 = vmatprep.mubr.bf16.mxu0 0
      %7668 = vmatmul.mubr.bf16.gmra.mrb[0].mxu0 %v6705
      %v7669 = vpop.f32.mrb[0].mxu0
      %v7670 = vadd.f32 %v6800, %v7669
      %v7671 = vpop.f32.mrb[0].mxu0
      %v7672 = vadd.f32 %v6804, %v7671
      %v7673 = vpop.f32.mrb[0].mxu0
      %v7674 = vadd.f32 %v6800, %v7673
      %v7675 = vpop.f32.mrb[0].mxu0
      %v7676 = vadd.f32 %v6804, %v7675
      %7677 = vmatprep.mubr.bf16.mxu0 0
      %7678 = vmatmul.mubr.bf16.gmra.mrb[0].mxu0 %v6706
      %v7679 = vpop.f32.mrb[0].mxu0
      %v7680 = vadd.f32 %v6800, %v7679
      %v7681 = vpop.f32.mrb[0].mxu0
      %v7682 = vadd.f32 %v6804, %v7681
      %v7683 = vpop.f32.mrb[0].mxu0
      %v7684 = vadd.f32 %v6800, %v7683
      %v7685 = vpop.f32.mrb[0].mxu0
      %v7686 = vadd.f32 %v6804, %v7685
      %7687 = vmatprep.mubr.bf16.mxu0 0
      %7688 = vmatmul.mubr.bf16.gmra.mrb[0].mxu0 %v6707
      %v7689 = vpop.f32.mrb[0].mxu0
      %v7690 = vadd.f32 %v6800, %v7689
      %v7691 = vpop.f32.mrb[0].mxu0
      %v7692 = vadd.f32 %v6804, %v7691
      %v7693 = vpop.f32.mrb[0].mxu0
      %v7694 = vadd.f32 %v6800, %v7693
      %v7695 = vpop.f32.mrb[0].mxu0
      %v7696 = vadd.f32 %v6804, %v7695
      %7697 = vmatprep.mubr.bf16.mxu0 0
      %7698 = vmatmul.mubr.bf16.gmra.mrb[0].mxu0 %v6708
      %v7699 = vpop.f32.mrb[0].mxu0
      %v7700 = vadd.f32 %v6800, %v7699
      %v7701 = vpop.f32.mrb[0].mxu0
      %v7702 = vadd.f32 %v6804, %v7701
      %v7703 = vpop.f32.mrb[0].mxu0
      %v7704 = vadd.f32 %v6800, %v7703
      %v7705 = vpop.f32.mrb[0].mxu0
      %v7706 = vadd.f32 %v6804, %v7705
      %7707 = vmatprep.mubr.bf16.mxu0 0
      %7708 = vmatmul.mubr.bf16.gmra.mrb[0].mxu0 %v6709
      %v7709 = vpop.f32.mrb[0].mxu0
      %v7710 = vadd.f32 %v6800, %v7709
      %v7711 = vpop.f32.mrb[0].mxu0
      %v7712 = vadd.f32 %v6804, %v7711
      %v7713 = vpop.f32.mrb[0].mxu0
      %v7714 = vadd.f32 %v6800, %v7713
      %v7715 = vpop.f32.mrb[0].mxu0
      %v7716 = vadd.f32 %v6804, %v7715
      %7717 = vmatprep.mubr.bf16.mxu0 0
      %7718 = vmatmul.mubr.bf16.gmra.mrb[0].mxu0 %v6710
      %v7719 = vpop.f32.mrb[0].mxu0
      %v7720 = vadd.f32 %v6800, %v7719
      %v7721 = vpop.f32.mrb[0].mxu0
      %v7722 = vadd.f32 %v6804, %v7721
      %v7723 = vpop.f32.mrb[0].mxu0
      %v7724 = vadd.f32 %v6800, %v7723
      %v7725 = vpop.f32.mrb[0].mxu0
      %v7726 = vadd.f32 %v6804, %v7725
      %7727 = vmatprep.mubr.bf16.mxu0 0
      %7728 = vmatmul.mubr.bf16.gmra.mrb[0].mxu0 %v6711
      %v7729 = vpop.f32.mrb[0].mxu0
      %v7730 = vadd.f32 %v6800, %v7729
      %v7731 = vpop.f32.mrb[0].mxu0
      %v7732 = vadd.f32 %v6804, %v7731
      %v7733 = vpop.f32.mrb[0].mxu0
      %v7734 = vadd.f32 %v6800, %v7733
      %v7735 = vpop.f32.mrb[0].mxu0
      %v7736 = vadd.f32 %v6804, %v7735
      %7737 = vmatprep.mubr.bf16.mxu0 0
      %7738 = vmatmul.mubr.bf16.gmra.mrb[0].mxu0 %v6712
      %v7739 = vpop.f32.mrb[0].mxu0
      %v7740 = vadd.f32 %v6800, %v7739
      %v7741 = vpop.f32.mrb[0].mxu0
      %v7742 = vadd.f32 %v6804, %v7741
      %v7743 = vpop.f32.mrb[0].mxu0
      %v7744 = vadd.f32 %v6800, %v7743
      %v7745 = vpop.f32.mrb[0].mxu0
      %v7746 = vadd.f32 %v6804, %v7745
      %7747 = vmatprep.mubr.bf16.mxu0 0
      %7748 = vmatmul.mubr.bf16.gmra.mrb[0].mxu0 %v6713
      %v7749 = vpop.f32.mrb[0].mxu0
      %v7750 = vadd.f32 %v6800, %v7749
      %v7751 = vpop.f32.mrb[0].mxu0
      %v7752 = vadd.f32 %v6804, %v7751
      %v7753 = vpop.f32.mrb[0].mxu0
      %v7754 = vadd.f32 %v6800, %v7753
      %v7755 = vpop.f32.mrb[0].mxu0
      %v7756 = vadd.f32 %v6804, %v7755
      %7757 = vmatprep.mubr.bf16.mxu0 0
      %7758 = vmatmul.mubr.bf16.gmra.mrb[0].mxu0 %v6714
      %v7759 = vpop.f32.mrb[0].mxu0
      %v7760 = vadd.f32 %v6800, %v7759
      %v7761 = vpop.f32.mrb[0].mxu0
      %v7762 = vadd.f32 %v6804, %v7761
      %v7763 = vpop.f32.mrb[0].mxu0
      %v7764 = vadd.f32 %v6800, %v7763
      %v7765 = vpop.f32.mrb[0].mxu0
      %v7766 = vadd.f32 %v6804, %v7765
      %7767 = vmatprep.mubr.bf16.mxu0 0
      %7768 = vmatmul.mubr.bf16.gmra.mrb[0].mxu0 %v6715
      %v7769 = vpop.f32.mrb[0].mxu0
      %v7770 = vadd.f32 %v6800, %v7769
      %v7771 = vpop.f32.mrb[0].mxu0
      %v7772 = vadd.f32 %v6804, %v7771
      %v7773 = vpop.f32.mrb[0].mxu0
      %v7774 = vadd.f32 %v6800, %v7773
      %v7775 = vpop.f32.mrb[0].mxu0
      %v7776 = vadd.f32 %v6804, %v7775
      %7777 = vmatprep.mubr.bf16.mxu0 0
      %7778 = vmatmul.mubr.bf16.gmra.mrb[0].mxu0 %v6716
      %v7779 = vpop.f32.mrb[0].mxu0
      %v7780 = vadd.f32 %v6800, %v7779
      %v7781 = vpop.f32.mrb[0].mxu0
      %v7782 = vadd.f32 %v6804, %v7781
      %v7783 = vpop.f32.mrb[0].mxu0
      %v7784 = vadd.f32 %v6800, %v7783
      %v7785 = vpop.f32.mrb[0].mxu0
      %v7786 = vadd.f32 %v6804, %v7785
      %7787 = vmatprep.mubr.bf16.mxu0 0
      %7788 = vmatmul.mubr.bf16.gmra.mrb[0].mxu0 %v6717
      %v7789 = vpop.f32.mrb[0].mxu0
      %v7790 = vadd.f32 %v6800, %v7789
      %v7791 = vpop.f32.mrb[0].mxu0
      %v7792 = vadd.f32 %v6804, %v7791
      %v7793 = vpop.f32.mrb[0].mxu0
      %v7794 = vadd.f32 %v6800, %v7793
      %v7795 = vpop.f32.mrb[0].mxu0
      %v7796 = vadd.f32 %v6804, %v7795
      %7797 = vmatprep.mubr.bf16.mxu0 0
      %7798 = vmatmul.mubr.bf16.gmra.mrb[0].mxu0 %v6718
      %v7799 = vpop.f32.mrb[0].mxu0
      %v7800 = vadd.f32 %v6800, %v7799
      %v7801 = vpop.f32.mrb[0].mxu0
      %v7802 = vadd.f32 %v6804, %v7801
      %v7803 = vpop.f32.mrb[0].mxu0
      %v7804 = vadd.f32 %v6800, %v7803
      %v7805 = vpop.f32.mrb[0].mxu0
      %v7806 = vadd.f32 %v6804, %v7805
      %7807 = vmatprep.mubr.bf16.mxu0 0
      %7808 = vmatmul.mubr.bf16.gmra.mrb[0].mxu0 %v6719
      %v7809 = vpop.f32.mrb[0].mxu0
      %v7810 = vadd.f32 %v6800, %v7809
      %v7811 = vpop.f32.mrb[0].mxu0
      %v7812 = vadd.f32 %v6804, %v7811
      %v7813 = vpop.f32.mrb[0].mxu0
      %v7814 = vadd.f32 %v6800, %v7813
      %v7815 = vpop.f32.mrb[0].mxu0
      %v7816 = vadd.f32 %v6804, %v7815
      %7817 = vdwg.mxu0
      %7818 = vmatprep.subr.bf16.mxu0 %v7005
      %7819 = vmatpush1.bf16.msra.mxu0 %v7004
      %7820 = vmatprep.subr.bf16.mxu0 %v7012
      %7821 = vmatpush1.bf16.msra.mxu0 %v7011
      %7822 = vmatprep.subr.bf16.mxu0 %v7019
      %7823 = vmatpush1.bf16.msra.mxu0 %v7018
      %7824 = vmatprep.subr.bf16.mxu0 %v7026
      %7825 = vmatpush1.bf16.msra.mxu0 %v7025
      %7826 = vmatprep.subr.bf16.mxu0 %v7033
      %7827 = vmatpush1.bf16.msra.mxu0 %v7032
      %7828 = vmatprep.subr.bf16.mxu0 %v7040
      %7829 = vmatpush1.bf16.msra.mxu0 %v7039
      %7830 = vmatprep.subr.bf16.mxu0 %v7047
      %7831 = vmatpush1.bf16.msra.mxu0 %v7046
      %7832 = vmatprep.subr.bf16.mxu0 %v7054
      %7833 = vmatpush1.bf16.msra.mxu0 %v7053
      %7834 = vmatprep.subr.bf16.mxu0 0
      %7835 = vmatpush1.bf16.msra.mxu0 0
      %7836 = vmatprep.subr.bf16.mxu0 0
      %7837 = vmatpush1.bf16.msra.mxu0 0
      %7838 = vmatprep.subr.bf16.mxu0 0
      %7839 = vmatpush1.bf16.msra.mxu0 0
      %7840 = vmatprep.subr.bf16.mxu0 0
      %7841 = vmatpush1.bf16.msra.mxu0 0
      %7842 = vmatprep.subr.bf16.mxu0 0
      %7843 = vmatpush1.bf16.msra.mxu0 0
      %7844 = vmatprep.subr.bf16.mxu0 0
      %7845 = vmatpush1.bf16.msra.mxu0 0
      %7846 = vmatprep.subr.bf16.mxu0 0
      %7847 = vmatpush1.bf16.msra.mxu0 0
      %7848 = vmatprep.subr.bf16.mxu0 0
      %7849 = vmatpush1.bf16.msra.mxu0 0
      %7850 = vmatprep.mubr.bf16.mxu0 0
      %7851 = vmatmul.mubr.bf16.gmra.mrb[0].mxu0 %v6688
      %v7852 = vpop.f32.mrb[0].mxu0
      %v7853 = vadd.f32 %v6808, %v7852
      %v7854 = vpop.f32.mrb[0].mxu0
      %v7855 = vadd.f32 %v6812, %v7854
      %v7856 = vpop.f32.mrb[0].mxu0
      %v7857 = vadd.f32 %v6808, %v7856
      %v7858 = vpop.f32.mrb[0].mxu0
      %v7859 = vadd.f32 %v6812, %v7858
      %7860 = vmatprep.mubr.bf16.mxu0 0
      %7861 = vmatmul.mubr.bf16.gmra.mrb[0].mxu0 %v6689
      %v7862 = vpop.f32.mrb[0].mxu0
      %v7863 = vadd.f32 %v6808, %v7862
      %v7864 = vpop.f32.mrb[0].mxu0
      %v7865 = vadd.f32 %v6812, %v7864
      %v7866 = vpop.f32.mrb[0].mxu0
      %v7867 = vadd.f32 %v6808, %v7866
      %v7868 = vpop.f32.mrb[0].mxu0
      %v7869 = vadd.f32 %v6812, %v7868
      %7870 = vmatprep.mubr.bf16.mxu0 0
      %7871 = vmatmul.mubr.bf16.gmra.mrb[0].mxu0 %v6690
      %v7872 = vpop.f32.mrb[0].mxu0
      %v7873 = vadd.f32 %v6808, %v7872
      %v7874 = vpop.f32.mrb[0].mxu0
      %v7875 = vadd.f32 %v6812, %v7874
      %v7876 = vpop.f32.mrb[0].mxu0
      %v7877 = vadd.f32 %v6808, %v7876
      %v7878 = vpop.f32.mrb[0].mxu0
      %v7879 = vadd.f32 %v6812, %v7878
      %7880 = vmatprep.mubr.bf16.mxu0 0
      %7881 = vmatmul.mubr.bf16.gmra.mrb[0].mxu0 %v6691
      %v7882 = vpop.f32.mrb[0].mxu0
      %v7883 = vadd.f32 %v6808, %v7882
      %v7884 = vpop.f32.mrb[0].mxu0
      %v7885 = vadd.f32 %v6812, %v7884
      %v7886 = vpop.f32.mrb[0].mxu0
      %v7887 = vadd.f32 %v6808, %v7886
      %v7888 = vpop.f32.mrb[0].mxu0
      %v7889 = vadd.f32 %v6812, %v7888
      %7890 = vmatprep.mubr.bf16.mxu0 0
      %7891 = vmatmul.mubr.bf16.gmra.mrb[0].mxu0 %v6692
      %v7892 = vpop.f32.mrb[0].mxu0
      %v7893 = vadd.f32 %v6808, %v7892
      %v7894 = vpop.f32.mrb[0].mxu0
      %v7895 = vadd.f32 %v6812, %v7894
      %v7896 = vpop.f32.mrb[0].mxu0
      %v7897 = vadd.f32 %v6808, %v7896
      %v7898 = vpop.f32.mrb[0].mxu0
      %v7899 = vadd.f32 %v6812, %v7898
      %7900 = vmatprep.mubr.bf16.mxu0 0
      %7901 = vmatmul.mubr.bf16.gmra.mrb[0].mxu0 %v6693
      %v7902 = vpop.f32.mrb[0].mxu0
      %v7903 = vadd.f32 %v6808, %v7902
      %v7904 = vpop.f32.mrb[0].mxu0
      %v7905 = vadd.f32 %v6812, %v7904
      %v7906 = vpop.f32.mrb[0].mxu0
      %v7907 = vadd.f32 %v6808, %v7906
      %v7908 = vpop.f32.mrb[0].mxu0
      %v7909 = vadd.f32 %v6812, %v7908
      %7910 = vmatprep.mubr.bf16.mxu0 0
      %7911 = vmatmul.mubr.bf16.gmra.mrb[0].mxu0 %v6694
      %v7912 = vpop.f32.mrb[0].mxu0
      %v7913 = vadd.f32 %v6808, %v7912
      %v7914 = vpop.f32.mrb[0].mxu0
      %v7915 = vadd.f32 %v6812, %v7914
      %v7916 = vpop.f32.mrb[0].mxu0
      %v7917 = vadd.f32 %v6808, %v7916
      %v7918 = vpop.f32.mrb[0].mxu0
      %v7919 = vadd.f32 %v6812, %v7918
      %7920 = vmatprep.mubr.bf16.mxu0 0
      %7921 = vmatmul.mubr.bf16.gmra.mrb[0].mxu0 %v6695
      %v7922 = vpop.f32.mrb[0].mxu0
      %v7923 = vadd.f32 %v6808, %v7922
      %v7924 = vpop.f32.mrb[0].mxu0
      %v7925 = vadd.f32 %v6812, %v7924
      %v7926 = vpop.f32.mrb[0].mxu0
      %v7927 = vadd.f32 %v6808, %v7926
      %v7928 = vpop.f32.mrb[0].mxu0
      %v7929 = vadd.f32 %v6812, %v7928
      %7930 = vmatprep.mubr.bf16.mxu0 0
      %7931 = vmatmul.mubr.bf16.gmra.mrb[0].mxu0 %v6696
      %v7932 = vpop.f32.mrb[0].mxu0
      %v7933 = vadd.f32 %v6808, %v7932
      %v7934 = vpop.f32.mrb[0].mxu0
      %v7935 = vadd.f32 %v6812, %v7934
      %v7936 = vpop.f32.mrb[0].mxu0
      %v7937 = vadd.f32 %v6808, %v7936
      %v7938 = vpop.f32.mrb[0].mxu0
      %v7939 = vadd.f32 %v6812, %v7938
      %7940 = vmatprep.mubr.bf16.mxu0 0
      %7941 = vmatmul.mubr.bf16.gmra.mrb[0].mxu0 %v6697
      %v7942 = vpop.f32.mrb[0].mxu0
      %v7943 = vadd.f32 %v6808, %v7942
      %v7944 = vpop.f32.mrb[0].mxu0
      %v7945 = vadd.f32 %v6812, %v7944
      %v7946 = vpop.f32.mrb[0].mxu0
      %v7947 = vadd.f32 %v6808, %v7946
      %v7948 = vpop.f32.mrb[0].mxu0
      %v7949 = vadd.f32 %v6812, %v7948
      %7950 = vmatprep.mubr.bf16.mxu0 0
      %7951 = vmatmul.mubr.bf16.gmra.mrb[0].mxu0 %v6698
      %v7952 = vpop.f32.mrb[0].mxu0
      %v7953 = vadd.f32 %v6808, %v7952
      %v7954 = vpop.f32.mrb[0].mxu0
      %v7955 = vadd.f32 %v6812, %v7954
      %v7956 = vpop.f32.mrb[0].mxu0
      %v7957 = vadd.f32 %v6808, %v7956
      %v7958 = vpop.f32.mrb[0].mxu0
      %v7959 = vadd.f32 %v6812, %v7958
      %7960 = vmatprep.mubr.bf16.mxu0 0
      %7961 = vmatmul.mubr.bf16.gmra.mrb[0].mxu0 %v6699
      %v7962 = vpop.f32.mrb[0].mxu0
      %v7963 = vadd.f32 %v6808, %v7962
      %v7964 = vpop.f32.mrb[0].mxu0
      %v7965 = vadd.f32 %v6812, %v7964
      %v7966 = vpop.f32.mrb[0].mxu0
      %v7967 = vadd.f32 %v6808, %v7966
      %v7968 = vpop.f32.mrb[0].mxu0
      %v7969 = vadd.f32 %v6812, %v7968
      %7970 = vmatprep.mubr.bf16.mxu0 0
      %7971 = vmatmul.mubr.bf16.gmra.mrb[0].mxu0 %v6700
      %v7972 = vpop.f32.mrb[0].mxu0
      %v7973 = vadd.f32 %v6808, %v7972
      %v7974 = vpop.f32.mrb[0].mxu0
      %v7975 = vadd.f32 %v6812, %v7974
      %v7976 = vpop.f32.mrb[0].mxu0
      %v7977 = vadd.f32 %v6808, %v7976
      %v7978 = vpop.f32.mrb[0].mxu0
      %v7979 = vadd.f32 %v6812, %v7978
      %7980 = vmatprep.mubr.bf16.mxu0 0
      %7981 = vmatmul.mubr.bf16.gmra.mrb[0].mxu0 %v6701
      %v7982 = vpop.f32.mrb[0].mxu0
      %v7983 = vadd.f32 %v6808, %v7982
      %v7984 = vpop.f32.mrb[0].mxu0
      %v7985 = vadd.f32 %v6812, %v7984
      %v7986 = vpop.f32.mrb[0].mxu0
      %v7987 = vadd.f32 %v6808, %v7986
      %v7988 = vpop.f32.mrb[0].mxu0
      %v7989 = vadd.f32 %v6812, %v7988
      %7990 = vmatprep.mubr.bf16.mxu0 0
      %7991 = vmatmul.mubr.bf16.gmra.mrb[0].mxu0 %v6702
      %v7992 = vpop.f32.mrb[0].mxu0
      %v7993 = vadd.f32 %v6808, %v7992
      %v7994 = vpop.f32.mrb[0].mxu0
      %v7995 = vadd.f32 %v6812, %v7994
      %v7996 = vpop.f32.mrb[0].mxu0
      %v7997 = vadd.f32 %v6808, %v7996
      %v7998 = vpop.f32.mrb[0].mxu0
      %v7999 = vadd.f32 %v6812, %v7998
      %8000 = vmatprep.mubr.bf16.mxu0 0
      %8001 = vmatmul.mubr.bf16.gmra.mrb[0].mxu0 %v6703
      %v8002 = vpop.f32.mrb[0].mxu0
      %v8003 = vadd.f32 %v6808, %v8002
      %v8004 = vpop.f32.mrb[0].mxu0
      %v8005 = vadd.f32 %v6812, %v8004
      %v8006 = vpop.f32.mrb[0].mxu0
      %v8007 = vadd.f32 %v6808, %v8006
      %v8008 = vpop.f32.mrb[0].mxu0
      %v8009 = vadd.f32 %v6812, %v8008
      %8010 = vmatprep.mubr.bf16.mxu0 0
      %8011 = vmatmul.mubr.bf16.gmra.mrb[0].mxu0 %v6704
      %v8012 = vpop.f32.mrb[0].mxu0
      %v8013 = vadd.f32 %v6808, %v8012
      %v8014 = vpop.f32.mrb[0].mxu0
      %v8015 = vadd.f32 %v6812, %v8014
      %v8016 = vpop.f32.mrb[0].mxu0
      %v8017 = vadd.f32 %v6808, %v8016
      %v8018 = vpop.f32.mrb[0].mxu0
      %v8019 = vadd.f32 %v6812, %v8018
      %8020 = vmatprep.mubr.bf16.mxu0 0
      %8021 = vmatmul.mubr.bf16.gmra.mrb[0].mxu0 %v6705
      %v8022 = vpop.f32.mrb[0].mxu0
      %v8023 = vadd.f32 %v6808, %v8022
      %v8024 = vpop.f32.mrb[0].mxu0
      %v8025 = vadd.f32 %v6812, %v8024
      %v8026 = vpop.f32.mrb[0].mxu0
      %v8027 = vadd.f32 %v6808, %v8026
      %v8028 = vpop.f32.mrb[0].mxu0
      %v8029 = vadd.f32 %v6812, %v8028
      %8030 = vmatprep.mubr.bf16.mxu0 0
      %8031 = vmatmul.mubr.bf16.gmra.mrb[0].mxu0 %v6706
      %v8032 = vpop.f32.mrb[0].mxu0
      %v8033 = vadd.f32 %v6808, %v8032
      %v8034 = vpop.f32.mrb[0].mxu0
      %v8035 = vadd.f32 %v6812, %v8034
      %v8036 = vpop.f32.mrb[0].mxu0
      %v8037 = vadd.f32 %v6808, %v8036
      %v8038 = vpop.f32.mrb[0].mxu0
      %v8039 = vadd.f32 %v6812, %v8038
      %8040 = vmatprep.mubr.bf16.mxu0 0
      %8041 = vmatmul.mubr.bf16.gmra.mrb[0].mxu0 %v6707
      %v8042 = vpop.f32.mrb[0].mxu0
      %v8043 = vadd.f32 %v6808, %v8042
      %v8044 = vpop.f32.mrb[0].mxu0
      %v8045 = vadd.f32 %v6812, %v8044
      %v8046 = vpop.f32.mrb[0].mxu0
      %v8047 = vadd.f32 %v6808, %v8046
      %v8048 = vpop.f32.mrb[0].mxu0
      %v8049 = vadd.f32 %v6812, %v8048
      %8050 = vmatprep.mubr.bf16.mxu0 0
      %8051 = vmatmul.mubr.bf16.gmra.mrb[0].mxu0 %v6708
      %v8052 = vpop.f32.mrb[0].mxu0
      %v8053 = vadd.f32 %v6808, %v8052
      %v8054 = vpop.f32.mrb[0].mxu0
      %v8055 = vadd.f32 %v6812, %v8054
      %v8056 = vpop.f32.mrb[0].mxu0
      %v8057 = vadd.f32 %v6808, %v8056
      %v8058 = vpop.f32.mrb[0].mxu0
      %v8059 = vadd.f32 %v6812, %v8058
      %8060 = vmatprep.mubr.bf16.mxu0 0
      %8061 = vmatmul.mubr.bf16.gmra.mrb[0].mxu0 %v6709
      %v8062 = vpop.f32.mrb[0].mxu0
      %v8063 = vadd.f32 %v6808, %v8062
      %v8064 = vpop.f32.mrb[0].mxu0
      %v8065 = vadd.f32 %v6812, %v8064
      %v8066 = vpop.f32.mrb[0].mxu0
      %v8067 = vadd.f32 %v6808, %v8066
      %v8068 = vpop.f32.mrb[0].mxu0
      %v8069 = vadd.f32 %v6812, %v8068
      %8070 = vmatprep.mubr.bf16.mxu0 0
      %8071 = vmatmul.mubr.bf16.gmra.mrb[0].mxu0 %v6710
      %v8072 = vpop.f32.mrb[0].mxu0
      %v8073 = vadd.f32 %v6808, %v8072
      %v8074 = vpop.f32.mrb[0].mxu0
      %v8075 = vadd.f32 %v6812, %v8074
      %v8076 = vpop.f32.mrb[0].mxu0
      %v8077 = vadd.f32 %v6808, %v8076
      %v8078 = vpop.f32.mrb[0].mxu0
      %v8079 = vadd.f32 %v6812, %v8078
      %8080 = vmatprep.mubr.bf16.mxu0 0
      %8081 = vmatmul.mubr.bf16.gmra.mrb[0].mxu0 %v6711
      %v8082 = vpop.f32.mrb[0].mxu0
      %v8083 = vadd.f32 %v6808, %v8082
      %v8084 = vpop.f32.mrb[0].mxu0
      %v8085 = vadd.f32 %v6812, %v8084
      %v8086 = vpop.f32.mrb[0].mxu0
      %v8087 = vadd.f32 %v6808, %v8086
      %v8088 = vpop.f32.mrb[0].mxu0
      %v8089 = vadd.f32 %v6812, %v8088
      %8090 = vmatprep.mubr.bf16.mxu0 0
      %8091 = vmatmul.mubr.bf16.gmra.mrb[0].mxu0 %v6712
      %v8092 = vpop.f32.mrb[0].mxu0
      %v8093 = vadd.f32 %v6808, %v8092
      %v8094 = vpop.f32.mrb[0].mxu0
      %v8095 = vadd.f32 %v6812, %v8094
      %v8096 = vpop.f32.mrb[0].mxu0
      %v8097 = vadd.f32 %v6808, %v8096
      %v8098 = vpop.f32.mrb[0].mxu0
      %v8099 = vadd.f32 %v6812, %v8098
      %8100 = vmatprep.mubr.bf16.mxu0 0
      %8101 = vmatmul.mubr.bf16.gmra.mrb[0].mxu0 %v6713
      %v8102 = vpop.f32.mrb[0].mxu0
      %v8103 = vadd.f32 %v6808, %v8102
      %v8104 = vpop.f32.mrb[0].mxu0
      %v8105 = vadd.f32 %v6812, %v8104
      %v8106 = vpop.f32.mrb[0].mxu0
      %v8107 = vadd.f32 %v6808, %v8106
      %v8108 = vpop.f32.mrb[0].mxu0
      %v8109 = vadd.f32 %v6812, %v8108
      %8110 = vmatprep.mubr.bf16.mxu0 0
      %8111 = vmatmul.mubr.bf16.gmra.mrb[0].mxu0 %v6714
      %v8112 = vpop.f32.mrb[0].mxu0
      %v8113 = vadd.f32 %v6808, %v8112
      %v8114 = vpop.f32.mrb[0].mxu0
      %v8115 = vadd.f32 %v6812, %v8114
      %v8116 = vpop.f32.mrb[0].mxu0
      %v8117 = vadd.f32 %v6808, %v8116
      %v8118 = vpop.f32.mrb[0].mxu0
      %v8119 = vadd.f32 %v6812, %v8118
      %8120 = vmatprep.mubr.bf16.mxu0 0
      %8121 = vmatmul.mubr.bf16.gmra.mrb[0].mxu0 %v6715
      %v8122 = vpop.f32.mrb[0].mxu0
      %v8123 = vadd.f32 %v6808, %v8122
      %v8124 = vpop.f32.mrb[0].mxu0
      %v8125 = vadd.f32 %v6812, %v8124
      %v8126 = vpop.f32.mrb[0].mxu0
      %v8127 = vadd.f32 %v6808, %v8126
      %v8128 = vpop.f32.mrb[0].mxu0
      %v8129 = vadd.f32 %v6812, %v8128
      %8130 = vmatprep.mubr.bf16.mxu0 0
      %8131 = vmatmul.mubr.bf16.gmra.mrb[0].mxu0 %v6716
      %v8132 = vpop.f32.mrb[0].mxu0
      %v8133 = vadd.f32 %v6808, %v8132
      %v8134 = vpop.f32.mrb[0].mxu0
      %v8135 = vadd.f32 %v6812, %v8134
      %v8136 = vpop.f32.mrb[0].mxu0
      %v8137 = vadd.f32 %v6808, %v8136
      %v8138 = vpop.f32.mrb[0].mxu0
      %v8139 = vadd.f32 %v6812, %v8138
      %8140 = vmatprep.mubr.bf16.mxu0 0
      %8141 = vmatmul.mubr.bf16.gmra.mrb[0].mxu0 %v6717
      %v8142 = vpop.f32.mrb[0].mxu0
      %v8143 = vadd.f32 %v6808, %v8142
      %v8144 = vpop.f32.mrb[0].mxu0
      %v8145 = vadd.f32 %v6812, %v8144
      %v8146 = vpop.f32.mrb[0].mxu0
      %v8147 = vadd.f32 %v6808, %v8146
      %v8148 = vpop.f32.mrb[0].mxu0
      %v8149 = vadd.f32 %v6812, %v8148
      %8150 = vmatprep.mubr.bf16.mxu0 0
      %8151 = vmatmul.mubr.bf16.gmra.mrb[0].mxu0 %v6718
      %v8152 = vpop.f32.mrb[0].mxu0
      %v8153 = vadd.f32 %v6808, %v8152
      %v8154 = vpop.f32.mrb[0].mxu0
      %v8155 = vadd.f32 %v6812, %v8154
      %v8156 = vpop.f32.mrb[0].mxu0
      %v8157 = vadd.f32 %v6808, %v8156
      %v8158 = vpop.f32.mrb[0].mxu0
      %v8159 = vadd.f32 %v6812, %v8158
      %8160 = vmatprep.mubr.bf16.mxu0 0
      %8161 = vmatmul.mubr.bf16.gmra.mrb[0].mxu0 %v6719
      %v8162 = vpop.f32.mrb[0].mxu0
      %v8163 = vadd.f32 %v6808, %v8162
      %v8164 = vpop.f32.mrb[0].mxu0
      %v8165 = vadd.f32 %v6812, %v8164
      %v8166 = vpop.f32.mrb[0].mxu0
      %v8167 = vadd.f32 %v6808, %v8166
      %v8168 = vpop.f32.mrb[0].mxu0
      %v8169 = vadd.f32 %v6812, %v8168
      %8170 = vdwg.mxu0
      %8171 = vmatprep.subr.bf16.mxu0 0
      %8172 = vmatpush1.bf16.msra.mxu0 %v7006
      %8173 = vmatprep.subr.bf16.mxu0 0
      %8174 = vmatpush1.bf16.msra.mxu0 %v7013
      %8175 = vmatprep.subr.bf16.mxu0 0
      %8176 = vmatpush1.bf16.msra.mxu0 %v7020
      %8177 = vmatprep.subr.bf16.mxu0 0
      %8178 = vmatpush1.bf16.msra.mxu0 %v7027
      %8179 = vmatprep.subr.bf16.mxu0 0
      %8180 = vmatpush1.bf16.msra.mxu0 %v7034
      %8181 = vmatprep.subr.bf16.mxu0 0
      %8182 = vmatpush1.bf16.msra.mxu0 %v7041
      %8183 = vmatprep.subr.bf16.mxu0 0
      %8184 = vmatpush1.bf16.msra.mxu0 %v7048
      %8185 = vmatprep.subr.bf16.mxu0 0
      %8186 = vmatpush1.bf16.msra.mxu0 %v7055
      %8187 = vmatprep.subr.bf16.mxu0 0
      %8188 = vmatpush1.bf16.msra.mxu0 0
      %8189 = vmatprep.subr.bf16.mxu0 0
      %8190 = vmatpush1.bf16.msra.mxu0 0
      %8191 = vmatprep.subr.bf16.mxu0 0
      %8192 = vmatpush1.bf16.msra.mxu0 0
      %8193 = vmatprep.subr.bf16.mxu0 0
      %8194 = vmatpush1.bf16.msra.mxu0 0
      %8195 = vmatprep.subr.bf16.mxu0 0
      %8196 = vmatpush1.bf16.msra.mxu0 0
      %8197 = vmatprep.subr.bf16.mxu0 0
      %8198 = vmatpush1.bf16.msra.mxu0 0
      %8199 = vmatprep.subr.bf16.mxu0 0
      %8200 = vmatpush1.bf16.msra.mxu0 0
      %8201 = vmatprep.subr.bf16.mxu0 0
      %8202 = vmatpush1.bf16.msra.mxu0 0
      %8203 = vmatprep.mubr.bf16.mxu0 0
      %8204 = vmatmul.mubr.bf16.gmra.mrb[0].mxu0 %v6688
      %v8205 = vpop.f32.mrb[0].mxu0
      %v8206 = vadd.f32 %v6816, %v8205
      %v8207 = vpop.f32.mrb[0].mxu0
      %v8208 = vpop.f32.mrb[0].mxu0
      %v8209 = vadd.f32 %v6816, %v8208
      %v8210 = vpop.f32.mrb[0].mxu0
      %8211 = vmatprep.mubr.bf16.mxu0 0
      %8212 = vmatmul.mubr.bf16.gmra.mrb[0].mxu0 %v6689
      %v8213 = vpop.f32.mrb[0].mxu0
      %v8214 = vadd.f32 %v6816, %v8213
      %v8215 = vpop.f32.mrb[0].mxu0
      %v8216 = vpop.f32.mrb[0].mxu0
      %v8217 = vadd.f32 %v6816, %v8216
      %v8218 = vpop.f32.mrb[0].mxu0
      %8219 = vmatprep.mubr.bf16.mxu0 0
      %8220 = vmatmul.mubr.bf16.gmra.mrb[0].mxu0 %v6690
      %v8221 = vpop.f32.mrb[0].mxu0
      %v8222 = vadd.f32 %v6816, %v8221
      %v8223 = vpop.f32.mrb[0].mxu0
      %v8224 = vpop.f32.mrb[0].mxu0
      %v8225 = vadd.f32 %v6816, %v8224
      %v8226 = vpop.f32.mrb[0].mxu0
      %8227 = vmatprep.mubr.bf16.mxu0 0
      %8228 = vmatmul.mubr.bf16.gmra.mrb[0].mxu0 %v6691
      %v8229 = vpop.f32.mrb[0].mxu0
      %v8230 = vadd.f32 %v6816, %v8229
      %v8231 = vpop.f32.mrb[0].mxu0
      %v8232 = vpop.f32.mrb[0].mxu0
      %v8233 = vadd.f32 %v6816, %v8232
      %v8234 = vpop.f32.mrb[0].mxu0
      %8235 = vmatprep.mubr.bf16.mxu0 0
      %8236 = vmatmul.mubr.bf16.gmra.mrb[0].mxu0 %v6692
      %v8237 = vpop.f32.mrb[0].mxu0
      %v8238 = vadd.f32 %v6816, %v8237
      %v8239 = vpop.f32.mrb[0].mxu0
      %v8240 = vpop.f32.mrb[0].mxu0
      %v8241 = vadd.f32 %v6816, %v8240
      %v8242 = vpop.f32.mrb[0].mxu0
      %8243 = vmatprep.mubr.bf16.mxu0 0
      %8244 = vmatmul.mubr.bf16.gmra.mrb[0].mxu0 %v6693
      %v8245 = vpop.f32.mrb[0].mxu0
      %v8246 = vadd.f32 %v6816, %v8245
      %v8247 = vpop.f32.mrb[0].mxu0
      %v8248 = vpop.f32.mrb[0].mxu0
      %v8249 = vadd.f32 %v6816, %v8248
      %v8250 = vpop.f32.mrb[0].mxu0
      %8251 = vmatprep.mubr.bf16.mxu0 0
      %8252 = vmatmul.mubr.bf16.gmra.mrb[0].mxu0 %v6694
      %v8253 = vpop.f32.mrb[0].mxu0
      %v8254 = vadd.f32 %v6816, %v8253
      %v8255 = vpop.f32.mrb[0].mxu0
      %v8256 = vpop.f32.mrb[0].mxu0
      %v8257 = vadd.f32 %v6816, %v8256
      %v8258 = vpop.f32.mrb[0].mxu0
      %8259 = vmatprep.mubr.bf16.mxu0 0
      %8260 = vmatmul.mubr.bf16.gmra.mrb[0].mxu0 %v6695
      %v8261 = vpop.f32.mrb[0].mxu0
      %v8262 = vadd.f32 %v6816, %v8261
      %v8263 = vpop.f32.mrb[0].mxu0
      %v8264 = vpop.f32.mrb[0].mxu0
      %v8265 = vadd.f32 %v6816, %v8264
      %v8266 = vpop.f32.mrb[0].mxu0
      %8267 = vmatprep.mubr.bf16.mxu0 0
      %8268 = vmatmul.mubr.bf16.gmra.mrb[0].mxu0 %v6696
      %v8269 = vpop.f32.mrb[0].mxu0
      %v8270 = vadd.f32 %v6816, %v8269
      %v8271 = vpop.f32.mrb[0].mxu0
      %v8272 = vpop.f32.mrb[0].mxu0
      %v8273 = vadd.f32 %v6816, %v8272
      %v8274 = vpop.f32.mrb[0].mxu0
      %8275 = vmatprep.mubr.bf16.mxu0 0
      %8276 = vmatmul.mubr.bf16.gmra.mrb[0].mxu0 %v6697
      %v8277 = vpop.f32.mrb[0].mxu0
      %v8278 = vadd.f32 %v6816, %v8277
      %v8279 = vpop.f32.mrb[0].mxu0
      %v8280 = vpop.f32.mrb[0].mxu0
      %v8281 = vadd.f32 %v6816, %v8280
      %v8282 = vpop.f32.mrb[0].mxu0
      %8283 = vmatprep.mubr.bf16.mxu0 0
      %8284 = vmatmul.mubr.bf16.gmra.mrb[0].mxu0 %v6698
      %v8285 = vpop.f32.mrb[0].mxu0
      %v8286 = vadd.f32 %v6816, %v8285
      %v8287 = vpop.f32.mrb[0].mxu0
      %v8288 = vpop.f32.mrb[0].mxu0
      %v8289 = vadd.f32 %v6816, %v8288
      %v8290 = vpop.f32.mrb[0].mxu0
      %8291 = vmatprep.mubr.bf16.mxu0 0
      %8292 = vmatmul.mubr.bf16.gmra.mrb[0].mxu0 %v6699
      %v8293 = vpop.f32.mrb[0].mxu0
      %v8294 = vadd.f32 %v6816, %v8293
      %v8295 = vpop.f32.mrb[0].mxu0
      %v8296 = vpop.f32.mrb[0].mxu0
      %v8297 = vadd.f32 %v6816, %v8296
      %v8298 = vpop.f32.mrb[0].mxu0
      %8299 = vmatprep.mubr.bf16.mxu0 0
      %8300 = vmatmul.mubr.bf16.gmra.mrb[0].mxu0 %v6700
      %v8301 = vpop.f32.mrb[0].mxu0
      %v8302 = vadd.f32 %v6816, %v8301
      %v8303 = vpop.f32.mrb[0].mxu0
      %v8304 = vpop.f32.mrb[0].mxu0
      %v8305 = vadd.f32 %v6816, %v8304
      %v8306 = vpop.f32.mrb[0].mxu0
      %8307 = vmatprep.mubr.bf16.mxu0 0
      %8308 = vmatmul.mubr.bf16.gmra.mrb[0].mxu0 %v6701
      %v8309 = vpop.f32.mrb[0].mxu0
      %v8310 = vadd.f32 %v6816, %v8309
      %v8311 = vpop.f32.mrb[0].mxu0
      %v8312 = vpop.f32.mrb[0].mxu0
      %v8313 = vadd.f32 %v6816, %v8312
      %v8314 = vpop.f32.mrb[0].mxu0
      %8315 = vmatprep.mubr.bf16.mxu0 0
      %8316 = vmatmul.mubr.bf16.gmra.mrb[0].mxu0 %v6702
      %v8317 = vpop.f32.mrb[0].mxu0
      %v8318 = vadd.f32 %v6816, %v8317
      %v8319 = vpop.f32.mrb[0].mxu0
      %v8320 = vpop.f32.mrb[0].mxu0
      %v8321 = vadd.f32 %v6816, %v8320
      %v8322 = vpop.f32.mrb[0].mxu0
      %8323 = vmatprep.mubr.bf16.mxu0 0
      %8324 = vmatmul.mubr.bf16.gmra.mrb[0].mxu0 %v6703
      %v8325 = vpop.f32.mrb[0].mxu0
      %v8326 = vadd.f32 %v6816, %v8325
      %v8327 = vpop.f32.mrb[0].mxu0
      %v8328 = vpop.f32.mrb[0].mxu0
      %v8329 = vadd.f32 %v6816, %v8328
      %v8330 = vpop.f32.mrb[0].mxu0
      %8331 = vmatprep.mubr.bf16.mxu0 0
      %8332 = vmatmul.mubr.bf16.gmra.mrb[0].mxu0 %v6704
      %v8333 = vpop.f32.mrb[0].mxu0
      %v8334 = vadd.f32 %v6816, %v8333
      %v8335 = vpop.f32.mrb[0].mxu0
      %v8336 = vpop.f32.mrb[0].mxu0
      %v8337 = vadd.f32 %v6816, %v8336
      %v8338 = vpop.f32.mrb[0].mxu0
      %8339 = vmatprep.mubr.bf16.mxu0 0
      %8340 = vmatmul.mubr.bf16.gmra.mrb[0].mxu0 %v6705
      %v8341 = vpop.f32.mrb[0].mxu0
      %v8342 = vadd.f32 %v6816, %v8341
      %v8343 = vpop.f32.mrb[0].mxu0
      %v8344 = vpop.f32.mrb[0].mxu0
      %v8345 = vadd.f32 %v6816, %v8344
      %v8346 = vpop.f32.mrb[0].mxu0
      %8347 = vmatprep.mubr.bf16.mxu0 0
      %8348 = vmatmul.mubr.bf16.gmra.mrb[0].mxu0 %v6706
      %v8349 = vpop.f32.mrb[0].mxu0
      %v8350 = vadd.f32 %v6816, %v8349
      %v8351 = vpop.f32.mrb[0].mxu0
      %v8352 = vpop.f32.mrb[0].mxu0
      %v8353 = vadd.f32 %v6816, %v8352
      %v8354 = vpop.f32.mrb[0].mxu0
      %8355 = vmatprep.mubr.bf16.mxu0 0
      %8356 = vmatmul.mubr.bf16.gmra.mrb[0].mxu0 %v6707
      %v8357 = vpop.f32.mrb[0].mxu0
      %v8358 = vadd.f32 %v6816, %v8357
      %v8359 = vpop.f32.mrb[0].mxu0
      %v8360 = vpop.f32.mrb[0].mxu0
      %v8361 = vadd.f32 %v6816, %v8360
      %v8362 = vpop.f32.mrb[0].mxu0
      %8363 = vmatprep.mubr.bf16.mxu0 0
      %8364 = vmatmul.mubr.bf16.gmra.mrb[0].mxu0 %v6708
      %v8365 = vpop.f32.mrb[0].mxu0
      %v8366 = vadd.f32 %v6816, %v8365
      %v8367 = vpop.f32.mrb[0].mxu0
      %v8368 = vpop.f32.mrb[0].mxu0
      %v8369 = vadd.f32 %v6816, %v8368
      %v8370 = vpop.f32.mrb[0].mxu0
      %8371 = vmatprep.mubr.bf16.mxu0 0
      %8372 = vmatmul.mubr.bf16.gmra.mrb[0].mxu0 %v6709
      %v8373 = vpop.f32.mrb[0].mxu0
      %v8374 = vadd.f32 %v6816, %v8373
      %v8375 = vpop.f32.mrb[0].mxu0
      %v8376 = vpop.f32.mrb[0].mxu0
      %v8377 = vadd.f32 %v6816, %v8376
      %v8378 = vpop.f32.mrb[0].mxu0
      %8379 = vmatprep.mubr.bf16.mxu0 0
      %8380 = vmatmul.mubr.bf16.gmra.mrb[0].mxu0 %v6710
      %v8381 = vpop.f32.mrb[0].mxu0
      %v8382 = vadd.f32 %v6816, %v8381
      %v8383 = vpop.f32.mrb[0].mxu0
      %v8384 = vpop.f32.mrb[0].mxu0
      %v8385 = vadd.f32 %v6816, %v8384
      %v8386 = vpop.f32.mrb[0].mxu0
      %8387 = vmatprep.mubr.bf16.mxu0 0
      %8388 = vmatmul.mubr.bf16.gmra.mrb[0].mxu0 %v6711
      %v8389 = vpop.f32.mrb[0].mxu0
      %v8390 = vadd.f32 %v6816, %v8389
      %v8391 = vpop.f32.mrb[0].mxu0
      %v8392 = vpop.f32.mrb[0].mxu0
      %v8393 = vadd.f32 %v6816, %v8392
      %v8394 = vpop.f32.mrb[0].mxu0
      %8395 = vmatprep.mubr.bf16.mxu0 0
      %8396 = vmatmul.mubr.bf16.gmra.mrb[0].mxu0 %v6712
      %v8397 = vpop.f32.mrb[0].mxu0
      %v8398 = vadd.f32 %v6816, %v8397
      %v8399 = vpop.f32.mrb[0].mxu0
      %v8400 = vpop.f32.mrb[0].mxu0
      %v8401 = vadd.f32 %v6816, %v8400
      %v8402 = vpop.f32.mrb[0].mxu0
      %8403 = vmatprep.mubr.bf16.mxu0 0
      %8404 = vmatmul.mubr.bf16.gmra.mrb[0].mxu0 %v6713
      %v8405 = vpop.f32.mrb[0].mxu0
      %v8406 = vadd.f32 %v6816, %v8405
      %v8407 = vpop.f32.mrb[0].mxu0
      %v8408 = vpop.f32.mrb[0].mxu0
      %v8409 = vadd.f32 %v6816, %v8408
      %v8410 = vpop.f32.mrb[0].mxu0
      %8411 = vmatprep.mubr.bf16.mxu0 0
      %8412 = vmatmul.mubr.bf16.gmra.mrb[0].mxu0 %v6714
      %v8413 = vpop.f32.mrb[0].mxu0
      %v8414 = vadd.f32 %v6816, %v8413
      %v8415 = vpop.f32.mrb[0].mxu0
      %v8416 = vpop.f32.mrb[0].mxu0
      %v8417 = vadd.f32 %v6816, %v8416
      %v8418 = vpop.f32.mrb[0].mxu0
      %8419 = vmatprep.mubr.bf16.mxu0 0
      %8420 = vmatmul.mubr.bf16.gmra.mrb[0].mxu0 %v6715
      %v8421 = vpop.f32.mrb[0].mxu0
      %v8422 = vadd.f32 %v6816, %v8421
      %v8423 = vpop.f32.mrb[0].mxu0
      %v8424 = vpop.f32.mrb[0].mxu0
      %v8425 = vadd.f32 %v6816, %v8424
      %v8426 = vpop.f32.mrb[0].mxu0
      %8427 = vmatprep.mubr.bf16.mxu0 0
      %8428 = vmatmul.mubr.bf16.gmra.mrb[0].mxu0 %v6716
      %v8429 = vpop.f32.mrb[0].mxu0
      %v8430 = vadd.f32 %v6816, %v8429
      %v8431 = vpop.f32.mrb[0].mxu0
      %v8432 = vpop.f32.mrb[0].mxu0
      %v8433 = vadd.f32 %v6816, %v8432
      %v8434 = vpop.f32.mrb[0].mxu0
      %8435 = vmatprep.mubr.bf16.mxu0 0
      %8436 = vmatmul.mubr.bf16.gmra.mrb[0].mxu0 %v6717
      %v8437 = vpop.f32.mrb[0].mxu0
      %v8438 = vadd.f32 %v6816, %v8437
      %v8439 = vpop.f32.mrb[0].mxu0
      %v8440 = vpop.f32.mrb[0].mxu0
      %v8441 = vadd.f32 %v6816, %v8440
      %v8442 = vpop.f32.mrb[0].mxu0
      %8443 = vmatprep.mubr.bf16.mxu0 0
      %8444 = vmatmul.mubr.bf16.gmra.mrb[0].mxu0 %v6718
      %v8445 = vpop.f32.mrb[0].mxu0
      %v8446 = vadd.f32 %v6816, %v8445
      %v8447 = vpop.f32.mrb[0].mxu0
      %v8448 = vpop.f32.mrb[0].mxu0
      %v8449 = vadd.f32 %v6816, %v8448
      %v8450 = vpop.f32.mrb[0].mxu0
      %8451 = vmatprep.mubr.bf16.mxu0 0
      %8452 = vmatmul.mubr.bf16.gmra.mrb[0].mxu0 %v6719
      %v8453 = vpop.f32.mrb[0].mxu0
      %v8454 = vadd.f32 %v6816, %v8453
      %v8455 = vpop.f32.mrb[0].mxu0
      %v8456 = vpop.f32.mrb[0].mxu0
      %v8457 = vadd.f32 %v6816, %v8456
      %v8458 = vpop.f32.mrb[0].mxu0
      %8459 = vdwg.mxu0
      %v8460 = vxor.u32 %v7147, 2147483648
      %v8461 = vxor.u32 %v7149, 2147483648
      %v8462 = vxor.u32 %v7500, 2147483648
      %v8463 = vxor.u32 %v7502, 2147483648
      %v8464 = vxor.u32 %v7853, 2147483648
      %v8465 = vxor.u32 %v7855, 2147483648
      %v8466 = vxor.u32 %v8206, 2147483648
      %v8467 = vxor.u32 %v7151, 2147483648
      %v8468 = vxor.u32 %v7153, 2147483648
      %v8469 = vxor.u32 %v7504, 2147483648
      %v8470 = vxor.u32 %v7506, 2147483648
      %v8471 = vxor.u32 %v7857, 2147483648
      %v8472 = vxor.u32 %v7859, 2147483648
      %v8473 = vxor.u32 %v8209, 2147483648
      %v8474 = vxor.u32 %v7157, 2147483648
      %v8475 = vxor.u32 %v7159, 2147483648
      %v8476 = vxor.u32 %v7510, 2147483648
      %v8477 = vxor.u32 %v7512, 2147483648
      %v8478 = vxor.u32 %v7863, 2147483648
      %v8479 = vxor.u32 %v7865, 2147483648
      %v8480 = vxor.u32 %v8214, 2147483648
      %v8481 = vxor.u32 %v7161, 2147483648
      %v8482 = vxor.u32 %v7163, 2147483648
      %v8483 = vxor.u32 %v7514, 2147483648
      %v8484 = vxor.u32 %v7516, 2147483648
      %v8485 = vxor.u32 %v7867, 2147483648
      %v8486 = vxor.u32 %v7869, 2147483648
      %v8487 = vxor.u32 %v8217, 2147483648
      %v8488 = vxor.u32 %v7167, 2147483648
      %v8489 = vxor.u32 %v7169, 2147483648
      %v8490 = vxor.u32 %v7520, 2147483648
      %v8491 = vxor.u32 %v7522, 2147483648
      %v8492 = vxor.u32 %v7873, 2147483648
      %v8493 = vxor.u32 %v7875, 2147483648
      %v8494 = vxor.u32 %v8222, 2147483648
      %v8495 = vxor.u32 %v7171, 2147483648
      %v8496 = vxor.u32 %v7173, 2147483648
      %v8497 = vxor.u32 %v7524, 2147483648
      %v8498 = vxor.u32 %v7526, 2147483648
      %v8499 = vxor.u32 %v7877, 2147483648
      %v8500 = vxor.u32 %v7879, 2147483648
      %v8501 = vxor.u32 %v8225, 2147483648
      %v8502 = vxor.u32 %v7177, 2147483648
      %v8503 = vxor.u32 %v7179, 2147483648
      %v8504 = vxor.u32 %v7530, 2147483648
      %v8505 = vxor.u32 %v7532, 2147483648
      %v8506 = vxor.u32 %v7883, 2147483648
      %v8507 = vxor.u32 %v7885, 2147483648
      %v8508 = vxor.u32 %v8230, 2147483648
      %v8509 = vxor.u32 %v7181, 2147483648
      %v8510 = vxor.u32 %v7183, 2147483648
      %v8511 = vxor.u32 %v7534, 2147483648
      %v8512 = vxor.u32 %v7536, 2147483648
      %v8513 = vxor.u32 %v7887, 2147483648
      %v8514 = vxor.u32 %v7889, 2147483648
      %v8515 = vxor.u32 %v8233, 2147483648
      %v8516 = vxor.u32 %v7187, 2147483648
      %v8517 = vxor.u32 %v7189, 2147483648
      %v8518 = vxor.u32 %v7540, 2147483648
      %v8519 = vxor.u32 %v7542, 2147483648
      %v8520 = vxor.u32 %v7893, 2147483648
      %v8521 = vxor.u32 %v7895, 2147483648
      %v8522 = vxor.u32 %v8238, 2147483648
      %v8523 = vxor.u32 %v7191, 2147483648
      %v8524 = vxor.u32 %v7193, 2147483648
      %v8525 = vxor.u32 %v7544, 2147483648
      %v8526 = vxor.u32 %v7546, 2147483648
      %v8527 = vxor.u32 %v7897, 2147483648
      %v8528 = vxor.u32 %v7899, 2147483648
      %v8529 = vxor.u32 %v8241, 2147483648
      %v8530 = vxor.u32 %v7197, 2147483648
      %v8531 = vxor.u32 %v7199, 2147483648
      %v8532 = vxor.u32 %v7550, 2147483648
      %v8533 = vxor.u32 %v7552, 2147483648
      %v8534 = vxor.u32 %v7903, 2147483648
      %v8535 = vxor.u32 %v7905, 2147483648
      %v8536 = vxor.u32 %v8246, 2147483648
      %v8537 = vxor.u32 %v7201, 2147483648
      %v8538 = vxor.u32 %v7203, 2147483648
      %v8539 = vxor.u32 %v7554, 2147483648
      %v8540 = vxor.u32 %v7556, 2147483648
      %v8541 = vxor.u32 %v7907, 2147483648
      %v8542 = vxor.u32 %v7909, 2147483648
      %v8543 = vxor.u32 %v8249, 2147483648
      %v8544 = vxor.u32 %v7207, 2147483648
      %v8545 = vxor.u32 %v7209, 2147483648
      %v8546 = vxor.u32 %v7560, 2147483648
      %v8547 = vxor.u32 %v7562, 2147483648
      %v8548 = vxor.u32 %v7913, 2147483648
      %v8549 = vxor.u32 %v7915, 2147483648
      %v8550 = vxor.u32 %v8254, 2147483648
      %v8551 = vxor.u32 %v7211, 2147483648
      %v8552 = vxor.u32 %v7213, 2147483648
      %v8553 = vxor.u32 %v7564, 2147483648
      %v8554 = vxor.u32 %v7566, 2147483648
      %v8555 = vxor.u32 %v7917, 2147483648
      %v8556 = vxor.u32 %v7919, 2147483648
      %v8557 = vxor.u32 %v8257, 2147483648
      %v8558 = vxor.u32 %v7217, 2147483648
      %v8559 = vxor.u32 %v7219, 2147483648
      %v8560 = vxor.u32 %v7570, 2147483648
      %v8561 = vxor.u32 %v7572, 2147483648
      %v8562 = vxor.u32 %v7923, 2147483648
      %v8563 = vxor.u32 %v7925, 2147483648
      %v8564 = vxor.u32 %v8262, 2147483648
      %v8565 = vxor.u32 %v7221, 2147483648
      %v8566 = vxor.u32 %v7223, 2147483648
      %v8567 = vxor.u32 %v7574, 2147483648
      %v8568 = vxor.u32 %v7576, 2147483648
      %v8569 = vxor.u32 %v7927, 2147483648
      %v8570 = vxor.u32 %v7929, 2147483648
      %v8571 = vxor.u32 %v8265, 2147483648
      %v8572 = vxor.u32 %v7227, 2147483648
      %v8573 = vxor.u32 %v7229, 2147483648
      %v8574 = vxor.u32 %v7580, 2147483648
      %v8575 = vxor.u32 %v7582, 2147483648
      %v8576 = vxor.u32 %v7933, 2147483648
      %v8577 = vxor.u32 %v7935, 2147483648
      %v8578 = vxor.u32 %v8270, 2147483648
      %v8579 = vxor.u32 %v7231, 2147483648
      %v8580 = vxor.u32 %v7233, 2147483648
      %v8581 = vxor.u32 %v7584, 2147483648
      %v8582 = vxor.u32 %v7586, 2147483648
      %v8583 = vxor.u32 %v7937, 2147483648
      %v8584 = vxor.u32 %v7939, 2147483648
      %v8585 = vxor.u32 %v8273, 2147483648
      %v8586 = vxor.u32 %v7237, 2147483648
      %v8587 = vxor.u32 %v7239, 2147483648
      %v8588 = vxor.u32 %v7590, 2147483648
      %v8589 = vxor.u32 %v7592, 2147483648
      %v8590 = vxor.u32 %v7943, 2147483648
      %v8591 = vxor.u32 %v7945, 2147483648
      %v8592 = vxor.u32 %v8278, 2147483648
      %v8593 = vxor.u32 %v7241, 2147483648
      %v8594 = vxor.u32 %v7243, 2147483648
      %v8595 = vxor.u32 %v7594, 2147483648
      %v8596 = vxor.u32 %v7596, 2147483648
      %v8597 = vxor.u32 %v7947, 2147483648
      %v8598 = vxor.u32 %v7949, 2147483648
      %v8599 = vxor.u32 %v8281, 2147483648
      %v8600 = vxor.u32 %v7247, 2147483648
      %v8601 = vxor.u32 %v7249, 2147483648
      %v8602 = vxor.u32 %v7600, 2147483648
      %v8603 = vxor.u32 %v7602, 2147483648
      %v8604 = vxor.u32 %v7953, 2147483648
      %v8605 = vxor.u32 %v7955, 2147483648
      %v8606 = vxor.u32 %v8286, 2147483648
      %v8607 = vxor.u32 %v7251, 2147483648
      %v8608 = vxor.u32 %v7253, 2147483648
      %v8609 = vxor.u32 %v7604, 2147483648
      %v8610 = vxor.u32 %v7606, 2147483648
      %v8611 = vxor.u32 %v7957, 2147483648
      %v8612 = vxor.u32 %v7959, 2147483648
      %v8613 = vxor.u32 %v8289, 2147483648
      %v8614 = vxor.u32 %v7257, 2147483648
      %v8615 = vxor.u32 %v7259, 2147483648
      %v8616 = vxor.u32 %v7610, 2147483648
      %v8617 = vxor.u32 %v7612, 2147483648
      %v8618 = vxor.u32 %v7963, 2147483648
      %v8619 = vxor.u32 %v7965, 2147483648
      %v8620 = vxor.u32 %v8294, 2147483648
      %v8621 = vxor.u32 %v7261, 2147483648
      %v8622 = vxor.u32 %v7263, 2147483648
      %v8623 = vxor.u32 %v7614, 2147483648
      %v8624 = vxor.u32 %v7616, 2147483648
      %v8625 = vxor.u32 %v7967, 2147483648
      %v8626 = vxor.u32 %v7969, 2147483648
      %v8627 = vxor.u32 %v8297, 2147483648
      %v8628 = vxor.u32 %v7267, 2147483648
      %v8629 = vxor.u32 %v7269, 2147483648
      %v8630 = vxor.u32 %v7620, 2147483648
      %v8631 = vxor.u32 %v7622, 2147483648
      %v8632 = vxor.u32 %v7973, 2147483648
      %v8633 = vxor.u32 %v7975, 2147483648
      %v8634 = vxor.u32 %v8302, 2147483648
      %v8635 = vxor.u32 %v7271, 2147483648
      %v8636 = vxor.u32 %v7273, 2147483648
      %v8637 = vxor.u32 %v7624, 2147483648
      %v8638 = vxor.u32 %v7626, 2147483648
      %v8639 = vxor.u32 %v7977, 2147483648
      %v8640 = vxor.u32 %v7979, 2147483648
      %v8641 = vxor.u32 %v8305, 2147483648
      %v8642 = vxor.u32 %v7277, 2147483648
      %v8643 = vxor.u32 %v7279, 2147483648
      %v8644 = vxor.u32 %v7630, 2147483648
      %v8645 = vxor.u32 %v7632, 2147483648
      %v8646 = vxor.u32 %v7983, 2147483648
      %v8647 = vxor.u32 %v7985, 2147483648
      %v8648 = vxor.u32 %v8310, 2147483648
      %v8649 = vxor.u32 %v7281, 2147483648
      %v8650 = vxor.u32 %v7283, 2147483648
      %v8651 = vxor.u32 %v7634, 2147483648
      %v8652 = vxor.u32 %v7636, 2147483648
      %v8653 = vxor.u32 %v7987, 2147483648
      %v8654 = vxor.u32 %v7989, 2147483648
      %v8655 = vxor.u32 %v8313, 2147483648
      %v8656 = vxor.u32 %v7287, 2147483648
      %v8657 = vxor.u32 %v7289, 2147483648
      %v8658 = vxor.u32 %v7640, 2147483648
      %v8659 = vxor.u32 %v7642, 2147483648
      %v8660 = vxor.u32 %v7993, 2147483648
      %v8661 = vxor.u32 %v7995, 2147483648
      %v8662 = vxor.u32 %v8318, 2147483648
      %v8663 = vxor.u32 %v7291, 2147483648
      %v8664 = vxor.u32 %v7293, 2147483648
      %v8665 = vxor.u32 %v7644, 2147483648
      %v8666 = vxor.u32 %v7646, 2147483648
      %v8667 = vxor.u32 %v7997, 2147483648
      %v8668 = vxor.u32 %v7999, 2147483648
      %v8669 = vxor.u32 %v8321, 2147483648
      %v8670 = vxor.u32 %v7297, 2147483648
      %v8671 = vxor.u32 %v7299, 2147483648
      %v8672 = vxor.u32 %v7650, 2147483648
      %v8673 = vxor.u32 %v7652, 2147483648
      %v8674 = vxor.u32 %v8003, 2147483648
      %v8675 = vxor.u32 %v8005, 2147483648
      %v8676 = vxor.u32 %v8326, 2147483648
      %v8677 = vxor.u32 %v7301, 2147483648
      %v8678 = vxor.u32 %v7303, 2147483648
      %v8679 = vxor.u32 %v7654, 2147483648
      %v8680 = vxor.u32 %v7656, 2147483648
      %v8681 = vxor.u32 %v8007, 2147483648
      %v8682 = vxor.u32 %v8009, 2147483648
      %v8683 = vxor.u32 %v8329, 2147483648
      %v8684 = vxor.u32 %v7307, 2147483648
      %v8685 = vxor.u32 %v7309, 2147483648
      %v8686 = vxor.u32 %v7660, 2147483648
      %v8687 = vxor.u32 %v7662, 2147483648
      %v8688 = vxor.u32 %v8013, 2147483648
      %v8689 = vxor.u32 %v8015, 2147483648
      %v8690 = vxor.u32 %v8334, 2147483648
      %v8691 = vxor.u32 %v7311, 2147483648
      %v8692 = vxor.u32 %v7313, 2147483648
      %v8693 = vxor.u32 %v7664, 2147483648
      %v8694 = vxor.u32 %v7666, 2147483648
      %v8695 = vxor.u32 %v8017, 2147483648
      %v8696 = vxor.u32 %v8019, 2147483648
      %v8697 = vxor.u32 %v8337, 2147483648
      %v8698 = vxor.u32 %v7317, 2147483648
      %v8699 = vxor.u32 %v7319, 2147483648
      %v8700 = vxor.u32 %v7670, 2147483648
      %v8701 = vxor.u32 %v7672, 2147483648
      %v8702 = vxor.u32 %v8023, 2147483648
      %v8703 = vxor.u32 %v8025, 2147483648
      %v8704 = vxor.u32 %v8342, 2147483648
      %v8705 = vxor.u32 %v7321, 2147483648
      %v8706 = vxor.u32 %v7323, 2147483648
      %v8707 = vxor.u32 %v7674, 2147483648
      %v8708 = vxor.u32 %v7676, 2147483648
      %v8709 = vxor.u32 %v8027, 2147483648
      %v8710 = vxor.u32 %v8029, 2147483648
      %v8711 = vxor.u32 %v8345, 2147483648
      %v8712 = vxor.u32 %v7327, 2147483648
      %v8713 = vxor.u32 %v7329, 2147483648
      %v8714 = vxor.u32 %v7680, 2147483648
      %v8715 = vxor.u32 %v7682, 2147483648
      %v8716 = vxor.u32 %v8033, 2147483648
      %v8717 = vxor.u32 %v8035, 2147483648
      %v8718 = vxor.u32 %v8350, 2147483648
      %v8719 = vxor.u32 %v7331, 2147483648
      %v8720 = vxor.u32 %v7333, 2147483648
      %v8721 = vxor.u32 %v7684, 2147483648
      %v8722 = vxor.u32 %v7686, 2147483648
      %v8723 = vxor.u32 %v8037, 2147483648
      %v8724 = vxor.u32 %v8039, 2147483648
      %v8725 = vxor.u32 %v8353, 2147483648
      %v8726 = vxor.u32 %v7337, 2147483648
      %v8727 = vxor.u32 %v7339, 2147483648
      %v8728 = vxor.u32 %v7690, 2147483648
      %v8729 = vxor.u32 %v7692, 2147483648
      %v8730 = vxor.u32 %v8043, 2147483648
      %v8731 = vxor.u32 %v8045, 2147483648
      %v8732 = vxor.u32 %v8358, 2147483648
      %v8733 = vxor.u32 %v7341, 2147483648
      %v8734 = vxor.u32 %v7343, 2147483648
      %v8735 = vxor.u32 %v7694, 2147483648
      %v8736 = vxor.u32 %v7696, 2147483648
      %v8737 = vxor.u32 %v8047, 2147483648
      %v8738 = vxor.u32 %v8049, 2147483648
      %v8739 = vxor.u32 %v8361, 2147483648
      %v8740 = vxor.u32 %v7347, 2147483648
      %v8741 = vxor.u32 %v7349, 2147483648
      %v8742 = vxor.u32 %v7700, 2147483648
      %v8743 = vxor.u32 %v7702, 2147483648
      %v8744 = vxor.u32 %v8053, 2147483648
      %v8745 = vxor.u32 %v8055, 2147483648
      %v8746 = vxor.u32 %v8366, 2147483648
      %v8747 = vxor.u32 %v7351, 2147483648
      %v8748 = vxor.u32 %v7353, 2147483648
      %v8749 = vxor.u32 %v7704, 2147483648
      %v8750 = vxor.u32 %v7706, 2147483648
      %v8751 = vxor.u32 %v8057, 2147483648
      %v8752 = vxor.u32 %v8059, 2147483648
      %v8753 = vxor.u32 %v8369, 2147483648
      %v8754 = vxor.u32 %v7357, 2147483648
      %v8755 = vxor.u32 %v7359, 2147483648
      %v8756 = vxor.u32 %v7710, 2147483648
      %v8757 = vxor.u32 %v7712, 2147483648
      %v8758 = vxor.u32 %v8063, 2147483648
      %v8759 = vxor.u32 %v8065, 2147483648
      %v8760 = vxor.u32 %v8374, 2147483648
      %v8761 = vxor.u32 %v7361, 2147483648
      %v8762 = vxor.u32 %v7363, 2147483648
      %v8763 = vxor.u32 %v7714, 2147483648
      %v8764 = vxor.u32 %v7716, 2147483648
      %v8765 = vxor.u32 %v8067, 2147483648
      %v8766 = vxor.u32 %v8069, 2147483648
      %v8767 = vxor.u32 %v8377, 2147483648
      %v8768 = vxor.u32 %v7367, 2147483648
      %v8769 = vxor.u32 %v7369, 2147483648
      %v8770 = vxor.u32 %v7720, 2147483648
      %v8771 = vxor.u32 %v7722, 2147483648
      %v8772 = vxor.u32 %v8073, 2147483648
      %v8773 = vxor.u32 %v8075, 2147483648
      %v8774 = vxor.u32 %v8382, 2147483648
      %v8775 = vxor.u32 %v7371, 2147483648
      %v8776 = vxor.u32 %v7373, 2147483648
      %v8777 = vxor.u32 %v7724, 2147483648
      %v8778 = vxor.u32 %v7726, 2147483648
      %v8779 = vxor.u32 %v8077, 2147483648
      %v8780 = vxor.u32 %v8079, 2147483648
      %v8781 = vxor.u32 %v8385, 2147483648
      %v8782 = vxor.u32 %v7377, 2147483648
      %v8783 = vxor.u32 %v7379, 2147483648
      %v8784 = vxor.u32 %v7730, 2147483648
      %v8785 = vxor.u32 %v7732, 2147483648
      %v8786 = vxor.u32 %v8083, 2147483648
      %v8787 = vxor.u32 %v8085, 2147483648
      %v8788 = vxor.u32 %v8390, 2147483648
      %v8789 = vxor.u32 %v7381, 2147483648
      %v8790 = vxor.u32 %v7383, 2147483648
      %v8791 = vxor.u32 %v7734, 2147483648
      %v8792 = vxor.u32 %v7736, 2147483648
      %v8793 = vxor.u32 %v8087, 2147483648
      %v8794 = vxor.u32 %v8089, 2147483648
      %v8795 = vxor.u32 %v8393, 2147483648
      %v8796 = vxor.u32 %v7387, 2147483648
      %v8797 = vxor.u32 %v7389, 2147483648
      %v8798 = vxor.u32 %v7740, 2147483648
      %v8799 = vxor.u32 %v7742, 2147483648
      %v8800 = vxor.u32 %v8093, 2147483648
      %v8801 = vxor.u32 %v8095, 2147483648
      %v8802 = vxor.u32 %v8398, 2147483648
      %v8803 = vxor.u32 %v7391, 2147483648
      %v8804 = vxor.u32 %v7393, 2147483648
      %v8805 = vxor.u32 %v7744, 2147483648
      %v8806 = vxor.u32 %v7746, 2147483648
      %v8807 = vxor.u32 %v8097, 2147483648
      %v8808 = vxor.u32 %v8099, 2147483648
      %v8809 = vxor.u32 %v8401, 2147483648
      %v8810 = vxor.u32 %v7397, 2147483648
      %v8811 = vxor.u32 %v7399, 2147483648
      %v8812 = vxor.u32 %v7750, 2147483648
      %v8813 = vxor.u32 %v7752, 2147483648
      %v8814 = vxor.u32 %v8103, 2147483648
      %v8815 = vxor.u32 %v8105, 2147483648
      %v8816 = vxor.u32 %v8406, 2147483648
      %v8817 = vxor.u32 %v7401, 2147483648
      %v8818 = vxor.u32 %v7403, 2147483648
      %v8819 = vxor.u32 %v7754, 2147483648
      %v8820 = vxor.u32 %v7756, 2147483648
      %v8821 = vxor.u32 %v8107, 2147483648
      %v8822 = vxor.u32 %v8109, 2147483648
      %v8823 = vxor.u32 %v8409, 2147483648
      %v8824 = vxor.u32 %v7407, 2147483648
      %v8825 = vxor.u32 %v7409, 2147483648
      %v8826 = vxor.u32 %v7760, 2147483648
      %v8827 = vxor.u32 %v7762, 2147483648
      %v8828 = vxor.u32 %v8113, 2147483648
      %v8829 = vxor.u32 %v8115, 2147483648
      %v8830 = vxor.u32 %v8414, 2147483648
      %v8831 = vxor.u32 %v7411, 2147483648
      %v8832 = vxor.u32 %v7413, 2147483648
      %v8833 = vxor.u32 %v7764, 2147483648
      %v8834 = vxor.u32 %v7766, 2147483648
      %v8835 = vxor.u32 %v8117, 2147483648
      %v8836 = vxor.u32 %v8119, 2147483648
      %v8837 = vxor.u32 %v8417, 2147483648
      %v8838 = vxor.u32 %v7417, 2147483648
      %v8839 = vxor.u32 %v7419, 2147483648
      %v8840 = vxor.u32 %v7770, 2147483648
      %v8841 = vxor.u32 %v7772, 2147483648
      %v8842 = vxor.u32 %v8123, 2147483648
      %v8843 = vxor.u32 %v8125, 2147483648
      %v8844 = vxor.u32 %v8422, 2147483648
      %v8845 = vxor.u32 %v7421, 2147483648
      %v8846 = vxor.u32 %v7423, 2147483648
      %v8847 = vxor.u32 %v7774, 2147483648
      %v8848 = vxor.u32 %v7776, 2147483648
      %v8849 = vxor.u32 %v8127, 2147483648
      %v8850 = vxor.u32 %v8129, 2147483648
      %v8851 = vxor.u32 %v8425, 2147483648
      %v8852 = vxor.u32 %v7427, 2147483648
      %v8853 = vxor.u32 %v7429, 2147483648
      %v8854 = vxor.u32 %v7780, 2147483648
      %v8855 = vxor.u32 %v7782, 2147483648
      %v8856 = vxor.u32 %v8133, 2147483648
      %v8857 = vxor.u32 %v8135, 2147483648
      %v8858 = vxor.u32 %v8430, 2147483648
      %v8859 = vxor.u32 %v7431, 2147483648
      %v8860 = vxor.u32 %v7433, 2147483648
      %v8861 = vxor.u32 %v7784, 2147483648
      %v8862 = vxor.u32 %v7786, 2147483648
      %v8863 = vxor.u32 %v8137, 2147483648
      %v8864 = vxor.u32 %v8139, 2147483648
      %v8865 = vxor.u32 %v8433, 2147483648
      %v8866 = vxor.u32 %v7437, 2147483648
      %v8867 = vxor.u32 %v7439, 2147483648
      %v8868 = vxor.u32 %v7790, 2147483648
      %v8869 = vxor.u32 %v7792, 2147483648
      %v8870 = vxor.u32 %v8143, 2147483648
      %v8871 = vxor.u32 %v8145, 2147483648
      %v8872 = vxor.u32 %v8438, 2147483648
      %v8873 = vxor.u32 %v7441, 2147483648
      %v8874 = vxor.u32 %v7443, 2147483648
      %v8875 = vxor.u32 %v7794, 2147483648
      %v8876 = vxor.u32 %v7796, 2147483648
      %v8877 = vxor.u32 %v8147, 2147483648
      %v8878 = vxor.u32 %v8149, 2147483648
      %v8879 = vxor.u32 %v8441, 2147483648
      %v8880 = vxor.u32 %v7447, 2147483648
      %v8881 = vxor.u32 %v7449, 2147483648
      %v8882 = vxor.u32 %v7800, 2147483648
      %v8883 = vxor.u32 %v7802, 2147483648
      %v8884 = vxor.u32 %v8153, 2147483648
      %v8885 = vxor.u32 %v8155, 2147483648
      %v8886 = vxor.u32 %v8446, 2147483648
      %v8887 = vxor.u32 %v7451, 2147483648
      %v8888 = vxor.u32 %v7453, 2147483648
      %v8889 = vxor.u32 %v7804, 2147483648
      %v8890 = vxor.u32 %v7806, 2147483648
      %v8891 = vxor.u32 %v8157, 2147483648
      %v8892 = vxor.u32 %v8159, 2147483648
      %v8893 = vxor.u32 %v8449, 2147483648
      %v8894 = vxor.u32 %v7457, 2147483648
      %v8895 = vxor.u32 %v7459, 2147483648
      %v8896 = vxor.u32 %v7810, 2147483648
      %v8897 = vxor.u32 %v7812, 2147483648
      %v8898 = vxor.u32 %v8163, 2147483648
      %v8899 = vxor.u32 %v8165, 2147483648
      %v8900 = vxor.u32 %v8454, 2147483648
      %v8901 = vxor.u32 %v7461, 2147483648
      %v8902 = vxor.u32 %v7463, 2147483648
      %v8903 = vxor.u32 %v7814, 2147483648
      %v8904 = vxor.u32 %v7816, 2147483648
      %v8905 = vxor.u32 %v8167, 2147483648
      %v8906 = vxor.u32 %v8169, 2147483648
      %v8907 = vxor.u32 %v8457, 2147483648
      %v8908 = vmul.f32 %v8460, 1.442695
      %v8909 = vpow.pop %v8908
      %v8910 = vmul.f32 %v8461, 1.442695
      %v8911 = vpow.pop %v8910
      %v8912 = vmul.f32 %v8462, 1.442695
      %v8913 = vpow.pop %v8912
      %v8914 = vmul.f32 %v8463, 1.442695
      %v8915 = vpow.pop %v8914
      %v8916 = vmul.f32 %v8464, 1.442695
      %v8917 = vpow.pop %v8916
      %v8918 = vmul.f32 %v8465, 1.442695
      %v8919 = vpow.pop %v8918
      %v8920 = vmul.f32 %v8466, 1.442695
      %v8921 = vpow.pop %v8920
      %v8922 = vmul.f32 %v8467, 1.442695
      %v8923 = vpow.pop %v8922
      %v8924 = vmul.f32 %v8468, 1.442695
      %v8925 = vpow.pop %v8924
      %v8926 = vmul.f32 %v8469, 1.442695
      %v8927 = vpow.pop %v8926
      %v8928 = vmul.f32 %v8470, 1.442695
      %v8929 = vpow.pop %v8928
      %v8930 = vmul.f32 %v8471, 1.442695
      %v8931 = vpow.pop %v8930
      %v8932 = vmul.f32 %v8472, 1.442695
      %v8933 = vpow.pop %v8932
      %v8934 = vmul.f32 %v8473, 1.442695
      %v8935 = vpow.pop %v8934
      %v8936 = vmul.f32 %v8474, 1.442695
      %v8937 = vpow.pop %v8936
      %v8938 = vmul.f32 %v8475, 1.442695
      %v8939 = vpow.pop %v8938
      %v8940 = vmul.f32 %v8476, 1.442695
      %v8941 = vpow.pop %v8940
      %v8942 = vmul.f32 %v8477, 1.442695
      %v8943 = vpow.pop %v8942
      %v8944 = vmul.f32 %v8478, 1.442695
      %v8945 = vpow.pop %v8944
      %v8946 = vmul.f32 %v8479, 1.442695
      %v8947 = vpow.pop %v8946
      %v8948 = vmul.f32 %v8480, 1.442695
      %v8949 = vpow.pop %v8948
      %v8950 = vmul.f32 %v8481, 1.442695
      %v8951 = vpow.pop %v8950
      %v8952 = vmul.f32 %v8482, 1.442695
      %v8953 = vpow.pop %v8952
      %v8954 = vmul.f32 %v8483, 1.442695
      %v8955 = vpow.pop %v8954
      %v8956 = vmul.f32 %v8484, 1.442695
      %v8957 = vpow.pop %v8956
      %v8958 = vmul.f32 %v8485, 1.442695
      %v8959 = vpow.pop %v8958
      %v8960 = vmul.f32 %v8486, 1.442695
      %v8961 = vpow.pop %v8960
      %v8962 = vmul.f32 %v8487, 1.442695
      %v8963 = vpow.pop %v8962
      %v8964 = vmul.f32 %v8488, 1.442695
      %v8965 = vpow.pop %v8964
      %v8966 = vmul.f32 %v8489, 1.442695
      %v8967 = vpow.pop %v8966
      %v8968 = vmul.f32 %v8490, 1.442695
      %v8969 = vpow.pop %v8968
      %v8970 = vmul.f32 %v8491, 1.442695
      %v8971 = vpow.pop %v8970
      %v8972 = vmul.f32 %v8492, 1.442695
      %v8973 = vpow.pop %v8972
      %v8974 = vmul.f32 %v8493, 1.442695
      %v8975 = vpow.pop %v8974
      %v8976 = vmul.f32 %v8494, 1.442695
      %v8977 = vpow.pop %v8976
      %v8978 = vmul.f32 %v8495, 1.442695
      %v8979 = vpow.pop %v8978
      %v8980 = vmul.f32 %v8496, 1.442695
      %v8981 = vpow.pop %v8980
      %v8982 = vmul.f32 %v8497, 1.442695
      %v8983 = vpow.pop %v8982
      %v8984 = vmul.f32 %v8498, 1.442695
      %v8985 = vpow.pop %v8984
      %v8986 = vmul.f32 %v8499, 1.442695
      %v8987 = vpow.pop %v8986
      %v8988 = vmul.f32 %v8500, 1.442695
      %v8989 = vpow.pop %v8988
      %v8990 = vmul.f32 %v8501, 1.442695
      %v8991 = vpow.pop %v8990
      %v8992 = vmul.f32 %v8502, 1.442695
      %v8993 = vpow.pop %v8992
      %v8994 = vmul.f32 %v8503, 1.442695
      %v8995 = vpow.pop %v8994
      %v8996 = vmul.f32 %v8504, 1.442695
      %v8997 = vpow.pop %v8996
      %v8998 = vmul.f32 %v8505, 1.442695
      %v8999 = vpow.pop %v8998
      %v9000 = vmul.f32 %v8506, 1.442695
      %v9001 = vpow.pop %v9000
      %v9002 = vmul.f32 %v8507, 1.442695
      %v9003 = vpow.pop %v9002
      %v9004 = vmul.f32 %v8508, 1.442695
      %v9005 = vpow.pop %v9004
      %v9006 = vmul.f32 %v8509, 1.442695
      %v9007 = vpow.pop %v9006
      %v9008 = vmul.f32 %v8510, 1.442695
      %v9009 = vpow.pop %v9008
      %v9010 = vmul.f32 %v8511, 1.442695
      %v9011 = vpow.pop %v9010
      %v9012 = vmul.f32 %v8512, 1.442695
      %v9013 = vpow.pop %v9012
      %v9014 = vmul.f32 %v8513, 1.442695
      %v9015 = vpow.pop %v9014
      %v9016 = vmul.f32 %v8514, 1.442695
      %v9017 = vpow.pop %v9016
      %v9018 = vmul.f32 %v8515, 1.442695
      %v9019 = vpow.pop %v9018
      %v9020 = vmul.f32 %v8516, 1.442695
      %v9021 = vpow.pop %v9020
      %v9022 = vmul.f32 %v8517, 1.442695
      %v9023 = vpow.pop %v9022
      %v9024 = vmul.f32 %v8518, 1.442695
      %v9025 = vpow.pop %v9024
      %v9026 = vmul.f32 %v8519, 1.442695
      %v9027 = vpow.pop %v9026
      %v9028 = vmul.f32 %v8520, 1.442695
      %v9029 = vpow.pop %v9028
      %v9030 = vmul.f32 %v8521, 1.442695
      %v9031 = vpow.pop %v9030
      %v9032 = vmul.f32 %v8522, 1.442695
      %v9033 = vpow.pop %v9032
      %v9034 = vmul.f32 %v8523, 1.442695
      %v9035 = vpow.pop %v9034
      %v9036 = vmul.f32 %v8524, 1.442695
      %v9037 = vpow.pop %v9036
      %v9038 = vmul.f32 %v8525, 1.442695
      %v9039 = vpow.pop %v9038
      %v9040 = vmul.f32 %v8526, 1.442695
      %v9041 = vpow.pop %v9040
      %v9042 = vmul.f32 %v8527, 1.442695
      %v9043 = vpow.pop %v9042
      %v9044 = vmul.f32 %v8528, 1.442695
      %v9045 = vpow.pop %v9044
      %v9046 = vmul.f32 %v8529, 1.442695
      %v9047 = vpow.pop %v9046
      %v9048 = vmul.f32 %v8530, 1.442695
      %v9049 = vpow.pop %v9048
      %v9050 = vmul.f32 %v8531, 1.442695
      %v9051 = vpow.pop %v9050
      %v9052 = vmul.f32 %v8532, 1.442695
      %v9053 = vpow.pop %v9052
      %v9054 = vmul.f32 %v8533, 1.442695
      %v9055 = vpow.pop %v9054
      %v9056 = vmul.f32 %v8534, 1.442695
      %v9057 = vpow.pop %v9056
      %v9058 = vmul.f32 %v8535, 1.442695
      %v9059 = vpow.pop %v9058
      %v9060 = vmul.f32 %v8536, 1.442695
      %v9061 = vpow.pop %v9060
      %v9062 = vmul.f32 %v8537, 1.442695
      %v9063 = vpow.pop %v9062
      %v9064 = vmul.f32 %v8538, 1.442695
      %v9065 = vpow.pop %v9064
      %v9066 = vmul.f32 %v8539, 1.442695
      %v9067 = vpow.pop %v9066
      %v9068 = vmul.f32 %v8540, 1.442695
      %v9069 = vpow.pop %v9068
      %v9070 = vmul.f32 %v8541, 1.442695
      %v9071 = vpow.pop %v9070
      %v9072 = vmul.f32 %v8542, 1.442695
      %v9073 = vpow.pop %v9072
      %v9074 = vmul.f32 %v8543, 1.442695
      %v9075 = vpow.pop %v9074
      %v9076 = vmul.f32 %v8544, 1.442695
      %v9077 = vpow.pop %v9076
      %v9078 = vmul.f32 %v8545, 1.442695
      %v9079 = vpow.pop %v9078
      %v9080 = vmul.f32 %v8546, 1.442695
      %v9081 = vpow.pop %v9080
      %v9082 = vmul.f32 %v8547, 1.442695
      %v9083 = vpow.pop %v9082
      %v9084 = vmul.f32 %v8548, 1.442695
      %v9085 = vpow.pop %v9084
      %v9086 = vmul.f32 %v8549, 1.442695
      %v9087 = vpow.pop %v9086
      %v9088 = vmul.f32 %v8550, 1.442695
      %v9089 = vpow.pop %v9088
      %v9090 = vmul.f32 %v8551, 1.442695
      %v9091 = vpow.pop %v9090
      %v9092 = vmul.f32 %v8552, 1.442695
      %v9093 = vpow.pop %v9092
      %v9094 = vmul.f32 %v8553, 1.442695
      %v9095 = vpow.pop %v9094
      %v9096 = vmul.f32 %v8554, 1.442695
      %v9097 = vpow.pop %v9096
      %v9098 = vmul.f32 %v8555, 1.442695
      %v9099 = vpow.pop %v9098
      %v9100 = vmul.f32 %v8556, 1.442695
      %v9101 = vpow.pop %v9100
      %v9102 = vmul.f32 %v8557, 1.442695
      %v9103 = vpow.pop %v9102
      %v9104 = vmul.f32 %v8558, 1.442695
      %v9105 = vpow.pop %v9104
      %v9106 = vmul.f32 %v8559, 1.442695
      %v9107 = vpow.pop %v9106
      %v9108 = vmul.f32 %v8560, 1.442695
      %v9109 = vpow.pop %v9108
      %v9110 = vmul.f32 %v8561, 1.442695
      %v9111 = vpow.pop %v9110
      %v9112 = vmul.f32 %v8562, 1.442695
      %v9113 = vpow.pop %v9112
      %v9114 = vmul.f32 %v8563, 1.442695
      %v9115 = vpow.pop %v9114
      %v9116 = vmul.f32 %v8564, 1.442695
      %v9117 = vpow.pop %v9116
      %v9118 = vmul.f32 %v8565, 1.442695
      %v9119 = vpow.pop %v9118
      %v9120 = vmul.f32 %v8566, 1.442695
      %v9121 = vpow.pop %v9120
      %v9122 = vmul.f32 %v8567, 1.442695
      %v9123 = vpow.pop %v9122
      %v9124 = vmul.f32 %v8568, 1.442695
      %v9125 = vpow.pop %v9124
      %v9126 = vmul.f32 %v8569, 1.442695
      %v9127 = vpow.pop %v9126
      %v9128 = vmul.f32 %v8570, 1.442695
      %v9129 = vpow.pop %v9128
      %v9130 = vmul.f32 %v8571, 1.442695
      %v9131 = vpow.pop %v9130
      %v9132 = vmul.f32 %v8572, 1.442695
      %v9133 = vpow.pop %v9132
      %v9134 = vmul.f32 %v8573, 1.442695
      %v9135 = vpow.pop %v9134
      %v9136 = vmul.f32 %v8574, 1.442695
      %v9137 = vpow.pop %v9136
      %v9138 = vmul.f32 %v8575, 1.442695
      %v9139 = vpow.pop %v9138
      %v9140 = vmul.f32 %v8576, 1.442695
      %v9141 = vpow.pop %v9140
      %v9142 = vmul.f32 %v8577, 1.442695
      %v9143 = vpow.pop %v9142
      %v9144 = vmul.f32 %v8578, 1.442695
      %v9145 = vpow.pop %v9144
      %v9146 = vmul.f32 %v8579, 1.442695
      %v9147 = vpow.pop %v9146
      %v9148 = vmul.f32 %v8580, 1.442695
      %v9149 = vpow.pop %v9148
      %v9150 = vmul.f32 %v8581, 1.442695
      %v9151 = vpow.pop %v9150
      %v9152 = vmul.f32 %v8582, 1.442695
      %v9153 = vpow.pop %v9152
      %v9154 = vmul.f32 %v8583, 1.442695
      %v9155 = vpow.pop %v9154
      %v9156 = vmul.f32 %v8584, 1.442695
      %v9157 = vpow.pop %v9156
      %v9158 = vmul.f32 %v8585, 1.442695
      %v9159 = vpow.pop %v9158
      %v9160 = vmul.f32 %v8586, 1.442695
      %v9161 = vpow.pop %v9160
      %v9162 = vmul.f32 %v8587, 1.442695
      %v9163 = vpow.pop %v9162
      %v9164 = vmul.f32 %v8588, 1.442695
      %v9165 = vpow.pop %v9164
      %v9166 = vmul.f32 %v8589, 1.442695
      %v9167 = vpow.pop %v9166
      %v9168 = vmul.f32 %v8590, 1.442695
      %v9169 = vpow.pop %v9168
      %v9170 = vmul.f32 %v8591, 1.442695
      %v9171 = vpow.pop %v9170
      %v9172 = vmul.f32 %v8592, 1.442695
      %v9173 = vpow.pop %v9172
      %v9174 = vmul.f32 %v8593, 1.442695
      %v9175 = vpow.pop %v9174
      %v9176 = vmul.f32 %v8594, 1.442695
      %v9177 = vpow.pop %v9176
      %v9178 = vmul.f32 %v8595, 1.442695
      %v9179 = vpow.pop %v9178
      %v9180 = vmul.f32 %v8596, 1.442695
      %v9181 = vpow.pop %v9180
      %v9182 = vmul.f32 %v8597, 1.442695
      %v9183 = vpow.pop %v9182
      %v9184 = vmul.f32 %v8598, 1.442695
      %v9185 = vpow.pop %v9184
      %v9186 = vmul.f32 %v8599, 1.442695
      %v9187 = vpow.pop %v9186
      %v9188 = vmul.f32 %v8600, 1.442695
      %v9189 = vpow.pop %v9188
      %v9190 = vmul.f32 %v8601, 1.442695
      %v9191 = vpow.pop %v9190
      %v9192 = vmul.f32 %v8602, 1.442695
      %v9193 = vpow.pop %v9192
      %v9194 = vmul.f32 %v8603, 1.442695
      %v9195 = vpow.pop %v9194
      %v9196 = vmul.f32 %v8604, 1.442695
      %v9197 = vpow.pop %v9196
      %v9198 = vmul.f32 %v8605, 1.442695
      %v9199 = vpow.pop %v9198
      %v9200 = vmul.f32 %v8606, 1.442695
      %v9201 = vpow.pop %v9200
      %v9202 = vmul.f32 %v8607, 1.442695
      %v9203 = vpow.pop %v9202
      %v9204 = vmul.f32 %v8608, 1.442695
      %v9205 = vpow.pop %v9204
      %v9206 = vmul.f32 %v8609, 1.442695
      %v9207 = vpow.pop %v9206
      %v9208 = vmul.f32 %v8610, 1.442695
      %v9209 = vpow.pop %v9208
      %v9210 = vmul.f32 %v8611, 1.442695
      %v9211 = vpow.pop %v9210
      %v9212 = vmul.f32 %v8612, 1.442695
      %v9213 = vpow.pop %v9212
      %v9214 = vmul.f32 %v8613, 1.442695
      %v9215 = vpow.pop %v9214
      %v9216 = vmul.f32 %v8614, 1.442695
      %v9217 = vpow.pop %v9216
      %v9218 = vmul.f32 %v8615, 1.442695
      %v9219 = vpow.pop %v9218
      %v9220 = vmul.f32 %v8616, 1.442695
      %v9221 = vpow.pop %v9220
      %v9222 = vmul.f32 %v8617, 1.442695
      %v9223 = vpow.pop %v9222
      %v9224 = vmul.f32 %v8618, 1.442695
      %v9225 = vpow.pop %v9224
      %v9226 = vmul.f32 %v8619, 1.442695
      %v9227 = vpow.pop %v9226
      %v9228 = vmul.f32 %v8620, 1.442695
      %v9229 = vpow.pop %v9228
      %v9230 = vmul.f32 %v8621, 1.442695
      %v9231 = vpow.pop %v9230
      %v9232 = vmul.f32 %v8622, 1.442695
      %v9233 = vpow.pop %v9232
      %v9234 = vmul.f32 %v8623, 1.442695
      %v9235 = vpow.pop %v9234
      %v9236 = vmul.f32 %v8624, 1.442695
      %v9237 = vpow.pop %v9236
      %v9238 = vmul.f32 %v8625, 1.442695
      %v9239 = vpow.pop %v9238
      %v9240 = vmul.f32 %v8626, 1.442695
      %v9241 = vpow.pop %v9240
      %v9242 = vmul.f32 %v8627, 1.442695
      %v9243 = vpow.pop %v9242
      %v9244 = vmul.f32 %v8628, 1.442695
      %v9245 = vpow.pop %v9244
      %v9246 = vmul.f32 %v8629, 1.442695
      %v9247 = vpow.pop %v9246
      %v9248 = vmul.f32 %v8630, 1.442695
      %v9249 = vpow.pop %v9248
      %v9250 = vmul.f32 %v8631, 1.442695
      %v9251 = vpow.pop %v9250
      %v9252 = vmul.f32 %v8632, 1.442695
      %v9253 = vpow.pop %v9252
      %v9254 = vmul.f32 %v8633, 1.442695
      %v9255 = vpow.pop %v9254
      %v9256 = vmul.f32 %v8634, 1.442695
      %v9257 = vpow.pop %v9256
      %v9258 = vmul.f32 %v8635, 1.442695
      %v9259 = vpow.pop %v9258
      %v9260 = vmul.f32 %v8636, 1.442695
      %v9261 = vpow.pop %v9260
      %v9262 = vmul.f32 %v8637, 1.442695
      %v9263 = vpow.pop %v9262
      %v9264 = vmul.f32 %v8638, 1.442695
      %v9265 = vpow.pop %v9264
      %v9266 = vmul.f32 %v8639, 1.442695
      %v9267 = vpow.pop %v9266
      %v9268 = vmul.f32 %v8640, 1.442695
      %v9269 = vpow.pop %v9268
      %v9270 = vmul.f32 %v8641, 1.442695
      %v9271 = vpow.pop %v9270
      %v9272 = vmul.f32 %v8642, 1.442695
      %v9273 = vpow.pop %v9272
      %v9274 = vmul.f32 %v8643, 1.442695
      %v9275 = vpow.pop %v9274
      %v9276 = vmul.f32 %v8644, 1.442695
      %v9277 = vpow.pop %v9276
      %v9278 = vmul.f32 %v8645, 1.442695
      %v9279 = vpow.pop %v9278
      %v9280 = vmul.f32 %v8646, 1.442695
      %v9281 = vpow.pop %v9280
      %v9282 = vmul.f32 %v8647, 1.442695
      %v9283 = vpow.pop %v9282
      %v9284 = vmul.f32 %v8648, 1.442695
      %v9285 = vpow.pop %v9284
      %v9286 = vmul.f32 %v8649, 1.442695
      %v9287 = vpow.pop %v9286
      %v9288 = vmul.f32 %v8650, 1.442695
      %v9289 = vpow.pop %v9288
      %v9290 = vmul.f32 %v8651, 1.442695
      %v9291 = vpow.pop %v9290
      %v9292 = vmul.f32 %v8652, 1.442695
      %v9293 = vpow.pop %v9292
      %v9294 = vmul.f32 %v8653, 1.442695
      %v9295 = vpow.pop %v9294
      %v9296 = vmul.f32 %v8654, 1.442695
      %v9297 = vpow.pop %v9296
      %v9298 = vmul.f32 %v8655, 1.442695
      %v9299 = vpow.pop %v9298
      %v9300 = vmul.f32 %v8656, 1.442695
      %v9301 = vpow.pop %v9300
      %v9302 = vmul.f32 %v8657, 1.442695
      %v9303 = vpow.pop %v9302
      %v9304 = vmul.f32 %v8658, 1.442695
      %v9305 = vpow.pop %v9304
      %v9306 = vmul.f32 %v8659, 1.442695
      %v9307 = vpow.pop %v9306
      %v9308 = vmul.f32 %v8660, 1.442695
      %v9309 = vpow.pop %v9308
      %v9310 = vmul.f32 %v8661, 1.442695
      %v9311 = vpow.pop %v9310
      %v9312 = vmul.f32 %v8662, 1.442695
      %v9313 = vpow.pop %v9312
      %v9314 = vmul.f32 %v8663, 1.442695
      %v9315 = vpow.pop %v9314
      %v9316 = vmul.f32 %v8664, 1.442695
      %v9317 = vpow.pop %v9316
      %v9318 = vmul.f32 %v8665, 1.442695
      %v9319 = vpow.pop %v9318
      %v9320 = vmul.f32 %v8666, 1.442695
      %v9321 = vpow.pop %v9320
      %v9322 = vmul.f32 %v8667, 1.442695
      %v9323 = vpow.pop %v9322
      %v9324 = vmul.f32 %v8668, 1.442695
      %v9325 = vpow.pop %v9324
      %v9326 = vmul.f32 %v8669, 1.442695
      %v9327 = vpow.pop %v9326
      %v9328 = vmul.f32 %v8670, 1.442695
      %v9329 = vpow.pop %v9328
      %v9330 = vmul.f32 %v8671, 1.442695
      %v9331 = vpow.pop %v9330
      %v9332 = vmul.f32 %v8672, 1.442695
      %v9333 = vpow.pop %v9332
      %v9334 = vmul.f32 %v8673, 1.442695
      %v9335 = vpow.pop %v9334
      %v9336 = vmul.f32 %v8674, 1.442695
      %v9337 = vpow.pop %v9336
      %v9338 = vmul.f32 %v8675, 1.442695
      %v9339 = vpow.pop %v9338
      %v9340 = vmul.f32 %v8676, 1.442695
      %v9341 = vpow.pop %v9340
      %v9342 = vmul.f32 %v8677, 1.442695
      %v9343 = vpow.pop %v9342
      %v9344 = vmul.f32 %v8678, 1.442695
      %v9345 = vpow.pop %v9344
      %v9346 = vmul.f32 %v8679, 1.442695
      %v9347 = vpow.pop %v9346
      %v9348 = vmul.f32 %v8680, 1.442695
      %v9349 = vpow.pop %v9348
      %v9350 = vmul.f32 %v8681, 1.442695
      %v9351 = vpow.pop %v9350
      %v9352 = vmul.f32 %v8682, 1.442695
      %v9353 = vpow.pop %v9352
      %v9354 = vmul.f32 %v8683, 1.442695
      %v9355 = vpow.pop %v9354
      %v9356 = vmul.f32 %v8684, 1.442695
      %v9357 = vpow.pop %v9356
      %v9358 = vmul.f32 %v8685, 1.442695
      %v9359 = vpow.pop %v9358
      %v9360 = vmul.f32 %v8686, 1.442695
      %v9361 = vpow.pop %v9360
      %v9362 = vmul.f32 %v8687, 1.442695
      %v9363 = vpow.pop %v9362
      %v9364 = vmul.f32 %v8688, 1.442695
      %v9365 = vpow.pop %v9364
      %v9366 = vmul.f32 %v8689, 1.442695
      %v9367 = vpow.pop %v9366
      %v9368 = vmul.f32 %v8690, 1.442695
      %v9369 = vpow.pop %v9368
      %v9370 = vmul.f32 %v8691, 1.442695
      %v9371 = vpow.pop %v9370
      %v9372 = vmul.f32 %v8692, 1.442695
      %v9373 = vpow.pop %v9372
      %v9374 = vmul.f32 %v8693, 1.442695
      %v9375 = vpow.pop %v9374
      %v9376 = vmul.f32 %v8694, 1.442695
      %v9377 = vpow.pop %v9376
      %v9378 = vmul.f32 %v8695, 1.442695
      %v9379 = vpow.pop %v9378
      %v9380 = vmul.f32 %v8696, 1.442695
      %v9381 = vpow.pop %v9380
      %v9382 = vmul.f32 %v8697, 1.442695
      %v9383 = vpow.pop %v9382
      %v9384 = vmul.f32 %v8698, 1.442695
      %v9385 = vpow.pop %v9384
      %v9386 = vmul.f32 %v8699, 1.442695
      %v9387 = vpow.pop %v9386
      %v9388 = vmul.f32 %v8700, 1.442695
      %v9389 = vpow.pop %v9388
      %v9390 = vmul.f32 %v8701, 1.442695
      %v9391 = vpow.pop %v9390
      %v9392 = vmul.f32 %v8702, 1.442695
      %v9393 = vpow.pop %v9392
      %v9394 = vmul.f32 %v8703, 1.442695
      %v9395 = vpow.pop %v9394
      %v9396 = vmul.f32 %v8704, 1.442695
      %v9397 = vpow.pop %v9396
      %v9398 = vmul.f32 %v8705, 1.442695
      %v9399 = vpow.pop %v9398
      %v9400 = vmul.f32 %v8706, 1.442695
      %v9401 = vpow.pop %v9400
      %v9402 = vmul.f32 %v8707, 1.442695
      %v9403 = vpow.pop %v9402
      %v9404 = vmul.f32 %v8708, 1.442695
      %v9405 = vpow.pop %v9404
      %v9406 = vmul.f32 %v8709, 1.442695
      %v9407 = vpow.pop %v9406
      %v9408 = vmul.f32 %v8710, 1.442695
      %v9409 = vpow.pop %v9408
      %v9410 = vmul.f32 %v8711, 1.442695
      %v9411 = vpow.pop %v9410
      %v9412 = vmul.f32 %v8712, 1.442695
      %v9413 = vpow.pop %v9412
      %v9414 = vmul.f32 %v8713, 1.442695
      %v9415 = vpow.pop %v9414
      %v9416 = vmul.f32 %v8714, 1.442695
      %v9417 = vpow.pop %v9416
      %v9418 = vmul.f32 %v8715, 1.442695
      %v9419 = vpow.pop %v9418
      %v9420 = vmul.f32 %v8716, 1.442695
      %v9421 = vpow.pop %v9420
      %v9422 = vmul.f32 %v8717, 1.442695
      %v9423 = vpow.pop %v9422
      %v9424 = vmul.f32 %v8718, 1.442695
      %v9425 = vpow.pop %v9424
      %v9426 = vmul.f32 %v8719, 1.442695
      %v9427 = vpow.pop %v9426
      %v9428 = vmul.f32 %v8720, 1.442695
      %v9429 = vpow.pop %v9428
      %v9430 = vmul.f32 %v8721, 1.442695
      %v9431 = vpow.pop %v9430
      %v9432 = vmul.f32 %v8722, 1.442695
      %v9433 = vpow.pop %v9432
      %v9434 = vmul.f32 %v8723, 1.442695
      %v9435 = vpow.pop %v9434
      %v9436 = vmul.f32 %v8724, 1.442695
      %v9437 = vpow.pop %v9436
      %v9438 = vmul.f32 %v8725, 1.442695
      %v9439 = vpow.pop %v9438
      %v9440 = vmul.f32 %v8726, 1.442695
      %v9441 = vpow.pop %v9440
      %v9442 = vmul.f32 %v8727, 1.442695
      %v9443 = vpow.pop %v9442
      %v9444 = vmul.f32 %v8728, 1.442695
      %v9445 = vpow.pop %v9444
      %v9446 = vmul.f32 %v8729, 1.442695
      %v9447 = vpow.pop %v9446
      %v9448 = vmul.f32 %v8730, 1.442695
      %v9449 = vpow.pop %v9448
      %v9450 = vmul.f32 %v8731, 1.442695
      %v9451 = vpow.pop %v9450
      %v9452 = vmul.f32 %v8732, 1.442695
      %v9453 = vpow.pop %v9452
      %v9454 = vmul.f32 %v8733, 1.442695
      %v9455 = vpow.pop %v9454
      %v9456 = vmul.f32 %v8734, 1.442695
      %v9457 = vpow.pop %v9456
      %v9458 = vmul.f32 %v8735, 1.442695
      %v9459 = vpow.pop %v9458
      %v9460 = vmul.f32 %v8736, 1.442695
      %v9461 = vpow.pop %v9460
      %v9462 = vmul.f32 %v8737, 1.442695
      %v9463 = vpow.pop %v9462
      %v9464 = vmul.f32 %v8738, 1.442695
      %v9465 = vpow.pop %v9464
      %v9466 = vmul.f32 %v8739, 1.442695
      %v9467 = vpow.pop %v9466
      %v9468 = vmul.f32 %v8740, 1.442695
      %v9469 = vpow.pop %v9468
      %v9470 = vmul.f32 %v8741, 1.442695
      %v9471 = vpow.pop %v9470
      %v9472 = vmul.f32 %v8742, 1.442695
      %v9473 = vpow.pop %v9472
      %v9474 = vmul.f32 %v8743, 1.442695
      %v9475 = vpow.pop %v9474
      %v9476 = vmul.f32 %v8744, 1.442695
      %v9477 = vpow.pop %v9476
      %v9478 = vmul.f32 %v8745, 1.442695
      %v9479 = vpow.pop %v9478
      %v9480 = vmul.f32 %v8746, 1.442695
      %v9481 = vpow.pop %v9480
      %v9482 = vmul.f32 %v8747, 1.442695
      %v9483 = vpow.pop %v9482
      %v9484 = vmul.f32 %v8748, 1.442695
      %v9485 = vpow.pop %v9484
      %v9486 = vmul.f32 %v8749, 1.442695
      %v9487 = vpow.pop %v9486
      %v9488 = vmul.f32 %v8750, 1.442695
      %v9489 = vpow.pop %v9488
      %v9490 = vmul.f32 %v8751, 1.442695
      %v9491 = vpow.pop %v9490
      %v9492 = vmul.f32 %v8752, 1.442695
      %v9493 = vpow.pop %v9492
      %v9494 = vmul.f32 %v8753, 1.442695
      %v9495 = vpow.pop %v9494
      %v9496 = vmul.f32 %v8754, 1.442695
      %v9497 = vpow.pop %v9496
      %v9498 = vmul.f32 %v8755, 1.442695
      %v9499 = vpow.pop %v9498
      %v9500 = vmul.f32 %v8756, 1.442695
      %v9501 = vpow.pop %v9500
      %v9502 = vmul.f32 %v8757, 1.442695
      %v9503 = vpow.pop %v9502
      %v9504 = vmul.f32 %v8758, 1.442695
      %v9505 = vpow.pop %v9504
      %v9506 = vmul.f32 %v8759, 1.442695
      %v9507 = vpow.pop %v9506
      %v9508 = vmul.f32 %v8760, 1.442695
      %v9509 = vpow.pop %v9508
      %v9510 = vmul.f32 %v8761, 1.442695
      %v9511 = vpow.pop %v9510
      %v9512 = vmul.f32 %v8762, 1.442695
      %v9513 = vpow.pop %v9512
      %v9514 = vmul.f32 %v8763, 1.442695
      %v9515 = vpow.pop %v9514
      %v9516 = vmul.f32 %v8764, 1.442695
      %v9517 = vpow.pop %v9516
      %v9518 = vmul.f32 %v8765, 1.442695
      %v9519 = vpow.pop %v9518
      %v9520 = vmul.f32 %v8766, 1.442695
      %v9521 = vpow.pop %v9520
      %v9522 = vmul.f32 %v8767, 1.442695
      %v9523 = vpow.pop %v9522
      %v9524 = vmul.f32 %v8768, 1.442695
      %v9525 = vpow.pop %v9524
      %v9526 = vmul.f32 %v8769, 1.442695
      %v9527 = vpow.pop %v9526
      %v9528 = vmul.f32 %v8770, 1.442695
      %v9529 = vpow.pop %v9528
      %v9530 = vmul.f32 %v8771, 1.442695
      %v9531 = vpow.pop %v9530
      %v9532 = vmul.f32 %v8772, 1.442695
      %v9533 = vpow.pop %v9532
      %v9534 = vmul.f32 %v8773, 1.442695
      %v9535 = vpow.pop %v9534
      %v9536 = vmul.f32 %v8774, 1.442695
      %v9537 = vpow.pop %v9536
      %v9538 = vmul.f32 %v8775, 1.442695
      %v9539 = vpow.pop %v9538
      %v9540 = vmul.f32 %v8776, 1.442695
      %v9541 = vpow.pop %v9540
      %v9542 = vmul.f32 %v8777, 1.442695
      %v9543 = vpow.pop %v9542
      %v9544 = vmul.f32 %v8778, 1.442695
      %v9545 = vpow.pop %v9544
      %v9546 = vmul.f32 %v8779, 1.442695
      %v9547 = vpow.pop %v9546
      %v9548 = vmul.f32 %v8780, 1.442695
      %v9549 = vpow.pop %v9548
      %v9550 = vmul.f32 %v8781, 1.442695
      %v9551 = vpow.pop %v9550
      %v9552 = vmul.f32 %v8782, 1.442695
      %v9553 = vpow.pop %v9552
      %v9554 = vmul.f32 %v8783, 1.442695
      %v9555 = vpow.pop %v9554
      %v9556 = vmul.f32 %v8784, 1.442695
      %v9557 = vpow.pop %v9556
      %v9558 = vmul.f32 %v8785, 1.442695
      %v9559 = vpow.pop %v9558
      %v9560 = vmul.f32 %v8786, 1.442695
      %v9561 = vpow.pop %v9560
      %v9562 = vmul.f32 %v8787, 1.442695
      %v9563 = vpow.pop %v9562
      %v9564 = vmul.f32 %v8788, 1.442695
      %v9565 = vpow.pop %v9564
      %v9566 = vmul.f32 %v8789, 1.442695
      %v9567 = vpow.pop %v9566
      %v9568 = vmul.f32 %v8790, 1.442695
      %v9569 = vpow.pop %v9568
      %v9570 = vmul.f32 %v8791, 1.442695
      %v9571 = vpow.pop %v9570
      %v9572 = vmul.f32 %v8792, 1.442695
      %v9573 = vpow.pop %v9572
      %v9574 = vmul.f32 %v8793, 1.442695
      %v9575 = vpow.pop %v9574
      %v9576 = vmul.f32 %v8794, 1.442695
      %v9577 = vpow.pop %v9576
      %v9578 = vmul.f32 %v8795, 1.442695
      %v9579 = vpow.pop %v9578
      %v9580 = vmul.f32 %v8796, 1.442695
      %v9581 = vpow.pop %v9580
      %v9582 = vmul.f32 %v8797, 1.442695
      %v9583 = vpow.pop %v9582
      %v9584 = vmul.f32 %v8798, 1.442695
      %v9585 = vpow.pop %v9584
      %v9586 = vmul.f32 %v8799, 1.442695
      %v9587 = vpow.pop %v9586
      %v9588 = vmul.f32 %v8800, 1.442695
      %v9589 = vpow.pop %v9588
      %v9590 = vmul.f32 %v8801, 1.442695
      %v9591 = vpow.pop %v9590
      %v9592 = vmul.f32 %v8802, 1.442695
      %v9593 = vpow.pop %v9592
      %v9594 = vmul.f32 %v8803, 1.442695
      %v9595 = vpow.pop %v9594
      %v9596 = vmul.f32 %v8804, 1.442695
      %v9597 = vpow.pop %v9596
      %v9598 = vmul.f32 %v8805, 1.442695
      %v9599 = vpow.pop %v9598
      %v9600 = vmul.f32 %v8806, 1.442695
      %v9601 = vpow.pop %v9600
      %v9602 = vmul.f32 %v8807, 1.442695
      %v9603 = vpow.pop %v9602
      %v9604 = vmul.f32 %v8808, 1.442695
      %v9605 = vpow.pop %v9604
      %v9606 = vmul.f32 %v8809, 1.442695
      %v9607 = vpow.pop %v9606
      %v9608 = vmul.f32 %v8810, 1.442695
      %v9609 = vpow.pop %v9608
      %v9610 = vmul.f32 %v8811, 1.442695
      %v9611 = vpow.pop %v9610
      %v9612 = vmul.f32 %v8812, 1.442695
      %v9613 = vpow.pop %v9612
      %v9614 = vmul.f32 %v8813, 1.442695
      %v9615 = vpow.pop %v9614
      %v9616 = vmul.f32 %v8814, 1.442695
      %v9617 = vpow.pop %v9616
      %v9618 = vmul.f32 %v8815, 1.442695
      %v9619 = vpow.pop %v9618
      %v9620 = vmul.f32 %v8816, 1.442695
      %v9621 = vpow.pop %v9620
      %v9622 = vmul.f32 %v8817, 1.442695
      %v9623 = vpow.pop %v9622
      %v9624 = vmul.f32 %v8818, 1.442695
      %v9625 = vpow.pop %v9624
      %v9626 = vmul.f32 %v8819, 1.442695
      %v9627 = vpow.pop %v9626
      %v9628 = vmul.f32 %v8820, 1.442695
      %v9629 = vpow.pop %v9628
      %v9630 = vmul.f32 %v8821, 1.442695
      %v9631 = vpow.pop %v9630
      %v9632 = vmul.f32 %v8822, 1.442695
      %v9633 = vpow.pop %v9632
      %v9634 = vmul.f32 %v8823, 1.442695
      %v9635 = vpow.pop %v9634
      %v9636 = vmul.f32 %v8824, 1.442695
      %v9637 = vpow.pop %v9636
      %v9638 = vmul.f32 %v8825, 1.442695
      %v9639 = vpow.pop %v9638
      %v9640 = vmul.f32 %v8826, 1.442695
      %v9641 = vpow.pop %v9640
      %v9642 = vmul.f32 %v8827, 1.442695
      %v9643 = vpow.pop %v9642
      %v9644 = vmul.f32 %v8828, 1.442695
      %v9645 = vpow.pop %v9644
      %v9646 = vmul.f32 %v8829, 1.442695
      %v9647 = vpow.pop %v9646
      %v9648 = vmul.f32 %v8830, 1.442695
      %v9649 = vpow.pop %v9648
      %v9650 = vmul.f32 %v8831, 1.442695
      %v9651 = vpow.pop %v9650
      %v9652 = vmul.f32 %v8832, 1.442695
      %v9653 = vpow.pop %v9652
      %v9654 = vmul.f32 %v8833, 1.442695
      %v9655 = vpow.pop %v9654
      %v9656 = vmul.f32 %v8834, 1.442695
      %v9657 = vpow.pop %v9656
      %v9658 = vmul.f32 %v8835, 1.442695
      %v9659 = vpow.pop %v9658
      %v9660 = vmul.f32 %v8836, 1.442695
      %v9661 = vpow.pop %v9660
      %v9662 = vmul.f32 %v8837, 1.442695
      %v9663 = vpow.pop %v9662
      %v9664 = vmul.f32 %v8838, 1.442695
      %v9665 = vpow.pop %v9664
      %v9666 = vmul.f32 %v8839, 1.442695
      %v9667 = vpow.pop %v9666
      %v9668 = vmul.f32 %v8840, 1.442695
      %v9669 = vpow.pop %v9668
      %v9670 = vmul.f32 %v8841, 1.442695
      %v9671 = vpow.pop %v9670
      %v9672 = vmul.f32 %v8842, 1.442695
      %v9673 = vpow.pop %v9672
      %v9674 = vmul.f32 %v8843, 1.442695
      %v9675 = vpow.pop %v9674
      %v9676 = vmul.f32 %v8844, 1.442695
      %v9677 = vpow.pop %v9676
      %v9678 = vmul.f32 %v8845, 1.442695
      %v9679 = vpow.pop %v9678
      %v9680 = vmul.f32 %v8846, 1.442695
      %v9681 = vpow.pop %v9680
      %v9682 = vmul.f32 %v8847, 1.442695
      %v9683 = vpow.pop %v9682
      %v9684 = vmul.f32 %v8848, 1.442695
      %v9685 = vpow.pop %v9684
      %v9686 = vmul.f32 %v8849, 1.442695
      %v9687 = vpow.pop %v9686
      %v9688 = vmul.f32 %v8850, 1.442695
      %v9689 = vpow.pop %v9688
      %v9690 = vmul.f32 %v8851, 1.442695
      %v9691 = vpow.pop %v9690
      %v9692 = vmul.f32 %v8852, 1.442695
      %v9693 = vpow.pop %v9692
      %v9694 = vmul.f32 %v8853, 1.442695
      %v9695 = vpow.pop %v9694
      %v9696 = vmul.f32 %v8854, 1.442695
      %v9697 = vpow.pop %v9696
      %v9698 = vmul.f32 %v8855, 1.442695
      %v9699 = vpow.pop %v9698
      %v9700 = vmul.f32 %v8856, 1.442695
      %v9701 = vpow.pop %v9700
      %v9702 = vmul.f32 %v8857, 1.442695
      %v9703 = vpow.pop %v9702
      %v9704 = vmul.f32 %v8858, 1.442695
      %v9705 = vpow.pop %v9704
      %v9706 = vmul.f32 %v8859, 1.442695
      %v9707 = vpow.pop %v9706
      %v9708 = vmul.f32 %v8860, 1.442695
      %v9709 = vpow.pop %v9708
      %v9710 = vmul.f32 %v8861, 1.442695
      %v9711 = vpow.pop %v9710
      %v9712 = vmul.f32 %v8862, 1.442695
      %v9713 = vpow.pop %v9712
      %v9714 = vmul.f32 %v8863, 1.442695
      %v9715 = vpow.pop %v9714
      %v9716 = vmul.f32 %v8864, 1.442695
      %v9717 = vpow.pop %v9716
      %v9718 = vmul.f32 %v8865, 1.442695
      %v9719 = vpow.pop %v9718
      %v9720 = vmul.f32 %v8866, 1.442695
      %v9721 = vpow.pop %v9720
      %v9722 = vmul.f32 %v8867, 1.442695
      %v9723 = vpow.pop %v9722
      %v9724 = vmul.f32 %v8868, 1.442695
      %v9725 = vpow.pop %v9724
      %v9726 = vmul.f32 %v8869, 1.442695
      %v9727 = vpow.pop %v9726
      %v9728 = vmul.f32 %v8870, 1.442695
      %v9729 = vpow.pop %v9728
      %v9730 = vmul.f32 %v8871, 1.442695
      %v9731 = vpow.pop %v9730
      %v9732 = vmul.f32 %v8872, 1.442695
      %v9733 = vpow.pop %v9732
      %v9734 = vmul.f32 %v8873, 1.442695
      %v9735 = vpow.pop %v9734
      %v9736 = vmul.f32 %v8874, 1.442695
      %v9737 = vpow.pop %v9736
      %v9738 = vmul.f32 %v8875, 1.442695
      %v9739 = vpow.pop %v9738
      %v9740 = vmul.f32 %v8876, 1.442695
      %v9741 = vpow.pop %v9740
      %v9742 = vmul.f32 %v8877, 1.442695
      %v9743 = vpow.pop %v9742
      %v9744 = vmul.f32 %v8878, 1.442695
      %v9745 = vpow.pop %v9744
      %v9746 = vmul.f32 %v8879, 1.442695
      %v9747 = vpow.pop %v9746
      %v9748 = vmul.f32 %v8880, 1.442695
      %v9749 = vpow.pop %v9748
      %v9750 = vmul.f32 %v8881, 1.442695
      %v9751 = vpow.pop %v9750
      %v9752 = vmul.f32 %v8882, 1.442695
      %v9753 = vpow.pop %v9752
      %v9754 = vmul.f32 %v8883, 1.442695
      %v9755 = vpow.pop %v9754
      %v9756 = vmul.f32 %v8884, 1.442695
      %v9757 = vpow.pop %v9756
      %v9758 = vmul.f32 %v8885, 1.442695
      %v9759 = vpow.pop %v9758
      %v9760 = vmul.f32 %v8886, 1.442695
      %v9761 = vpow.pop %v9760
      %v9762 = vmul.f32 %v8887, 1.442695
      %v9763 = vpow.pop %v9762
      %v9764 = vmul.f32 %v8888, 1.442695
      %v9765 = vpow.pop %v9764
      %v9766 = vmul.f32 %v8889, 1.442695
      %v9767 = vpow.pop %v9766
      %v9768 = vmul.f32 %v8890, 1.442695
      %v9769 = vpow.pop %v9768
      %v9770 = vmul.f32 %v8891, 1.442695
      %v9771 = vpow.pop %v9770
      %v9772 = vmul.f32 %v8892, 1.442695
      %v9773 = vpow.pop %v9772
      %v9774 = vmul.f32 %v8893, 1.442695
      %v9775 = vpow.pop %v9774
      %v9776 = vmul.f32 %v8894, 1.442695
      %v9777 = vpow.pop %v9776
      %v9778 = vmul.f32 %v8895, 1.442695
      %v9779 = vpow.pop %v9778
      %v9780 = vmul.f32 %v8896, 1.442695
      %v9781 = vpow.pop %v9780
      %v9782 = vmul.f32 %v8897, 1.442695
      %v9783 = vpow.pop %v9782
      %v9784 = vmul.f32 %v8898, 1.442695
      %v9785 = vpow.pop %v9784
      %v9786 = vmul.f32 %v8899, 1.442695
      %v9787 = vpow.pop %v9786
      %v9788 = vmul.f32 %v8900, 1.442695
      %v9789 = vpow.pop %v9788
      %v9790 = vmul.f32 %v8901, 1.442695
      %v9791 = vpow.pop %v9790
      %v9792 = vmul.f32 %v8902, 1.442695
      %v9793 = vpow.pop %v9792
      %v9794 = vmul.f32 %v8903, 1.442695
      %v9795 = vpow.pop %v9794
      %v9796 = vmul.f32 %v8904, 1.442695
      %v9797 = vpow.pop %v9796
      %v9798 = vmul.f32 %v8905, 1.442695
      %v9799 = vpow.pop %v9798
      %v9800 = vmul.f32 %v8906, 1.442695
      %v9801 = vpow.pop %v9800
      %v9802 = vmul.f32 %v8907, 1.442695
      %v9803 = vpow.pop %v9802
      %v9804 = vadd.f32 %v8909, 1.0
      %v9805 = vadd.f32 %v8911, 1.0
      %v9806 = vadd.f32 %v8913, 1.0
      %v9807 = vadd.f32 %v8915, 1.0
      %v9808 = vadd.f32 %v8917, 1.0
      %v9809 = vadd.f32 %v8919, 1.0
      %v9810 = vadd.f32 %v8921, 1.0
      %v9811 = vadd.f32 %v8923, 1.0
      %v9812 = vadd.f32 %v8925, 1.0
      %v9813 = vadd.f32 %v8927, 1.0
      %v9814 = vadd.f32 %v8929, 1.0
      %v9815 = vadd.f32 %v8931, 1.0
      %v9816 = vadd.f32 %v8933, 1.0
      %v9817 = vadd.f32 %v8935, 1.0
      %v9818 = vadd.f32 %v8937, 1.0
      %v9819 = vadd.f32 %v8939, 1.0
      %v9820 = vadd.f32 %v8941, 1.0
      %v9821 = vadd.f32 %v8943, 1.0
      %v9822 = vadd.f32 %v8945, 1.0
      %v9823 = vadd.f32 %v8947, 1.0
      %v9824 = vadd.f32 %v8949, 1.0
      %v9825 = vadd.f32 %v8951, 1.0
      %v9826 = vadd.f32 %v8953, 1.0
      %v9827 = vadd.f32 %v8955, 1.0
      %v9828 = vadd.f32 %v8957, 1.0
      %v9829 = vadd.f32 %v8959, 1.0
      %v9830 = vadd.f32 %v8961, 1.0
      %v9831 = vadd.f32 %v8963, 1.0
      %v9832 = vadd.f32 %v8965, 1.0
      %v9833 = vadd.f32 %v8967, 1.0
      %v9834 = vadd.f32 %v8969, 1.0
      %v9835 = vadd.f32 %v8971, 1.0
      %v9836 = vadd.f32 %v8973, 1.0
      %v9837 = vadd.f32 %v8975, 1.0
      %v9838 = vadd.f32 %v8977, 1.0
      %v9839 = vadd.f32 %v8979, 1.0
      %v9840 = vadd.f32 %v8981, 1.0
      %v9841 = vadd.f32 %v8983, 1.0
      %v9842 = vadd.f32 %v8985, 1.0
      %v9843 = vadd.f32 %v8987, 1.0
      %v9844 = vadd.f32 %v8989, 1.0
      %v9845 = vadd.f32 %v8991, 1.0
      %v9846 = vadd.f32 %v8993, 1.0
      %v9847 = vadd.f32 %v8995, 1.0
      %v9848 = vadd.f32 %v8997, 1.0
      %v9849 = vadd.f32 %v8999, 1.0
      %v9850 = vadd.f32 %v9001, 1.0
      %v9851 = vadd.f32 %v9003, 1.0
      %v9852 = vadd.f32 %v9005, 1.0
      %v9853 = vadd.f32 %v9007, 1.0
      %v9854 = vadd.f32 %v9009, 1.0
      %v9855 = vadd.f32 %v9011, 1.0
      %v9856 = vadd.f32 %v9013, 1.0
      %v9857 = vadd.f32 %v9015, 1.0
      %v9858 = vadd.f32 %v9017, 1.0
      %v9859 = vadd.f32 %v9019, 1.0
      %v9860 = vadd.f32 %v9021, 1.0
      %v9861 = vadd.f32 %v9023, 1.0
      %v9862 = vadd.f32 %v9025, 1.0
      %v9863 = vadd.f32 %v9027, 1.0
      %v9864 = vadd.f32 %v9029, 1.0
      %v9865 = vadd.f32 %v9031, 1.0
      %v9866 = vadd.f32 %v9033, 1.0
      %v9867 = vadd.f32 %v9035, 1.0
      %v9868 = vadd.f32 %v9037, 1.0
      %v9869 = vadd.f32 %v9039, 1.0
      %v9870 = vadd.f32 %v9041, 1.0
      %v9871 = vadd.f32 %v9043, 1.0
      %v9872 = vadd.f32 %v9045, 1.0
      %v9873 = vadd.f32 %v9047, 1.0
      %v9874 = vadd.f32 %v9049, 1.0
      %v9875 = vadd.f32 %v9051, 1.0
      %v9876 = vadd.f32 %v9053, 1.0
      %v9877 = vadd.f32 %v9055, 1.0
      %v9878 = vadd.f32 %v9057, 1.0
      %v9879 = vadd.f32 %v9059, 1.0
      %v9880 = vadd.f32 %v9061, 1.0
      %v9881 = vadd.f32 %v9063, 1.0
      %v9882 = vadd.f32 %v9065, 1.0
      %v9883 = vadd.f32 %v9067, 1.0
      %v9884 = vadd.f32 %v9069, 1.0
      %v9885 = vadd.f32 %v9071, 1.0
      %v9886 = vadd.f32 %v9073, 1.0
      %v9887 = vadd.f32 %v9075, 1.0
      %v9888 = vadd.f32 %v9077, 1.0
      %v9889 = vadd.f32 %v9079, 1.0
      %v9890 = vadd.f32 %v9081, 1.0
      %v9891 = vadd.f32 %v9083, 1.0
      %v9892 = vadd.f32 %v9085, 1.0
      %v9893 = vadd.f32 %v9087, 1.0
      %v9894 = vadd.f32 %v9089, 1.0
      %v9895 = vadd.f32 %v9091, 1.0
      %v9896 = vadd.f32 %v9093, 1.0
      %v9897 = vadd.f32 %v9095, 1.0
      %v9898 = vadd.f32 %v9097, 1.0
      %v9899 = vadd.f32 %v9099, 1.0
      %v9900 = vadd.f32 %v9101, 1.0
      %v9901 = vadd.f32 %v9103, 1.0
      %v9902 = vadd.f32 %v9105, 1.0
      %v9903 = vadd.f32 %v9107, 1.0
      %v9904 = vadd.f32 %v9109, 1.0
      %v9905 = vadd.f32 %v9111, 1.0
      %v9906 = vadd.f32 %v9113, 1.0
      %v9907 = vadd.f32 %v9115, 1.0
      %v9908 = vadd.f32 %v9117, 1.0
      %v9909 = vadd.f32 %v9119, 1.0
      %v9910 = vadd.f32 %v9121, 1.0
      %v9911 = vadd.f32 %v9123, 1.0
      %v9912 = vadd.f32 %v9125, 1.0
      %v9913 = vadd.f32 %v9127, 1.0
      %v9914 = vadd.f32 %v9129, 1.0
      %v9915 = vadd.f32 %v9131, 1.0
      %v9916 = vadd.f32 %v9133, 1.0
      %v9917 = vadd.f32 %v9135, 1.0
      %v9918 = vadd.f32 %v9137, 1.0
      %v9919 = vadd.f32 %v9139, 1.0
      %v9920 = vadd.f32 %v9141, 1.0
      %v9921 = vadd.f32 %v9143, 1.0
      %v9922 = vadd.f32 %v9145, 1.0
      %v9923 = vadd.f32 %v9147, 1.0
      %v9924 = vadd.f32 %v9149, 1.0
      %v9925 = vadd.f32 %v9151, 1.0
      %v9926 = vadd.f32 %v9153, 1.0
      %v9927 = vadd.f32 %v9155, 1.0
      %v9928 = vadd.f32 %v9157, 1.0
      %v9929 = vadd.f32 %v9159, 1.0
      %v9930 = vadd.f32 %v9161, 1.0
      %v9931 = vadd.f32 %v9163, 1.0
      %v9932 = vadd.f32 %v9165, 1.0
      %v9933 = vadd.f32 %v9167, 1.0
      %v9934 = vadd.f32 %v9169, 1.0
      %v9935 = vadd.f32 %v9171, 1.0
      %v9936 = vadd.f32 %v9173, 1.0
      %v9937 = vadd.f32 %v9175, 1.0
      %v9938 = vadd.f32 %v9177, 1.0
      %v9939 = vadd.f32 %v9179, 1.0
      %v9940 = vadd.f32 %v9181, 1.0
      %v9941 = vadd.f32 %v9183, 1.0
      %v9942 = vadd.f32 %v9185, 1.0
      %v9943 = vadd.f32 %v9187, 1.0
      %v9944 = vadd.f32 %v9189, 1.0
      %v9945 = vadd.f32 %v9191, 1.0
      %v9946 = vadd.f32 %v9193, 1.0
      %v9947 = vadd.f32 %v9195, 1.0
      %v9948 = vadd.f32 %v9197, 1.0
      %v9949 = vadd.f32 %v9199, 1.0
      %v9950 = vadd.f32 %v9201, 1.0
      %v9951 = vadd.f32 %v9203, 1.0
      %v9952 = vadd.f32 %v9205, 1.0
      %v9953 = vadd.f32 %v9207, 1.0
      %v9954 = vadd.f32 %v9209, 1.0
      %v9955 = vadd.f32 %v9211, 1.0
      %v9956 = vadd.f32 %v9213, 1.0
      %v9957 = vadd.f32 %v9215, 1.0
      %v9958 = vadd.f32 %v9217, 1.0
      %v9959 = vadd.f32 %v9219, 1.0
      %v9960 = vadd.f32 %v9221, 1.0
      %v9961 = vadd.f32 %v9223, 1.0
      %v9962 = vadd.f32 %v9225, 1.0
      %v9963 = vadd.f32 %v9227, 1.0
      %v9964 = vadd.f32 %v9229, 1.0
      %v9965 = vadd.f32 %v9231, 1.0
      %v9966 = vadd.f32 %v9233, 1.0
      %v9967 = vadd.f32 %v9235, 1.0
      %v9968 = vadd.f32 %v9237, 1.0
      %v9969 = vadd.f32 %v9239, 1.0
      %v9970 = vadd.f32 %v9241, 1.0
      %v9971 = vadd.f32 %v9243, 1.0
      %v9972 = vadd.f32 %v9245, 1.0
      %v9973 = vadd.f32 %v9247, 1.0
      %v9974 = vadd.f32 %v9249, 1.0
      %v9975 = vadd.f32 %v9251, 1.0
      %v9976 = vadd.f32 %v9253, 1.0
      %v9977 = vadd.f32 %v9255, 1.0
      %v9978 = vadd.f32 %v9257, 1.0
      %v9979 = vadd.f32 %v9259, 1.0
      %v9980 = vadd.f32 %v9261, 1.0
      %v9981 = vadd.f32 %v9263, 1.0
      %v9982 = vadd.f32 %v9265, 1.0
      %v9983 = vadd.f32 %v9267, 1.0
      %v9984 = vadd.f32 %v9269, 1.0
      %v9985 = vadd.f32 %v9271, 1.0
      %v9986 = vadd.f32 %v9273, 1.0
      %v9987 = vadd.f32 %v9275, 1.0
      %v9988 = vadd.f32 %v9277, 1.0
      %v9989 = vadd.f32 %v9279, 1.0
      %v9990 = vadd.f32 %v9281, 1.0
      %v9991 = vadd.f32 %v9283, 1.0
      %v9992 = vadd.f32 %v9285, 1.0
      %v9993 = vadd.f32 %v9287, 1.0
      %v9994 = vadd.f32 %v9289, 1.0
      %v9995 = vadd.f32 %v9291, 1.0
      %v9996 = vadd.f32 %v9293, 1.0
      %v9997 = vadd.f32 %v9295, 1.0
      %v9998 = vadd.f32 %v9297, 1.0
      %v9999 = vadd.f32 %v9299, 1.0
      %v10000 = vadd.f32 %v9301, 1.0
      %v10001 = vadd.f32 %v9303, 1.0
      %v10002 = vadd.f32 %v9305, 1.0
      %v10003 = vadd.f32 %v9307, 1.0
      %v10004 = vadd.f32 %v9309, 1.0
      %v10005 = vadd.f32 %v9311, 1.0
      %v10006 = vadd.f32 %v9313, 1.0
      %v10007 = vadd.f32 %v9315, 1.0
      %v10008 = vadd.f32 %v9317, 1.0
      %v10009 = vadd.f32 %v9319, 1.0
      %v10010 = vadd.f32 %v9321, 1.0
      %v10011 = vadd.f32 %v9323, 1.0
      %v10012 = vadd.f32 %v9325, 1.0
      %v10013 = vadd.f32 %v9327, 1.0
      %v10014 = vadd.f32 %v9329, 1.0
      %v10015 = vadd.f32 %v9331, 1.0
      %v10016 = vadd.f32 %v9333, 1.0
      %v10017 = vadd.f32 %v9335, 1.0
      %v10018 = vadd.f32 %v9337, 1.0
      %v10019 = vadd.f32 %v9339, 1.0
      %v10020 = vadd.f32 %v9341, 1.0
      %v10021 = vadd.f32 %v9343, 1.0
      %v10022 = vadd.f32 %v9345, 1.0
      %v10023 = vadd.f32 %v9347, 1.0
      %v10024 = vadd.f32 %v9349, 1.0
      %v10025 = vadd.f32 %v9351, 1.0
      %v10026 = vadd.f32 %v9353, 1.0
      %v10027 = vadd.f32 %v9355, 1.0
      %v10028 = vadd.f32 %v9357, 1.0
      %v10029 = vadd.f32 %v9359, 1.0
      %v10030 = vadd.f32 %v9361, 1.0
      %v10031 = vadd.f32 %v9363, 1.0
      %v10032 = vadd.f32 %v9365, 1.0
      %v10033 = vadd.f32 %v9367, 1.0
      %v10034 = vadd.f32 %v9369, 1.0
      %v10035 = vadd.f32 %v9371, 1.0
      %v10036 = vadd.f32 %v9373, 1.0
      %v10037 = vadd.f32 %v9375, 1.0
      %v10038 = vadd.f32 %v9377, 1.0
      %v10039 = vadd.f32 %v9379, 1.0
      %v10040 = vadd.f32 %v9381, 1.0
      %v10041 = vadd.f32 %v9383, 1.0
      %v10042 = vadd.f32 %v9385, 1.0
      %v10043 = vadd.f32 %v9387, 1.0
      %v10044 = vadd.f32 %v9389, 1.0
      %v10045 = vadd.f32 %v9391, 1.0
      %v10046 = vadd.f32 %v9393, 1.0
      %v10047 = vadd.f32 %v9395, 1.0
      %v10048 = vadd.f32 %v9397, 1.0
      %v10049 = vadd.f32 %v9399, 1.0
      %v10050 = vadd.f32 %v9401, 1.0
      %v10051 = vadd.f32 %v9403, 1.0
      %v10052 = vadd.f32 %v9405, 1.0
      %v10053 = vadd.f32 %v9407, 1.0
      %v10054 = vadd.f32 %v9409, 1.0
      %v10055 = vadd.f32 %v9411, 1.0
      %v10056 = vadd.f32 %v9413, 1.0
      %v10057 = vadd.f32 %v9415, 1.0
      %v10058 = vadd.f32 %v9417, 1.0
      %v10059 = vadd.f32 %v9419, 1.0
      %v10060 = vadd.f32 %v9421, 1.0
      %v10061 = vadd.f32 %v9423, 1.0
      %v10062 = vadd.f32 %v9425, 1.0
      %v10063 = vadd.f32 %v9427, 1.0
      %v10064 = vadd.f32 %v9429, 1.0
      %v10065 = vadd.f32 %v9431, 1.0
      %v10066 = vadd.f32 %v9433, 1.0
      %v10067 = vadd.f32 %v9435, 1.0
      %v10068 = vadd.f32 %v9437, 1.0
      %v10069 = vadd.f32 %v9439, 1.0
      %v10070 = vadd.f32 %v9441, 1.0
      %v10071 = vadd.f32 %v9443, 1.0
      %v10072 = vadd.f32 %v9445, 1.0
      %v10073 = vadd.f32 %v9447, 1.0
      %v10074 = vadd.f32 %v9449, 1.0
      %v10075 = vadd.f32 %v9451, 1.0
      %v10076 = vadd.f32 %v9453, 1.0
      %v10077 = vadd.f32 %v9455, 1.0
      %v10078 = vadd.f32 %v9457, 1.0
      %v10079 = vadd.f32 %v9459, 1.0
      %v10080 = vadd.f32 %v9461, 1.0
      %v10081 = vadd.f32 %v9463, 1.0
      %v10082 = vadd.f32 %v9465, 1.0
      %v10083 = vadd.f32 %v9467, 1.0
      %v10084 = vadd.f32 %v9469, 1.0
      %v10085 = vadd.f32 %v9471, 1.0
      %v10086 = vadd.f32 %v9473, 1.0
      %v10087 = vadd.f32 %v9475, 1.0
      %v10088 = vadd.f32 %v9477, 1.0
      %v10089 = vadd.f32 %v9479, 1.0
      %v10090 = vadd.f32 %v9481, 1.0
      %v10091 = vadd.f32 %v9483, 1.0
      %v10092 = vadd.f32 %v9485, 1.0
      %v10093 = vadd.f32 %v9487, 1.0
      %v10094 = vadd.f32 %v9489, 1.0
      %v10095 = vadd.f32 %v9491, 1.0
      %v10096 = vadd.f32 %v9493, 1.0
      %v10097 = vadd.f32 %v9495, 1.0
      %v10098 = vadd.f32 %v9497, 1.0
      %v10099 = vadd.f32 %v9499, 1.0
      %v10100 = vadd.f32 %v9501, 1.0
      %v10101 = vadd.f32 %v9503, 1.0
      %v10102 = vadd.f32 %v9505, 1.0
      %v10103 = vadd.f32 %v9507, 1.0
      %v10104 = vadd.f32 %v9509, 1.0
      %v10105 = vadd.f32 %v9511, 1.0
      %v10106 = vadd.f32 %v9513, 1.0
      %v10107 = vadd.f32 %v9515, 1.0
      %v10108 = vadd.f32 %v9517, 1.0
      %v10109 = vadd.f32 %v9519, 1.0
      %v10110 = vadd.f32 %v9521, 1.0
      %v10111 = vadd.f32 %v9523, 1.0
      %v10112 = vadd.f32 %v9525, 1.0
      %v10113 = vadd.f32 %v9527, 1.0
      %v10114 = vadd.f32 %v9529, 1.0
      %v10115 = vadd.f32 %v9531, 1.0
      %v10116 = vadd.f32 %v9533, 1.0
      %v10117 = vadd.f32 %v9535, 1.0
      %v10118 = vadd.f32 %v9537, 1.0
      %v10119 = vadd.f32 %v9539, 1.0
      %v10120 = vadd.f32 %v9541, 1.0
      %v10121 = vadd.f32 %v9543, 1.0
      %v10122 = vadd.f32 %v9545, 1.0
      %v10123 = vadd.f32 %v9547, 1.0
      %v10124 = vadd.f32 %v9549, 1.0
      %v10125 = vadd.f32 %v9551, 1.0
      %v10126 = vadd.f32 %v9553, 1.0
      %v10127 = vadd.f32 %v9555, 1.0
      %v10128 = vadd.f32 %v9557, 1.0
      %v10129 = vadd.f32 %v9559, 1.0
      %v10130 = vadd.f32 %v9561, 1.0
      %v10131 = vadd.f32 %v9563, 1.0
      %v10132 = vadd.f32 %v9565, 1.0
      %v10133 = vadd.f32 %v9567, 1.0
      %v10134 = vadd.f32 %v9569, 1.0
      %v10135 = vadd.f32 %v9571, 1.0
      %v10136 = vadd.f32 %v9573, 1.0
      %v10137 = vadd.f32 %v9575, 1.0
      %v10138 = vadd.f32 %v9577, 1.0
      %v10139 = vadd.f32 %v9579, 1.0
      %v10140 = vadd.f32 %v9581, 1.0
      %v10141 = vadd.f32 %v9583, 1.0
      %v10142 = vadd.f32 %v9585, 1.0
      %v10143 = vadd.f32 %v9587, 1.0
      %v10144 = vadd.f32 %v9589, 1.0
      %v10145 = vadd.f32 %v9591, 1.0
      %v10146 = vadd.f32 %v9593, 1.0
      %v10147 = vadd.f32 %v9595, 1.0
      %v10148 = vadd.f32 %v9597, 1.0
      %v10149 = vadd.f32 %v9599, 1.0
      %v10150 = vadd.f32 %v9601, 1.0
      %v10151 = vadd.f32 %v9603, 1.0
      %v10152 = vadd.f32 %v9605, 1.0
      %v10153 = vadd.f32 %v9607, 1.0
      %v10154 = vadd.f32 %v9609, 1.0
      %v10155 = vadd.f32 %v9611, 1.0
      %v10156 = vadd.f32 %v9613, 1.0
      %v10157 = vadd.f32 %v9615, 1.0
      %v10158 = vadd.f32 %v9617, 1.0
      %v10159 = vadd.f32 %v9619, 1.0
      %v10160 = vadd.f32 %v9621, 1.0
      %v10161 = vadd.f32 %v9623, 1.0
      %v10162 = vadd.f32 %v9625, 1.0
      %v10163 = vadd.f32 %v9627, 1.0
      %v10164 = vadd.f32 %v9629, 1.0
      %v10165 = vadd.f32 %v9631, 1.0
      %v10166 = vadd.f32 %v9633, 1.0
      %v10167 = vadd.f32 %v9635, 1.0
      %v10168 = vadd.f32 %v9637, 1.0
      %v10169 = vadd.f32 %v9639, 1.0
      %v10170 = vadd.f32 %v9641, 1.0
      %v10171 = vadd.f32 %v9643, 1.0
      %v10172 = vadd.f32 %v9645, 1.0
      %v10173 = vadd.f32 %v9647, 1.0
      %v10174 = vadd.f32 %v9649, 1.0
      %v10175 = vadd.f32 %v9651, 1.0
      %v10176 = vadd.f32 %v9653, 1.0
      %v10177 = vadd.f32 %v9655, 1.0
      %v10178 = vadd.f32 %v9657, 1.0
      %v10179 = vadd.f32 %v9659, 1.0
      %v10180 = vadd.f32 %v9661, 1.0
      %v10181 = vadd.f32 %v9663, 1.0
      %v10182 = vadd.f32 %v9665, 1.0
      %v10183 = vadd.f32 %v9667, 1.0
      %v10184 = vadd.f32 %v9669, 1.0
      %v10185 = vadd.f32 %v9671, 1.0
      %v10186 = vadd.f32 %v9673, 1.0
      %v10187 = vadd.f32 %v9675, 1.0
      %v10188 = vadd.f32 %v9677, 1.0
      %v10189 = vadd.f32 %v9679, 1.0
      %v10190 = vadd.f32 %v9681, 1.0
      %v10191 = vadd.f32 %v9683, 1.0
      %v10192 = vadd.f32 %v9685, 1.0
      %v10193 = vadd.f32 %v9687, 1.0
      %v10194 = vadd.f32 %v9689, 1.0
      %v10195 = vadd.f32 %v9691, 1.0
      %v10196 = vadd.f32 %v9693, 1.0
      %v10197 = vadd.f32 %v9695, 1.0
      %v10198 = vadd.f32 %v9697, 1.0
      %v10199 = vadd.f32 %v9699, 1.0
      %v10200 = vadd.f32 %v9701, 1.0
      %v10201 = vadd.f32 %v9703, 1.0
      %v10202 = vadd.f32 %v9705, 1.0
      %v10203 = vadd.f32 %v9707, 1.0
      %v10204 = vadd.f32 %v9709, 1.0
      %v10205 = vadd.f32 %v9711, 1.0
      %v10206 = vadd.f32 %v9713, 1.0
      %v10207 = vadd.f32 %v9715, 1.0
      %v10208 = vadd.f32 %v9717, 1.0
      %v10209 = vadd.f32 %v9719, 1.0
      %v10210 = vadd.f32 %v9721, 1.0
      %v10211 = vadd.f32 %v9723, 1.0
      %v10212 = vadd.f32 %v9725, 1.0
      %v10213 = vadd.f32 %v9727, 1.0
      %v10214 = vadd.f32 %v9729, 1.0
      %v10215 = vadd.f32 %v9731, 1.0
      %v10216 = vadd.f32 %v9733, 1.0
      %v10217 = vadd.f32 %v9735, 1.0
      %v10218 = vadd.f32 %v9737, 1.0
      %v10219 = vadd.f32 %v9739, 1.0
      %v10220 = vadd.f32 %v9741, 1.0
      %v10221 = vadd.f32 %v9743, 1.0
      %v10222 = vadd.f32 %v9745, 1.0
      %v10223 = vadd.f32 %v9747, 1.0
      %v10224 = vadd.f32 %v9749, 1.0
      %v10225 = vadd.f32 %v9751, 1.0
      %v10226 = vadd.f32 %v9753, 1.0
      %v10227 = vadd.f32 %v9755, 1.0
      %v10228 = vadd.f32 %v9757, 1.0
      %v10229 = vadd.f32 %v9759, 1.0
      %v10230 = vadd.f32 %v9761, 1.0
      %v10231 = vadd.f32 %v9763, 1.0
      %v10232 = vadd.f32 %v9765, 1.0
      %v10233 = vadd.f32 %v9767, 1.0
      %v10234 = vadd.f32 %v9769, 1.0
      %v10235 = vadd.f32 %v9771, 1.0
      %v10236 = vadd.f32 %v9773, 1.0
      %v10237 = vadd.f32 %v9775, 1.0
      %v10238 = vadd.f32 %v9777, 1.0
      %v10239 = vadd.f32 %v9779, 1.0
      %v10240 = vadd.f32 %v9781, 1.0
      %v10241 = vadd.f32 %v9783, 1.0
      %v10242 = vadd.f32 %v9785, 1.0
      %v10243 = vadd.f32 %v9787, 1.0
      %v10244 = vadd.f32 %v9789, 1.0
      %v10245 = vadd.f32 %v9791, 1.0
      %v10246 = vadd.f32 %v9793, 1.0
      %v10247 = vadd.f32 %v9795, 1.0
      %v10248 = vadd.f32 %v9797, 1.0
      %v10249 = vadd.f32 %v9799, 1.0
      %v10250 = vadd.f32 %v9801, 1.0
      %v10251 = vadd.f32 %v9803, 1.0
      %v10252 = vrcp.pop %v9804
      %v10253 = vmul.f32 1.0, %v10252
      %v10254 = vrcp.pop %v9805
      %v10255 = vmul.f32 1.0, %v10254
      %v10256 = vrcp.pop %v9806
      %v10257 = vmul.f32 1.0, %v10256
      %v10258 = vrcp.pop %v9807
      %v10259 = vmul.f32 1.0, %v10258
      %v10260 = vrcp.pop %v9808
      %v10261 = vmul.f32 1.0, %v10260
      %v10262 = vrcp.pop %v9809
      %v10263 = vmul.f32 1.0, %v10262
      %v10264 = vrcp.pop %v9810
      %v10265 = vmul.f32 1.0, %v10264
      %v10266 = vrcp.pop %v9811
      %v10267 = vmul.f32 1.0, %v10266
      %v10268 = vrcp.pop %v9812
      %v10269 = vmul.f32 1.0, %v10268
      %v10270 = vrcp.pop %v9813
      %v10271 = vmul.f32 1.0, %v10270
      %v10272 = vrcp.pop %v9814
      %v10273 = vmul.f32 1.0, %v10272
      %v10274 = vrcp.pop %v9815
      %v10275 = vmul.f32 1.0, %v10274
      %v10276 = vrcp.pop %v9816
      %v10277 = vmul.f32 1.0, %v10276
      %v10278 = vrcp.pop %v9817
      %v10279 = vmul.f32 1.0, %v10278
      %v10280 = vrcp.pop %v9818
      %v10281 = vmul.f32 1.0, %v10280
      %v10282 = vrcp.pop %v9819
      %v10283 = vmul.f32 1.0, %v10282
      %v10284 = vrcp.pop %v9820
      %v10285 = vmul.f32 1.0, %v10284
      %v10286 = vrcp.pop %v9821
      %v10287 = vmul.f32 1.0, %v10286
      %v10288 = vrcp.pop %v9822
      %v10289 = vmul.f32 1.0, %v10288
      %v10290 = vrcp.pop %v9823
      %v10291 = vmul.f32 1.0, %v10290
      %v10292 = vrcp.pop %v9824
      %v10293 = vmul.f32 1.0, %v10292
      %v10294 = vrcp.pop %v9825
      %v10295 = vmul.f32 1.0, %v10294
      %v10296 = vrcp.pop %v9826
      %v10297 = vmul.f32 1.0, %v10296
      %v10298 = vrcp.pop %v9827
      %v10299 = vmul.f32 1.0, %v10298
      %v10300 = vrcp.pop %v9828
      %v10301 = vmul.f32 1.0, %v10300
      %v10302 = vrcp.pop %v9829
      %v10303 = vmul.f32 1.0, %v10302
      %v10304 = vrcp.pop %v9830
      %v10305 = vmul.f32 1.0, %v10304
      %v10306 = vrcp.pop %v9831
      %v10307 = vmul.f32 1.0, %v10306
      %v10308 = vrcp.pop %v9832
      %v10309 = vmul.f32 1.0, %v10308
      %v10310 = vrcp.pop %v9833
      %v10311 = vmul.f32 1.0, %v10310
      %v10312 = vrcp.pop %v9834
      %v10313 = vmul.f32 1.0, %v10312
      %v10314 = vrcp.pop %v9835
      %v10315 = vmul.f32 1.0, %v10314
      %v10316 = vrcp.pop %v9836
      %v10317 = vmul.f32 1.0, %v10316
      %v10318 = vrcp.pop %v9837
      %v10319 = vmul.f32 1.0, %v10318
      %v10320 = vrcp.pop %v9838
      %v10321 = vmul.f32 1.0, %v10320
      %v10322 = vrcp.pop %v9839
      %v10323 = vmul.f32 1.0, %v10322
      %v10324 = vrcp.pop %v9840
      %v10325 = vmul.f32 1.0, %v10324
      %v10326 = vrcp.pop %v9841
      %v10327 = vmul.f32 1.0, %v10326
      %v10328 = vrcp.pop %v9842
      %v10329 = vmul.f32 1.0, %v10328
      %v10330 = vrcp.pop %v9843
      %v10331 = vmul.f32 1.0, %v10330
      %v10332 = vrcp.pop %v9844
      %v10333 = vmul.f32 1.0, %v10332
      %v10334 = vrcp.pop %v9845
      %v10335 = vmul.f32 1.0, %v10334
      %v10336 = vrcp.pop %v9846
      %v10337 = vmul.f32 1.0, %v10336
      %v10338 = vrcp.pop %v9847
      %v10339 = vmul.f32 1.0, %v10338
      %v10340 = vrcp.pop %v9848
      %v10341 = vmul.f32 1.0, %v10340
      %v10342 = vrcp.pop %v9849
      %v10343 = vmul.f32 1.0, %v10342
      %v10344 = vrcp.pop %v9850
      %v10345 = vmul.f32 1.0, %v10344
      %v10346 = vrcp.pop %v9851
      %v10347 = vmul.f32 1.0, %v10346
      %v10348 = vrcp.pop %v9852
      %v10349 = vmul.f32 1.0, %v10348
      %v10350 = vrcp.pop %v9853
      %v10351 = vmul.f32 1.0, %v10350
      %v10352 = vrcp.pop %v9854
      %v10353 = vmul.f32 1.0, %v10352
      %v10354 = vrcp.pop %v9855
      %v10355 = vmul.f32 1.0, %v10354
      %v10356 = vrcp.pop %v9856
      %v10357 = vmul.f32 1.0, %v10356
      %v10358 = vrcp.pop %v9857
      %v10359 = vmul.f32 1.0, %v10358
      %v10360 = vrcp.pop %v9858
      %v10361 = vmul.f32 1.0, %v10360
      %v10362 = vrcp.pop %v9859
      %v10363 = vmul.f32 1.0, %v10362
      %v10364 = vrcp.pop %v9860
      %v10365 = vmul.f32 1.0, %v10364
      %v10366 = vrcp.pop %v9861
      %v10367 = vmul.f32 1.0, %v10366
      %v10368 = vrcp.pop %v9862
      %v10369 = vmul.f32 1.0, %v10368
      %v10370 = vrcp.pop %v9863
      %v10371 = vmul.f32 1.0, %v10370
      %v10372 = vrcp.pop %v9864
      %v10373 = vmul.f32 1.0, %v10372
      %v10374 = vrcp.pop %v9865
      %v10375 = vmul.f32 1.0, %v10374
      %v10376 = vrcp.pop %v9866
      %v10377 = vmul.f32 1.0, %v10376
      %v10378 = vrcp.pop %v9867
      %v10379 = vmul.f32 1.0, %v10378
      %v10380 = vrcp.pop %v9868
      %v10381 = vmul.f32 1.0, %v10380
      %v10382 = vrcp.pop %v9869
      %v10383 = vmul.f32 1.0, %v10382
      %v10384 = vrcp.pop %v9870
      %v10385 = vmul.f32 1.0, %v10384
      %v10386 = vrcp.pop %v9871
      %v10387 = vmul.f32 1.0, %v10386
      %v10388 = vrcp.pop %v9872
      %v10389 = vmul.f32 1.0, %v10388
      %v10390 = vrcp.pop %v9873
      %v10391 = vmul.f32 1.0, %v10390
      %v10392 = vrcp.pop %v9874
      %v10393 = vmul.f32 1.0, %v10392
      %v10394 = vrcp.pop %v9875
      %v10395 = vmul.f32 1.0, %v10394
      %v10396 = vrcp.pop %v9876
      %v10397 = vmul.f32 1.0, %v10396
      %v10398 = vrcp.pop %v9877
      %v10399 = vmul.f32 1.0, %v10398
      %v10400 = vrcp.pop %v9878
      %v10401 = vmul.f32 1.0, %v10400
      %v10402 = vrcp.pop %v9879
      %v10403 = vmul.f32 1.0, %v10402
      %v10404 = vrcp.pop %v9880
      %v10405 = vmul.f32 1.0, %v10404
      %v10406 = vrcp.pop %v9881
      %v10407 = vmul.f32 1.0, %v10406
      %v10408 = vrcp.pop %v9882
      %v10409 = vmul.f32 1.0, %v10408
      %v10410 = vrcp.pop %v9883
      %v10411 = vmul.f32 1.0, %v10410
      %v10412 = vrcp.pop %v9884
      %v10413 = vmul.f32 1.0, %v10412
      %v10414 = vrcp.pop %v9885
      %v10415 = vmul.f32 1.0, %v10414
      %v10416 = vrcp.pop %v9886
      %v10417 = vmul.f32 1.0, %v10416
      %v10418 = vrcp.pop %v9887
      %v10419 = vmul.f32 1.0, %v10418
      %v10420 = vrcp.pop %v9888
      %v10421 = vmul.f32 1.0, %v10420
      %v10422 = vrcp.pop %v9889
      %v10423 = vmul.f32 1.0, %v10422
      %v10424 = vrcp.pop %v9890
      %v10425 = vmul.f32 1.0, %v10424
      %v10426 = vrcp.pop %v9891
      %v10427 = vmul.f32 1.0, %v10426
      %v10428 = vrcp.pop %v9892
      %v10429 = vmul.f32 1.0, %v10428
      %v10430 = vrcp.pop %v9893
      %v10431 = vmul.f32 1.0, %v10430
      %v10432 = vrcp.pop %v9894
      %v10433 = vmul.f32 1.0, %v10432
      %v10434 = vrcp.pop %v9895
      %v10435 = vmul.f32 1.0, %v10434
      %v10436 = vrcp.pop %v9896
      %v10437 = vmul.f32 1.0, %v10436
      %v10438 = vrcp.pop %v9897
      %v10439 = vmul.f32 1.0, %v10438
      %v10440 = vrcp.pop %v9898
      %v10441 = vmul.f32 1.0, %v10440
      %v10442 = vrcp.pop %v9899
      %v10443 = vmul.f32 1.0, %v10442
      %v10444 = vrcp.pop %v9900
      %v10445 = vmul.f32 1.0, %v10444
      %v10446 = vrcp.pop %v9901
      %v10447 = vmul.f32 1.0, %v10446
      %v10448 = vrcp.pop %v9902
      %v10449 = vmul.f32 1.0, %v10448
      %v10450 = vrcp.pop %v9903
      %v10451 = vmul.f32 1.0, %v10450
      %v10452 = vrcp.pop %v9904
      %v10453 = vmul.f32 1.0, %v10452
      %v10454 = vrcp.pop %v9905
      %v10455 = vmul.f32 1.0, %v10454
      %v10456 = vrcp.pop %v9906
      %v10457 = vmul.f32 1.0, %v10456
      %v10458 = vrcp.pop %v9907
      %v10459 = vmul.f32 1.0, %v10458
      %v10460 = vrcp.pop %v9908
      %v10461 = vmul.f32 1.0, %v10460
      %v10462 = vrcp.pop %v9909
      %v10463 = vmul.f32 1.0, %v10462
      %v10464 = vrcp.pop %v9910
      %v10465 = vmul.f32 1.0, %v10464
      %v10466 = vrcp.pop %v9911
      %v10467 = vmul.f32 1.0, %v10466
      %v10468 = vrcp.pop %v9912
      %v10469 = vmul.f32 1.0, %v10468
      %v10470 = vrcp.pop %v9913
      %v10471 = vmul.f32 1.0, %v10470
      %v10472 = vrcp.pop %v9914
      %v10473 = vmul.f32 1.0, %v10472
      %v10474 = vrcp.pop %v9915
      %v10475 = vmul.f32 1.0, %v10474
      %v10476 = vrcp.pop %v9916
      %v10477 = vmul.f32 1.0, %v10476
      %v10478 = vrcp.pop %v9917
      %v10479 = vmul.f32 1.0, %v10478
      %v10480 = vrcp.pop %v9918
      %v10481 = vmul.f32 1.0, %v10480
      %v10482 = vrcp.pop %v9919
      %v10483 = vmul.f32 1.0, %v10482
      %v10484 = vrcp.pop %v9920
      %v10485 = vmul.f32 1.0, %v10484
      %v10486 = vrcp.pop %v9921
      %v10487 = vmul.f32 1.0, %v10486
      %v10488 = vrcp.pop %v9922
      %v10489 = vmul.f32 1.0, %v10488
      %v10490 = vrcp.pop %v9923
      %v10491 = vmul.f32 1.0, %v10490
      %v10492 = vrcp.pop %v9924
      %v10493 = vmul.f32 1.0, %v10492
      %v10494 = vrcp.pop %v9925
      %v10495 = vmul.f32 1.0, %v10494
      %v10496 = vrcp.pop %v9926
      %v10497 = vmul.f32 1.0, %v10496
      %v10498 = vrcp.pop %v9927
      %v10499 = vmul.f32 1.0, %v10498
      %v10500 = vrcp.pop %v9928
      %v10501 = vmul.f32 1.0, %v10500
      %v10502 = vrcp.pop %v9929
      %v10503 = vmul.f32 1.0, %v10502
      %v10504 = vrcp.pop %v9930
      %v10505 = vmul.f32 1.0, %v10504
      %v10506 = vrcp.pop %v9931
      %v10507 = vmul.f32 1.0, %v10506
      %v10508 = vrcp.pop %v9932
      %v10509 = vmul.f32 1.0, %v10508
      %v10510 = vrcp.pop %v9933
      %v10511 = vmul.f32 1.0, %v10510
      %v10512 = vrcp.pop %v9934
      %v10513 = vmul.f32 1.0, %v10512
      %v10514 = vrcp.pop %v9935
      %v10515 = vmul.f32 1.0, %v10514
      %v10516 = vrcp.pop %v9936
      %v10517 = vmul.f32 1.0, %v10516
      %v10518 = vrcp.pop %v9937
      %v10519 = vmul.f32 1.0, %v10518
      %v10520 = vrcp.pop %v9938
      %v10521 = vmul.f32 1.0, %v10520
      %v10522 = vrcp.pop %v9939
      %v10523 = vmul.f32 1.0, %v10522
      %v10524 = vrcp.pop %v9940
      %v10525 = vmul.f32 1.0, %v10524
      %v10526 = vrcp.pop %v9941
      %v10527 = vmul.f32 1.0, %v10526
      %v10528 = vrcp.pop %v9942
      %v10529 = vmul.f32 1.0, %v10528
      %v10530 = vrcp.pop %v9943
      %v10531 = vmul.f32 1.0, %v10530
      %v10532 = vrcp.pop %v9944
      %v10533 = vmul.f32 1.0, %v10532
      %v10534 = vrcp.pop %v9945
      %v10535 = vmul.f32 1.0, %v10534
      %v10536 = vrcp.pop %v9946
      %v10537 = vmul.f32 1.0, %v10536
      %v10538 = vrcp.pop %v9947
      %v10539 = vmul.f32 1.0, %v10538
      %v10540 = vrcp.pop %v9948
      %v10541 = vmul.f32 1.0, %v10540
      %v10542 = vrcp.pop %v9949
      %v10543 = vmul.f32 1.0, %v10542
      %v10544 = vrcp.pop %v9950
      %v10545 = vmul.f32 1.0, %v10544
      %v10546 = vrcp.pop %v9951
      %v10547 = vmul.f32 1.0, %v10546
      %v10548 = vrcp.pop %v9952
      %v10549 = vmul.f32 1.0, %v10548
      %v10550 = vrcp.pop %v9953
      %v10551 = vmul.f32 1.0, %v10550
      %v10552 = vrcp.pop %v9954
      %v10553 = vmul.f32 1.0, %v10552
      %v10554 = vrcp.pop %v9955
      %v10555 = vmul.f32 1.0, %v10554
      %v10556 = vrcp.pop %v9956
      %v10557 = vmul.f32 1.0, %v10556
      %v10558 = vrcp.pop %v9957
      %v10559 = vmul.f32 1.0, %v10558
      %v10560 = vrcp.pop %v9958
      %v10561 = vmul.f32 1.0, %v10560
      %v10562 = vrcp.pop %v9959
      %v10563 = vmul.f32 1.0, %v10562
      %v10564 = vrcp.pop %v9960
      %v10565 = vmul.f32 1.0, %v10564
      %v10566 = vrcp.pop %v9961
      %v10567 = vmul.f32 1.0, %v10566
      %v10568 = vrcp.pop %v9962
      %v10569 = vmul.f32 1.0, %v10568
      %v10570 = vrcp.pop %v9963
      %v10571 = vmul.f32 1.0, %v10570
      %v10572 = vrcp.pop %v9964
      %v10573 = vmul.f32 1.0, %v10572
      %v10574 = vrcp.pop %v9965
      %v10575 = vmul.f32 1.0, %v10574
      %v10576 = vrcp.pop %v9966
      %v10577 = vmul.f32 1.0, %v10576
      %v10578 = vrcp.pop %v9967
      %v10579 = vmul.f32 1.0, %v10578
      %v10580 = vrcp.pop %v9968
      %v10581 = vmul.f32 1.0, %v10580
      %v10582 = vrcp.pop %v9969
      %v10583 = vmul.f32 1.0, %v10582
      %v10584 = vrcp.pop %v9970
      %v10585 = vmul.f32 1.0, %v10584
      %v10586 = vrcp.pop %v9971
      %v10587 = vmul.f32 1.0, %v10586
      %v10588 = vrcp.pop %v9972
      %v10589 = vmul.f32 1.0, %v10588
      %v10590 = vrcp.pop %v9973
      %v10591 = vmul.f32 1.0, %v10590
      %v10592 = vrcp.pop %v9974
      %v10593 = vmul.f32 1.0, %v10592
      %v10594 = vrcp.pop %v9975
      %v10595 = vmul.f32 1.0, %v10594
      %v10596 = vrcp.pop %v9976
      %v10597 = vmul.f32 1.0, %v10596
      %v10598 = vrcp.pop %v9977
      %v10599 = vmul.f32 1.0, %v10598
      %v10600 = vrcp.pop %v9978
      %v10601 = vmul.f32 1.0, %v10600
      %v10602 = vrcp.pop %v9979
      %v10603 = vmul.f32 1.0, %v10602
      %v10604 = vrcp.pop %v9980
      %v10605 = vmul.f32 1.0, %v10604
      %v10606 = vrcp.pop %v9981
      %v10607 = vmul.f32 1.0, %v10606
      %v10608 = vrcp.pop %v9982
      %v10609 = vmul.f32 1.0, %v10608
      %v10610 = vrcp.pop %v9983
      %v10611 = vmul.f32 1.0, %v10610
      %v10612 = vrcp.pop %v9984
      %v10613 = vmul.f32 1.0, %v10612
      %v10614 = vrcp.pop %v9985
      %v10615 = vmul.f32 1.0, %v10614
      %v10616 = vrcp.pop %v9986
      %v10617 = vmul.f32 1.0, %v10616
      %v10618 = vrcp.pop %v9987
      %v10619 = vmul.f32 1.0, %v10618
      %v10620 = vrcp.pop %v9988
      %v10621 = vmul.f32 1.0, %v10620
      %v10622 = vrcp.pop %v9989
      %v10623 = vmul.f32 1.0, %v10622
      %v10624 = vrcp.pop %v9990
      %v10625 = vmul.f32 1.0, %v10624
      %v10626 = vrcp.pop %v9991
      %v10627 = vmul.f32 1.0, %v10626
      %v10628 = vrcp.pop %v9992
      %v10629 = vmul.f32 1.0, %v10628
      %v10630 = vrcp.pop %v9993
      %v10631 = vmul.f32 1.0, %v10630
      %v10632 = vrcp.pop %v9994
      %v10633 = vmul.f32 1.0, %v10632
      %v10634 = vrcp.pop %v9995
      %v10635 = vmul.f32 1.0, %v10634
      %v10636 = vrcp.pop %v9996
      %v10637 = vmul.f32 1.0, %v10636
      %v10638 = vrcp.pop %v9997
      %v10639 = vmul.f32 1.0, %v10638
      %v10640 = vrcp.pop %v9998
      %v10641 = vmul.f32 1.0, %v10640
      %v10642 = vrcp.pop %v9999
      %v10643 = vmul.f32 1.0, %v10642
      %v10644 = vrcp.pop %v10000
      %v10645 = vmul.f32 1.0, %v10644
      %v10646 = vrcp.pop %v10001
      %v10647 = vmul.f32 1.0, %v10646
      %v10648 = vrcp.pop %v10002
      %v10649 = vmul.f32 1.0, %v10648
      %v10650 = vrcp.pop %v10003
      %v10651 = vmul.f32 1.0, %v10650
      %v10652 = vrcp.pop %v10004
      %v10653 = vmul.f32 1.0, %v10652
      %v10654 = vrcp.pop %v10005
      %v10655 = vmul.f32 1.0, %v10654
      %v10656 = vrcp.pop %v10006
      %v10657 = vmul.f32 1.0, %v10656
      %v10658 = vrcp.pop %v10007
      %v10659 = vmul.f32 1.0, %v10658
      %v10660 = vrcp.pop %v10008
      %v10661 = vmul.f32 1.0, %v10660
      %v10662 = vrcp.pop %v10009
      %v10663 = vmul.f32 1.0, %v10662
      %v10664 = vrcp.pop %v10010
      %v10665 = vmul.f32 1.0, %v10664
      %v10666 = vrcp.pop %v10011
      %v10667 = vmul.f32 1.0, %v10666
      %v10668 = vrcp.pop %v10012
      %v10669 = vmul.f32 1.0, %v10668
      %v10670 = vrcp.pop %v10013
      %v10671 = vmul.f32 1.0, %v10670
      %v10672 = vrcp.pop %v10014
      %v10673 = vmul.f32 1.0, %v10672
      %v10674 = vrcp.pop %v10015
      %v10675 = vmul.f32 1.0, %v10674
      %v10676 = vrcp.pop %v10016
      %v10677 = vmul.f32 1.0, %v10676
      %v10678 = vrcp.pop %v10017
      %v10679 = vmul.f32 1.0, %v10678
      %v10680 = vrcp.pop %v10018
      %v10681 = vmul.f32 1.0, %v10680
      %v10682 = vrcp.pop %v10019
      %v10683 = vmul.f32 1.0, %v10682
      %v10684 = vrcp.pop %v10020
      %v10685 = vmul.f32 1.0, %v10684
      %v10686 = vrcp.pop %v10021
      %v10687 = vmul.f32 1.0, %v10686
      %v10688 = vrcp.pop %v10022
      %v10689 = vmul.f32 1.0, %v10688
      %v10690 = vrcp.pop %v10023
      %v10691 = vmul.f32 1.0, %v10690
      %v10692 = vrcp.pop %v10024
      %v10693 = vmul.f32 1.0, %v10692
      %v10694 = vrcp.pop %v10025
      %v10695 = vmul.f32 1.0, %v10694
      %v10696 = vrcp.pop %v10026
      %v10697 = vmul.f32 1.0, %v10696
      %v10698 = vrcp.pop %v10027
      %v10699 = vmul.f32 1.0, %v10698
      %v10700 = vrcp.pop %v10028
      %v10701 = vmul.f32 1.0, %v10700
      %v10702 = vrcp.pop %v10029
      %v10703 = vmul.f32 1.0, %v10702
      %v10704 = vrcp.pop %v10030
      %v10705 = vmul.f32 1.0, %v10704
      %v10706 = vrcp.pop %v10031
      %v10707 = vmul.f32 1.0, %v10706
      %v10708 = vrcp.pop %v10032
      %v10709 = vmul.f32 1.0, %v10708
      %v10710 = vrcp.pop %v10033
      %v10711 = vmul.f32 1.0, %v10710
      %v10712 = vrcp.pop %v10034
      %v10713 = vmul.f32 1.0, %v10712
      %v10714 = vrcp.pop %v10035
      %v10715 = vmul.f32 1.0, %v10714
      %v10716 = vrcp.pop %v10036
      %v10717 = vmul.f32 1.0, %v10716
      %v10718 = vrcp.pop %v10037
      %v10719 = vmul.f32 1.0, %v10718
      %v10720 = vrcp.pop %v10038
      %v10721 = vmul.f32 1.0, %v10720
      %v10722 = vrcp.pop %v10039
      %v10723 = vmul.f32 1.0, %v10722
      %v10724 = vrcp.pop %v10040
      %v10725 = vmul.f32 1.0, %v10724
      %v10726 = vrcp.pop %v10041
      %v10727 = vmul.f32 1.0, %v10726
      %v10728 = vrcp.pop %v10042
      %v10729 = vmul.f32 1.0, %v10728
      %v10730 = vrcp.pop %v10043
      %v10731 = vmul.f32 1.0, %v10730
      %v10732 = vrcp.pop %v10044
      %v10733 = vmul.f32 1.0, %v10732
      %v10734 = vrcp.pop %v10045
      %v10735 = vmul.f32 1.0, %v10734
      %v10736 = vrcp.pop %v10046
      %v10737 = vmul.f32 1.0, %v10736
      %v10738 = vrcp.pop %v10047
      %v10739 = vmul.f32 1.0, %v10738
      %v10740 = vrcp.pop %v10048
      %v10741 = vmul.f32 1.0, %v10740
      %v10742 = vrcp.pop %v10049
      %v10743 = vmul.f32 1.0, %v10742
      %v10744 = vrcp.pop %v10050
      %v10745 = vmul.f32 1.0, %v10744
      %v10746 = vrcp.pop %v10051
      %v10747 = vmul.f32 1.0, %v10746
      %v10748 = vrcp.pop %v10052
      %v10749 = vmul.f32 1.0, %v10748
      %v10750 = vrcp.pop %v10053
      %v10751 = vmul.f32 1.0, %v10750
      %v10752 = vrcp.pop %v10054
      %v10753 = vmul.f32 1.0, %v10752
      %v10754 = vrcp.pop %v10055
      %v10755 = vmul.f32 1.0, %v10754
      %v10756 = vrcp.pop %v10056
      %v10757 = vmul.f32 1.0, %v10756
      %v10758 = vrcp.pop %v10057
      %v10759 = vmul.f32 1.0, %v10758
      %v10760 = vrcp.pop %v10058
      %v10761 = vmul.f32 1.0, %v10760
      %v10762 = vrcp.pop %v10059
      %v10763 = vmul.f32 1.0, %v10762
      %v10764 = vrcp.pop %v10060
      %v10765 = vmul.f32 1.0, %v10764
      %v10766 = vrcp.pop %v10061
      %v10767 = vmul.f32 1.0, %v10766
      %v10768 = vrcp.pop %v10062
      %v10769 = vmul.f32 1.0, %v10768
      %v10770 = vrcp.pop %v10063
      %v10771 = vmul.f32 1.0, %v10770
      %v10772 = vrcp.pop %v10064
      %v10773 = vmul.f32 1.0, %v10772
      %v10774 = vrcp.pop %v10065
      %v10775 = vmul.f32 1.0, %v10774
      %v10776 = vrcp.pop %v10066
      %v10777 = vmul.f32 1.0, %v10776
      %v10778 = vrcp.pop %v10067
      %v10779 = vmul.f32 1.0, %v10778
      %v10780 = vrcp.pop %v10068
      %v10781 = vmul.f32 1.0, %v10780
      %v10782 = vrcp.pop %v10069
      %v10783 = vmul.f32 1.0, %v10782
      %v10784 = vrcp.pop %v10070
      %v10785 = vmul.f32 1.0, %v10784
      %v10786 = vrcp.pop %v10071
      %v10787 = vmul.f32 1.0, %v10786
      %v10788 = vrcp.pop %v10072
      %v10789 = vmul.f32 1.0, %v10788
      %v10790 = vrcp.pop %v10073
      %v10791 = vmul.f32 1.0, %v10790
      %v10792 = vrcp.pop %v10074
      %v10793 = vmul.f32 1.0, %v10792
      %v10794 = vrcp.pop %v10075
      %v10795 = vmul.f32 1.0, %v10794
      %v10796 = vrcp.pop %v10076
      %v10797 = vmul.f32 1.0, %v10796
      %v10798 = vrcp.pop %v10077
      %v10799 = vmul.f32 1.0, %v10798
      %v10800 = vrcp.pop %v10078
      %v10801 = vmul.f32 1.0, %v10800
      %v10802 = vrcp.pop %v10079
      %v10803 = vmul.f32 1.0, %v10802
      %v10804 = vrcp.pop %v10080
      %v10805 = vmul.f32 1.0, %v10804
      %v10806 = vrcp.pop %v10081
      %v10807 = vmul.f32 1.0, %v10806
      %v10808 = vrcp.pop %v10082
      %v10809 = vmul.f32 1.0, %v10808
      %v10810 = vrcp.pop %v10083
      %v10811 = vmul.f32 1.0, %v10810
      %v10812 = vrcp.pop %v10084
      %v10813 = vmul.f32 1.0, %v10812
      %v10814 = vrcp.pop %v10085
      %v10815 = vmul.f32 1.0, %v10814
      %v10816 = vrcp.pop %v10086
      %v10817 = vmul.f32 1.0, %v10816
      %v10818 = vrcp.pop %v10087
      %v10819 = vmul.f32 1.0, %v10818
      %v10820 = vrcp.pop %v10088
      %v10821 = vmul.f32 1.0, %v10820
      %v10822 = vrcp.pop %v10089
      %v10823 = vmul.f32 1.0, %v10822
      %v10824 = vrcp.pop %v10090
      %v10825 = vmul.f32 1.0, %v10824
      %v10826 = vrcp.pop %v10091
      %v10827 = vmul.f32 1.0, %v10826
      %v10828 = vrcp.pop %v10092
      %v10829 = vmul.f32 1.0, %v10828
      %v10830 = vrcp.pop %v10093
      %v10831 = vmul.f32 1.0, %v10830
      %v10832 = vrcp.pop %v10094
      %v10833 = vmul.f32 1.0, %v10832
      %v10834 = vrcp.pop %v10095
      %v10835 = vmul.f32 1.0, %v10834
      %v10836 = vrcp.pop %v10096
      %v10837 = vmul.f32 1.0, %v10836
      %v10838 = vrcp.pop %v10097
      %v10839 = vmul.f32 1.0, %v10838
      %v10840 = vrcp.pop %v10098
      %v10841 = vmul.f32 1.0, %v10840
      %v10842 = vrcp.pop %v10099
      %v10843 = vmul.f32 1.0, %v10842
      %v10844 = vrcp.pop %v10100
      %v10845 = vmul.f32 1.0, %v10844
      %v10846 = vrcp.pop %v10101
      %v10847 = vmul.f32 1.0, %v10846
      %v10848 = vrcp.pop %v10102
      %v10849 = vmul.f32 1.0, %v10848
      %v10850 = vrcp.pop %v10103
      %v10851 = vmul.f32 1.0, %v10850
      %v10852 = vrcp.pop %v10104
      %v10853 = vmul.f32 1.0, %v10852
      %v10854 = vrcp.pop %v10105
      %v10855 = vmul.f32 1.0, %v10854
      %v10856 = vrcp.pop %v10106
      %v10857 = vmul.f32 1.0, %v10856
      %v10858 = vrcp.pop %v10107
      %v10859 = vmul.f32 1.0, %v10858
      %v10860 = vrcp.pop %v10108
      %v10861 = vmul.f32 1.0, %v10860
      %v10862 = vrcp.pop %v10109
      %v10863 = vmul.f32 1.0, %v10862
      %v10864 = vrcp.pop %v10110
      %v10865 = vmul.f32 1.0, %v10864
      %v10866 = vrcp.pop %v10111
      %v10867 = vmul.f32 1.0, %v10866
      %v10868 = vrcp.pop %v10112
      %v10869 = vmul.f32 1.0, %v10868
      %v10870 = vrcp.pop %v10113
      %v10871 = vmul.f32 1.0, %v10870
      %v10872 = vrcp.pop %v10114
      %v10873 = vmul.f32 1.0, %v10872
      %v10874 = vrcp.pop %v10115
      %v10875 = vmul.f32 1.0, %v10874
      %v10876 = vrcp.pop %v10116
      %v10877 = vmul.f32 1.0, %v10876
      %v10878 = vrcp.pop %v10117
      %v10879 = vmul.f32 1.0, %v10878
      %v10880 = vrcp.pop %v10118
      %v10881 = vmul.f32 1.0, %v10880
      %v10882 = vrcp.pop %v10119
      %v10883 = vmul.f32 1.0, %v10882
      %v10884 = vrcp.pop %v10120
      %v10885 = vmul.f32 1.0, %v10884
      %v10886 = vrcp.pop %v10121
      %v10887 = vmul.f32 1.0, %v10886
      %v10888 = vrcp.pop %v10122
      %v10889 = vmul.f32 1.0, %v10888
      %v10890 = vrcp.pop %v10123
      %v10891 = vmul.f32 1.0, %v10890
      %v10892 = vrcp.pop %v10124
      %v10893 = vmul.f32 1.0, %v10892
      %v10894 = vrcp.pop %v10125
      %v10895 = vmul.f32 1.0, %v10894
      %v10896 = vrcp.pop %v10126
      %v10897 = vmul.f32 1.0, %v10896
      %v10898 = vrcp.pop %v10127
      %v10899 = vmul.f32 1.0, %v10898
      %v10900 = vrcp.pop %v10128
      %v10901 = vmul.f32 1.0, %v10900
      %v10902 = vrcp.pop %v10129
      %v10903 = vmul.f32 1.0, %v10902
      %v10904 = vrcp.pop %v10130
      %v10905 = vmul.f32 1.0, %v10904
      %v10906 = vrcp.pop %v10131
      %v10907 = vmul.f32 1.0, %v10906
      %v10908 = vrcp.pop %v10132
      %v10909 = vmul.f32 1.0, %v10908
      %v10910 = vrcp.pop %v10133
      %v10911 = vmul.f32 1.0, %v10910
      %v10912 = vrcp.pop %v10134
      %v10913 = vmul.f32 1.0, %v10912
      %v10914 = vrcp.pop %v10135
      %v10915 = vmul.f32 1.0, %v10914
      %v10916 = vrcp.pop %v10136
      %v10917 = vmul.f32 1.0, %v10916
      %v10918 = vrcp.pop %v10137
      %v10919 = vmul.f32 1.0, %v10918
      %v10920 = vrcp.pop %v10138
      %v10921 = vmul.f32 1.0, %v10920
      %v10922 = vrcp.pop %v10139
      %v10923 = vmul.f32 1.0, %v10922
      %v10924 = vrcp.pop %v10140
      %v10925 = vmul.f32 1.0, %v10924
      %v10926 = vrcp.pop %v10141
      %v10927 = vmul.f32 1.0, %v10926
      %v10928 = vrcp.pop %v10142
      %v10929 = vmul.f32 1.0, %v10928
      %v10930 = vrcp.pop %v10143
      %v10931 = vmul.f32 1.0, %v10930
      %v10932 = vrcp.pop %v10144
      %v10933 = vmul.f32 1.0, %v10932
      %v10934 = vrcp.pop %v10145
      %v10935 = vmul.f32 1.0, %v10934
      %v10936 = vrcp.pop %v10146
      %v10937 = vmul.f32 1.0, %v10936
      %v10938 = vrcp.pop %v10147
      %v10939 = vmul.f32 1.0, %v10938
      %v10940 = vrcp.pop %v10148
      %v10941 = vmul.f32 1.0, %v10940
      %v10942 = vrcp.pop %v10149
      %v10943 = vmul.f32 1.0, %v10942
      %v10944 = vrcp.pop %v10150
      %v10945 = vmul.f32 1.0, %v10944
      %v10946 = vrcp.pop %v10151
      %v10947 = vmul.f32 1.0, %v10946
      %v10948 = vrcp.pop %v10152
      %v10949 = vmul.f32 1.0, %v10948
      %v10950 = vrcp.pop %v10153
      %v10951 = vmul.f32 1.0, %v10950
      %v10952 = vrcp.pop %v10154
      %v10953 = vmul.f32 1.0, %v10952
      %v10954 = vrcp.pop %v10155
      %v10955 = vmul.f32 1.0, %v10954
      %v10956 = vrcp.pop %v10156
      %v10957 = vmul.f32 1.0, %v10956
      %v10958 = vrcp.pop %v10157
      %v10959 = vmul.f32 1.0, %v10958
      %v10960 = vrcp.pop %v10158
      %v10961 = vmul.f32 1.0, %v10960
      %v10962 = vrcp.pop %v10159
      %v10963 = vmul.f32 1.0, %v10962
      %v10964 = vrcp.pop %v10160
      %v10965 = vmul.f32 1.0, %v10964
      %v10966 = vrcp.pop %v10161
      %v10967 = vmul.f32 1.0, %v10966
      %v10968 = vrcp.pop %v10162
      %v10969 = vmul.f32 1.0, %v10968
      %v10970 = vrcp.pop %v10163
      %v10971 = vmul.f32 1.0, %v10970
      %v10972 = vrcp.pop %v10164
      %v10973 = vmul.f32 1.0, %v10972
      %v10974 = vrcp.pop %v10165
      %v10975 = vmul.f32 1.0, %v10974
      %v10976 = vrcp.pop %v10166
      %v10977 = vmul.f32 1.0, %v10976
      %v10978 = vrcp.pop %v10167
      %v10979 = vmul.f32 1.0, %v10978
      %v10980 = vrcp.pop %v10168
      %v10981 = vmul.f32 1.0, %v10980
      %v10982 = vrcp.pop %v10169
      %v10983 = vmul.f32 1.0, %v10982
      %v10984 = vrcp.pop %v10170
      %v10985 = vmul.f32 1.0, %v10984
      %v10986 = vrcp.pop %v10171
      %v10987 = vmul.f32 1.0, %v10986
      %v10988 = vrcp.pop %v10172
      %v10989 = vmul.f32 1.0, %v10988
      %v10990 = vrcp.pop %v10173
      %v10991 = vmul.f32 1.0, %v10990
      %v10992 = vrcp.pop %v10174
      %v10993 = vmul.f32 1.0, %v10992
      %v10994 = vrcp.pop %v10175
      %v10995 = vmul.f32 1.0, %v10994
      %v10996 = vrcp.pop %v10176
      %v10997 = vmul.f32 1.0, %v10996
      %v10998 = vrcp.pop %v10177
      %v10999 = vmul.f32 1.0, %v10998
      %v11000 = vrcp.pop %v10178
      %v11001 = vmul.f32 1.0, %v11000
      %v11002 = vrcp.pop %v10179
      %v11003 = vmul.f32 1.0, %v11002
      %v11004 = vrcp.pop %v10180
      %v11005 = vmul.f32 1.0, %v11004
      %v11006 = vrcp.pop %v10181
      %v11007 = vmul.f32 1.0, %v11006
      %v11008 = vrcp.pop %v10182
      %v11009 = vmul.f32 1.0, %v11008
      %v11010 = vrcp.pop %v10183
      %v11011 = vmul.f32 1.0, %v11010
      %v11012 = vrcp.pop %v10184
      %v11013 = vmul.f32 1.0, %v11012
      %v11014 = vrcp.pop %v10185
      %v11015 = vmul.f32 1.0, %v11014
      %v11016 = vrcp.pop %v10186
      %v11017 = vmul.f32 1.0, %v11016
      %v11018 = vrcp.pop %v10187
      %v11019 = vmul.f32 1.0, %v11018
      %v11020 = vrcp.pop %v10188
      %v11021 = vmul.f32 1.0, %v11020
      %v11022 = vrcp.pop %v10189
      %v11023 = vmul.f32 1.0, %v11022
      %v11024 = vrcp.pop %v10190
      %v11025 = vmul.f32 1.0, %v11024
      %v11026 = vrcp.pop %v10191
      %v11027 = vmul.f32 1.0, %v11026
      %v11028 = vrcp.pop %v10192
      %v11029 = vmul.f32 1.0, %v11028
      %v11030 = vrcp.pop %v10193
      %v11031 = vmul.f32 1.0, %v11030
      %v11032 = vrcp.pop %v10194
      %v11033 = vmul.f32 1.0, %v11032
      %v11034 = vrcp.pop %v10195
      %v11035 = vmul.f32 1.0, %v11034
      %v11036 = vrcp.pop %v10196
      %v11037 = vmul.f32 1.0, %v11036
      %v11038 = vrcp.pop %v10197
      %v11039 = vmul.f32 1.0, %v11038
      %v11040 = vrcp.pop %v10198
      %v11041 = vmul.f32 1.0, %v11040
      %v11042 = vrcp.pop %v10199
      %v11043 = vmul.f32 1.0, %v11042
      %v11044 = vrcp.pop %v10200
      %v11045 = vmul.f32 1.0, %v11044
      %v11046 = vrcp.pop %v10201
      %v11047 = vmul.f32 1.0, %v11046
      %v11048 = vrcp.pop %v10202
      %v11049 = vmul.f32 1.0, %v11048
      %v11050 = vrcp.pop %v10203
      %v11051 = vmul.f32 1.0, %v11050
      %v11052 = vrcp.pop %v10204
      %v11053 = vmul.f32 1.0, %v11052
      %v11054 = vrcp.pop %v10205
      %v11055 = vmul.f32 1.0, %v11054
      %v11056 = vrcp.pop %v10206
      %v11057 = vmul.f32 1.0, %v11056
      %v11058 = vrcp.pop %v10207
      %v11059 = vmul.f32 1.0, %v11058
      %v11060 = vrcp.pop %v10208
      %v11061 = vmul.f32 1.0, %v11060
      %v11062 = vrcp.pop %v10209
      %v11063 = vmul.f32 1.0, %v11062
      %v11064 = vrcp.pop %v10210
      %v11065 = vmul.f32 1.0, %v11064
      %v11066 = vrcp.pop %v10211
      %v11067 = vmul.f32 1.0, %v11066
      %v11068 = vrcp.pop %v10212
      %v11069 = vmul.f32 1.0, %v11068
      %v11070 = vrcp.pop %v10213
      %v11071 = vmul.f32 1.0, %v11070
      %v11072 = vrcp.pop %v10214
      %v11073 = vmul.f32 1.0, %v11072
      %v11074 = vrcp.pop %v10215
      %v11075 = vmul.f32 1.0, %v11074
      %v11076 = vrcp.pop %v10216
      %v11077 = vmul.f32 1.0, %v11076
      %v11078 = vrcp.pop %v10217
      %v11079 = vmul.f32 1.0, %v11078
      %v11080 = vrcp.pop %v10218
      %v11081 = vmul.f32 1.0, %v11080
      %v11082 = vrcp.pop %v10219
      %v11083 = vmul.f32 1.0, %v11082
      %v11084 = vrcp.pop %v10220
      %v11085 = vmul.f32 1.0, %v11084
      %v11086 = vrcp.pop %v10221
      %v11087 = vmul.f32 1.0, %v11086
      %v11088 = vrcp.pop %v10222
      %v11089 = vmul.f32 1.0, %v11088
      %v11090 = vrcp.pop %v10223
      %v11091 = vmul.f32 1.0, %v11090
      %v11092 = vrcp.pop %v10224
      %v11093 = vmul.f32 1.0, %v11092
      %v11094 = vrcp.pop %v10225
      %v11095 = vmul.f32 1.0, %v11094
      %v11096 = vrcp.pop %v10226
      %v11097 = vmul.f32 1.0, %v11096
      %v11098 = vrcp.pop %v10227
      %v11099 = vmul.f32 1.0, %v11098
      %v11100 = vrcp.pop %v10228
      %v11101 = vmul.f32 1.0, %v11100
      %v11102 = vrcp.pop %v10229
      %v11103 = vmul.f32 1.0, %v11102
      %v11104 = vrcp.pop %v10230
      %v11105 = vmul.f32 1.0, %v11104
      %v11106 = vrcp.pop %v10231
      %v11107 = vmul.f32 1.0, %v11106
      %v11108 = vrcp.pop %v10232
      %v11109 = vmul.f32 1.0, %v11108
      %v11110 = vrcp.pop %v10233
      %v11111 = vmul.f32 1.0, %v11110
      %v11112 = vrcp.pop %v10234
      %v11113 = vmul.f32 1.0, %v11112
      %v11114 = vrcp.pop %v10235
      %v11115 = vmul.f32 1.0, %v11114
      %v11116 = vrcp.pop %v10236
      %v11117 = vmul.f32 1.0, %v11116
      %v11118 = vrcp.pop %v10237
      %v11119 = vmul.f32 1.0, %v11118
      %v11120 = vrcp.pop %v10238
      %v11121 = vmul.f32 1.0, %v11120
      %v11122 = vrcp.pop %v10239
      %v11123 = vmul.f32 1.0, %v11122
      %v11124 = vrcp.pop %v10240
      %v11125 = vmul.f32 1.0, %v11124
      %v11126 = vrcp.pop %v10241
      %v11127 = vmul.f32 1.0, %v11126
      %v11128 = vrcp.pop %v10242
      %v11129 = vmul.f32 1.0, %v11128
      %v11130 = vrcp.pop %v10243
      %v11131 = vmul.f32 1.0, %v11130
      %v11132 = vrcp.pop %v10244
      %v11133 = vmul.f32 1.0, %v11132
      %v11134 = vrcp.pop %v10245
      %v11135 = vmul.f32 1.0, %v11134
      %v11136 = vrcp.pop %v10246
      %v11137 = vmul.f32 1.0, %v11136
      %v11138 = vrcp.pop %v10247
      %v11139 = vmul.f32 1.0, %v11138
      %v11140 = vrcp.pop %v10248
      %v11141 = vmul.f32 1.0, %v11140
      %v11142 = vrcp.pop %v10249
      %v11143 = vmul.f32 1.0, %v11142
      %v11144 = vrcp.pop %v10250
      %v11145 = vmul.f32 1.0, %v11144
      %v11146 = vrcp.pop %v10251
      %v11147 = vmul.f32 1.0, %v11146
      %11148 = vst [vmem:[%s420] sm:$0xff] %v10253
      %11149 = vst [vmem:[%s420 + $0x8] sm:$0xff] %v10255
      %11150 = vst [vmem:[%s420 + $0x10] sm:$0xff] %v10257
      %11151 = vst [vmem:[%s420 + $0x18] sm:$0xff] %v10259
      %11152 = vst [vmem:[%s420 + $0x20] sm:$0xff] %v10261
      %11153 = vst [vmem:[%s420 + $0x28] sm:$0xff] %v10263
      %11154 = vst.msk [vmem:[%s420 + $0x30] sm:$0xff] %vm1488, %v10265
      %11155 = vst [vmem:[%s420 + $0x38] sm:$0xff] %v10267
      %11156 = vst [vmem:[%s420 + $0x40] sm:$0xff] %v10269
      %11157 = vst [vmem:[%s420 + $0x48] sm:$0xff] %v10271
      %11158 = vst [vmem:[%s420 + $0x50] sm:$0xff] %v10273
      %11159 = vst [vmem:[%s420 + $0x58] sm:$0xff] %v10275
      %11160 = vst [vmem:[%s420 + $0x60] sm:$0xff] %v10277
      %11161 = vst.msk [vmem:[%s420 + $0x68] sm:$0xff] %vm1488, %v10279
      %11162 = vst [vmem:[%s420 + $0x70] sm:$0xff] %v10281
      %11163 = vst [vmem:[%s420 + $0x78] sm:$0xff] %v10283
      %11164 = vst [vmem:[%s420 + $0x80] sm:$0xff] %v10285
      %11165 = vst [vmem:[%s420 + $0x88] sm:$0xff] %v10287
      %11166 = vst [vmem:[%s420 + $0x90] sm:$0xff] %v10289
      %11167 = vst [vmem:[%s420 + $0x98] sm:$0xff] %v10291
      %11168 = vst.msk [vmem:[%s420 + $0xa0] sm:$0xff] %vm1488, %v10293
      %11169 = vst [vmem:[%s420 + $0xa8] sm:$0xff] %v10295
      %11170 = vst [vmem:[%s420 + $0xb0] sm:$0xff] %v10297
      %11171 = vst [vmem:[%s420 + $0xb8] sm:$0xff] %v10299
      %11172 = vst [vmem:[%s420 + $0xc0] sm:$0xff] %v10301
      %11173 = vst [vmem:[%s420 + $0xc8] sm:$0xff] %v10303
      %11174 = vst [vmem:[%s420 + $0xd0] sm:$0xff] %v10305
      %11175 = vst.msk [vmem:[%s420 + $0xd8] sm:$0xff] %vm1488, %v10307
      %11176 = vst [vmem:[%s420 + $0xe0] sm:$0xff] %v10309
      %11177 = vst [vmem:[%s420 + $0xe8] sm:$0xff] %v10311
      %11178 = vst [vmem:[%s420 + $0xf0] sm:$0xff] %v10313
      %11179 = vst [vmem:[%s420 + $0xf8] sm:$0xff] %v10315
      %11180 = vst [vmem:[%s420 + $0x100] sm:$0xff] %v10317
      %11181 = vst [vmem:[%s420 + $0x108] sm:$0xff] %v10319
      %11182 = vst.msk [vmem:[%s420 + $0x110] sm:$0xff] %vm1488, %v10321
      %11183 = vst [vmem:[%s420 + $0x118] sm:$0xff] %v10323
      %11184 = vst [vmem:[%s420 + $0x120] sm:$0xff] %v10325
      %11185 = vst [vmem:[%s420 + $0x128] sm:$0xff] %v10327
      %11186 = vst [vmem:[%s420 + $0x130] sm:$0xff] %v10329
      %11187 = vst [vmem:[%s420 + $0x138] sm:$0xff] %v10331
      %11188 = vst [vmem:[%s420 + $0x140] sm:$0xff] %v10333
      %11189 = vst.msk [vmem:[%s420 + $0x148] sm:$0xff] %vm1488, %v10335
      %11190 = vst [vmem:[%s420 + $0x150] sm:$0xff] %v10337
      %11191 = vst [vmem:[%s420 + $0x158] sm:$0xff] %v10339
      %11192 = vst [vmem:[%s420 + $0x160] sm:$0xff] %v10341
      %11193 = vst [vmem:[%s420 + $0x168] sm:$0xff] %v10343
      %11194 = vst [vmem:[%s420 + $0x170] sm:$0xff] %v10345
      %11195 = vst [vmem:[%s420 + $0x178] sm:$0xff] %v10347
      %11196 = vst.msk [vmem:[%s420 + $0x180] sm:$0xff] %vm1488, %v10349
      %11197 = vst [vmem:[%s420 + $0x188] sm:$0xff] %v10351
      %11198 = vst [vmem:[%s420 + $0x190] sm:$0xff] %v10353
      %11199 = vst [vmem:[%s420 + $0x198] sm:$0xff] %v10355
      %11200 = vst [vmem:[%s420 + $0x1a0] sm:$0xff] %v10357
      %11201 = vst [vmem:[%s420 + $0x1a8] sm:$0xff] %v10359
      %11202 = vst [vmem:[%s420 + $0x1b0] sm:$0xff] %v10361
      %11203 = vst.msk [vmem:[%s420 + $0x1b8] sm:$0xff] %vm1488, %v10363
      %11204 = vst [vmem:[%s420 + $0x1c0] sm:$0xff] %v10365
      %11205 = vst [vmem:[%s420 + $0x1c8] sm:$0xff] %v10367
      %11206 = vst [vmem:[%s420 + $0x1d0] sm:$0xff] %v10369
      %11207 = vst [vmem:[%s420 + $0x1d8] sm:$0xff] %v10371
      %11208 = vst [vmem:[%s420 + $0x1e0] sm:$0xff] %v10373
      %11209 = vst [vmem:[%s420 + $0x1e8] sm:$0xff] %v10375
      %11210 = vst.msk [vmem:[%s420 + $0x1f0] sm:$0xff] %vm1488, %v10377
      %11211 = vst [vmem:[%s420 + $0x1f8] sm:$0xff] %v10379
      %11212 = vst [vmem:[%s420 + $0x200] sm:$0xff] %v10381
      %11213 = vst [vmem:[%s420 + $0x208] sm:$0xff] %v10383
      %11214 = vst [vmem:[%s420 + $0x210] sm:$0xff] %v10385
      %11215 = vst [vmem:[%s420 + $0x218] sm:$0xff] %v10387
      %11216 = vst [vmem:[%s420 + $0x220] sm:$0xff] %v10389
      %11217 = vst.msk [vmem:[%s420 + $0x228] sm:$0xff] %vm1488, %v10391
      %11218 = vst [vmem:[%s420 + $0x230] sm:$0xff] %v10393
      %11219 = vst [vmem:[%s420 + $0x238] sm:$0xff] %v10395
      %11220 = vst [vmem:[%s420 + $0x240] sm:$0xff] %v10397
      %11221 = vst [vmem:[%s420 + $0x248] sm:$0xff] %v10399
      %11222 = vst [vmem:[%s420 + $0x250] sm:$0xff] %v10401
      %11223 = vst [vmem:[%s420 + $0x258] sm:$0xff] %v10403
      %11224 = vst.msk [vmem:[%s420 + $0x260] sm:$0xff] %vm1488, %v10405
      %11225 = vst [vmem:[%s420 + $0x268] sm:$0xff] %v10407
      %11226 = vst [vmem:[%s420 + $0x270] sm:$0xff] %v10409
      %11227 = vst [vmem:[%s420 + $0x278] sm:$0xff] %v10411
      %11228 = vst [vmem:[%s420 + $0x280] sm:$0xff] %v10413
      %11229 = vst [vmem:[%s420 + $0x288] sm:$0xff] %v10415
      %11230 = vst [vmem:[%s420 + $0x290] sm:$0xff] %v10417
      %11231 = vst.msk [vmem:[%s420 + $0x298] sm:$0xff] %vm1488, %v10419
      %11232 = vst [vmem:[%s420 + $0x2a0] sm:$0xff] %v10421
      %11233 = vst [vmem:[%s420 + $0x2a8] sm:$0xff] %v10423
      %11234 = vst [vmem:[%s420 + $0x2b0] sm:$0xff] %v10425
      %11235 = vst [vmem:[%s420 + $0x2b8] sm:$0xff] %v10427
      %11236 = vst [vmem:[%s420 + $0x2c0] sm:$0xff] %v10429
      %11237 = vst [vmem:[%s420 + $0x2c8] sm:$0xff] %v10431
      %11238 = vst.msk [vmem:[%s420 + $0x2d0] sm:$0xff] %vm1488, %v10433
      %11239 = vst [vmem:[%s420 + $0x2d8] sm:$0xff] %v10435
      %11240 = vst [vmem:[%s420 + $0x2e0] sm:$0xff] %v10437
      %11241 = vst [vmem:[%s420 + $0x2e8] sm:$0xff] %v10439
      %11242 = vst [vmem:[%s420 + $0x2f0] sm:$0xff] %v10441
      %11243 = vst [vmem:[%s420 + $0x2f8] sm:$0xff] %v10443
      %11244 = vst [vmem:[%s420 + $0x300] sm:$0xff] %v10445
      %11245 = vst.msk [vmem:[%s420 + $0x308] sm:$0xff] %vm1488, %v10447
      %11246 = vst [vmem:[%s420 + $0x310] sm:$0xff] %v10449
      %11247 = vst [vmem:[%s420 + $0x318] sm:$0xff] %v10451
      %11248 = vst [vmem:[%s420 + $0x320] sm:$0xff] %v10453
      %11249 = vst [vmem:[%s420 + $0x328] sm:$0xff] %v10455
      %11250 = vst [vmem:[%s420 + $0x330] sm:$0xff] %v10457
      %11251 = vst [vmem:[%s420 + $0x338] sm:$0xff] %v10459
      %11252 = vst.msk [vmem:[%s420 + $0x340] sm:$0xff] %vm1488, %v10461
      %11253 = vst [vmem:[%s420 + $0x348] sm:$0xff] %v10463
      %11254 = vst [vmem:[%s420 + $0x350] sm:$0xff] %v10465
      %11255 = vst [vmem:[%s420 + $0x358] sm:$0xff] %v10467
      %11256 = vst [vmem:[%s420 + $0x360] sm:$0xff] %v10469
      %11257 = vst [vmem:[%s420 + $0x368] sm:$0xff] %v10471
      %11258 = vst [vmem:[%s420 + $0x370] sm:$0xff] %v10473
      %11259 = vst.msk [vmem:[%s420 + $0x378] sm:$0xff] %vm1488, %v10475
      %11260 = vst [vmem:[%s420 + $0x380] sm:$0xff] %v10477
      %11261 = vst [vmem:[%s420 + $0x388] sm:$0xff] %v10479
      %11262 = vst [vmem:[%s420 + $0x390] sm:$0xff] %v10481
      %11263 = vst [vmem:[%s420 + $0x398] sm:$0xff] %v10483
      %11264 = vst [vmem:[%s420 + $0x3a0] sm:$0xff] %v10485
      %11265 = vst [vmem:[%s420 + $0x3a8] sm:$0xff] %v10487
      %11266 = vst.msk [vmem:[%s420 + $0x3b0] sm:$0xff] %vm1488, %v10489
      %11267 = vst [vmem:[%s420 + $0x3b8] sm:$0xff] %v10491
      %11268 = vst [vmem:[%s420 + $0x3c0] sm:$0xff] %v10493
      %11269 = vst [vmem:[%s420 + $0x3c8] sm:$0xff] %v10495
      %11270 = vst [vmem:[%s420 + $0x3d0] sm:$0xff] %v10497
      %11271 = vst [vmem:[%s420 + $0x3d8] sm:$0xff] %v10499
      %11272 = vst [vmem:[%s420 + $0x3e0] sm:$0xff] %v10501
      %11273 = vst.msk [vmem:[%s420 + $0x3e8] sm:$0xff] %vm1488, %v10503
      %11274 = vst [vmem:[%s420 + $0x3f0] sm:$0xff] %v10505
      %11275 = vst [vmem:[%s420 + $0x3f8] sm:$0xff] %v10507
      %11276 = vst [vmem:[%s420 + $0x400] sm:$0xff] %v10509
      %11277 = vst [vmem:[%s420 + $0x408] sm:$0xff] %v10511
      %11278 = vst [vmem:[%s420 + $0x410] sm:$0xff] %v10513
      %11279 = vst [vmem:[%s420 + $0x418] sm:$0xff] %v10515
      %11280 = vst.msk [vmem:[%s420 + $0x420] sm:$0xff] %vm1488, %v10517
      %11281 = vst [vmem:[%s420 + $0x428] sm:$0xff] %v10519
      %11282 = vst [vmem:[%s420 + $0x430] sm:$0xff] %v10521
      %11283 = vst [vmem:[%s420 + $0x438] sm:$0xff] %v10523
      %11284 = vst [vmem:[%s420 + $0x440] sm:$0xff] %v10525
      %11285 = vst [vmem:[%s420 + $0x448] sm:$0xff] %v10527
      %11286 = vst [vmem:[%s420 + $0x450] sm:$0xff] %v10529
      %11287 = vst.msk [vmem:[%s420 + $0x458] sm:$0xff] %vm1488, %v10531
      %11288 = vst [vmem:[%s420 + $0x460] sm:$0xff] %v10533
      %11289 = vst [vmem:[%s420 + $0x468] sm:$0xff] %v10535
      %11290 = vst [vmem:[%s420 + $0x470] sm:$0xff] %v10537
      %11291 = vst [vmem:[%s420 + $0x478] sm:$0xff] %v10539
      %11292 = vst [vmem:[%s420 + $0x480] sm:$0xff] %v10541
      %11293 = vst [vmem:[%s420 + $0x488] sm:$0xff] %v10543
      %11294 = vst.msk [vmem:[%s420 + $0x490] sm:$0xff] %vm1488, %v10545
      %11295 = vst [vmem:[%s420 + $0x498] sm:$0xff] %v10547
      %11296 = vst [vmem:[%s420 + $0x4a0] sm:$0xff] %v10549
      %11297 = vst [vmem:[%s420 + $0x4a8] sm:$0xff] %v10551
      %11298 = vst [vmem:[%s420 + $0x4b0] sm:$0xff] %v10553
      %11299 = vst [vmem:[%s420 + $0x4b8] sm:$0xff] %v10555
      %11300 = vst [vmem:[%s420 + $0x4c0] sm:$0xff] %v10557
      %11301 = vst.msk [vmem:[%s420 + $0x4c8] sm:$0xff] %vm1488, %v10559
      %11302 = vst [vmem:[%s420 + $0x4d0] sm:$0xff] %v10561
      %11303 = vst [vmem:[%s420 + $0x4d8] sm:$0xff] %v10563
      %11304 = vst [vmem:[%s420 + $0x4e0] sm:$0xff] %v10565
      %11305 = vst [vmem:[%s420 + $0x4e8] sm:$0xff] %v10567
      %11306 = vst [vmem:[%s420 + $0x4f0] sm:$0xff] %v10569
      %11307 = vst [vmem:[%s420 + $0x4f8] sm:$0xff] %v10571
      %11308 = vst.msk [vmem:[%s420 + $0x500] sm:$0xff] %vm1488, %v10573
      %11309 = vst [vmem:[%s420 + $0x508] sm:$0xff] %v10575
      %11310 = vst [vmem:[%s420 + $0x510] sm:$0xff] %v10577
      %11311 = vst [vmem:[%s420 + $0x518] sm:$0xff] %v10579
      %11312 = vst [vmem:[%s420 + $0x520] sm:$0xff] %v10581
      %11313 = vst [vmem:[%s420 + $0x528] sm:$0xff] %v10583
      %11314 = vst [vmem:[%s420 + $0x530] sm:$0xff] %v10585
      %11315 = vst.msk [vmem:[%s420 + $0x538] sm:$0xff] %vm1488, %v10587
      %11316 = vst [vmem:[%s420 + $0x540] sm:$0xff] %v10589
      %11317 = vst [vmem:[%s420 + $0x548] sm:$0xff] %v10591
      %11318 = vst [vmem:[%s420 + $0x550] sm:$0xff] %v10593
      %11319 = vst [vmem:[%s420 + $0x558] sm:$0xff] %v10595
      %11320 = vst [vmem:[%s420 + $0x560] sm:$0xff] %v10597
      %11321 = vst [vmem:[%s420 + $0x568] sm:$0xff] %v10599
      %11322 = vst.msk [vmem:[%s420 + $0x570] sm:$0xff] %vm1488, %v10601
      %11323 = vst [vmem:[%s420 + $0x578] sm:$0xff] %v10603
      %11324 = vst [vmem:[%s420 + $0x580] sm:$0xff] %v10605
      %11325 = vst [vmem:[%s420 + $0x588] sm:$0xff] %v10607
      %11326 = vst [vmem:[%s420 + $0x590] sm:$0xff] %v10609
      %11327 = vst [vmem:[%s420 + $0x598] sm:$0xff] %v10611
      %11328 = vst [vmem:[%s420 + $0x5a0] sm:$0xff] %v10613
      %11329 = vst.msk [vmem:[%s420 + $0x5a8] sm:$0xff] %vm1488, %v10615
      %11330 = vst [vmem:[%s420 + $0x5b0] sm:$0xff] %v10617
      %11331 = vst [vmem:[%s420 + $0x5b8] sm:$0xff] %v10619
      %11332 = vst [vmem:[%s420 + $0x5c0] sm:$0xff] %v10621
      %11333 = vst [vmem:[%s420 + $0x5c8] sm:$0xff] %v10623
      %11334 = vst [vmem:[%s420 + $0x5d0] sm:$0xff] %v10625
      %11335 = vst [vmem:[%s420 + $0x5d8] sm:$0xff] %v10627
      %11336 = vst.msk [vmem:[%s420 + $0x5e0] sm:$0xff] %vm1488, %v10629
      %11337 = vst [vmem:[%s420 + $0x5e8] sm:$0xff] %v10631
      %11338 = vst [vmem:[%s420 + $0x5f0] sm:$0xff] %v10633
      %11339 = vst [vmem:[%s420 + $0x5f8] sm:$0xff] %v10635
      %11340 = vst [vmem:[%s420 + $0x600] sm:$0xff] %v10637
      %11341 = vst [vmem:[%s420 + $0x608] sm:$0xff] %v10639
      %11342 = vst [vmem:[%s420 + $0x610] sm:$0xff] %v10641
      %11343 = vst.msk [vmem:[%s420 + $0x618] sm:$0xff] %vm1488, %v10643
      %11344 = vst [vmem:[%s420 + $0x620] sm:$0xff] %v10645
      %11345 = vst [vmem:[%s420 + $0x628] sm:$0xff] %v10647
      %11346 = vst [vmem:[%s420 + $0x630] sm:$0xff] %v10649
      %11347 = vst [vmem:[%s420 + $0x638] sm:$0xff] %v10651
      %11348 = vst [vmem:[%s420 + $0x640] sm:$0xff] %v10653
      %11349 = vst [vmem:[%s420 + $0x648] sm:$0xff] %v10655
      %11350 = vst.msk [vmem:[%s420 + $0x650] sm:$0xff] %vm1488, %v10657
      %11351 = vst [vmem:[%s420 + $0x658] sm:$0xff] %v10659
      %11352 = vst [vmem:[%s420 + $0x660] sm:$0xff] %v10661
      %11353 = vst [vmem:[%s420 + $0x668] sm:$0xff] %v10663
      %11354 = vst [vmem:[%s420 + $0x670] sm:$0xff] %v10665
      %11355 = vst [vmem:[%s420 + $0x678] sm:$0xff] %v10667
      %11356 = vst [vmem:[%s420 + $0x680] sm:$0xff] %v10669
      %11357 = vst.msk [vmem:[%s420 + $0x688] sm:$0xff] %vm1488, %v10671
      %11358 = vst [vmem:[%s420 + $0x690] sm:$0xff] %v10673
      %11359 = vst [vmem:[%s420 + $0x698] sm:$0xff] %v10675
      %11360 = vst [vmem:[%s420 + $0x6a0] sm:$0xff] %v10677
      %11361 = vst [vmem:[%s420 + $0x6a8] sm:$0xff] %v10679
      %11362 = vst [vmem:[%s420 + $0x6b0] sm:$0xff] %v10681
      %11363 = vst [vmem:[%s420 + $0x6b8] sm:$0xff] %v10683
      %11364 = vst.msk [vmem:[%s420 + $0x6c0] sm:$0xff] %vm1488, %v10685
      %11365 = vst [vmem:[%s420 + $0x6c8] sm:$0xff] %v10687
      %11366 = vst [vmem:[%s420 + $0x6d0] sm:$0xff] %v10689
      %11367 = vst [vmem:[%s420 + $0x6d8] sm:$0xff] %v10691
      %11368 = vst [vmem:[%s420 + $0x6e0] sm:$0xff] %v10693
      %11369 = vst [vmem:[%s420 + $0x6e8] sm:$0xff] %v10695
      %11370 = vst [vmem:[%s420 + $0x6f0] sm:$0xff] %v10697
      %11371 = vst.msk [vmem:[%s420 + $0x6f8] sm:$0xff] %vm1488, %v10699
      %11372 = vst [vmem:[%s420 + $0x700] sm:$0xff] %v10701
      %11373 = vst [vmem:[%s420 + $0x708] sm:$0xff] %v10703
      %11374 = vst [vmem:[%s420 + $0x710] sm:$0xff] %v10705
      %11375 = vst [vmem:[%s420 + $0x718] sm:$0xff] %v10707
      %11376 = vst [vmem:[%s420 + $0x720] sm:$0xff] %v10709
      %11377 = vst [vmem:[%s420 + $0x728] sm:$0xff] %v10711
      %11378 = vst.msk [vmem:[%s420 + $0x730] sm:$0xff] %vm1488, %v10713
      %11379 = vst [vmem:[%s420 + $0x738] sm:$0xff] %v10715
      %11380 = vst [vmem:[%s420 + $0x740] sm:$0xff] %v10717
      %11381 = vst [vmem:[%s420 + $0x748] sm:$0xff] %v10719
      %11382 = vst [vmem:[%s420 + $0x750] sm:$0xff] %v10721
      %11383 = vst [vmem:[%s420 + $0x758] sm:$0xff] %v10723
      %11384 = vst [vmem:[%s420 + $0x760] sm:$0xff] %v10725
      %11385 = vst.msk [vmem:[%s420 + $0x768] sm:$0xff] %vm1488, %v10727
      %11386 = vst [vmem:[%s420 + $0x770] sm:$0xff] %v10729
      %11387 = vst [vmem:[%s420 + $0x778] sm:$0xff] %v10731
      %11388 = vst [vmem:[%s420 + $0x780] sm:$0xff] %v10733
      %11389 = vst [vmem:[%s420 + $0x788] sm:$0xff] %v10735
      %11390 = vst [vmem:[%s420 + $0x790] sm:$0xff] %v10737
      %11391 = vst [vmem:[%s420 + $0x798] sm:$0xff] %v10739
      %11392 = vst.msk [vmem:[%s420 + $0x7a0] sm:$0xff] %vm1488, %v10741
      %11393 = vst [vmem:[%s420 + $0x7a8] sm:$0xff] %v10743
      %11394 = vst [vmem:[%s420 + $0x7b0] sm:$0xff] %v10745
      %11395 = vst [vmem:[%s420 + $0x7b8] sm:$0xff] %v10747
      %11396 = vst [vmem:[%s420 + $0x7c0] sm:$0xff] %v10749
      %11397 = vst [vmem:[%s420 + $0x7c8] sm:$0xff] %v10751
      %11398 = vst [vmem:[%s420 + $0x7d0] sm:$0xff] %v10753
      %11399 = vst.msk [vmem:[%s420 + $0x7d8] sm:$0xff] %vm1488, %v10755
      %11400 = vst [vmem:[%s420 + $0x7e0] sm:$0xff] %v10757
      %11401 = vst [vmem:[%s420 + $0x7e8] sm:$0xff] %v10759
      %11402 = vst [vmem:[%s420 + $0x7f0] sm:$0xff] %v10761
      %11403 = vst [vmem:[%s420 + $0x7f8] sm:$0xff] %v10763
      %11404 = vst [vmem:[%s420 + $0x800] sm:$0xff] %v10765
      %11405 = vst [vmem:[%s420 + $0x808] sm:$0xff] %v10767
      %11406 = vst.msk [vmem:[%s420 + $0x810] sm:$0xff] %vm1488, %v10769
      %11407 = vst [vmem:[%s420 + $0x818] sm:$0xff] %v10771
      %11408 = vst [vmem:[%s420 + $0x820] sm:$0xff] %v10773
      %11409 = vst [vmem:[%s420 + $0x828] sm:$0xff] %v10775
      %11410 = vst [vmem:[%s420 + $0x830] sm:$0xff] %v10777
      %11411 = vst [vmem:[%s420 + $0x838] sm:$0xff] %v10779
      %11412 = vst [vmem:[%s420 + $0x840] sm:$0xff] %v10781
      %11413 = vst.msk [vmem:[%s420 + $0x848] sm:$0xff] %vm1488, %v10783
      %11414 = vst [vmem:[%s420 + $0x850] sm:$0xff] %v10785
      %11415 = vst [vmem:[%s420 + $0x858] sm:$0xff] %v10787
      %11416 = vst [vmem:[%s420 + $0x860] sm:$0xff] %v10789
      %11417 = vst [vmem:[%s420 + $0x868] sm:$0xff] %v10791
      %11418 = vst [vmem:[%s420 + $0x870] sm:$0xff] %v10793
      %11419 = vst [vmem:[%s420 + $0x878] sm:$0xff] %v10795
      %11420 = vst.msk [vmem:[%s420 + $0x880] sm:$0xff] %vm1488, %v10797
      %11421 = vst [vmem:[%s420 + $0x888] sm:$0xff] %v10799
      %11422 = vst [vmem:[%s420 + $0x890] sm:$0xff] %v10801
      %11423 = vst [vmem:[%s420 + $0x898] sm:$0xff] %v10803
      %11424 = vst [vmem:[%s420 + $0x8a0] sm:$0xff] %v10805
      %11425 = vst [vmem:[%s420 + $0x8a8] sm:$0xff] %v10807
      %11426 = vst [vmem:[%s420 + $0x8b0] sm:$0xff] %v10809
      %11427 = vst.msk [vmem:[%s420 + $0x8b8] sm:$0xff] %vm1488, %v10811
      %11428 = vst [vmem:[%s420 + $0x8c0] sm:$0xff] %v10813
      %11429 = vst [vmem:[%s420 + $0x8c8] sm:$0xff] %v10815
      %11430 = vst [vmem:[%s420 + $0x8d0] sm:$0xff] %v10817
      %11431 = vst [vmem:[%s420 + $0x8d8] sm:$0xff] %v10819
      %11432 = vst [vmem:[%s420 + $0x8e0] sm:$0xff] %v10821
      %11433 = vst [vmem:[%s420 + $0x8e8] sm:$0xff] %v10823
      %11434 = vst.msk [vmem:[%s420 + $0x8f0] sm:$0xff] %vm1488, %v10825
      %11435 = vst [vmem:[%s420 + $0x8f8] sm:$0xff] %v10827
      %11436 = vst [vmem:[%s420 + $0x900] sm:$0xff] %v10829
      %11437 = vst [vmem:[%s420 + $0x908] sm:$0xff] %v10831
      %11438 = vst [vmem:[%s420 + $0x910] sm:$0xff] %v10833
      %11439 = vst [vmem:[%s420 + $0x918] sm:$0xff] %v10835
      %11440 = vst [vmem:[%s420 + $0x920] sm:$0xff] %v10837
      %11441 = vst.msk [vmem:[%s420 + $0x928] sm:$0xff] %vm1488, %v10839
      %11442 = vst [vmem:[%s420 + $0x930] sm:$0xff] %v10841
      %11443 = vst [vmem:[%s420 + $0x938] sm:$0xff] %v10843
      %11444 = vst [vmem:[%s420 + $0x940] sm:$0xff] %v10845
      %11445 = vst [vmem:[%s420 + $0x948] sm:$0xff] %v10847
      %11446 = vst [vmem:[%s420 + $0x950] sm:$0xff] %v10849
      %11447 = vst [vmem:[%s420 + $0x958] sm:$0xff] %v10851
      %11448 = vst.msk [vmem:[%s420 + $0x960] sm:$0xff] %vm1488, %v10853
      %11449 = vst [vmem:[%s420 + $0x968] sm:$0xff] %v10855
      %11450 = vst [vmem:[%s420 + $0x970] sm:$0xff] %v10857
      %11451 = vst [vmem:[%s420 + $0x978] sm:$0xff] %v10859
      %11452 = vst [vmem:[%s420 + $0x980] sm:$0xff] %v10861
      %11453 = vst [vmem:[%s420 + $0x988] sm:$0xff] %v10863
      %11454 = vst [vmem:[%s420 + $0x990] sm:$0xff] %v10865
      %11455 = vst.msk [vmem:[%s420 + $0x998] sm:$0xff] %vm1488, %v10867
      %11456 = vst [vmem:[%s420 + $0x9a0] sm:$0xff] %v10869
      %11457 = vst [vmem:[%s420 + $0x9a8] sm:$0xff] %v10871
      %11458 = vst [vmem:[%s420 + $0x9b0] sm:$0xff] %v10873
      %11459 = vst [vmem:[%s420 + $0x9b8] sm:$0xff] %v10875
      %11460 = vst [vmem:[%s420 + $0x9c0] sm:$0xff] %v10877
      %11461 = vst [vmem:[%s420 + $0x9c8] sm:$0xff] %v10879
      %11462 = vst.msk [vmem:[%s420 + $0x9d0] sm:$0xff] %vm1488, %v10881
      %11463 = vst [vmem:[%s420 + $0x9d8] sm:$0xff] %v10883
      %11464 = vst [vmem:[%s420 + $0x9e0] sm:$0xff] %v10885
      %11465 = vst [vmem:[%s420 + $0x9e8] sm:$0xff] %v10887
      %11466 = vst [vmem:[%s420 + $0x9f0] sm:$0xff] %v10889
      %11467 = vst [vmem:[%s420 + $0x9f8] sm:$0xff] %v10891
      %11468 = vst [vmem:[%s420 + $0xa00] sm:$0xff] %v10893
      %11469 = vst.msk [vmem:[%s420 + $0xa08] sm:$0xff] %vm1488, %v10895
      %11470 = vst [vmem:[%s420 + $0xa10] sm:$0xff] %v10897
      %11471 = vst [vmem:[%s420 + $0xa18] sm:$0xff] %v10899
      %11472 = vst [vmem:[%s420 + $0xa20] sm:$0xff] %v10901
      %11473 = vst [vmem:[%s420 + $0xa28] sm:$0xff] %v10903
      %11474 = vst [vmem:[%s420 + $0xa30] sm:$0xff] %v10905
      %11475 = vst [vmem:[%s420 + $0xa38] sm:$0xff] %v10907
      %11476 = vst.msk [vmem:[%s420 + $0xa40] sm:$0xff] %vm1488, %v10909
      %11477 = vst [vmem:[%s420 + $0xa48] sm:$0xff] %v10911
      %11478 = vst [vmem:[%s420 + $0xa50] sm:$0xff] %v10913
      %11479 = vst [vmem:[%s420 + $0xa58] sm:$0xff] %v10915
      %11480 = vst [vmem:[%s420 + $0xa60] sm:$0xff] %v10917
      %11481 = vst [vmem:[%s420 + $0xa68] sm:$0xff] %v10919
      %11482 = vst [vmem:[%s420 + $0xa70] sm:$0xff] %v10921
      %11483 = vst.msk [vmem:[%s420 + $0xa78] sm:$0xff] %vm1488, %v10923
      %11484 = vst [vmem:[%s420 + $0xa80] sm:$0xff] %v10925
      %11485 = vst [vmem:[%s420 + $0xa88] sm:$0xff] %v10927
      %11486 = vst [vmem:[%s420 + $0xa90] sm:$0xff] %v10929
      %11487 = vst [vmem:[%s420 + $0xa98] sm:$0xff] %v10931
      %11488 = vst [vmem:[%s420 + $0xaa0] sm:$0xff] %v10933
      %11489 = vst [vmem:[%s420 + $0xaa8] sm:$0xff] %v10935
      %11490 = vst.msk [vmem:[%s420 + $0xab0] sm:$0xff] %vm1488, %v10937
      %11491 = vst [vmem:[%s420 + $0xab8] sm:$0xff] %v10939
      %11492 = vst [vmem:[%s420 + $0xac0] sm:$0xff] %v10941
      %11493 = vst [vmem:[%s420 + $0xac8] sm:$0xff] %v10943
      %11494 = vst [vmem:[%s420 + $0xad0] sm:$0xff] %v10945
      %11495 = vst [vmem:[%s420 + $0xad8] sm:$0xff] %v10947
      %11496 = vst [vmem:[%s420 + $0xae0] sm:$0xff] %v10949
      %11497 = vst.msk [vmem:[%s420 + $0xae8] sm:$0xff] %vm1488, %v10951
      %11498 = vst [vmem:[%s420 + $0xaf0] sm:$0xff] %v10953
      %11499 = vst [vmem:[%s420 + $0xaf8] sm:$0xff] %v10955
      %11500 = vst [vmem:[%s420 + $0xb00] sm:$0xff] %v10957
      %11501 = vst [vmem:[%s420 + $0xb08] sm:$0xff] %v10959
      %11502 = vst [vmem:[%s420 + $0xb10] sm:$0xff] %v10961
      %11503 = vst [vmem:[%s420 + $0xb18] sm:$0xff] %v10963
      %11504 = vst.msk [vmem:[%s420 + $0xb20] sm:$0xff] %vm1488, %v10965
      %11505 = vst [vmem:[%s420 + $0xb28] sm:$0xff] %v10967
      %11506 = vst [vmem:[%s420 + $0xb30] sm:$0xff] %v10969
      %11507 = vst [vmem:[%s420 + $0xb38] sm:$0xff] %v10971
      %11508 = vst [vmem:[%s420 + $0xb40] sm:$0xff] %v10973
      %11509 = vst [vmem:[%s420 + $0xb48] sm:$0xff] %v10975
      %11510 = vst [vmem:[%s420 + $0xb50] sm:$0xff] %v10977
      %11511 = vst.msk [vmem:[%s420 + $0xb58] sm:$0xff] %vm1488, %v10979
      %11512 = vst [vmem:[%s420 + $0xb60] sm:$0xff] %v10981
      %11513 = vst [vmem:[%s420 + $0xb68] sm:$0xff] %v10983
      %11514 = vst [vmem:[%s420 + $0xb70] sm:$0xff] %v10985
      %11515 = vst [vmem:[%s420 + $0xb78] sm:$0xff] %v10987
      %11516 = vst [vmem:[%s420 + $0xb80] sm:$0xff] %v10989
      %11517 = vst [vmem:[%s420 + $0xb88] sm:$0xff] %v10991
      %11518 = vst.msk [vmem:[%s420 + $0xb90] sm:$0xff] %vm1488, %v10993
      %11519 = vst [vmem:[%s420 + $0xb98] sm:$0xff] %v10995
      %11520 = vst [vmem:[%s420 + $0xba0] sm:$0xff] %v10997
      %11521 = vst [vmem:[%s420 + $0xba8] sm:$0xff] %v10999
      %11522 = vst [vmem:[%s420 + $0xbb0] sm:$0xff] %v11001
      %11523 = vst [vmem:[%s420 + $0xbb8] sm:$0xff] %v11003
      %11524 = vst [vmem:[%s420 + $0xbc0] sm:$0xff] %v11005
      %11525 = vst.msk [vmem:[%s420 + $0xbc8] sm:$0xff] %vm1488, %v11007
      %11526 = vst [vmem:[%s420 + $0xbd0] sm:$0xff] %v11009
      %11527 = vst [vmem:[%s420 + $0xbd8] sm:$0xff] %v11011
      %11528 = vst [vmem:[%s420 + $0xbe0] sm:$0xff] %v11013
      %11529 = vst [vmem:[%s420 + $0xbe8] sm:$0xff] %v11015
      %11530 = vst [vmem:[%s420 + $0xbf0] sm:$0xff] %v11017
      %11531 = vst [vmem:[%s420 + $0xbf8] sm:$0xff] %v11019
      %11532 = vst.msk [vmem:[%s420 + $0xc00] sm:$0xff] %vm1488, %v11021
      %11533 = vst [vmem:[%s420 + $0xc08] sm:$0xff] %v11023
      %11534 = vst [vmem:[%s420 + $0xc10] sm:$0xff] %v11025
      %11535 = vst [vmem:[%s420 + $0xc18] sm:$0xff] %v11027
      %11536 = vst [vmem:[%s420 + $0xc20] sm:$0xff] %v11029
      %11537 = vst [vmem:[%s420 + $0xc28] sm:$0xff] %v11031
      %11538 = vst [vmem:[%s420 + $0xc30] sm:$0xff] %v11033
      %11539 = vst.msk [vmem:[%s420 + $0xc38] sm:$0xff] %vm1488, %v11035
      %11540 = vst [vmem:[%s420 + $0xc40] sm:$0xff] %v11037
      %11541 = vst [vmem:[%s420 + $0xc48] sm:$0xff] %v11039
      %11542 = vst [vmem:[%s420 + $0xc50] sm:$0xff] %v11041
      %11543 = vst [vmem:[%s420 + $0xc58] sm:$0xff] %v11043
      %11544 = vst [vmem:[%s420 + $0xc60] sm:$0xff] %v11045
      %11545 = vst [vmem:[%s420 + $0xc68] sm:$0xff] %v11047
      %11546 = vst.msk [vmem:[%s420 + $0xc70] sm:$0xff] %vm1488, %v11049
      %11547 = vst [vmem:[%s420 + $0xc78] sm:$0xff] %v11051
      %11548 = vst [vmem:[%s420 + $0xc80] sm:$0xff] %v11053
      %11549 = vst [vmem:[%s420 + $0xc88] sm:$0xff] %v11055
      %11550 = vst [vmem:[%s420 + $0xc90] sm:$0xff] %v11057
      %11551 = vst [vmem:[%s420 + $0xc98] sm:$0xff] %v11059
      %11552 = vst [vmem:[%s420 + $0xca0] sm:$0xff] %v11061
      %11553 = vst.msk [vmem:[%s420 + $0xca8] sm:$0xff] %vm1488, %v11063
      %11554 = vst [vmem:[%s420 + $0xcb0] sm:$0xff] %v11065
      %11555 = vst [vmem:[%s420 + $0xcb8] sm:$0xff] %v11067
      %11556 = vst [vmem:[%s420 + $0xcc0] sm:$0xff] %v11069
      %11557 = vst [vmem:[%s420 + $0xcc8] sm:$0xff] %v11071
      %11558 = vst [vmem:[%s420 + $0xcd0] sm:$0xff] %v11073
      %11559 = vst [vmem:[%s420 + $0xcd8] sm:$0xff] %v11075
      %11560 = vst.msk [vmem:[%s420 + $0xce0] sm:$0xff] %vm1488, %v11077
      %11561 = vst [vmem:[%s420 + $0xce8] sm:$0xff] %v11079
      %11562 = vst [vmem:[%s420 + $0xcf0] sm:$0xff] %v11081
      %11563 = vst [vmem:[%s420 + $0xcf8] sm:$0xff] %v11083
      %11564 = vst [vmem:[%s420 + $0xd00] sm:$0xff] %v11085
      %11565 = vst [vmem:[%s420 + $0xd08] sm:$0xff] %v11087
      %11566 = vst [vmem:[%s420 + $0xd10] sm:$0xff] %v11089
      %11567 = vst.msk [vmem:[%s420 + $0xd18] sm:$0xff] %vm1488, %v11091
      %11568 = vst [vmem:[%s420 + $0xd20] sm:$0xff] %v11093
      %11569 = vst [vmem:[%s420 + $0xd28] sm:$0xff] %v11095
      %11570 = vst [vmem:[%s420 + $0xd30] sm:$0xff] %v11097
      %11571 = vst [vmem:[%s420 + $0xd38] sm:$0xff] %v11099
      %11572 = vst [vmem:[%s420 + $0xd40] sm:$0xff] %v11101
      %11573 = vst [vmem:[%s420 + $0xd48] sm:$0xff] %v11103
      %11574 = vst.msk [vmem:[%s420 + $0xd50] sm:$0xff] %vm1488, %v11105
      %11575 = vst [vmem:[%s420 + $0xd58] sm:$0xff] %v11107
      %11576 = vst [vmem:[%s420 + $0xd60] sm:$0xff] %v11109
      %11577 = vst [vmem:[%s420 + $0xd68] sm:$0xff] %v11111
      %11578 = vst [vmem:[%s420 + $0xd70] sm:$0xff] %v11113
      %11579 = vst [vmem:[%s420 + $0xd78] sm:$0xff] %v11115
      %11580 = vst [vmem:[%s420 + $0xd80] sm:$0xff] %v11117
      %11581 = vst.msk [vmem:[%s420 + $0xd88] sm:$0xff] %vm1488, %v11119
      %11582 = vst [vmem:[%s420 + $0xd90] sm:$0xff] %v11121
      %11583 = vst [vmem:[%s420 + $0xd98] sm:$0xff] %v11123
      %11584 = vst [vmem:[%s420 + $0xda0] sm:$0xff] %v11125
      %11585 = vst [vmem:[%s420 + $0xda8] sm:$0xff] %v11127
      %11586 = vst [vmem:[%s420 + $0xdb0] sm:$0xff] %v11129
      %11587 = vst [vmem:[%s420 + $0xdb8] sm:$0xff] %v11131
      %11588 = vst.msk [vmem:[%s420 + $0xdc0] sm:$0xff] %vm1488, %v11133
      %11589 = vst [vmem:[%s420 + $0xdc8] sm:$0xff] %v11135
      %11590 = vst [vmem:[%s420 + $0xdd0] sm:$0xff] %v11137
      %11591 = vst [vmem:[%s420 + $0xdd8] sm:$0xff] %v11139
      %11592 = vst [vmem:[%s420 + $0xde0] sm:$0xff] %v11141
      %11593 = vst [vmem:[%s420 + $0xde8] sm:$0xff] %v11143
      %11594 = vst [vmem:[%s420 + $0xdf0] sm:$0xff] %v11145
      %11595 = vst.msk [vmem:[%s420 + $0xdf8] sm:$0xff] %vm1488, %v11147
      %s11596 = smul.u32 64, %s23
      %p11597 = scmp.lt.s32.totalorder %s11596, 127
      %s11598 = scalar_select %p11597, %s11596, 127
      %s11599 = smul.addr %s11598, 7
      %s11600 = smul.addr %s11599, 8
      %s11601 = scalar_lea.vmem %s12, %s11600
      // Predicated region
      $region69: #{autoencoder_forward.1} parent=67 // pred_check
        %p11602 = pneg %p298
      $region70: #{autoencoder_forward.1} parent=67 // pred_check_branch
        %11604 = sbr.rel (%p11602) target = $region72
      $region71: #{autoencoder_forward.1} parent=67 // pred_region
        %s11605 = smul.u32 64, %s23
      $region72: #{autoencoder_forward.1} parent=67 // pred_fallthru
        _
    $region68: #{autoencoder_forward.1} parent=5 // pred_fallthru
      _
    %p11606 = scmp.le.s32.totalorder 2, %s18
    // Predicated region
    $region73: #{autoencoder_forward.1} parent=5 // pred_check
      %p11607 = pneg %p11606
    $region74: #{autoencoder_forward.1} parent=5 // pred_check_branch
      %11609 = sbr.rel (%p11607) target = $region76
    $region75: #{autoencoder_forward.1} parent=5 // pred_region
      %s11610 = ssub.s32 %s18, 2
      // Predicated region
      $region77: #{autoencoder_forward.1} parent=75 // pred_check
        %p11611 = pneg %p304
      $region78: #{autoencoder_forward.1} parent=75 // pred_check_branch
        %11613 = sbr.rel (%p11611) target = $region80
      $region79: #{autoencoder_forward.1} parent=75 // pred_region
        %s11614 = smul.u32 64, %s24
        %p11615 = scmp.lt.s32.totalorder %s11614, 127
        %s11616 = scalar_select %p11615, %s11614, 127
        %s11617 = smul.addr %s11616, 7
        %s11618 = smul.addr %s11617, 8
        %s11619 = scalar_lea.vmem %s12, %s11618
      $region80: #{autoencoder_forward.1} parent=75 // pred_fallthru
        _
    $region76: #{autoencoder_forward.1} parent=5 // pred_fallthru
      _
  $region6: #{autoencoder_forward.1} parent=0 // loop_footer
    %s22 = sadd.s32 1, %s18
  $region7: #{autoencoder_forward.1} parent=0 // loop_footer_branch
    %17 = sbr.rel target = $region3
  $region8: #{autoencoder_forward.1} parent=0 // loop_exit
    _

</llo_original>
